<compile_context>
chip_gen: v7x
topology: tpu7x:2x2x1
jax: 0.10.0
libtpu: 0.0.40
codegen_flags: <defaults>
</compile_context>

<pallas_src>
import functools

import jax
import jax.numpy as jnp
from jax.experimental import pallas as pl
from jax.experimental.pallas import tpu as pltpu


def _round_up(x, m):
    return ((x + m - 1) // m) * m


# ----------------------------------------------------------------------------
# Pallas kernel: chained matmuls + fused LeakyReLU / residual epilogue
# ----------------------------------------------------------------------------
def _make_chain_kernel(n_w, has_res, acts, alpha):
    def kernel(*refs):
        a_ref = refs[0]
        w_refs = refs[1:1 + n_w]
        res_ref = refs[1 + n_w] if has_res else None
        o_ref = refs[-1]
        h = a_ref[...]
        for i in range(n_w):
            wmat = w_refs[i][...]
            h = jnp.dot(h.astype(wmat.dtype), wmat,
                        preferred_element_type=jnp.float32)
            if acts[i]:
                h = jnp.where(h >= 0, h, alpha * h)       # fused LeakyReLU(0.1)
        if has_res:
            h = h + res_ref[...].astype(jnp.float32)      # fused residual add
        o_ref[...] = h.astype(o_ref.dtype)
    return kernel


def pallas_matmul_chain(a, ws, acts, residual=None, *, alpha=0.1,
                        out_dtype=jnp.bfloat16, tm_max=512):
    """out = (act) (... (act)(A @ W0) @ W1 ...) [+ residual], one Pallas kernel.

    a: (M, K0) activations (bf16), ws[i]: (K_i, K_{i+1}) weights (resident in
    VMEM across the grid), acts[i]: apply LeakyReLU(alpha) after dot i,
    residual: optional (M, N) added after the last dot.

    Grid is 1-D over M only ("parallel").  K / N block dims equal the full
    (small) array dims; the M remainder is handled by a ragged grid with
    masked writeback, so no HBM padding or slicing is materialized.
    """
    M, K0 = a.shape
    N = ws[-1].shape[1]
    n_w = len(ws)
    has_res = residual is not None

    # >= 2 grid steps whenever M allows (v7x megacore), capped at tm_max.
    # VMEM check: tm*K0 bf16 double-buffered + resident weights + (tm,N) out
    # is well under 1 MiB here - far below even v7x's 64 MiB.
    tm = max(16, min(tm_max, _round_up(-(-M // 2), 16)))
    grid_m = pl.cdiv(M, tm)

    in_specs = [pl.BlockSpec((tm, K0), lambda i: (i, 0))]
    for wmat in ws:
        in_specs.append(pl.BlockSpec(wmat.shape, lambda i: (0, 0)))
    if has_res:
        in_specs.append(pl.BlockSpec((tm, N), lambda i: (i, 0)))

    args = [a, *ws] + ([residual] if has_res else [])
    return pl.pallas_call(
        _make_chain_kernel(n_w, has_res, tuple(acts), alpha),
        out_shape=jax.ShapeDtypeStruct((M, N), out_dtype),
        grid_spec=pltpu.PrefetchScalarGridSpec(
            num_scalar_prefetch=0,
            grid=(grid_m,),
            in_specs=in_specs,
            out_specs=pl.BlockSpec((tm, N), lambda i: (i, 0))),
        compiler_params=pltpu.CompilerParams(
            dimension_semantics=("parallel",)),
    )(*args)


# ----------------------------------------------------------------------------
# Channels-last im2col (XLA glue; no NCHW transposes needed between convs)
# ----------------------------------------------------------------------------
def im2col_cl(x_cl, kh, kw, ph, pw):
    """x_cl: (N, H, W, C) -> (N*Ho*Wo, kh*kw*C); patch order (kh, kw, C)
    matches prepare_params' weight layout."""
    # TODO(synk): for larger C, move patch extraction into the kernel (DMA a
    # haloed tile, form shifted views with ref[pl.ds(...)]) to kill the
    # kh*kw HBM expansion.
    N, H, W, C = x_cl.shape
    xp = jnp.pad(x_cl, ((0, 0), (ph, ph), (pw, pw), (0, 0)))
    Ho = H + 2 * ph - kh + 1
    Wo = W + 2 * pw - kw + 1
    cols = [xp[:, i:i + Ho, j:j + Wo, :] for i in range(kh) for j in range(kw)]
    patches = jnp.stack(cols, axis=3)               # (N, Ho, Wo, kh*kw, C)
    return patches.reshape(N * Ho * Wo, kh * kw * C)


# ----------------------------------------------------------------------------
# One-time parameter preparation (hoisted out of the forward)
# ----------------------------------------------------------------------------
def _pad_hidden(w1, w2, mult=16):
    """Zero-pad the chained hidden dim (w1 cols / w2 rows) to `mult`; numerics
    are unchanged (zero columns pass LeakyReLU as 0 and contribute nothing)."""
    hd = w1.shape[1]
    hp = _round_up(hd, mult)
    if hp == hd:
        return w1, w2
    w1p = jnp.zeros((w1.shape[0], hp), w1.dtype).at[:, :hd].set(w1)
    w2p = jnp.zeros((hp, w2.shape[1]), w2.dtype).at[:hd, :].set(w2)
    return w1p, w2p


def prepare_params(params, dtype=jnp.bfloat16):
    """(Cout, Cin, kh, kw) -> channels-last matmul layout (kh*kw*Cin, Cout),
    cast to bf16, with the AngConv/EpiConv chained hidden dims padded."""
    def prep(wt):
        co, ci, kh, kw = wt.shape
        return wt.transpose(2, 3, 1, 0).reshape(kh * kw * ci, co).astype(dtype)

    pp = {k: prep(v) for k, v in params.items()}
    pp['ang_w1'], pp['ang_w2'] = _pad_hidden(pp['ang_w1'], pp['ang_w2'])
    pp['epi_w1'], pp['epi_w2'] = _pad_hidden(pp['epi_w1'], pp['epi_w2'])
    return pp


def init_params(key, angRes, channels):
    C, A = channels, angRes
    ks = jax.random.split(key, 8)

    def w(k, shape):
        fan_in = shape[1] * shape[2] * shape[3]
        return jax.random.normal(k, shape, jnp.float32) / jnp.sqrt(jnp.float32(fan_in))

    return {
        'spa_w1':  w(ks[0], (C, C, 3, 3)),
        'spa_w2':  w(ks[1], (C, C, 3, 3)),
        'ang_w1':  w(ks[2], (C // 4, C, A, A)),
        'ang_w2':  w(ks[3], (A * A * (C // 4), C // 4, 1, 1)),
        'epi_w1':  w(ks[4], (C // 2, C, A, A)),
        'epi_w2':  w(ks[5], (A * (C // 2), C // 2, 1, 1)),
        'fuse_w1': w(ks[6], (C, 2 * C + C // 4, 1, 1)),
        'fuse_w2': w(ks[7], (C, C, 3, 3)),
    }


# ----------------------------------------------------------------------------
# DistgBlock forward (6 Pallas kernel launches total)
# ----------------------------------------------------------------------------
def distg_block_forward(x, pp, angRes):
    b, u, v, c, h, w = x.shape
    A = angRes
    assert A % 2 == 1 and u == A and v == A
    c4, c2 = c // 4, c // 2
    M = b * u * v * h * w

    # channels-last views of the input (bf16 for the MXU, f32 for the residual)
    x_cl = x.transpose(0, 1, 2, 4, 5, 3)                      # (b,u,v,h,w,c) f32
    res_flat = x_cl.reshape(M, c)                             # residual (f32)
    x_bf = x.astype(jnp.bfloat16)

    # ---- SpaConv: two 3x3 convs + LeakyReLU on (b u v) images ----
    x_spa = x_cl.astype(jnp.bfloat16).reshape(b * u * v, h, w, c)
    s1 = pallas_matmul_chain(im2col_cl(x_spa, 3, 3, 1, 1), [pp['spa_w1']], [True])
    spa_flat = pallas_matmul_chain(
        im2col_cl(s1.reshape(b * u * v, h, w, c), 3, 3, 1, 1),
        [pp['spa_w2']], [True])                               # (M, c), (b,u,v,h,w) order

    # ---- AngConv: AxA conv -> 1x1 conv (+ LeakyReLUs) fused in ONE kernel;
    #      PixelShuffle(A) is a pure reshape afterwards ----
    x_ang = x_bf.transpose(0, 4, 5, 1, 2, 3).reshape(b * h * w, u * v * c)
    ang = pallas_matmul_chain(x_ang, [pp['ang_w1'], pp['ang_w2']], [True, True])
    # ang: (b*h*w, A*A*c4), channel order (c4, u, v)
    ang_flat = (ang.reshape(b, h, w, c4, A, A)
                   .transpose(0, 4, 5, 1, 2, 3).reshape(M, c4))

    # ---- EpiConv (shared weights; horizontal + vertical in ONE kernel) ----
    x_eh = x_bf.transpose(0, 1, 4, 2, 5, 3).reshape(b * u * h, v, w, c)  # (b u h) v w c
    x_ev = x_bf.transpose(0, 2, 5, 1, 4, 3).reshape(b * v * w, u, h, c)  # epi on x^T
    ae_h = im2col_cl(x_eh, A, A, 0, A // 2)                   # (b*u*h*w, A*A*c)
    ae_v = im2col_cl(x_ev, A, A, 0, A // 2)                   # (b*v*w*h, A*A*c)
    Mh = ae_h.shape[0]
    ee = pallas_matmul_chain(jnp.concatenate([ae_h, ae_v], axis=0),
                             [pp['epi_w1'], pp['epi_w2']], [True, True])
    # ee: (., A*c2), channel order (c2, A)  (PixelShuffle1D layout)
    epih_flat = (ee[:Mh].reshape(b, u, h, w, c2, A)
                        .transpose(0, 1, 5, 2, 3, 4).reshape(M, c2))
    epiv_flat = (ee[Mh:].reshape(b, v, w, h, c2, A)
                        .transpose(0, 5, 1, 3, 2, 4).reshape(M, c2))

    # ---- Fuse: narrow channel-last concat -> 1x1 conv + LeakyReLU
    #      -> 3x3 conv with the residual add fused into its epilogue ----
    fea = jnp.concatenate([spa_flat, ang_flat, epih_flat, epiv_flat], axis=-1)
    f1 = pallas_matmul_chain(fea, [pp['fuse_w1']], [True])    # (M, c)
    out_flat = pallas_matmul_chain(
        im2col_cl(f1.reshape(b * u * v, h, w, c), 3, 3, 1, 1),
        [pp['fuse_w2']], [False], residual=res_flat, out_dtype=jnp.float32)
    return out_flat.reshape(b, u, v, h, w, c).transpose(0, 1, 2, 5, 3, 4)


if __name__ == "__main__":
    angRes = 5
    channels = 8
    b, h, w = 2, 8, 8

    key = jax.random.PRNGKey(0)
    kx, kp = jax.random.split(key)
    x = jax.random.normal(kx, (b, angRes, angRes, channels, h, w), jnp.float32)
    params = init_params(kp, angRes, channels)
    pp = prepare_params(params)     # weight reshape / bf16 cast hoisted out

    fwd = jax.jit(functools.partial(distg_block_forward, angRes=angRes))
    out = fwd(x, pp)
    jax.block_until_ready(out)
    assert out.shape == x.shape and out.dtype == jnp.float32
    print("KERNEL_OK")
</pallas_src>

<mosaic_0001>
module attributes {stable_mosaic.version = 11 : i64} {
  func.func @kernel(%arg0: i32, %arg1: memref<512x200xbf16, #tpu.memory_space<vmem>>, %arg2: memref<200x16xbf16, #tpu.memory_space<vmem>>, %arg3: memref<16x20xbf16, #tpu.memory_space<vmem>>, %arg4: memref<512x20xbf16, #tpu.memory_space<vmem>>) attributes {dimension_semantics = [#tpu.dimension_semantics<parallel>], iteration_bounds = array<i64: 3>, scalar_prefetch = 0 : i64, scratch_operands = 0 : i64, tpu.core_type = #tpu.core_type<tc>, window_params = [{transform_indices = @transform_0, window_bounds = array<i64: 512, 200>}, {pipeline_mode = #tpu.pipeline_mode<synchronous>, transform_indices = @transform_1, window_bounds = array<i64: 200, 16>}, {pipeline_mode = #tpu.pipeline_mode<synchronous>, transform_indices = @transform_2, window_bounds = array<i64: 16, 20>}, {transform_indices = @transform_3, window_bounds = array<i64: 512, 20>}]} {
    %c0 = arith.constant 0 : index
    %c0_0 = arith.constant 0 : index
    %0 = vector.load %arg1[%c0, %c0_0] : memref<512x200xbf16, #tpu.memory_space<vmem>>, vector<512x200xbf16>
    %c0_1 = arith.constant 0 : index
    %c0_2 = arith.constant 0 : index
    %1 = vector.load %arg2[%c0_1, %c0_2] : memref<200x16xbf16, #tpu.memory_space<vmem>>, vector<200x16xbf16>
    %cst = arith.constant dense<0.000000e+00> : vector<512x16xf32>
    %2 = tpu.matmul %0, %1, %cst {dimension_numbers = #tpu.dot_dimension_numbers<[1], [0], [0], [1], [0, 0, 1, 1], [], []>} : vector<512x200xbf16>, vector<200x16xbf16>, vector<512x16xf32> -> vector<512x16xf32>
    %cst_3 = arith.constant 0.000000e+00 : f32
    %3 = vector.broadcast %cst_3 : f32 to vector<512x16xf32>
    %4 = arith.cmpf oge, %2, %3 : vector<512x16xf32>
    %cst_4 = arith.constant 1.000000e-01 : f32
    %5 = vector.broadcast %cst_4 : f32 to vector<512x16xf32>
    %6 = arith.mulf %5, %2 : vector<512x16xf32>
    %7 = arith.select %4, %2, %6 : vector<512x16xi1>, vector<512x16xf32>
    %c0_5 = arith.constant 0 : index
    %c0_6 = arith.constant 0 : index
    %8 = vector.load %arg3[%c0_5, %c0_6] : memref<16x20xbf16, #tpu.memory_space<vmem>>, vector<16x20xbf16>
    %9 = arith.truncf %7 : vector<512x16xf32> to vector<512x16xbf16>
    %cst_7 = arith.constant dense<0.000000e+00> : vector<512x20xf32>
    %10 = tpu.matmul %9, %8, %cst_7 {dimension_numbers = #tpu.dot_dimension_numbers<[1], [0], [0], [1], [0, 0, 1, 1], [], []>} : vector<512x16xbf16>, vector<16x20xbf16>, vector<512x20xf32> -> vector<512x20xf32>
    %cst_8 = arith.constant 0.000000e+00 : f32
    %11 = vector.broadcast %cst_8 : f32 to vector<512x20xf32>
    %12 = arith.cmpf oge, %10, %11 : vector<512x20xf32>
    %cst_9 = arith.constant 1.000000e-01 : f32
    %13 = vector.broadcast %cst_9 : f32 to vector<512x20xf32>
    %14 = arith.mulf %13, %10 : vector<512x20xf32>
    %15 = arith.select %12, %10, %14 : vector<512x20xi1>, vector<512x20xf32>
    %16 = arith.truncf %15 : vector<512x20xf32> to vector<512x20xbf16>
    %c0_10 = arith.constant 0 : index
    %c0_11 = arith.constant 0 : index
    %17 = vector.load %arg4[%c0_10, %c0_11] : memref<512x20xbf16, #tpu.memory_space<vmem>>, vector<512x20xbf16>
    tpu.vector_store %arg4[%c0_10, %c0_11], %16 {strides = array<i32>} : memref<512x20xbf16, #tpu.memory_space<vmem>>, vector<512x20xbf16>,
    return
  }
  func.func @transform_0(%arg0: i32) -> (i32, i32) {
    %c0_i32 = arith.constant 0 : i32
    %c0_i32_0 = arith.constant 0 : i32
    return %arg0, %c0_i32 : i32, i32
  }
  func.func @transform_1(%arg0: i32) -> (i32, i32) {
    %c0_i32 = arith.constant 0 : i32
    %c0_i32_0 = arith.constant 0 : i32
    %c0_i32_1 = arith.constant 0 : i32
    return %c0_i32, %c0_i32_0 : i32, i32
  }
  func.func @transform_2(%arg0: i32) -> (i32, i32) {
    %c0_i32 = arith.constant 0 : i32
    %c0_i32_0 = arith.constant 0 : i32
    %c0_i32_1 = arith.constant 0 : i32
    return %c0_i32, %c0_i32_0 : i32, i32
  }
  func.func @transform_3(%arg0: i32) -> (i32, i32) {
    %c0_i32 = arith.constant 0 : i32
    %c0_i32_0 = arith.constant 0 : i32
    return %arg0, %c0_i32 : i32, i32
  }
}

module attributes {stable_mosaic.version = 11 : i64} {
  func.func @kernel(%arg0: i32, %arg1: memref<64x200xbf16, #tpu.memory_space<vmem>>, %arg2: memref<200x16xbf16, #tpu.memory_space<vmem>>, %arg3: memref<16x50xbf16, #tpu.memory_space<vmem>>, %arg4: memref<64x50xbf16, #tpu.memory_space<vmem>>) attributes {dimension_semantics = [#tpu.dimension_semantics<parallel>], iteration_bounds = array<i64: 2>, scalar_prefetch = 0 : i64, scratch_operands = 0 : i64, tpu.core_type = #tpu.core_type<tc>, window_params = [{transform_indices = @transform_0, window_bounds = array<i64: 64, 200>}, {pipeline_mode = #tpu.pipeline_mode<synchronous>, transform_indices = @transform_1, window_bounds = array<i64: 200, 16>}, {pipeline_mode = #tpu.pipeline_mode<synchronous>, transform_indices = @transform_2, window_bounds = array<i64: 16, 50>}, {transform_indices = @transform_3, window_bounds = array<i64: 64, 50>}]} {
    %c0 = arith.constant 0 : index
    %c0_0 = arith.constant 0 : index
    %0 = vector.load %arg1[%c0, %c0_0] : memref<64x200xbf16, #tpu.memory_space<vmem>>, vector<64x200xbf16>
    %c0_1 = arith.constant 0 : index
    %c0_2 = arith.constant 0 : index
    %1 = vector.load %arg2[%c0_1, %c0_2] : memref<200x16xbf16, #tpu.memory_space<vmem>>, vector<200x16xbf16>
    %cst = arith.constant dense<0.000000e+00> : vector<64x16xf32>
    %2 = tpu.matmul %0, %1, %cst {dimension_numbers = #tpu.dot_dimension_numbers<[1], [0], [0], [1], [0, 0, 1, 1], [], []>} : vector<64x200xbf16>, vector<200x16xbf16>, vector<64x16xf32> -> vector<64x16xf32>
    %cst_3 = arith.constant 0.000000e+00 : f32
    %3 = vector.broadcast %cst_3 : f32 to vector<64x16xf32>
    %4 = arith.cmpf oge, %2, %3 : vector<64x16xf32>
    %cst_4 = arith.constant 1.000000e-01 : f32
    %5 = vector.broadcast %cst_4 : f32 to vector<64x16xf32>
    %6 = arith.mulf %5, %2 : vector<64x16xf32>
    %7 = arith.select %4, %2, %6 : vector<64x16xi1>, vector<64x16xf32>
    %c0_5 = arith.constant 0 : index
    %c0_6 = arith.constant 0 : index
    %8 = vector.load %arg3[%c0_5, %c0_6] : memref<16x50xbf16, #tpu.memory_space<vmem>>, vector<16x50xbf16>
    %9 = arith.truncf %7 : vector<64x16xf32> to vector<64x16xbf16>
    %cst_7 = arith.constant dense<0.000000e+00> : vector<64x50xf32>
    %10 = tpu.matmul %9, %8, %cst_7 {dimension_numbers = #tpu.dot_dimension_numbers<[1], [0], [0], [1], [0, 0, 1, 1], [], []>} : vector<64x16xbf16>, vector<16x50xbf16>, vector<64x50xf32> -> vector<64x50xf32>
    %cst_8 = arith.constant 0.000000e+00 : f32
    %11 = vector.broadcast %cst_8 : f32 to vector<64x50xf32>
    %12 = arith.cmpf oge, %10, %11 : vector<64x50xf32>
    %cst_9 = arith.constant 1.000000e-01 : f32
    %13 = vector.broadcast %cst_9 : f32 to vector<64x50xf32>
    %14 = arith.mulf %13, %10 : vector<64x50xf32>
    %15 = arith.select %12, %10, %14 : vector<64x50xi1>, vector<64x50xf32>
    %16 = arith.truncf %15 : vector<64x50xf32> to vector<64x50xbf16>
    %c0_10 = arith.constant 0 : index
    %c0_11 = arith.constant 0 : index
    %17 = vector.load %arg4[%c0_10, %c0_11] : memref<64x50xbf16, #tpu.memory_space<vmem>>, vector<64x50xbf16>
    tpu.vector_store %arg4[%c0_10, %c0_11], %16 {strides = array<i32>} : memref<64x50xbf16, #tpu.memory_space<vmem>>, vector<64x50xbf16>,
    return
  }
  func.func @transform_0(%arg0: i32) -> (i32, i32) {
    %c0_i32 = arith.constant 0 : i32
    %c0_i32_0 = arith.constant 0 : i32
    return %arg0, %c0_i32 : i32, i32
  }
  func.func @transform_1(%arg0: i32) -> (i32, i32) {
    %c0_i32 = arith.constant 0 : i32
    %c0_i32_0 = arith.constant 0 : i32
    %c0_i32_1 = arith.constant 0 : i32
    return %c0_i32, %c0_i32_0 : i32, i32
  }
  func.func @transform_2(%arg0: i32) -> (i32, i32) {
    %c0_i32 = arith.constant 0 : i32
    %c0_i32_0 = arith.constant 0 : i32
    %c0_i32_1 = arith.constant 0 : i32
    return %c0_i32, %c0_i32_0 : i32, i32
  }
  func.func @transform_3(%arg0: i32) -> (i32, i32) {
    %c0_i32 = arith.constant 0 : i32
    %c0_i32_0 = arith.constant 0 : i32
    return %arg0, %c0_i32 : i32, i32
  }
}

module attributes {stable_mosaic.version = 11 : i64} {
  func.func @kernel(%arg0: i32, %arg1: memref<512x72xbf16, #tpu.memory_space<vmem>>, %arg2: memref<72x8xbf16, #tpu.memory_space<vmem>>, %arg3: memref<512x8xbf16, #tpu.memory_space<vmem>>) attributes {dimension_semantics = [#tpu.dimension_semantics<parallel>], iteration_bounds = array<i64: 7>, scalar_prefetch = 0 : i64, scratch_operands = 0 : i64, tpu.core_type = #tpu.core_type<tc>, window_params = [{transform_indices = @transform_0, window_bounds = array<i64: 512, 72>}, {pipeline_mode = #tpu.pipeline_mode<synchronous>, transform_indices = @transform_1, window_bounds = array<i64: 72, 8>}, {transform_indices = @transform_2, window_bounds = array<i64: 512, 8>}]} {
    %c0 = arith.constant 0 : index
    %c0_0 = arith.constant 0 : index
    %0 = vector.load %arg1[%c0, %c0_0] : memref<512x72xbf16, #tpu.memory_space<vmem>>, vector<512x72xbf16>
    %c0_1 = arith.constant 0 : index
    %c0_2 = arith.constant 0 : index
    %1 = vector.load %arg2[%c0_1, %c0_2] : memref<72x8xbf16, #tpu.memory_space<vmem>>, vector<72x8xbf16>
    %cst = arith.constant dense<0.000000e+00> : vector<512x8xf32>
    %2 = tpu.matmul %0, %1, %cst {dimension_numbers = #tpu.dot_dimension_numbers<[1], [0], [0], [1], [0, 0, 1, 1], [], []>} : vector<512x72xbf16>, vector<72x8xbf16>, vector<512x8xf32> -> vector<512x8xf32>
    %cst_3 = arith.constant 0.000000e+00 : f32
    %3 = vector.broadcast %cst_3 : f32 to vector<512x8xf32>
    %4 = arith.cmpf oge, %2, %3 : vector<512x8xf32>
    %cst_4 = arith.constant 1.000000e-01 : f32
    %5 = vector.broadcast %cst_4 : f32 to vector<512x8xf32>
    %6 = arith.mulf %5, %2 : vector<512x8xf32>
    %7 = arith.select %4, %2, %6 : vector<512x8xi1>, vector<512x8xf32>
    %8 = arith.truncf %7 : vector<512x8xf32> to vector<512x8xbf16>
    %c0_5 = arith.constant 0 : index
    %c0_6 = arith.constant 0 : index
    %9 = vector.load %arg3[%c0_5, %c0_6] : memref<512x8xbf16, #tpu.memory_space<vmem>>, vector<512x8xbf16>
    tpu.vector_store %arg3[%c0_5, %c0_6], %8 {strides = array<i32>} : memref<512x8xbf16, #tpu.memory_space<vmem>>, vector<512x8xbf16>,
    return
  }
  func.func @transform_0(%arg0: i32) -> (i32, i32) {
    %c0_i32 = arith.constant 0 : i32
    %c0_i32_0 = arith.constant 0 : i32
    return %arg0, %c0_i32 : i32, i32
  }
  func.func @transform_1(%arg0: i32) -> (i32, i32) {
    %c0_i32 = arith.constant 0 : i32
    %c0_i32_0 = arith.constant 0 : i32
    %c0_i32_1 = arith.constant 0 : i32
    return %c0_i32, %c0_i32_0 : i32, i32
  }
  func.func @transform_2(%arg0: i32) -> (i32, i32) {
    %c0_i32 = arith.constant 0 : i32
    %c0_i32_0 = arith.constant 0 : i32
    return %arg0, %c0_i32 : i32, i32
  }
}

module attributes {stable_mosaic.version = 11 : i64} {
  func.func @kernel(%arg0: i32, %arg1: memref<512x18xbf16, #tpu.memory_space<vmem>>, %arg2: memref<18x8xbf16, #tpu.memory_space<vmem>>, %arg3: memref<512x8xbf16, #tpu.memory_space<vmem>>) attributes {dimension_semantics = [#tpu.dimension_semantics<parallel>], iteration_bounds = array<i64: 7>, scalar_prefetch = 0 : i64, scratch_operands = 0 : i64, tpu.core_type = #tpu.core_type<tc>, window_params = [{transform_indices = @transform_0, window_bounds = array<i64: 512, 18>}, {pipeline_mode = #tpu.pipeline_mode<synchronous>, transform_indices = @transform_1, window_bounds = array<i64: 18, 8>}, {transform_indices = @transform_2, window_bounds = array<i64: 512, 8>}]} {
    %c0 = arith.constant 0 : index
    %c0_0 = arith.constant 0 : index
    %0 = vector.load %arg1[%c0, %c0_0] : memref<512x18xbf16, #tpu.memory_space<vmem>>, vector<512x18xbf16>
    %c0_1 = arith.constant 0 : index
    %c0_2 = arith.constant 0 : index
    %1 = vector.load %arg2[%c0_1, %c0_2] : memref<18x8xbf16, #tpu.memory_space<vmem>>, vector<18x8xbf16>
    %cst = arith.constant dense<0.000000e+00> : vector<512x8xf32>
    %2 = tpu.matmul %0, %1, %cst {dimension_numbers = #tpu.dot_dimension_numbers<[1], [0], [0], [1], [0, 0, 1, 1], [], []>} : vector<512x18xbf16>, vector<18x8xbf16>, vector<512x8xf32> -> vector<512x8xf32>
    %cst_3 = arith.constant 0.000000e+00 : f32
    %3 = vector.broadcast %cst_3 : f32 to vector<512x8xf32>
    %4 = arith.cmpf oge, %2, %3 : vector<512x8xf32>
    %cst_4 = arith.constant 1.000000e-01 : f32
    %5 = vector.broadcast %cst_4 : f32 to vector<512x8xf32>
    %6 = arith.mulf %5, %2 : vector<512x8xf32>
    %7 = arith.select %4, %2, %6 : vector<512x8xi1>, vector<512x8xf32>
    %8 = arith.truncf %7 : vector<512x8xf32> to vector<512x8xbf16>
    %c0_5 = arith.constant 0 : index
    %c0_6 = arith.constant 0 : index
    %9 = vector.load %arg3[%c0_5, %c0_6] : memref<512x8xbf16, #tpu.memory_space<vmem>>, vector<512x8xbf16>
    tpu.vector_store %arg3[%c0_5, %c0_6], %8 {strides = array<i32>} : memref<512x8xbf16, #tpu.memory_space<vmem>>, vector<512x8xbf16>,
    return
  }
  func.func @transform_0(%arg0: i32) -> (i32, i32) {
    %c0_i32 = arith.constant 0 : i32
    %c0_i32_0 = arith.constant 0 : i32
    return %arg0, %c0_i32 : i32, i32
  }
  func.func @transform_1(%arg0: i32) -> (i32, i32) {
    %c0_i32 = arith.constant 0 : i32
    %c0_i32_0 = arith.constant 0 : i32
    %c0_i32_1 = arith.constant 0 : i32
    return %c0_i32, %c0_i32_0 : i32, i32
  }
  func.func @transform_2(%arg0: i32) -> (i32, i32) {
    %c0_i32 = arith.constant 0 : i32
    %c0_i32_0 = arith.constant 0 : i32
    return %arg0, %c0_i32 : i32, i32
  }
}

module attributes {stable_mosaic.version = 11 : i64} {
  func.func @kernel(%arg0: i32, %arg1: memref<512x72xbf16, #tpu.memory_space<vmem>>, %arg2: memref<72x8xbf16, #tpu.memory_space<vmem>>, %arg3: memref<512x8xf32, #tpu.memory_space<vmem>>, %arg4: memref<512x8xf32, #tpu.memory_space<vmem>>) attributes {dimension_semantics = [#tpu.dimension_semantics<parallel>], iteration_bounds = array<i64: 7>, scalar_prefetch = 0 : i64, scratch_operands = 0 : i64, tpu.core_type = #tpu.core_type<tc>, window_params = [{transform_indices = @transform_0, window_bounds = array<i64: 512, 72>}, {pipeline_mode = #tpu.pipeline_mode<synchronous>, transform_indices = @transform_1, window_bounds = array<i64: 72, 8>}, {transform_indices = @transform_2, window_bounds = array<i64: 512, 8>}, {transform_indices = @transform_3, window_bounds = array<i64: 512, 8>}]} {
    %c0 = arith.constant 0 : index
    %c0_0 = arith.constant 0 : index
    %0 = vector.load %arg1[%c0, %c0_0] : memref<512x72xbf16, #tpu.memory_space<vmem>>, vector<512x72xbf16>
    %c0_1 = arith.constant 0 : index
    %c0_2 = arith.constant 0 : index
    %1 = vector.load %arg2[%c0_1, %c0_2] : memref<72x8xbf16, #tpu.memory_space<vmem>>, vector<72x8xbf16>
    %cst = arith.constant dense<0.000000e+00> : vector<512x8xf32>
    %2 = tpu.matmul %0, %1, %cst {dimension_numbers = #tpu.dot_dimension_numbers<[1], [0], [0], [1], [0, 0, 1, 1], [], []>} : vector<512x72xbf16>, vector<72x8xbf16>, vector<512x8xf32> -> vector<512x8xf32>
    %c0_3 = arith.constant 0 : index
    %c0_4 = arith.constant 0 : index
    %3 = vector.load %arg3[%c0_3, %c0_4] : memref<512x8xf32, #tpu.memory_space<vmem>>, vector<512x8xf32>
    %4 = arith.addf %2, %3 : vector<512x8xf32>
    %c0_5 = arith.constant 0 : index
    %c0_6 = arith.constant 0 : index
    %5 = vector.load %arg4[%c0_5, %c0_6] : memref<512x8xf32, #tpu.memory_space<vmem>>, vector<512x8xf32>
    tpu.vector_store %arg4[%c0_5, %c0_6], %4 {strides = array<i32>} : memref<512x8xf32, #tpu.memory_space<vmem>>, vector<512x8xf32>,
    return
  }
  func.func @transform_0(%arg0: i32) -> (i32, i32) {
    %c0_i32 = arith.constant 0 : i32
    %c0_i32_0 = arith.constant 0 : i32
    return %arg0, %c0_i32 : i32, i32
  }
  func.func @transform_1(%arg0: i32) -> (i32, i32) {
    %c0_i32 = arith.constant 0 : i32
    %c0_i32_0 = arith.constant 0 : i32
    %c0_i32_1 = arith.constant 0 : i32
    return %c0_i32, %c0_i32_0 : i32, i32
  }
  func.func @transform_2(%arg0: i32) -> (i32, i32) {
    %c0_i32 = arith.constant 0 : i32
    %c0_i32_0 = arith.constant 0 : i32
    return %arg0, %c0_i32 : i32, i32
  }
  func.func @transform_3(%arg0: i32) -> (i32, i32) {
    %c0_i32 = arith.constant 0 : i32
    %c0_i32_0 = arith.constant 0 : i32
    return %arg0, %c0_i32 : i32, i32
  }
}

</mosaic_0001>

<llo_original>
// kernel: distg_block_forward.9
$region0: #{distg_block_forward.9}
  #allocation0 [shape = 'u32[]', space=smem, size = 0x4, offset = 0x4, fixed_abs, tag = 'smem constant byte address 0x4 - core index']
  #allocation1 [shape = 'u32[144,128]{1,0:T(1,128)}', space=vmem, size = 0x12000, scoped, tag = 'internal scratch']
  %s0 = inlined_call_operand.vmem [shape: bf16[1280,200], index: 0, kind: input, shape index: {}]
  %s1 = inlined_call_operand.vmem [shape: bf16[200,16], index: 1, kind: input, shape index: {}]
  %s2 = inlined_call_operand.vmem [shape: bf16[16,20], index: 2, kind: input, shape index: {}]
  %s3 = inlined_call_operand.vmem [shape: bf16[1280,20], index: 3, kind: output, shape index: {}]
  %s4 = sld [smem:[#allocation0]]
  $region89: #{distg_block_forward.9} parent=0
    _
  %s6 = ssub.s32 1, %s4
  %s7 = scalar_select 0, %s6, %s4
  $region1: #{distg_block_forward.9} parent=0
    #allocation2 [shape = 'u8[262144]{0}', space=vmem, size = 0x40000, scoped, tag = 'output window, operand 0']
    loop: start=0, step=1, limit=5
    $region2: #{distg_block_forward.9} parent=1 // loop_pre_header
      _
    $region3: #{distg_block_forward.9} parent=1 // loop_header
      %s9 = sphi 0, %s13
      %p10 = scmp.ge.s32.totalorder %s9, 5
      %s19 = sphi 0, %s21
      %s22 = sphi 0, %s19
      %s23 = sphi 0, %s22
      %s39 = sphi 0, %s23
      %s43 = sphi 0, %s43
      %s45 = sphi 0, %s43
      %s46 = sphi 0, %s45
      %s60 = sphi 0, %s46
      %s64 = sphi 0, %s64
      %s66 = sphi 0, %s64
      %s67 = sphi 0, %s66
      %s81 = sphi 0, %s67
      %s87 = sphi 0, %s89
      %s90 = sphi 0, %s87
      %s91 = sphi 0, %s90
      %s107 = sphi 0, %s91
    $region4: #{distg_block_forward.9} parent=1 // loop_header_branch
      %12 = sbr.rel (%p10) target = $region8
    $region5: #{distg_block_forward.9} parent=1 // loop_body
      %s14 = ssub.s32 %s9, 1
      %s15 = ssub.s32 %s9, 2
      %s16 = sadd.s32 %s9, 1
      %s17 = ssub.s32 %s9, %s16
      %p18 = scmp.eq.s32.totalorder %s17, 0
      %s20 = sadd.s32 %s19, 1
      %s21 = scalar_select %p18, %s19, %s20
      %p24 = pneg %p18
      %p25 = scmp.eq.s32.totalorder %s9, 2
      %p26 = por %p24, %p25
      %p27 = scmp.ne.s32.totalorder %s19, %s22
      %p28 = scmp.eq.s32.totalorder %s9, 0
      %p29 = por %p27, %p28
      %p30 = scmp.ne.s32.totalorder %s19, %s22
      %p31 = scmp.eq.s32.totalorder %s14, 2
      %p32 = por %p30, %p31
      %p33 = scmp.ne.s32.totalorder %s22, %s23
      %p34 = scmp.eq.s32.totalorder %s14, 0
      %p35 = por %p33, %p34
      %p36 = scmp.ne.s32.totalorder %s22, %s23
      %p37 = scmp.eq.s32.totalorder %s15, 2
      %p38 = por %p36, %p37
      %p40 = scmp.ne.s32.totalorder %s23, %s39
      %p41 = scmp.eq.s32.totalorder %s15, 0
      %p42 = por %p40, %p41
      %s44 = sadd.s32 %s43, 1
      %p47 = scmp.eq.s32.totalorder %s9, 2
      %p48 = scmp.ne.s32.totalorder %s43, %s45
      %p49 = scmp.eq.s32.totalorder %s9, 0
      %p50 = por %p48, %p49
      %p51 = scmp.ne.s32.totalorder %s43, %s45
      %p52 = scmp.eq.s32.totalorder %s14, 2
      %p53 = por %p51, %p52
      %p54 = scmp.ne.s32.totalorder %s45, %s46
      %p55 = scmp.eq.s32.totalorder %s14, 0
      %p56 = por %p54, %p55
      %p57 = scmp.ne.s32.totalorder %s45, %s46
      %p58 = scmp.eq.s32.totalorder %s15, 2
      %p59 = por %p57, %p58
      %p61 = scmp.ne.s32.totalorder %s46, %s60
      %p62 = scmp.eq.s32.totalorder %s15, 0
      %p63 = por %p61, %p62
      %s65 = sadd.s32 %s64, 1
      %p68 = scmp.eq.s32.totalorder %s9, 2
      %p69 = scmp.ne.s32.totalorder %s64, %s66
      %p70 = scmp.eq.s32.totalorder %s9, 0
      %p71 = por %p69, %p70
      %p72 = scmp.ne.s32.totalorder %s64, %s66
      %p73 = scmp.eq.s32.totalorder %s14, 2
      %p74 = por %p72, %p73
      %p75 = scmp.ne.s32.totalorder %s66, %s67
      %p76 = scmp.eq.s32.totalorder %s14, 0
      %p77 = por %p75, %p76
      %p78 = scmp.ne.s32.totalorder %s66, %s67
      %p79 = scmp.eq.s32.totalorder %s15, 2
      %p80 = por %p78, %p79
      %p82 = scmp.ne.s32.totalorder %s67, %s81
      %p83 = scmp.eq.s32.totalorder %s15, 0
      %p84 = por %p82, %p83
      %s85 = ssub.s32 %s9, %s16
      %p86 = scmp.eq.s32.totalorder %s85, 0
      %s88 = sadd.s32 %s87, 1
      %s89 = scalar_select %p86, %s87, %s88
      %p92 = pneg %p86
      %p93 = scmp.eq.s32.totalorder %s9, 2
      %p94 = por %p92, %p93
      %p95 = scmp.ne.s32.totalorder %s87, %s90
      %p96 = scmp.eq.s32.totalorder %s9, 0
      %p97 = por %p95, %p96
      %p98 = scmp.ne.s32.totalorder %s87, %s90
      %p99 = scmp.eq.s32.totalorder %s14, 2
      %p100 = por %p98, %p99
      %p101 = scmp.ne.s32.totalorder %s90, %s91
      %p102 = scmp.eq.s32.totalorder %s14, 0
      %p103 = por %p101, %p102
      %p104 = scmp.ne.s32.totalorder %s90, %s91
      %p105 = scmp.eq.s32.totalorder %s15, 2
      %p106 = por %p104, %p105
      %p108 = scmp.ne.s32.totalorder %s91, %s107
      %p109 = scmp.eq.s32.totalorder %s15, 0
      %p110 = por %p108, %p109
      %p111 = scmp.le.s32.totalorder 1, %s9
      %p112 = scmp.lt.s32.totalorder %s9, 4
      %p113 = pnand %p111, %p112
      %p114 = pneg %p113
      // Predicated region
      $region9: #{distg_block_forward.9} parent=5 // pred_check
        _
      $region10: #{distg_block_forward.9} parent=5 // pred_check_branch
        %116 = sbr.rel (%p113) target = $region12
      $region11: #{distg_block_forward.9} parent=5 // pred_region
        %s117 = ssub.s32 %s9, 1
        // Predicated region
        $region13: #{distg_block_forward.9} parent=11 // pred_check
          %p118 = pneg %p56
        $region14: #{distg_block_forward.9} parent=11 // pred_check_branch
          %120 = sbr.rel (%p118) target = $region16
        $region15: #{distg_block_forward.9} parent=11 // pred_region
          _
        $region16: #{distg_block_forward.9} parent=11 // pred_fallthru
          _
        // Predicated region
        $region17: #{distg_block_forward.9} parent=11 // pred_check
          %p121 = pneg %p77
        $region18: #{distg_block_forward.9} parent=11 // pred_check_branch
          %123 = sbr.rel (%p121) target = $region20
        $region19: #{distg_block_forward.9} parent=11 // pred_region
          _
        $region20: #{distg_block_forward.9} parent=11 // pred_fallthru
          _
      $region12: #{distg_block_forward.9} parent=5 // pred_fallthru
        _
      %p124 = scmp.lt.s32.totalorder %s9, 3
      // Predicated region
      $region21: #{distg_block_forward.9} parent=5 // pred_check
        %p125 = pneg %p124
      $region22: #{distg_block_forward.9} parent=5 // pred_check_branch
        %127 = sbr.rel (%p125) target = $region24
      $region23: #{distg_block_forward.9} parent=5 // pred_region
        // Predicated region
        $region25: #{distg_block_forward.9} parent=23 // pred_check
          %p128 = pneg %p29
        $region26: #{distg_block_forward.9} parent=23 // pred_check_branch
          %130 = sbr.rel (%p128) target = $region28
        $region27: #{distg_block_forward.9} parent=23 // pred_region
          %s131 = smul.u32 64, %s9
          %s132 = ssub.s32 160, %s131
          %p133 = scmp.lt.s32.totalorder %s132, 64
          %s134 = scalar_select %p133, %s132, 64
          %s135 = smul.u32 64, %s134
          %s136 = smul.u32 %s135, 2
          %p137 = scmp.lt.s32.totalorder %s131, 159
          %s138 = scalar_select %p137, %s131, 159
          %s139 = smul.addr %s138, 2
          %s140 = smul.addr %s139, 4
          %s141 = scalar_lea.vmem %s0, %s140
          %s142 = smul.u32 64, %s9
          %s143 = ssub.s32 160, %s142
          %p144 = scmp.lt.s32.totalorder %s143, 64
          %s145 = scalar_select %p144, %s143, 64
          %s146 = smul.u32 64, %s145
          %s147 = smul.u32 %s146, 2
        $region28: #{distg_block_forward.9} parent=23 // pred_fallthru
          _
      $region24: #{distg_block_forward.9} parent=5 // pred_fallthru
        _
      %p148 = scmp.le.s32.totalorder 1, %s9
      %p149 = scmp.lt.s32.totalorder %s9, 4
      %p150 = pnand %p148, %p149
      %p151 = pneg %p150
      // Predicated region
      $region29: #{distg_block_forward.9} parent=5 // pred_check
        _
      $region30: #{distg_block_forward.9} parent=5 // pred_check_branch
        %153 = sbr.rel (%p150) target = $region32
      $region31: #{distg_block_forward.9} parent=5 // pred_region
        %s154 = ssub.s32 %s9, 1
        %s155 = smul.u32 64, %s14
        %s156 = ssub.s32 160, %s155
        %p157 = scmp.lt.s32.totalorder %s156, 64
        %s158 = scalar_select %p157, %s156, 64
        %s159 = smul.u32 64, %s158
        %s160 = smul.u32 %s159, 2
        %p161 = scmp.lt.s32.totalorder %s155, 159
        %s162 = scalar_select %p161, %s155, 159
        %s163 = smul.addr %s162, 2
        %s164 = smul.addr %s163, 4
        %s165 = scalar_lea.vmem %s0, %s164
        %p166 = pneg %p35
        %p167 = pneg %p32
        %p168 = pneg %p56
        %p169 = pneg %p53
        %p170 = pneg %p77
        %p171 = pneg %p74
        %p172 = pneg %p103
        %p173 = pneg %p100
        %s174 = sand.u32 %s90, 1
        %s175 = sand.u32 %s90, 1
        %s176 = smul.addr %s175, 256
        %s177 = scalar_lea.vmem [#allocation2], %s176
        %s178 = smul.u32 64, %s14
        %s179 = ssub.s32 160, %s178
        %p180 = scmp.lt.s32.totalorder %s179, 64
        %s181 = scalar_select %p180, %s179, 64
        %s182 = smul.u32 64, %s181
        %s183 = smul.u32 %s182, 2
        %p184 = scmp.lt.s32.totalorder %s178, 159
        %s185 = scalar_select %p184, %s178, 159
        %s186 = smul.addr %s185, 2
        %s187 = smul.addr %s186, 4
        %s188 = scalar_lea.vmem %s0, %s187
        %s189 = smul.u32 64, %s14
        %s190 = ssub.s32 160, %s189
        %p191 = scmp.lt.s32.totalorder %s190, 64
        %s192 = scalar_select %p191, %s190, 64
        %s193 = smul.u32 64, %s192
        %s194 = smul.u32 %s193, 2
        %s195 = smul.u32 64, %s14
        %s196 = ssub.s32 160, %s195
        %p197 = scmp.lt.s32.totalorder %s196, 64
        %s198 = scalar_select %p197, %s196, 64
        %s199 = smul.u32 64, %s198
        %v201 = vld [vmem:[%s188] sm:$0xff]
        %v202 = vld [vmem:[%s188 + $0x8] sm:$0xff]
        %v203 = vld [vmem:[%s188 + $0x10] sm:$0xff]
        %v204 = vld [vmem:[%s188 + $0x18] sm:$0xff]
        %v205 = vld [vmem:[%s188 + $0x20] sm:$0xff]
        %v206 = vld [vmem:[%s188 + $0x28] sm:$0xff]
        %v207 = vld [vmem:[%s188 + $0x30] sm:$0xff]
        %v208 = vld [vmem:[%s188 + $0x38] sm:$0xff]
        %v209 = vld [vmem:[%s188 + $0x40] sm:$0xff]
        %v210 = vld [vmem:[%s188 + $0x48] sm:$0xff]
        %v211 = vld [vmem:[%s188 + $0x50] sm:$0xff]
        %v212 = vld [vmem:[%s188 + $0x58] sm:$0xff]
        %v213 = vld [vmem:[%s188 + $0x60] sm:$0xff]
        %v214 = vld [vmem:[%s188 + $0x68] sm:$0xff]
        %v215 = vld [vmem:[%s188 + $0x70] sm:$0xff]
        %v216 = vld [vmem:[%s188 + $0x78] sm:$0xff]
        %v217 = vld [vmem:[%s188 + $0x80] sm:$0xff]
        %v218 = vld [vmem:[%s188 + $0x88] sm:$0xff]
        %v219 = vld [vmem:[%s188 + $0x90] sm:$0xff]
        %v220 = vld [vmem:[%s188 + $0x98] sm:$0xff]
        %v221 = vld [vmem:[%s188 + $0xa0] sm:$0xff]
        %v222 = vld [vmem:[%s188 + $0xa8] sm:$0xff]
        %v223 = vld [vmem:[%s188 + $0xb0] sm:$0xff]
        %v224 = vld [vmem:[%s188 + $0xb8] sm:$0xff]
        %v225 = vld [vmem:[%s188 + $0xc0] sm:$0xff]
        %v226 = vld [vmem:[%s188 + $0xc8] sm:$0xff]
        %v227 = vld [vmem:[%s188 + $0xd0] sm:$0xff]
        %v228 = vld [vmem:[%s188 + $0xd8] sm:$0xff]
        %v229 = vld [vmem:[%s188 + $0xe0] sm:$0xff]
        %v230 = vld [vmem:[%s188 + $0xe8] sm:$0xff]
        %v231 = vld [vmem:[%s188 + $0xf0] sm:$0xff]
        %v232 = vld [vmem:[%s188 + $0xf8] sm:$0xff]
        %v233 = vld [vmem:[%s188 + $0x100] sm:$0xff]
        %v234 = vld [vmem:[%s188 + $0x108] sm:$0xff]
        %v235 = vld [vmem:[%s188 + $0x110] sm:$0xff]
        %v236 = vld [vmem:[%s188 + $0x118] sm:$0xff]
        %v237 = vld [vmem:[%s188 + $0x120] sm:$0xff]
        %v238 = vld [vmem:[%s188 + $0x128] sm:$0xff]
        %v239 = vld [vmem:[%s188 + $0x130] sm:$0xff]
        %v240 = vld [vmem:[%s188 + $0x138] sm:$0xff]
        %v241 = vld [vmem:[%s188 + $0x140] sm:$0xff]
        %v242 = vld [vmem:[%s188 + $0x148] sm:$0xff]
        %v243 = vld [vmem:[%s188 + $0x150] sm:$0xff]
        %v244 = vld [vmem:[%s188 + $0x158] sm:$0xff]
        %v245 = vld [vmem:[%s188 + $0x160] sm:$0xff]
        %v246 = vld [vmem:[%s188 + $0x168] sm:$0xff]
        %v247 = vld [vmem:[%s188 + $0x170] sm:$0xff]
        %v248 = vld [vmem:[%s188 + $0x178] sm:$0xff]
        %v249 = vld [vmem:[%s188 + $0x180] sm:$0xff]
        %v250 = vld [vmem:[%s188 + $0x188] sm:$0xff]
        %v251 = vld [vmem:[%s188 + $0x190] sm:$0xff]
        %v252 = vld [vmem:[%s188 + $0x198] sm:$0xff]
        %v253 = vld [vmem:[%s188 + $0x1a0] sm:$0xff]
        %v254 = vld [vmem:[%s188 + $0x1a8] sm:$0xff]
        %v255 = vld [vmem:[%s188 + $0x1b0] sm:$0xff]
        %v256 = vld [vmem:[%s188 + $0x1b8] sm:$0xff]
        %v257 = vld [vmem:[%s188 + $0x1c0] sm:$0xff]
        %v258 = vld [vmem:[%s188 + $0x1c8] sm:$0xff]
        %v259 = vld [vmem:[%s188 + $0x1d0] sm:$0xff]
        %v260 = vld [vmem:[%s188 + $0x1d8] sm:$0xff]
        %v261 = vld [vmem:[%s188 + $0x1e0] sm:$0xff]
        %v262 = vld [vmem:[%s188 + $0x1e8] sm:$0xff]
        %v263 = vld [vmem:[%s188 + $0x1f0] sm:$0xff]
        %v264 = vld [vmem:[%s188 + $0x1f8] sm:$0xff]
        %v265 = vld [vmem:[%s1] sm:$0xf]
        %v266 = vld [vmem:[%s1 + $0x4] sm:$0xf]
        %v267 = vld [vmem:[%s1 + $0x8] sm:$0xf]
        %v268 = vld [vmem:[%s1 + $0xc] sm:$0xf]
        %v269 = vld [vmem:[%s1 + $0x10] sm:$0xf]
        %v270 = vld [vmem:[%s1 + $0x14] sm:$0xf]
        %v271 = vld [vmem:[%s1 + $0x18] sm:$0xf]
        %v272 = vld [vmem:[%s1 + $0x1c] sm:$0xf]
        %v273 = vld [vmem:[%s1 + $0x20] sm:$0xf]
        %v274 = vld [vmem:[%s1 + $0x24] sm:$0xf]
        %v275 = vld [vmem:[%s1 + $0x28] sm:$0xf]
        %v276 = vld [vmem:[%s1 + $0x2c] sm:$0xf]
        %v277 = vld [vmem:[%s1 + $0x30] sm:$0xf]
        %v278 = vld [vmem:[%s1 + $0x34] sm:$0xf]
        %v279 = vld [vmem:[%s1 + $0x38] sm:$0xf]
        %v280 = vld [vmem:[%s1 + $0x3c] sm:$0xf]
        %v281 = vld [vmem:[%s1 + $0x40] sm:$0xf]
        %v282 = vld [vmem:[%s1 + $0x44] sm:$0xf]
        %v283 = vld [vmem:[%s1 + $0x48] sm:$0xf]
        %v284 = vld [vmem:[%s1 + $0x4c] sm:$0xf]
        %v285 = vld [vmem:[%s1 + $0x50] sm:$0xf]
        %v286 = vld [vmem:[%s1 + $0x54] sm:$0xf]
        %v287 = vld [vmem:[%s1 + $0x58] sm:$0xf]
        %v288 = vld [vmem:[%s1 + $0x5c] sm:$0xf]
        %v289 = vld [vmem:[%s1 + $0x60] sm:$0xf]
        %v354 = vunpack.c.l.b16 %v201
        %v355 = vunpack.c.h.b16 %v201
        %v356 = vunpack.c.l.b16 %v202
        %v357 = vunpack.c.h.b16 %v202
        %v358 = vunpack.c.l.b16 %v203
        %v359 = vunpack.c.h.b16 %v203
        %v360 = vunpack.c.l.b16 %v204
        %v361 = vunpack.c.h.b16 %v204
        %v362 = vunpack.c.l.b16 %v205
        %v363 = vunpack.c.h.b16 %v205
        %v364 = vunpack.c.l.b16 %v206
        %v365 = vunpack.c.h.b16 %v206
        %v366 = vunpack.c.l.b16 %v207
        %v367 = vunpack.c.h.b16 %v207
        %v368 = vunpack.c.l.b16 %v208
        %v369 = vunpack.c.h.b16 %v208
        %v370 = vunpack.c.l.b16 %v209
        %v371 = vunpack.c.h.b16 %v209
        %v372 = vunpack.c.l.b16 %v210
        %v373 = vunpack.c.h.b16 %v210
        %v374 = vunpack.c.l.b16 %v211
        %v375 = vunpack.c.h.b16 %v211
        %v376 = vunpack.c.l.b16 %v212
        %v377 = vunpack.c.h.b16 %v212
        %v378 = vunpack.c.l.b16 %v213
        %v379 = vunpack.c.h.b16 %v213
        %v380 = vunpack.c.l.b16 %v214
        %v381 = vunpack.c.h.b16 %v214
        %v382 = vunpack.c.l.b16 %v215
        %v383 = vunpack.c.h.b16 %v215
        %v384 = vunpack.c.l.b16 %v216
        %v385 = vunpack.c.h.b16 %v216
        %v386 = vunpack.c.l.b16 %v217
        %v387 = vunpack.c.h.b16 %v217
        %v388 = vunpack.c.l.b16 %v218
        %v389 = vunpack.c.h.b16 %v218
        %v390 = vunpack.c.l.b16 %v219
        %v391 = vunpack.c.h.b16 %v219
        %v392 = vunpack.c.l.b16 %v220
        %v393 = vunpack.c.h.b16 %v220
        %v394 = vunpack.c.l.b16 %v221
        %v395 = vunpack.c.h.b16 %v221
        %v396 = vunpack.c.l.b16 %v222
        %v397 = vunpack.c.h.b16 %v222
        %v398 = vunpack.c.l.b16 %v223
        %v399 = vunpack.c.h.b16 %v223
        %v400 = vunpack.c.l.b16 %v224
        %v401 = vunpack.c.h.b16 %v224
        %v402 = vunpack.c.l.b16 %v225
        %v403 = vunpack.c.h.b16 %v225
        %v404 = vunpack.c.l.b16 %v226
        %v405 = vunpack.c.h.b16 %v226
        %v406 = vunpack.c.l.b16 %v227
        %v407 = vunpack.c.h.b16 %v227
        %v408 = vunpack.c.l.b16 %v228
        %v409 = vunpack.c.h.b16 %v228
        %v410 = vunpack.c.l.b16 %v229
        %v411 = vunpack.c.h.b16 %v229
        %v412 = vunpack.c.l.b16 %v230
        %v413 = vunpack.c.h.b16 %v230
        %v414 = vunpack.c.l.b16 %v231
        %v415 = vunpack.c.h.b16 %v231
        %v416 = vunpack.c.l.b16 %v232
        %v417 = vunpack.c.h.b16 %v232
        %v418 = vunpack.c.l.b16 %v233
        %v419 = vunpack.c.h.b16 %v233
        %v420 = vunpack.c.l.b16 %v234
        %v421 = vunpack.c.h.b16 %v234
        %v422 = vunpack.c.l.b16 %v235
        %v423 = vunpack.c.h.b16 %v235
        %v424 = vunpack.c.l.b16 %v236
        %v425 = vunpack.c.h.b16 %v236
        %v426 = vunpack.c.l.b16 %v237
        %v427 = vunpack.c.h.b16 %v237
        %v428 = vunpack.c.l.b16 %v238
        %v429 = vunpack.c.h.b16 %v238
        %v430 = vunpack.c.l.b16 %v239
        %v431 = vunpack.c.h.b16 %v239
        %v432 = vunpack.c.l.b16 %v240
        %v433 = vunpack.c.h.b16 %v240
        %v434 = vunpack.c.l.b16 %v241
        %v435 = vunpack.c.h.b16 %v241
        %v436 = vunpack.c.l.b16 %v242
        %v437 = vunpack.c.h.b16 %v242
        %v438 = vunpack.c.l.b16 %v243
        %v439 = vunpack.c.h.b16 %v243
        %v440 = vunpack.c.l.b16 %v244
        %v441 = vunpack.c.h.b16 %v244
        %v442 = vunpack.c.l.b16 %v245
        %v443 = vunpack.c.h.b16 %v245
        %v444 = vunpack.c.l.b16 %v246
        %v445 = vunpack.c.h.b16 %v246
        %v446 = vunpack.c.l.b16 %v247
        %v447 = vunpack.c.h.b16 %v247
        %v448 = vunpack.c.l.b16 %v248
        %v449 = vunpack.c.h.b16 %v248
        %v450 = vunpack.c.l.b16 %v249
        %v451 = vunpack.c.h.b16 %v249
        %v452 = vunpack.c.l.b16 %v250
        %v453 = vunpack.c.h.b16 %v250
        %v454 = vunpack.c.l.b16 %v251
        %v455 = vunpack.c.h.b16 %v251
        %v456 = vunpack.c.l.b16 %v252
        %v457 = vunpack.c.h.b16 %v252
        %v458 = vunpack.c.l.b16 %v253
        %v459 = vunpack.c.h.b16 %v253
        %v460 = vunpack.c.l.b16 %v254
        %v461 = vunpack.c.h.b16 %v254
        %v462 = vunpack.c.l.b16 %v255
        %v463 = vunpack.c.h.b16 %v255
        %v464 = vunpack.c.l.b16 %v256
        %v465 = vunpack.c.h.b16 %v256
        %v466 = vunpack.c.l.b16 %v257
        %v467 = vunpack.c.h.b16 %v257
        %v468 = vunpack.c.l.b16 %v258
        %v469 = vunpack.c.h.b16 %v258
        %v470 = vunpack.c.l.b16 %v259
        %v471 = vunpack.c.h.b16 %v259
        %v472 = vunpack.c.l.b16 %v260
        %v473 = vunpack.c.h.b16 %v260
        %v474 = vunpack.c.l.b16 %v261
        %v475 = vunpack.c.h.b16 %v261
        %v476 = vunpack.c.l.b16 %v262
        %v477 = vunpack.c.h.b16 %v262
        %v478 = vunpack.c.l.b16 %v263
        %v479 = vunpack.c.h.b16 %v263
        %v480 = vunpack.c.l.b16 %v264
        %v481 = vunpack.c.h.b16 %v264
        %v482 = vpack.c.b16 %v356, %v354
        %v483 = vpack.c.b16 %v357, %v355
        %v484 = vpack.c.b16 %v360, %v358
        %v485 = vpack.c.b16 %v361, %v359
        %v486 = vpack.c.b16 %v364, %v362
        %v487 = vpack.c.b16 %v365, %v363
        %v488 = vpack.c.b16 %v368, %v366
        %v489 = vpack.c.b16 %v369, %v367
        %v490 = vpack.c.b16 %v372, %v370
        %v491 = vpack.c.b16 %v373, %v371
        %v492 = vpack.c.b16 %v376, %v374
        %v493 = vpack.c.b16 %v377, %v375
        %v494 = vpack.c.b16 %v380, %v378
        %v495 = vpack.c.b16 %v381, %v379
        %v496 = vpack.c.b16 %v384, %v382
        %v497 = vpack.c.b16 %v385, %v383
        %v498 = vpack.c.b16 %v388, %v386
        %v499 = vpack.c.b16 %v389, %v387
        %v500 = vpack.c.b16 %v392, %v390
        %v501 = vpack.c.b16 %v393, %v391
        %v502 = vpack.c.b16 %v396, %v394
        %v503 = vpack.c.b16 %v397, %v395
        %v504 = vpack.c.b16 %v400, %v398
        %v505 = vpack.c.b16 %v401, %v399
        %v506 = vpack.c.b16 %v404, %v402
        %v507 = vpack.c.b16 %v405, %v403
        %v508 = vpack.c.b16 %v408, %v406
        %v509 = vpack.c.b16 %v409, %v407
        %v510 = vpack.c.b16 %v412, %v410
        %v511 = vpack.c.b16 %v413, %v411
        %v512 = vpack.c.b16 %v416, %v414
        %v513 = vpack.c.b16 %v417, %v415
        %v514 = vpack.c.b16 %v420, %v418
        %v515 = vpack.c.b16 %v421, %v419
        %v516 = vpack.c.b16 %v424, %v422
        %v517 = vpack.c.b16 %v425, %v423
        %v518 = vpack.c.b16 %v428, %v426
        %v519 = vpack.c.b16 %v429, %v427
        %v520 = vpack.c.b16 %v432, %v430
        %v521 = vpack.c.b16 %v433, %v431
        %v522 = vpack.c.b16 %v436, %v434
        %v523 = vpack.c.b16 %v437, %v435
        %v524 = vpack.c.b16 %v440, %v438
        %v525 = vpack.c.b16 %v441, %v439
        %v526 = vpack.c.b16 %v444, %v442
        %v527 = vpack.c.b16 %v445, %v443
        %v528 = vpack.c.b16 %v448, %v446
        %v529 = vpack.c.b16 %v449, %v447
        %v530 = vpack.c.b16 %v452, %v450
        %v531 = vpack.c.b16 %v453, %v451
        %v532 = vpack.c.b16 %v456, %v454
        %v533 = vpack.c.b16 %v457, %v455
        %v534 = vpack.c.b16 %v460, %v458
        %v535 = vpack.c.b16 %v461, %v459
        %v536 = vpack.c.b16 %v464, %v462
        %v537 = vpack.c.b16 %v465, %v463
        %v538 = vpack.c.b16 %v468, %v466
        %v539 = vpack.c.b16 %v469, %v467
        %v540 = vpack.c.b16 %v472, %v470
        %v541 = vpack.c.b16 %v473, %v471
        %v542 = vpack.c.b16 %v476, %v474
        %v543 = vpack.c.b16 %v477, %v475
        %v544 = vpack.c.b16 %v480, %v478
        %v545 = vpack.c.b16 %v481, %v479
        %v603 = vunpack.c.l.b16 %v265
        %v604 = vunpack.c.l.b16 %v266
        %v605 = vunpack.c.l.b16 %v267
        %v606 = vunpack.c.l.b16 %v268
        %v607 = vunpack.c.l.b16 %v269
        %v608 = vunpack.c.l.b16 %v270
        %v609 = vunpack.c.l.b16 %v271
        %v610 = vunpack.c.l.b16 %v272
        %v611 = vunpack.c.l.b16 %v273
        %v612 = vunpack.c.l.b16 %v274
        %v613 = vunpack.c.l.b16 %v275
        %v614 = vunpack.c.l.b16 %v276
        %v615 = vunpack.c.l.b16 %v277
        %v616 = vunpack.c.l.b16 %v278
        %v617 = vunpack.c.l.b16 %v279
        %v618 = vunpack.c.l.b16 %v280
        %v619 = vunpack.c.l.b16 %v281
        %v620 = vunpack.c.l.b16 %v282
        %v621 = vunpack.c.l.b16 %v283
        %v622 = vunpack.c.l.b16 %v284
        %v623 = vunpack.c.l.b16 %v285
        %v624 = vunpack.c.l.b16 %v286
        %v625 = vunpack.c.l.b16 %v287
        %v626 = vunpack.c.l.b16 %v288
        %v627 = vunpack.c.l.b16 %v289
        %v628 = vpack.c.b16 %v604, %v603
        %v629 = vpack.c.b16 %v606, %v605
        %v630 = vpack.c.b16 %v608, %v607
        %v631 = vpack.c.b16 %v610, %v609
        %v632 = vpack.c.b16 %v612, %v611
        %v633 = vpack.c.b16 %v614, %v613
        %v634 = vpack.c.b16 %v616, %v615
        %v635 = vpack.c.b16 %v618, %v617
        %v636 = vpack.c.b16 %v620, %v619
        %v637 = vpack.c.b16 %v622, %v621
        %v638 = vpack.c.b16 %v624, %v623
        %v639 = vpack.c.b16 %v626, %v625
        %v640 = vpack.c.b16 %v627, %v627
        %vm653 = vcmask 588800
        %v655 = vsel %vm653, %v483, 0
        %v658 = vsel %vm653, %v485, 0
        %v661 = vsel %vm653, %v487, 0
        %v664 = vsel %vm653, %v489, 0
        %v667 = vsel %vm653, %v491, 0
        %v670 = vsel %vm653, %v493, 0
        %v673 = vsel %vm653, %v495, 0
        %v676 = vsel %vm653, %v497, 0
        %v679 = vsel %vm653, %v499, 0
        %v682 = vsel %vm653, %v501, 0
        %v685 = vsel %vm653, %v503, 0
        %v688 = vsel %vm653, %v505, 0
        %v691 = vsel %vm653, %v507, 0
        %v694 = vsel %vm653, %v509, 0
        %v697 = vsel %vm653, %v511, 0
        %v700 = vsel %vm653, %v513, 0
        %v703 = vsel %vm653, %v515, 0
        %v706 = vsel %vm653, %v517, 0
        %v709 = vsel %vm653, %v519, 0
        %v712 = vsel %vm653, %v521, 0
        %v715 = vsel %vm653, %v523, 0
        %v718 = vsel %vm653, %v525, 0
        %v721 = vsel %vm653, %v527, 0
        %v724 = vsel %vm653, %v529, 0
        %v727 = vsel %vm653, %v531, 0
        %v730 = vsel %vm653, %v533, 0
        %v733 = vsel %vm653, %v535, 0
        %v736 = vsel %vm653, %v537, 0
        %v739 = vsel %vm653, %v539, 0
        %v742 = vsel %vm653, %v541, 0
        %v745 = vsel %vm653, %v543, 0
        %v748 = vsel %vm653, %v545, 0
        %vm750 = vcmask 1043456
        %v752 = vsel %vm750, %v640, 0
        %754 = vmatprep.subr.bf16.mxu0 0
        %755 = vmatpush1.bf16.msra.mxu0 %v628
        %756 = vmatprep.subr.bf16.mxu0 0
        %757 = vmatpush1.bf16.msra.mxu0 %v629
        %758 = vmatprep.subr.bf16.mxu0 0
        %759 = vmatpush1.bf16.msra.mxu0 %v630
        %760 = vmatprep.subr.bf16.mxu0 0
        %761 = vmatpush1.bf16.msra.mxu0 %v631
        %762 = vmatprep.subr.bf16.mxu0 0
        %763 = vmatpush1.bf16.msra.mxu0 %v632
        %764 = vmatprep.subr.bf16.mxu0 0
        %765 = vmatpush1.bf16.msra.mxu0 %v633
        %766 = vmatprep.subr.bf16.mxu0 0
        %767 = vmatpush1.bf16.msra.mxu0 %v634
        %768 = vmatprep.subr.bf16.mxu0 0
        %769 = vmatpush1.bf16.msra.mxu0 %v635
        %770 = vmatprep.subr.bf16.mxu0 0
        %771 = vmatpush1.bf16.msra.mxu0 %v636
        %772 = vmatprep.subr.bf16.mxu0 0
        %773 = vmatpush1.bf16.msra.mxu0 %v637
        %774 = vmatprep.subr.bf16.mxu0 0
        %775 = vmatpush1.bf16.msra.mxu0 %v638
        %776 = vmatprep.subr.bf16.mxu0 0
        %777 = vmatpush1.bf16.msra.mxu0 %v639
        %778 = vmatprep.subr.bf16.mxu0 0
        %779 = vmatpush1.bf16.msra.mxu0 %v752
        %780 = vmatprep.subr.bf16.mxu0 0
        %781 = vmatpush1.bf16.msra.mxu0 0
        %782 = vmatprep.subr.bf16.mxu0 0
        %783 = vmatpush1.bf16.msra.mxu0 0
        %784 = vmatprep.subr.bf16.mxu0 0
        %785 = vmatpush1.bf16.msra.mxu0 0
        %786 = vmatprep.mubr.bf16.mxu0 %v655
        %787 = vmatmul.mubr.bf16.gmra.mrb[0].mxu0 %v482
        %v788 = vpop.f32.mrb[0].mxu0
        %v789 = vadd.f32 0.0, %v788
        %v790 = vpop.f32.mrb[0].mxu0
        %v791 = vpop.f32.mrb[0].mxu0
        %v792 = vadd.f32 0.0, %v791
        %v793 = vpop.f32.mrb[0].mxu0
        %794 = vmatprep.mubr.bf16.mxu0 %v658
        %795 = vmatmul.mubr.bf16.gmra.mrb[0].mxu0 %v484
        %v796 = vpop.f32.mrb[0].mxu0
        %v797 = vadd.f32 0.0, %v796
        %v798 = vpop.f32.mrb[0].mxu0
        %v799 = vpop.f32.mrb[0].mxu0
        %v800 = vadd.f32 0.0, %v799
        %v801 = vpop.f32.mrb[0].mxu0
        %802 = vmatprep.mubr.bf16.mxu0 %v661
        %803 = vmatmul.mubr.bf16.gmra.mrb[0].mxu0 %v486
        %v804 = vpop.f32.mrb[0].mxu0
        %v805 = vadd.f32 0.0, %v804
        %v806 = vpop.f32.mrb[0].mxu0
        %v807 = vpop.f32.mrb[0].mxu0
        %v808 = vadd.f32 0.0, %v807
        %v809 = vpop.f32.mrb[0].mxu0
        %810 = vmatprep.mubr.bf16.mxu0 %v664
        %811 = vmatmul.mubr.bf16.gmra.mrb[0].mxu0 %v488
        %v812 = vpop.f32.mrb[0].mxu0
        %v813 = vadd.f32 0.0, %v812
        %v814 = vpop.f32.mrb[0].mxu0
        %v815 = vpop.f32.mrb[0].mxu0
        %v816 = vadd.f32 0.0, %v815
        %v817 = vpop.f32.mrb[0].mxu0
        %818 = vmatprep.mubr.bf16.mxu0 %v667
        %819 = vmatmul.mubr.bf16.gmra.mrb[0].mxu0 %v490
        %v820 = vpop.f32.mrb[0].mxu0
        %v821 = vadd.f32 0.0, %v820
        %v822 = vpop.f32.mrb[0].mxu0
        %v823 = vpop.f32.mrb[0].mxu0
        %v824 = vadd.f32 0.0, %v823
        %v825 = vpop.f32.mrb[0].mxu0
        %826 = vmatprep.mubr.bf16.mxu0 %v670
        %827 = vmatmul.mubr.bf16.gmra.mrb[0].mxu0 %v492
        %v828 = vpop.f32.mrb[0].mxu0
        %v829 = vadd.f32 0.0, %v828
        %v830 = vpop.f32.mrb[0].mxu0
        %v831 = vpop.f32.mrb[0].mxu0
        %v832 = vadd.f32 0.0, %v831
        %v833 = vpop.f32.mrb[0].mxu0
        %834 = vmatprep.mubr.bf16.mxu0 %v673
        %835 = vmatmul.mubr.bf16.gmra.mrb[0].mxu0 %v494
        %v836 = vpop.f32.mrb[0].mxu0
        %v837 = vadd.f32 0.0, %v836
        %v838 = vpop.f32.mrb[0].mxu0
        %v839 = vpop.f32.mrb[0].mxu0
        %v840 = vadd.f32 0.0, %v839
        %v841 = vpop.f32.mrb[0].mxu0
        %842 = vmatprep.mubr.bf16.mxu0 %v676
        %843 = vmatmul.mubr.bf16.gmra.mrb[0].mxu0 %v496
        %v844 = vpop.f32.mrb[0].mxu0
        %v845 = vadd.f32 0.0, %v844
        %v846 = vpop.f32.mrb[0].mxu0
        %v847 = vpop.f32.mrb[0].mxu0
        %v848 = vadd.f32 0.0, %v847
        %v849 = vpop.f32.mrb[0].mxu0
        %850 = vmatprep.mubr.bf16.mxu0 %v679
        %851 = vmatmul.mubr.bf16.gmra.mrb[0].mxu0 %v498
        %v852 = vpop.f32.mrb[0].mxu0
        %v853 = vadd.f32 0.0, %v852
        %v854 = vpop.f32.mrb[0].mxu0
        %v855 = vpop.f32.mrb[0].mxu0
        %v856 = vadd.f32 0.0, %v855
        %v857 = vpop.f32.mrb[0].mxu0
        %858 = vmatprep.mubr.bf16.mxu0 %v682
        %859 = vmatmul.mubr.bf16.gmra.mrb[0].mxu0 %v500
        %v860 = vpop.f32.mrb[0].mxu0
        %v861 = vadd.f32 0.0, %v860
        %v862 = vpop.f32.mrb[0].mxu0
        %v863 = vpop.f32.mrb[0].mxu0
        %v864 = vadd.f32 0.0, %v863
        %v865 = vpop.f32.mrb[0].mxu0
        %866 = vmatprep.mubr.bf16.mxu0 %v685
        %867 = vmatmul.mubr.bf16.gmra.mrb[0].mxu0 %v502
        %v868 = vpop.f32.mrb[0].mxu0
        %v869 = vadd.f32 0.0, %v868
        %v870 = vpop.f32.mrb[0].mxu0
        %v871 = vpop.f32.mrb[0].mxu0
        %v872 = vadd.f32 0.0, %v871
        %v873 = vpop.f32.mrb[0].mxu0
        %874 = vmatprep.mubr.bf16.mxu0 %v688
        %875 = vmatmul.mubr.bf16.gmra.mrb[0].mxu0 %v504
        %v876 = vpop.f32.mrb[0].mxu0
        %v877 = vadd.f32 0.0, %v876
        %v878 = vpop.f32.mrb[0].mxu0
        %v879 = vpop.f32.mrb[0].mxu0
        %v880 = vadd.f32 0.0, %v879
        %v881 = vpop.f32.mrb[0].mxu0
        %882 = vmatprep.mubr.bf16.mxu0 %v691
        %883 = vmatmul.mubr.bf16.gmra.mrb[0].mxu0 %v506
        %v884 = vpop.f32.mrb[0].mxu0
        %v885 = vadd.f32 0.0, %v884
        %v886 = vpop.f32.mrb[0].mxu0
        %v887 = vpop.f32.mrb[0].mxu0
        %v888 = vadd.f32 0.0, %v887
        %v889 = vpop.f32.mrb[0].mxu0
        %890 = vmatprep.mubr.bf16.mxu0 %v694
        %891 = vmatmul.mubr.bf16.gmra.mrb[0].mxu0 %v508
        %v892 = vpop.f32.mrb[0].mxu0
        %v893 = vadd.f32 0.0, %v892
        %v894 = vpop.f32.mrb[0].mxu0
        %v895 = vpop.f32.mrb[0].mxu0
        %v896 = vadd.f32 0.0, %v895
        %v897 = vpop.f32.mrb[0].mxu0
        %898 = vmatprep.mubr.bf16.mxu0 %v697
        %899 = vmatmul.mubr.bf16.gmra.mrb[0].mxu0 %v510
        %v900 = vpop.f32.mrb[0].mxu0
        %v901 = vadd.f32 0.0, %v900
        %v902 = vpop.f32.mrb[0].mxu0
        %v903 = vpop.f32.mrb[0].mxu0
        %v904 = vadd.f32 0.0, %v903
        %v905 = vpop.f32.mrb[0].mxu0
        %906 = vmatprep.mubr.bf16.mxu0 %v700
        %907 = vmatmul.mubr.bf16.gmra.mrb[0].mxu0 %v512
        %v908 = vpop.f32.mrb[0].mxu0
        %v909 = vadd.f32 0.0, %v908
        %v910 = vpop.f32.mrb[0].mxu0
        %v911 = vpop.f32.mrb[0].mxu0
        %v912 = vadd.f32 0.0, %v911
        %v913 = vpop.f32.mrb[0].mxu0
        %914 = vmatprep.mubr.bf16.mxu0 %v703
        %915 = vmatmul.mubr.bf16.gmra.mrb[0].mxu0 %v514
        %v916 = vpop.f32.mrb[0].mxu0
        %v917 = vadd.f32 0.0, %v916
        %v918 = vpop.f32.mrb[0].mxu0
        %v919 = vpop.f32.mrb[0].mxu0
        %v920 = vadd.f32 0.0, %v919
        %v921 = vpop.f32.mrb[0].mxu0
        %922 = vmatprep.mubr.bf16.mxu0 %v706
        %923 = vmatmul.mubr.bf16.gmra.mrb[0].mxu0 %v516
        %v924 = vpop.f32.mrb[0].mxu0
        %v925 = vadd.f32 0.0, %v924
        %v926 = vpop.f32.mrb[0].mxu0
        %v927 = vpop.f32.mrb[0].mxu0
        %v928 = vadd.f32 0.0, %v927
        %v929 = vpop.f32.mrb[0].mxu0
        %930 = vmatprep.mubr.bf16.mxu0 %v709
        %931 = vmatmul.mubr.bf16.gmra.mrb[0].mxu0 %v518
        %v932 = vpop.f32.mrb[0].mxu0
        %v933 = vadd.f32 0.0, %v932
        %v934 = vpop.f32.mrb[0].mxu0
        %v935 = vpop.f32.mrb[0].mxu0
        %v936 = vadd.f32 0.0, %v935
        %v937 = vpop.f32.mrb[0].mxu0
        %938 = vmatprep.mubr.bf16.mxu0 %v712
        %939 = vmatmul.mubr.bf16.gmra.mrb[0].mxu0 %v520
        %v940 = vpop.f32.mrb[0].mxu0
        %v941 = vadd.f32 0.0, %v940
        %v942 = vpop.f32.mrb[0].mxu0
        %v943 = vpop.f32.mrb[0].mxu0
        %v944 = vadd.f32 0.0, %v943
        %v945 = vpop.f32.mrb[0].mxu0
        %946 = vmatprep.mubr.bf16.mxu0 %v715
        %947 = vmatmul.mubr.bf16.gmra.mrb[0].mxu0 %v522
        %v948 = vpop.f32.mrb[0].mxu0
        %v949 = vadd.f32 0.0, %v948
        %v950 = vpop.f32.mrb[0].mxu0
        %v951 = vpop.f32.mrb[0].mxu0
        %v952 = vadd.f32 0.0, %v951
        %v953 = vpop.f32.mrb[0].mxu0
        %954 = vmatprep.mubr.bf16.mxu0 %v718
        %955 = vmatmul.mubr.bf16.gmra.mrb[0].mxu0 %v524
        %v956 = vpop.f32.mrb[0].mxu0
        %v957 = vadd.f32 0.0, %v956
        %v958 = vpop.f32.mrb[0].mxu0
        %v959 = vpop.f32.mrb[0].mxu0
        %v960 = vadd.f32 0.0, %v959
        %v961 = vpop.f32.mrb[0].mxu0
        %962 = vmatprep.mubr.bf16.mxu0 %v721
        %963 = vmatmul.mubr.bf16.gmra.mrb[0].mxu0 %v526
        %v964 = vpop.f32.mrb[0].mxu0
        %v965 = vadd.f32 0.0, %v964
        %v966 = vpop.f32.mrb[0].mxu0
        %v967 = vpop.f32.mrb[0].mxu0
        %v968 = vadd.f32 0.0, %v967
        %v969 = vpop.f32.mrb[0].mxu0
        %970 = vmatprep.mubr.bf16.mxu0 %v724
        %971 = vmatmul.mubr.bf16.gmra.mrb[0].mxu0 %v528
        %v972 = vpop.f32.mrb[0].mxu0
        %v973 = vadd.f32 0.0, %v972
        %v974 = vpop.f32.mrb[0].mxu0
        %v975 = vpop.f32.mrb[0].mxu0
        %v976 = vadd.f32 0.0, %v975
        %v977 = vpop.f32.mrb[0].mxu0
        %978 = vmatprep.mubr.bf16.mxu0 %v727
        %979 = vmatmul.mubr.bf16.gmra.mrb[0].mxu0 %v530
        %v980 = vpop.f32.mrb[0].mxu0
        %v981 = vadd.f32 0.0, %v980
        %v982 = vpop.f32.mrb[0].mxu0
        %v983 = vpop.f32.mrb[0].mxu0
        %v984 = vadd.f32 0.0, %v983
        %v985 = vpop.f32.mrb[0].mxu0
        %986 = vmatprep.mubr.bf16.mxu0 %v730
        %987 = vmatmul.mubr.bf16.gmra.mrb[0].mxu0 %v532
        %v988 = vpop.f32.mrb[0].mxu0
        %v989 = vadd.f32 0.0, %v988
        %v990 = vpop.f32.mrb[0].mxu0
        %v991 = vpop.f32.mrb[0].mxu0
        %v992 = vadd.f32 0.0, %v991
        %v993 = vpop.f32.mrb[0].mxu0
        %994 = vmatprep.mubr.bf16.mxu0 %v733
        %995 = vmatmul.mubr.bf16.gmra.mrb[0].mxu0 %v534
        %v996 = vpop.f32.mrb[0].mxu0
        %v997 = vadd.f32 0.0, %v996
        %v998 = vpop.f32.mrb[0].mxu0
        %v999 = vpop.f32.mrb[0].mxu0
        %v1000 = vadd.f32 0.0, %v999
        %v1001 = vpop.f32.mrb[0].mxu0
        %1002 = vmatprep.mubr.bf16.mxu0 %v736
        %1003 = vmatmul.mubr.bf16.gmra.mrb[0].mxu0 %v536
        %v1004 = vpop.f32.mrb[0].mxu0
        %v1005 = vadd.f32 0.0, %v1004
        %v1006 = vpop.f32.mrb[0].mxu0
        %v1007 = vpop.f32.mrb[0].mxu0
        %v1008 = vadd.f32 0.0, %v1007
        %v1009 = vpop.f32.mrb[0].mxu0
        %1010 = vmatprep.mubr.bf16.mxu0 %v739
        %1011 = vmatmul.mubr.bf16.gmra.mrb[0].mxu0 %v538
        %v1012 = vpop.f32.mrb[0].mxu0
        %v1013 = vadd.f32 0.0, %v1012
        %v1014 = vpop.f32.mrb[0].mxu0
        %v1015 = vpop.f32.mrb[0].mxu0
        %v1016 = vadd.f32 0.0, %v1015
        %v1017 = vpop.f32.mrb[0].mxu0
        %1018 = vmatprep.mubr.bf16.mxu0 %v742
        %1019 = vmatmul.mubr.bf16.gmra.mrb[0].mxu0 %v540
        %v1020 = vpop.f32.mrb[0].mxu0
        %v1021 = vadd.f32 0.0, %v1020
        %v1022 = vpop.f32.mrb[0].mxu0
        %v1023 = vpop.f32.mrb[0].mxu0
        %v1024 = vadd.f32 0.0, %v1023
        %v1025 = vpop.f32.mrb[0].mxu0
        %1026 = vmatprep.mubr.bf16.mxu0 %v745
        %1027 = vmatmul.mubr.bf16.gmra.mrb[0].mxu0 %v542
        %v1028 = vpop.f32.mrb[0].mxu0
        %v1029 = vadd.f32 0.0, %v1028
        %v1030 = vpop.f32.mrb[0].mxu0
        %v1031 = vpop.f32.mrb[0].mxu0
        %v1032 = vadd.f32 0.0, %v1031
        %v1033 = vpop.f32.mrb[0].mxu0
        %1034 = vmatprep.mubr.bf16.mxu0 %v748
        %1035 = vmatmul.mubr.bf16.gmra.mrb[0].mxu0 %v544
        %v1036 = vpop.f32.mrb[0].mxu0
        %v1037 = vadd.f32 0.0, %v1036
        %v1038 = vpop.f32.mrb[0].mxu0
        %v1039 = vpop.f32.mrb[0].mxu0
        %v1040 = vadd.f32 0.0, %v1039
        %v1041 = vpop.f32.mrb[0].mxu0
        %1042 = vdwg.mxu0
        %vm1043 = vcmp.ge.f32.partialorder %v789, 0.0
        %vm1044 = vcmp.ge.f32.partialorder %v792, 0.0
        %vm1045 = vcmp.ge.f32.partialorder %v797, 0.0
        %vm1046 = vcmp.ge.f32.partialorder %v800, 0.0
        %vm1047 = vcmp.ge.f32.partialorder %v805, 0.0
        %vm1048 = vcmp.ge.f32.partialorder %v808, 0.0
        %vm1049 = vcmp.ge.f32.partialorder %v813, 0.0
        %vm1050 = vcmp.ge.f32.partialorder %v816, 0.0
        %vm1051 = vcmp.ge.f32.partialorder %v821, 0.0
        %vm1052 = vcmp.ge.f32.partialorder %v824, 0.0
        %vm1053 = vcmp.ge.f32.partialorder %v829, 0.0
        %vm1054 = vcmp.ge.f32.partialorder %v832, 0.0
        %vm1055 = vcmp.ge.f32.partialorder %v837, 0.0
        %vm1056 = vcmp.ge.f32.partialorder %v840, 0.0
        %vm1057 = vcmp.ge.f32.partialorder %v845, 0.0
        %vm1058 = vcmp.ge.f32.partialorder %v848, 0.0
        %vm1059 = vcmp.ge.f32.partialorder %v853, 0.0
        %vm1060 = vcmp.ge.f32.partialorder %v856, 0.0
        %vm1061 = vcmp.ge.f32.partialorder %v861, 0.0
        %vm1062 = vcmp.ge.f32.partialorder %v864, 0.0
        %vm1063 = vcmp.ge.f32.partialorder %v869, 0.0
        %vm1064 = vcmp.ge.f32.partialorder %v872, 0.0
        %vm1065 = vcmp.ge.f32.partialorder %v877, 0.0
        %vm1066 = vcmp.ge.f32.partialorder %v880, 0.0
        %vm1067 = vcmp.ge.f32.partialorder %v885, 0.0
        %vm1068 = vcmp.ge.f32.partialorder %v888, 0.0
        %vm1069 = vcmp.ge.f32.partialorder %v893, 0.0
        %vm1070 = vcmp.ge.f32.partialorder %v896, 0.0
        %vm1071 = vcmp.ge.f32.partialorder %v901, 0.0
        %vm1072 = vcmp.ge.f32.partialorder %v904, 0.0
        %vm1073 = vcmp.ge.f32.partialorder %v909, 0.0
        %vm1074 = vcmp.ge.f32.partialorder %v912, 0.0
        %vm1075 = vcmp.ge.f32.partialorder %v917, 0.0
        %vm1076 = vcmp.ge.f32.partialorder %v920, 0.0
        %vm1077 = vcmp.ge.f32.partialorder %v925, 0.0
        %vm1078 = vcmp.ge.f32.partialorder %v928, 0.0
        %vm1079 = vcmp.ge.f32.partialorder %v933, 0.0
        %vm1080 = vcmp.ge.f32.partialorder %v936, 0.0
        %vm1081 = vcmp.ge.f32.partialorder %v941, 0.0
        %vm1082 = vcmp.ge.f32.partialorder %v944, 0.0
        %vm1083 = vcmp.ge.f32.partialorder %v949, 0.0
        %vm1084 = vcmp.ge.f32.partialorder %v952, 0.0
        %vm1085 = vcmp.ge.f32.partialorder %v957, 0.0
        %vm1086 = vcmp.ge.f32.partialorder %v960, 0.0
        %vm1087 = vcmp.ge.f32.partialorder %v965, 0.0
        %vm1088 = vcmp.ge.f32.partialorder %v968, 0.0
        %vm1089 = vcmp.ge.f32.partialorder %v973, 0.0
        %vm1090 = vcmp.ge.f32.partialorder %v976, 0.0
        %vm1091 = vcmp.ge.f32.partialorder %v981, 0.0
        %vm1092 = vcmp.ge.f32.partialorder %v984, 0.0
        %vm1093 = vcmp.ge.f32.partialorder %v989, 0.0
        %vm1094 = vcmp.ge.f32.partialorder %v992, 0.0
        %vm1095 = vcmp.ge.f32.partialorder %v997, 0.0
        %vm1096 = vcmp.ge.f32.partialorder %v1000, 0.0
        %vm1097 = vcmp.ge.f32.partialorder %v1005, 0.0
        %vm1098 = vcmp.ge.f32.partialorder %v1008, 0.0
        %vm1099 = vcmp.ge.f32.partialorder %v1013, 0.0
        %vm1100 = vcmp.ge.f32.partialorder %v1016, 0.0
        %vm1101 = vcmp.ge.f32.partialorder %v1021, 0.0
        %vm1102 = vcmp.ge.f32.partialorder %v1024, 0.0
        %vm1103 = vcmp.ge.f32.partialorder %v1029, 0.0
        %vm1104 = vcmp.ge.f32.partialorder %v1032, 0.0
        %vm1105 = vcmp.ge.f32.partialorder %v1037, 0.0
        %vm1106 = vcmp.ge.f32.partialorder %v1040, 0.0
        %v1107 = vmul.f32 %v789, 0.1
        %v1108 = vmul.f32 %v792, 0.1
        %v1109 = vmul.f32 %v797, 0.1
        %v1110 = vmul.f32 %v800, 0.1
        %v1111 = vmul.f32 %v805, 0.1
        %v1112 = vmul.f32 %v808, 0.1
        %v1113 = vmul.f32 %v813, 0.1
        %v1114 = vmul.f32 %v816, 0.1
        %v1115 = vmul.f32 %v821, 0.1
        %v1116 = vmul.f32 %v824, 0.1
        %v1117 = vmul.f32 %v829, 0.1
        %v1118 = vmul.f32 %v832, 0.1
        %v1119 = vmul.f32 %v837, 0.1
        %v1120 = vmul.f32 %v840, 0.1
        %v1121 = vmul.f32 %v845, 0.1
        %v1122 = vmul.f32 %v848, 0.1
        %v1123 = vmul.f32 %v853, 0.1
        %v1124 = vmul.f32 %v856, 0.1
        %v1125 = vmul.f32 %v861, 0.1
        %v1126 = vmul.f32 %v864, 0.1
        %v1127 = vmul.f32 %v869, 0.1
        %v1128 = vmul.f32 %v872, 0.1
        %v1129 = vmul.f32 %v877, 0.1
        %v1130 = vmul.f32 %v880, 0.1
        %v1131 = vmul.f32 %v885, 0.1
        %v1132 = vmul.f32 %v888, 0.1
        %v1133 = vmul.f32 %v893, 0.1
        %v1134 = vmul.f32 %v896, 0.1
        %v1135 = vmul.f32 %v901, 0.1
        %v1136 = vmul.f32 %v904, 0.1
        %v1137 = vmul.f32 %v909, 0.1
        %v1138 = vmul.f32 %v912, 0.1
        %v1139 = vmul.f32 %v917, 0.1
        %v1140 = vmul.f32 %v920, 0.1
        %v1141 = vmul.f32 %v925, 0.1
        %v1142 = vmul.f32 %v928, 0.1
        %v1143 = vmul.f32 %v933, 0.1
        %v1144 = vmul.f32 %v936, 0.1
        %v1145 = vmul.f32 %v941, 0.1
        %v1146 = vmul.f32 %v944, 0.1
        %v1147 = vmul.f32 %v949, 0.1
        %v1148 = vmul.f32 %v952, 0.1
        %v1149 = vmul.f32 %v957, 0.1
        %v1150 = vmul.f32 %v960, 0.1
        %v1151 = vmul.f32 %v965, 0.1
        %v1152 = vmul.f32 %v968, 0.1
        %v1153 = vmul.f32 %v973, 0.1
        %v1154 = vmul.f32 %v976, 0.1
        %v1155 = vmul.f32 %v981, 0.1
        %v1156 = vmul.f32 %v984, 0.1
        %v1157 = vmul.f32 %v989, 0.1
        %v1158 = vmul.f32 %v992, 0.1
        %v1159 = vmul.f32 %v997, 0.1
        %v1160 = vmul.f32 %v1000, 0.1
        %v1161 = vmul.f32 %v1005, 0.1
        %v1162 = vmul.f32 %v1008, 0.1
        %v1163 = vmul.f32 %v1013, 0.1
        %v1164 = vmul.f32 %v1016, 0.1
        %v1165 = vmul.f32 %v1021, 0.1
        %v1166 = vmul.f32 %v1024, 0.1
        %v1167 = vmul.f32 %v1029, 0.1
        %v1168 = vmul.f32 %v1032, 0.1
        %v1169 = vmul.f32 %v1037, 0.1
        %v1170 = vmul.f32 %v1040, 0.1
        %v1171 = vsel %vm1043, %v789, %v1107
        %v1172 = vsel %vm1044, %v792, %v1108
        %v1173 = vsel %vm1045, %v797, %v1109
        %v1174 = vsel %vm1046, %v800, %v1110
        %v1175 = vsel %vm1047, %v805, %v1111
        %v1176 = vsel %vm1048, %v808, %v1112
        %v1177 = vsel %vm1049, %v813, %v1113
        %v1178 = vsel %vm1050, %v816, %v1114
        %v1179 = vsel %vm1051, %v821, %v1115
        %v1180 = vsel %vm1052, %v824, %v1116
        %v1181 = vsel %vm1053, %v829, %v1117
        %v1182 = vsel %vm1054, %v832, %v1118
        %v1183 = vsel %vm1055, %v837, %v1119
        %v1184 = vsel %vm1056, %v840, %v1120
        %v1185 = vsel %vm1057, %v845, %v1121
        %v1186 = vsel %vm1058, %v848, %v1122
        %v1187 = vsel %vm1059, %v853, %v1123
        %v1188 = vsel %vm1060, %v856, %v1124
        %v1189 = vsel %vm1061, %v861, %v1125
        %v1190 = vsel %vm1062, %v864, %v1126
        %v1191 = vsel %vm1063, %v869, %v1127
        %v1192 = vsel %vm1064, %v872, %v1128
        %v1193 = vsel %vm1065, %v877, %v1129
        %v1194 = vsel %vm1066, %v880, %v1130
        %v1195 = vsel %vm1067, %v885, %v1131
        %v1196 = vsel %vm1068, %v888, %v1132
        %v1197 = vsel %vm1069, %v893, %v1133
        %v1198 = vsel %vm1070, %v896, %v1134
        %v1199 = vsel %vm1071, %v901, %v1135
        %v1200 = vsel %vm1072, %v904, %v1136
        %v1201 = vsel %vm1073, %v909, %v1137
        %v1202 = vsel %vm1074, %v912, %v1138
        %v1203 = vsel %vm1075, %v917, %v1139
        %v1204 = vsel %vm1076, %v920, %v1140
        %v1205 = vsel %vm1077, %v925, %v1141
        %v1206 = vsel %vm1078, %v928, %v1142
        %v1207 = vsel %vm1079, %v933, %v1143
        %v1208 = vsel %vm1080, %v936, %v1144
        %v1209 = vsel %vm1081, %v941, %v1145
        %v1210 = vsel %vm1082, %v944, %v1146
        %v1211 = vsel %vm1083, %v949, %v1147
        %v1212 = vsel %vm1084, %v952, %v1148
        %v1213 = vsel %vm1085, %v957, %v1149
        %v1214 = vsel %vm1086, %v960, %v1150
        %v1215 = vsel %vm1087, %v965, %v1151
        %v1216 = vsel %vm1088, %v968, %v1152
        %v1217 = vsel %vm1089, %v973, %v1153
        %v1218 = vsel %vm1090, %v976, %v1154
        %v1219 = vsel %vm1091, %v981, %v1155
        %v1220 = vsel %vm1092, %v984, %v1156
        %v1221 = vsel %vm1093, %v989, %v1157
        %v1222 = vsel %vm1094, %v992, %v1158
        %v1223 = vsel %vm1095, %v997, %v1159
        %v1224 = vsel %vm1096, %v1000, %v1160
        %v1225 = vsel %vm1097, %v1005, %v1161
        %v1226 = vsel %vm1098, %v1008, %v1162
        %v1227 = vsel %vm1099, %v1013, %v1163
        %v1228 = vsel %vm1100, %v1016, %v1164
        %v1229 = vsel %vm1101, %v1021, %v1165
        %v1230 = vsel %vm1102, %v1024, %v1166
        %v1231 = vsel %vm1103, %v1029, %v1167
        %v1232 = vsel %vm1104, %v1032, %v1168
        %v1233 = vsel %vm1105, %v1037, %v1169
        %v1234 = vsel %vm1106, %v1040, %v1170
        %v1235 = vld [vmem:[%s2] sm:$0xf]
        %v1236 = vld [vmem:[%s2 + $0x4] sm:$0xf]
        %v1237 = vpack.c.bf16 %v1172, %v1171
        %v1238 = vpack.c.bf16 %v1174, %v1173
        %v1239 = vpack.c.bf16 %v1176, %v1175
        %v1240 = vpack.c.bf16 %v1178, %v1177
        %v1241 = vpack.c.bf16 %v1180, %v1179
        %v1242 = vpack.c.bf16 %v1182, %v1181
        %v1243 = vpack.c.bf16 %v1184, %v1183
        %v1244 = vpack.c.bf16 %v1186, %v1185
        %v1245 = vpack.c.bf16 %v1188, %v1187
        %v1246 = vpack.c.bf16 %v1190, %v1189
        %v1247 = vpack.c.bf16 %v1192, %v1191
        %v1248 = vpack.c.bf16 %v1194, %v1193
        %v1249 = vpack.c.bf16 %v1196, %v1195
        %v1250 = vpack.c.bf16 %v1198, %v1197
        %v1251 = vpack.c.bf16 %v1200, %v1199
        %v1252 = vpack.c.bf16 %v1202, %v1201
        %v1253 = vpack.c.bf16 %v1204, %v1203
        %v1254 = vpack.c.bf16 %v1206, %v1205
        %v1255 = vpack.c.bf16 %v1208, %v1207
        %v1256 = vpack.c.bf16 %v1210, %v1209
        %v1257 = vpack.c.bf16 %v1212, %v1211
        %v1258 = vpack.c.bf16 %v1214, %v1213
        %v1259 = vpack.c.bf16 %v1216, %v1215
        %v1260 = vpack.c.bf16 %v1218, %v1217
        %v1261 = vpack.c.bf16 %v1220, %v1219
        %v1262 = vpack.c.bf16 %v1222, %v1221
        %v1263 = vpack.c.bf16 %v1224, %v1223
        %v1264 = vpack.c.bf16 %v1226, %v1225
        %v1265 = vpack.c.bf16 %v1228, %v1227
        %v1266 = vpack.c.bf16 %v1230, %v1229
        %v1267 = vpack.c.bf16 %v1232, %v1231
        %v1268 = vpack.c.bf16 %v1234, %v1233
        %v1271 = vunpack.c.l.b16 %v1235
        %v1272 = vunpack.c.l.b16 %v1236
        %v1273 = vpack.c.b16 %v1272, %v1271
        %vm1275 = vcmask 130048
        %v1277 = vsel %vm1275, %v1237, 0
        %v1280 = vsel %vm1275, %v1238, 0
        %v1283 = vsel %vm1275, %v1239, 0
        %v1286 = vsel %vm1275, %v1240, 0
        %v1289 = vsel %vm1275, %v1241, 0
        %v1292 = vsel %vm1275, %v1242, 0
        %v1295 = vsel %vm1275, %v1243, 0
        %v1298 = vsel %vm1275, %v1244, 0
        %v1301 = vsel %vm1275, %v1245, 0
        %v1304 = vsel %vm1275, %v1246, 0
        %v1307 = vsel %vm1275, %v1247, 0
        %v1310 = vsel %vm1275, %v1248, 0
        %v1313 = vsel %vm1275, %v1249, 0
        %v1316 = vsel %vm1275, %v1250, 0
        %v1319 = vsel %vm1275, %v1251, 0
        %v1322 = vsel %vm1275, %v1252, 0
        %v1325 = vsel %vm1275, %v1253, 0
        %v1328 = vsel %vm1275, %v1254, 0
        %v1331 = vsel %vm1275, %v1255, 0
        %v1334 = vsel %vm1275, %v1256, 0
        %v1337 = vsel %vm1275, %v1257, 0
        %v1340 = vsel %vm1275, %v1258, 0
        %v1343 = vsel %vm1275, %v1259, 0
        %v1346 = vsel %vm1275, %v1260, 0
        %v1349 = vsel %vm1275, %v1261, 0
        %v1352 = vsel %vm1275, %v1262, 0
        %v1355 = vsel %vm1275, %v1263, 0
        %v1358 = vsel %vm1275, %v1264, 0
        %v1361 = vsel %vm1275, %v1265, 0
        %v1364 = vsel %vm1275, %v1266, 0
        %v1367 = vsel %vm1275, %v1267, 0
        %v1370 = vsel %vm1275, %v1268, 0
        %1372 = vmatprep.subr.bf16.mxu0 0
        %1373 = vmatpush1.bf16.msra.mxu0 %v1273
        %1374 = vmatprep.subr.bf16.mxu0 0
        %1375 = vmatpush1.bf16.msra.mxu0 0
        %1376 = vmatprep.subr.bf16.mxu0 0
        %1377 = vmatpush1.bf16.msra.mxu0 0
        %1378 = vmatprep.subr.bf16.mxu0 0
        %1379 = vmatpush1.bf16.msra.mxu0 0
        %1380 = vmatprep.subr.bf16.mxu0 0
        %1381 = vmatpush1.bf16.msra.mxu0 0
        %1382 = vmatprep.subr.bf16.mxu0 0
        %1383 = vmatpush1.bf16.msra.mxu0 0
        %1384 = vmatprep.subr.bf16.mxu0 0
        %1385 = vmatpush1.bf16.msra.mxu0 0
        %1386 = vmatprep.subr.bf16.mxu0 0
        %1387 = vmatpush1.bf16.msra.mxu0 0
        %1388 = vmatprep.subr.bf16.mxu0 0
        %1389 = vmatpush1.bf16.msra.mxu0 0
        %1390 = vmatprep.subr.bf16.mxu0 0
        %1391 = vmatpush1.bf16.msra.mxu0 0
        %1392 = vmatprep.subr.bf16.mxu0 0
        %1393 = vmatpush1.bf16.msra.mxu0 0
        %1394 = vmatprep.subr.bf16.mxu0 0
        %1395 = vmatpush1.bf16.msra.mxu0 0
        %1396 = vmatprep.subr.bf16.mxu0 0
        %1397 = vmatpush1.bf16.msra.mxu0 0
        %1398 = vmatprep.subr.bf16.mxu0 0
        %1399 = vmatpush1.bf16.msra.mxu0 0
        %1400 = vmatprep.subr.bf16.mxu0 0
        %1401 = vmatpush1.bf16.msra.mxu0 0
        %1402 = vmatprep.subr.bf16.mxu0 0
        %1403 = vmatpush1.bf16.msra.mxu0 0
        %1404 = vmatprep.mubr.bf16.mxu0 0
        %1405 = vmatmul.mubr.bf16.gmra.mrb[0].mxu0 %v1277
        %v1406 = vpop.f32.mrb[0].mxu0
        %v1407 = vadd.f32 0.0, %v1406
        %v1408 = vpop.f32.mrb[0].mxu0
        %v1409 = vpop.f32.mrb[0].mxu0
        %v1410 = vadd.f32 0.0, %v1409
        %v1411 = vpop.f32.mrb[0].mxu0
        %1412 = vmatprep.mubr.bf16.mxu0 0
        %1413 = vmatmul.mubr.bf16.gmra.mrb[0].mxu0 %v1280
        %v1414 = vpop.f32.mrb[0].mxu0
        %v1415 = vadd.f32 0.0, %v1414
        %v1416 = vpop.f32.mrb[0].mxu0
        %v1417 = vpop.f32.mrb[0].mxu0
        %v1418 = vadd.f32 0.0, %v1417
        %v1419 = vpop.f32.mrb[0].mxu0
        %1420 = vmatprep.mubr.bf16.mxu0 0
        %1421 = vmatmul.mubr.bf16.gmra.mrb[0].mxu0 %v1283
        %v1422 = vpop.f32.mrb[0].mxu0
        %v1423 = vadd.f32 0.0, %v1422
        %v1424 = vpop.f32.mrb[0].mxu0
        %v1425 = vpop.f32.mrb[0].mxu0
        %v1426 = vadd.f32 0.0, %v1425
        %v1427 = vpop.f32.mrb[0].mxu0
        %1428 = vmatprep.mubr.bf16.mxu0 0
        %1429 = vmatmul.mubr.bf16.gmra.mrb[0].mxu0 %v1286
        %v1430 = vpop.f32.mrb[0].mxu0
        %v1431 = vadd.f32 0.0, %v1430
        %v1432 = vpop.f32.mrb[0].mxu0
        %v1433 = vpop.f32.mrb[0].mxu0
        %v1434 = vadd.f32 0.0, %v1433
        %v1435 = vpop.f32.mrb[0].mxu0
        %1436 = vmatprep.mubr.bf16.mxu0 0
        %1437 = vmatmul.mubr.bf16.gmra.mrb[0].mxu0 %v1289
        %v1438 = vpop.f32.mrb[0].mxu0
        %v1439 = vadd.f32 0.0, %v1438
        %v1440 = vpop.f32.mrb[0].mxu0
        %v1441 = vpop.f32.mrb[0].mxu0
        %v1442 = vadd.f32 0.0, %v1441
        %v1443 = vpop.f32.mrb[0].mxu0
        %1444 = vmatprep.mubr.bf16.mxu0 0
        %1445 = vmatmul.mubr.bf16.gmra.mrb[0].mxu0 %v1292
        %v1446 = vpop.f32.mrb[0].mxu0
        %v1447 = vadd.f32 0.0, %v1446
        %v1448 = vpop.f32.mrb[0].mxu0
        %v1449 = vpop.f32.mrb[0].mxu0
        %v1450 = vadd.f32 0.0, %v1449
        %v1451 = vpop.f32.mrb[0].mxu0
        %1452 = vmatprep.mubr.bf16.mxu0 0
        %1453 = vmatmul.mubr.bf16.gmra.mrb[0].mxu0 %v1295
        %v1454 = vpop.f32.mrb[0].mxu0
        %v1455 = vadd.f32 0.0, %v1454
        %v1456 = vpop.f32.mrb[0].mxu0
        %v1457 = vpop.f32.mrb[0].mxu0
        %v1458 = vadd.f32 0.0, %v1457
        %v1459 = vpop.f32.mrb[0].mxu0
        %1460 = vmatprep.mubr.bf16.mxu0 0
        %1461 = vmatmul.mubr.bf16.gmra.mrb[0].mxu0 %v1298
        %v1462 = vpop.f32.mrb[0].mxu0
        %v1463 = vadd.f32 0.0, %v1462
        %v1464 = vpop.f32.mrb[0].mxu0
        %v1465 = vpop.f32.mrb[0].mxu0
        %v1466 = vadd.f32 0.0, %v1465
        %v1467 = vpop.f32.mrb[0].mxu0
        %1468 = vmatprep.mubr.bf16.mxu0 0
        %1469 = vmatmul.mubr.bf16.gmra.mrb[0].mxu0 %v1301
        %v1470 = vpop.f32.mrb[0].mxu0
        %v1471 = vadd.f32 0.0, %v1470
        %v1472 = vpop.f32.mrb[0].mxu0
        %v1473 = vpop.f32.mrb[0].mxu0
        %v1474 = vadd.f32 0.0, %v1473
        %v1475 = vpop.f32.mrb[0].mxu0
        %1476 = vmatprep.mubr.bf16.mxu0 0
        %1477 = vmatmul.mubr.bf16.gmra.mrb[0].mxu0 %v1304
        %v1478 = vpop.f32.mrb[0].mxu0
        %v1479 = vadd.f32 0.0, %v1478
        %v1480 = vpop.f32.mrb[0].mxu0
        %v1481 = vpop.f32.mrb[0].mxu0
        %v1482 = vadd.f32 0.0, %v1481
        %v1483 = vpop.f32.mrb[0].mxu0
        %1484 = vmatprep.mubr.bf16.mxu0 0
        %1485 = vmatmul.mubr.bf16.gmra.mrb[0].mxu0 %v1307
        %v1486 = vpop.f32.mrb[0].mxu0
        %v1487 = vadd.f32 0.0, %v1486
        %v1488 = vpop.f32.mrb[0].mxu0
        %v1489 = vpop.f32.mrb[0].mxu0
        %v1490 = vadd.f32 0.0, %v1489
        %v1491 = vpop.f32.mrb[0].mxu0
        %1492 = vmatprep.mubr.bf16.mxu0 0
        %1493 = vmatmul.mubr.bf16.gmra.mrb[0].mxu0 %v1310
        %v1494 = vpop.f32.mrb[0].mxu0
        %v1495 = vadd.f32 0.0, %v1494
        %v1496 = vpop.f32.mrb[0].mxu0
        %v1497 = vpop.f32.mrb[0].mxu0
        %v1498 = vadd.f32 0.0, %v1497
        %v1499 = vpop.f32.mrb[0].mxu0
        %1500 = vmatprep.mubr.bf16.mxu0 0
        %1501 = vmatmul.mubr.bf16.gmra.mrb[0].mxu0 %v1313
        %v1502 = vpop.f32.mrb[0].mxu0
        %v1503 = vadd.f32 0.0, %v1502
        %v1504 = vpop.f32.mrb[0].mxu0
        %v1505 = vpop.f32.mrb[0].mxu0
        %v1506 = vadd.f32 0.0, %v1505
        %v1507 = vpop.f32.mrb[0].mxu0
        %1508 = vmatprep.mubr.bf16.mxu0 0
        %1509 = vmatmul.mubr.bf16.gmra.mrb[0].mxu0 %v1316
        %v1510 = vpop.f32.mrb[0].mxu0
        %v1511 = vadd.f32 0.0, %v1510
        %v1512 = vpop.f32.mrb[0].mxu0
        %v1513 = vpop.f32.mrb[0].mxu0
        %v1514 = vadd.f32 0.0, %v1513
        %v1515 = vpop.f32.mrb[0].mxu0
        %1516 = vmatprep.mubr.bf16.mxu0 0
        %1517 = vmatmul.mubr.bf16.gmra.mrb[0].mxu0 %v1319
        %v1518 = vpop.f32.mrb[0].mxu0
        %v1519 = vadd.f32 0.0, %v1518
        %v1520 = vpop.f32.mrb[0].mxu0
        %v1521 = vpop.f32.mrb[0].mxu0
        %v1522 = vadd.f32 0.0, %v1521
        %v1523 = vpop.f32.mrb[0].mxu0
        %1524 = vmatprep.mubr.bf16.mxu0 0
        %1525 = vmatmul.mubr.bf16.gmra.mrb[0].mxu0 %v1322
        %v1526 = vpop.f32.mrb[0].mxu0
        %v1527 = vadd.f32 0.0, %v1526
        %v1528 = vpop.f32.mrb[0].mxu0
        %v1529 = vpop.f32.mrb[0].mxu0
        %v1530 = vadd.f32 0.0, %v1529
        %v1531 = vpop.f32.mrb[0].mxu0
        %1532 = vmatprep.mubr.bf16.mxu0 0
        %1533 = vmatmul.mubr.bf16.gmra.mrb[0].mxu0 %v1325
        %v1534 = vpop.f32.mrb[0].mxu0
        %v1535 = vadd.f32 0.0, %v1534
        %v1536 = vpop.f32.mrb[0].mxu0
        %v1537 = vpop.f32.mrb[0].mxu0
        %v1538 = vadd.f32 0.0, %v1537
        %v1539 = vpop.f32.mrb[0].mxu0
        %1540 = vmatprep.mubr.bf16.mxu0 0
        %1541 = vmatmul.mubr.bf16.gmra.mrb[0].mxu0 %v1328
        %v1542 = vpop.f32.mrb[0].mxu0
        %v1543 = vadd.f32 0.0, %v1542
        %v1544 = vpop.f32.mrb[0].mxu0
        %v1545 = vpop.f32.mrb[0].mxu0
        %v1546 = vadd.f32 0.0, %v1545
        %v1547 = vpop.f32.mrb[0].mxu0
        %1548 = vmatprep.mubr.bf16.mxu0 0
        %1549 = vmatmul.mubr.bf16.gmra.mrb[0].mxu0 %v1331
        %v1550 = vpop.f32.mrb[0].mxu0
        %v1551 = vadd.f32 0.0, %v1550
        %v1552 = vpop.f32.mrb[0].mxu0
        %v1553 = vpop.f32.mrb[0].mxu0
        %v1554 = vadd.f32 0.0, %v1553
        %v1555 = vpop.f32.mrb[0].mxu0
        %1556 = vmatprep.mubr.bf16.mxu0 0
        %1557 = vmatmul.mubr.bf16.gmra.mrb[0].mxu0 %v1334
        %v1558 = vpop.f32.mrb[0].mxu0
        %v1559 = vadd.f32 0.0, %v1558
        %v1560 = vpop.f32.mrb[0].mxu0
        %v1561 = vpop.f32.mrb[0].mxu0
        %v1562 = vadd.f32 0.0, %v1561
        %v1563 = vpop.f32.mrb[0].mxu0
        %1564 = vmatprep.mubr.bf16.mxu0 0
        %1565 = vmatmul.mubr.bf16.gmra.mrb[0].mxu0 %v1337
        %v1566 = vpop.f32.mrb[0].mxu0
        %v1567 = vadd.f32 0.0, %v1566
        %v1568 = vpop.f32.mrb[0].mxu0
        %v1569 = vpop.f32.mrb[0].mxu0
        %v1570 = vadd.f32 0.0, %v1569
        %v1571 = vpop.f32.mrb[0].mxu0
        %1572 = vmatprep.mubr.bf16.mxu0 0
        %1573 = vmatmul.mubr.bf16.gmra.mrb[0].mxu0 %v1340
        %v1574 = vpop.f32.mrb[0].mxu0
        %v1575 = vadd.f32 0.0, %v1574
        %v1576 = vpop.f32.mrb[0].mxu0
        %v1577 = vpop.f32.mrb[0].mxu0
        %v1578 = vadd.f32 0.0, %v1577
        %v1579 = vpop.f32.mrb[0].mxu0
        %1580 = vmatprep.mubr.bf16.mxu0 0
        %1581 = vmatmul.mubr.bf16.gmra.mrb[0].mxu0 %v1343
        %v1582 = vpop.f32.mrb[0].mxu0
        %v1583 = vadd.f32 0.0, %v1582
        %v1584 = vpop.f32.mrb[0].mxu0
        %v1585 = vpop.f32.mrb[0].mxu0
        %v1586 = vadd.f32 0.0, %v1585
        %v1587 = vpop.f32.mrb[0].mxu0
        %1588 = vmatprep.mubr.bf16.mxu0 0
        %1589 = vmatmul.mubr.bf16.gmra.mrb[0].mxu0 %v1346
        %v1590 = vpop.f32.mrb[0].mxu0
        %v1591 = vadd.f32 0.0, %v1590
        %v1592 = vpop.f32.mrb[0].mxu0
        %v1593 = vpop.f32.mrb[0].mxu0
        %v1594 = vadd.f32 0.0, %v1593
        %v1595 = vpop.f32.mrb[0].mxu0
        %1596 = vmatprep.mubr.bf16.mxu0 0
        %1597 = vmatmul.mubr.bf16.gmra.mrb[0].mxu0 %v1349
        %v1598 = vpop.f32.mrb[0].mxu0
        %v1599 = vadd.f32 0.0, %v1598
        %v1600 = vpop.f32.mrb[0].mxu0
        %v1601 = vpop.f32.mrb[0].mxu0
        %v1602 = vadd.f32 0.0, %v1601
        %v1603 = vpop.f32.mrb[0].mxu0
        %1604 = vmatprep.mubr.bf16.mxu0 0
        %1605 = vmatmul.mubr.bf16.gmra.mrb[0].mxu0 %v1352
        %v1606 = vpop.f32.mrb[0].mxu0
        %v1607 = vadd.f32 0.0, %v1606
        %v1608 = vpop.f32.mrb[0].mxu0
        %v1609 = vpop.f32.mrb[0].mxu0
        %v1610 = vadd.f32 0.0, %v1609
        %v1611 = vpop.f32.mrb[0].mxu0
        %1612 = vmatprep.mubr.bf16.mxu0 0
        %1613 = vmatmul.mubr.bf16.gmra.mrb[0].mxu0 %v1355
        %v1614 = vpop.f32.mrb[0].mxu0
        %v1615 = vadd.f32 0.0, %v1614
        %v1616 = vpop.f32.mrb[0].mxu0
        %v1617 = vpop.f32.mrb[0].mxu0
        %v1618 = vadd.f32 0.0, %v1617
        %v1619 = vpop.f32.mrb[0].mxu0
        %1620 = vmatprep.mubr.bf16.mxu0 0
        %1621 = vmatmul.mubr.bf16.gmra.mrb[0].mxu0 %v1358
        %v1622 = vpop.f32.mrb[0].mxu0
        %v1623 = vadd.f32 0.0, %v1622
        %v1624 = vpop.f32.mrb[0].mxu0
        %v1625 = vpop.f32.mrb[0].mxu0
        %v1626 = vadd.f32 0.0, %v1625
        %v1627 = vpop.f32.mrb[0].mxu0
        %1628 = vmatprep.mubr.bf16.mxu0 0
        %1629 = vmatmul.mubr.bf16.gmra.mrb[0].mxu0 %v1361
        %v1630 = vpop.f32.mrb[0].mxu0
        %v1631 = vadd.f32 0.0, %v1630
        %v1632 = vpop.f32.mrb[0].mxu0
        %v1633 = vpop.f32.mrb[0].mxu0
        %v1634 = vadd.f32 0.0, %v1633
        %v1635 = vpop.f32.mrb[0].mxu0
        %1636 = vmatprep.mubr.bf16.mxu0 0
        %1637 = vmatmul.mubr.bf16.gmra.mrb[0].mxu0 %v1364
        %v1638 = vpop.f32.mrb[0].mxu0
        %v1639 = vadd.f32 0.0, %v1638
        %v1640 = vpop.f32.mrb[0].mxu0
        %v1641 = vpop.f32.mrb[0].mxu0
        %v1642 = vadd.f32 0.0, %v1641
        %v1643 = vpop.f32.mrb[0].mxu0
        %1644 = vmatprep.mubr.bf16.mxu0 0
        %1645 = vmatmul.mubr.bf16.gmra.mrb[0].mxu0 %v1367
        %v1646 = vpop.f32.mrb[0].mxu0
        %v1647 = vadd.f32 0.0, %v1646
        %v1648 = vpop.f32.mrb[0].mxu0
        %v1649 = vpop.f32.mrb[0].mxu0
        %v1650 = vadd.f32 0.0, %v1649
        %v1651 = vpop.f32.mrb[0].mxu0
        %1652 = vmatprep.mubr.bf16.mxu0 0
        %1653 = vmatmul.mubr.bf16.gmra.mrb[0].mxu0 %v1370
        %v1654 = vpop.f32.mrb[0].mxu0
        %v1655 = vadd.f32 0.0, %v1654
        %v1656 = vpop.f32.mrb[0].mxu0
        %v1657 = vpop.f32.mrb[0].mxu0
        %v1658 = vadd.f32 0.0, %v1657
        %v1659 = vpop.f32.mrb[0].mxu0
        %1660 = vdwg.mxu0
        %vm1661 = vcmp.ge.f32.partialorder %v1407, 0.0
        %vm1662 = vcmp.ge.f32.partialorder %v1410, 0.0
        %vm1663 = vcmp.ge.f32.partialorder %v1415, 0.0
        %vm1664 = vcmp.ge.f32.partialorder %v1418, 0.0
        %vm1665 = vcmp.ge.f32.partialorder %v1423, 0.0
        %vm1666 = vcmp.ge.f32.partialorder %v1426, 0.0
        %vm1667 = vcmp.ge.f32.partialorder %v1431, 0.0
        %vm1668 = vcmp.ge.f32.partialorder %v1434, 0.0
        %vm1669 = vcmp.ge.f32.partialorder %v1439, 0.0
        %vm1670 = vcmp.ge.f32.partialorder %v1442, 0.0
        %vm1671 = vcmp.ge.f32.partialorder %v1447, 0.0
        %vm1672 = vcmp.ge.f32.partialorder %v1450, 0.0
        %vm1673 = vcmp.ge.f32.partialorder %v1455, 0.0
        %vm1674 = vcmp.ge.f32.partialorder %v1458, 0.0
        %vm1675 = vcmp.ge.f32.partialorder %v1463, 0.0
        %vm1676 = vcmp.ge.f32.partialorder %v1466, 0.0
        %vm1677 = vcmp.ge.f32.partialorder %v1471, 0.0
        %vm1678 = vcmp.ge.f32.partialorder %v1474, 0.0
        %vm1679 = vcmp.ge.f32.partialorder %v1479, 0.0
        %vm1680 = vcmp.ge.f32.partialorder %v1482, 0.0
        %vm1681 = vcmp.ge.f32.partialorder %v1487, 0.0
        %vm1682 = vcmp.ge.f32.partialorder %v1490, 0.0
        %vm1683 = vcmp.ge.f32.partialorder %v1495, 0.0
        %vm1684 = vcmp.ge.f32.partialorder %v1498, 0.0
        %vm1685 = vcmp.ge.f32.partialorder %v1503, 0.0
        %vm1686 = vcmp.ge.f32.partialorder %v1506, 0.0
        %vm1687 = vcmp.ge.f32.partialorder %v1511, 0.0
        %vm1688 = vcmp.ge.f32.partialorder %v1514, 0.0
        %vm1689 = vcmp.ge.f32.partialorder %v1519, 0.0
        %vm1690 = vcmp.ge.f32.partialorder %v1522, 0.0
        %vm1691 = vcmp.ge.f32.partialorder %v1527, 0.0
        %vm1692 = vcmp.ge.f32.partialorder %v1530, 0.0
        %vm1693 = vcmp.ge.f32.partialorder %v1535, 0.0
        %vm1694 = vcmp.ge.f32.partialorder %v1538, 0.0
        %vm1695 = vcmp.ge.f32.partialorder %v1543, 0.0
        %vm1696 = vcmp.ge.f32.partialorder %v1546, 0.0
        %vm1697 = vcmp.ge.f32.partialorder %v1551, 0.0
        %vm1698 = vcmp.ge.f32.partialorder %v1554, 0.0
        %vm1699 = vcmp.ge.f32.partialorder %v1559, 0.0
        %vm1700 = vcmp.ge.f32.partialorder %v1562, 0.0
        %vm1701 = vcmp.ge.f32.partialorder %v1567, 0.0
        %vm1702 = vcmp.ge.f32.partialorder %v1570, 0.0
        %vm1703 = vcmp.ge.f32.partialorder %v1575, 0.0
        %vm1704 = vcmp.ge.f32.partialorder %v1578, 0.0
        %vm1705 = vcmp.ge.f32.partialorder %v1583, 0.0
        %vm1706 = vcmp.ge.f32.partialorder %v1586, 0.0
        %vm1707 = vcmp.ge.f32.partialorder %v1591, 0.0
        %vm1708 = vcmp.ge.f32.partialorder %v1594, 0.0
        %vm1709 = vcmp.ge.f32.partialorder %v1599, 0.0
        %vm1710 = vcmp.ge.f32.partialorder %v1602, 0.0
        %vm1711 = vcmp.ge.f32.partialorder %v1607, 0.0
        %vm1712 = vcmp.ge.f32.partialorder %v1610, 0.0
        %vm1713 = vcmp.ge.f32.partialorder %v1615, 0.0
        %vm1714 = vcmp.ge.f32.partialorder %v1618, 0.0
        %vm1715 = vcmp.ge.f32.partialorder %v1623, 0.0
        %vm1716 = vcmp.ge.f32.partialorder %v1626, 0.0
        %vm1717 = vcmp.ge.f32.partialorder %v1631, 0.0
        %vm1718 = vcmp.ge.f32.partialorder %v1634, 0.0
        %vm1719 = vcmp.ge.f32.partialorder %v1639, 0.0
        %vm1720 = vcmp.ge.f32.partialorder %v1642, 0.0
        %vm1721 = vcmp.ge.f32.partialorder %v1647, 0.0
        %vm1722 = vcmp.ge.f32.partialorder %v1650, 0.0
        %vm1723 = vcmp.ge.f32.partialorder %v1655, 0.0
        %vm1724 = vcmp.ge.f32.partialorder %v1658, 0.0
        %v1725 = vmul.f32 %v1407, 0.1
        %v1726 = vmul.f32 %v1410, 0.1
        %v1727 = vmul.f32 %v1415, 0.1
        %v1728 = vmul.f32 %v1418, 0.1
        %v1729 = vmul.f32 %v1423, 0.1
        %v1730 = vmul.f32 %v1426, 0.1
        %v1731 = vmul.f32 %v1431, 0.1
        %v1732 = vmul.f32 %v1434, 0.1
        %v1733 = vmul.f32 %v1439, 0.1
        %v1734 = vmul.f32 %v1442, 0.1
        %v1735 = vmul.f32 %v1447, 0.1
        %v1736 = vmul.f32 %v1450, 0.1
        %v1737 = vmul.f32 %v1455, 0.1
        %v1738 = vmul.f32 %v1458, 0.1
        %v1739 = vmul.f32 %v1463, 0.1
        %v1740 = vmul.f32 %v1466, 0.1
        %v1741 = vmul.f32 %v1471, 0.1
        %v1742 = vmul.f32 %v1474, 0.1
        %v1743 = vmul.f32 %v1479, 0.1
        %v1744 = vmul.f32 %v1482, 0.1
        %v1745 = vmul.f32 %v1487, 0.1
        %v1746 = vmul.f32 %v1490, 0.1
        %v1747 = vmul.f32 %v1495, 0.1
        %v1748 = vmul.f32 %v1498, 0.1
        %v1749 = vmul.f32 %v1503, 0.1
        %v1750 = vmul.f32 %v1506, 0.1
        %v1751 = vmul.f32 %v1511, 0.1
        %v1752 = vmul.f32 %v1514, 0.1
        %v1753 = vmul.f32 %v1519, 0.1
        %v1754 = vmul.f32 %v1522, 0.1
        %v1755 = vmul.f32 %v1527, 0.1
        %v1756 = vmul.f32 %v1530, 0.1
        %v1757 = vmul.f32 %v1535, 0.1
        %v1758 = vmul.f32 %v1538, 0.1
        %v1759 = vmul.f32 %v1543, 0.1
        %v1760 = vmul.f32 %v1546, 0.1
        %v1761 = vmul.f32 %v1551, 0.1
        %v1762 = vmul.f32 %v1554, 0.1
        %v1763 = vmul.f32 %v1559, 0.1
        %v1764 = vmul.f32 %v1562, 0.1
        %v1765 = vmul.f32 %v1567, 0.1
        %v1766 = vmul.f32 %v1570, 0.1
        %v1767 = vmul.f32 %v1575, 0.1
        %v1768 = vmul.f32 %v1578, 0.1
        %v1769 = vmul.f32 %v1583, 0.1
        %v1770 = vmul.f32 %v1586, 0.1
        %v1771 = vmul.f32 %v1591, 0.1
        %v1772 = vmul.f32 %v1594, 0.1
        %v1773 = vmul.f32 %v1599, 0.1
        %v1774 = vmul.f32 %v1602, 0.1
        %v1775 = vmul.f32 %v1607, 0.1
        %v1776 = vmul.f32 %v1610, 0.1
        %v1777 = vmul.f32 %v1615, 0.1
        %v1778 = vmul.f32 %v1618, 0.1
        %v1779 = vmul.f32 %v1623, 0.1
        %v1780 = vmul.f32 %v1626, 0.1
        %v1781 = vmul.f32 %v1631, 0.1
        %v1782 = vmul.f32 %v1634, 0.1
        %v1783 = vmul.f32 %v1639, 0.1
        %v1784 = vmul.f32 %v1642, 0.1
        %v1785 = vmul.f32 %v1647, 0.1
        %v1786 = vmul.f32 %v1650, 0.1
        %v1787 = vmul.f32 %v1655, 0.1
        %v1788 = vmul.f32 %v1658, 0.1
        %v1789 = vsel %vm1661, %v1407, %v1725
        %v1790 = vsel %vm1662, %v1410, %v1726
        %v1791 = vsel %vm1663, %v1415, %v1727
        %v1792 = vsel %vm1664, %v1418, %v1728
        %v1793 = vsel %vm1665, %v1423, %v1729
        %v1794 = vsel %vm1666, %v1426, %v1730
        %v1795 = vsel %vm1667, %v1431, %v1731
        %v1796 = vsel %vm1668, %v1434, %v1732
        %v1797 = vsel %vm1669, %v1439, %v1733
        %v1798 = vsel %vm1670, %v1442, %v1734
        %v1799 = vsel %vm1671, %v1447, %v1735
        %v1800 = vsel %vm1672, %v1450, %v1736
        %v1801 = vsel %vm1673, %v1455, %v1737
        %v1802 = vsel %vm1674, %v1458, %v1738
        %v1803 = vsel %vm1675, %v1463, %v1739
        %v1804 = vsel %vm1676, %v1466, %v1740
        %v1805 = vsel %vm1677, %v1471, %v1741
        %v1806 = vsel %vm1678, %v1474, %v1742
        %v1807 = vsel %vm1679, %v1479, %v1743
        %v1808 = vsel %vm1680, %v1482, %v1744
        %v1809 = vsel %vm1681, %v1487, %v1745
        %v1810 = vsel %vm1682, %v1490, %v1746
        %v1811 = vsel %vm1683, %v1495, %v1747
        %v1812 = vsel %vm1684, %v1498, %v1748
        %v1813 = vsel %vm1685, %v1503, %v1749
        %v1814 = vsel %vm1686, %v1506, %v1750
        %v1815 = vsel %vm1687, %v1511, %v1751
        %v1816 = vsel %vm1688, %v1514, %v1752
        %v1817 = vsel %vm1689, %v1519, %v1753
        %v1818 = vsel %vm1690, %v1522, %v1754
        %v1819 = vsel %vm1691, %v1527, %v1755
        %v1820 = vsel %vm1692, %v1530, %v1756
        %v1821 = vsel %vm1693, %v1535, %v1757
        %v1822 = vsel %vm1694, %v1538, %v1758
        %v1823 = vsel %vm1695, %v1543, %v1759
        %v1824 = vsel %vm1696, %v1546, %v1760
        %v1825 = vsel %vm1697, %v1551, %v1761
        %v1826 = vsel %vm1698, %v1554, %v1762
        %v1827 = vsel %vm1699, %v1559, %v1763
        %v1828 = vsel %vm1700, %v1562, %v1764
        %v1829 = vsel %vm1701, %v1567, %v1765
        %v1830 = vsel %vm1702, %v1570, %v1766
        %v1831 = vsel %vm1703, %v1575, %v1767
        %v1832 = vsel %vm1704, %v1578, %v1768
        %v1833 = vsel %vm1705, %v1583, %v1769
        %v1834 = vsel %vm1706, %v1586, %v1770
        %v1835 = vsel %vm1707, %v1591, %v1771
        %v1836 = vsel %vm1708, %v1594, %v1772
        %v1837 = vsel %vm1709, %v1599, %v1773
        %v1838 = vsel %vm1710, %v1602, %v1774
        %v1839 = vsel %vm1711, %v1607, %v1775
        %v1840 = vsel %vm1712, %v1610, %v1776
        %v1841 = vsel %vm1713, %v1615, %v1777
        %v1842 = vsel %vm1714, %v1618, %v1778
        %v1843 = vsel %vm1715, %v1623, %v1779
        %v1844 = vsel %vm1716, %v1626, %v1780
        %v1845 = vsel %vm1717, %v1631, %v1781
        %v1846 = vsel %vm1718, %v1634, %v1782
        %v1847 = vsel %vm1719, %v1639, %v1783
        %v1848 = vsel %vm1720, %v1642, %v1784
        %v1849 = vsel %vm1721, %v1647, %v1785
        %v1850 = vsel %vm1722, %v1650, %v1786
        %v1851 = vsel %vm1723, %v1655, %v1787
        %v1852 = vsel %vm1724, %v1658, %v1788
        %v1853 = vpack.c.bf16 %v1790, %v1789
        %v1854 = vpack.c.bf16 %v1792, %v1791
        %v1855 = vpack.c.bf16 %v1794, %v1793
        %v1856 = vpack.c.bf16 %v1796, %v1795
        %v1857 = vpack.c.bf16 %v1798, %v1797
        %v1858 = vpack.c.bf16 %v1800, %v1799
        %v1859 = vpack.c.bf16 %v1802, %v1801
        %v1860 = vpack.c.bf16 %v1804, %v1803
        %v1861 = vpack.c.bf16 %v1806, %v1805
        %v1862 = vpack.c.bf16 %v1808, %v1807
        %v1863 = vpack.c.bf16 %v1810, %v1809
        %v1864 = vpack.c.bf16 %v1812, %v1811
        %v1865 = vpack.c.bf16 %v1814, %v1813
        %v1866 = vpack.c.bf16 %v1816, %v1815
        %v1867 = vpack.c.bf16 %v1818, %v1817
        %v1868 = vpack.c.bf16 %v1820, %v1819
        %v1869 = vpack.c.bf16 %v1822, %v1821
        %v1870 = vpack.c.bf16 %v1824, %v1823
        %v1871 = vpack.c.bf16 %v1826, %v1825
        %v1872 = vpack.c.bf16 %v1828, %v1827
        %v1873 = vpack.c.bf16 %v1830, %v1829
        %v1874 = vpack.c.bf16 %v1832, %v1831
        %v1875 = vpack.c.bf16 %v1834, %v1833
        %v1876 = vpack.c.bf16 %v1836, %v1835
        %v1877 = vpack.c.bf16 %v1838, %v1837
        %v1878 = vpack.c.bf16 %v1840, %v1839
        %v1879 = vpack.c.bf16 %v1842, %v1841
        %v1880 = vpack.c.bf16 %v1844, %v1843
        %v1881 = vpack.c.bf16 %v1846, %v1845
        %v1882 = vpack.c.bf16 %v1848, %v1847
        %v1883 = vpack.c.bf16 %v1850, %v1849
        %v1884 = vpack.c.bf16 %v1852, %v1851
        %v1917 = vunpack.c.l.b16 %v1853
        %v1918 = vunpack.c.h.b16 %v1853
        %v1919 = vunpack.c.l.b16 %v1854
        %v1920 = vunpack.c.h.b16 %v1854
        %v1921 = vunpack.c.l.b16 %v1855
        %v1922 = vunpack.c.h.b16 %v1855
        %v1923 = vunpack.c.l.b16 %v1856
        %v1924 = vunpack.c.h.b16 %v1856
        %v1925 = vunpack.c.l.b16 %v1857
        %v1926 = vunpack.c.h.b16 %v1857
        %v1927 = vunpack.c.l.b16 %v1858
        %v1928 = vunpack.c.h.b16 %v1858
        %v1929 = vunpack.c.l.b16 %v1859
        %v1930 = vunpack.c.h.b16 %v1859
        %v1931 = vunpack.c.l.b16 %v1860
        %v1932 = vunpack.c.h.b16 %v1860
        %v1933 = vunpack.c.l.b16 %v1861
        %v1934 = vunpack.c.h.b16 %v1861
        %v1935 = vunpack.c.l.b16 %v1862
        %v1936 = vunpack.c.h.b16 %v1862
        %v1937 = vunpack.c.l.b16 %v1863
        %v1938 = vunpack.c.h.b16 %v1863
        %v1939 = vunpack.c.l.b16 %v1864
        %v1940 = vunpack.c.h.b16 %v1864
        %v1941 = vunpack.c.l.b16 %v1865
        %v1942 = vunpack.c.h.b16 %v1865
        %v1943 = vunpack.c.l.b16 %v1866
        %v1944 = vunpack.c.h.b16 %v1866
        %v1945 = vunpack.c.l.b16 %v1867
        %v1946 = vunpack.c.h.b16 %v1867
        %v1947 = vunpack.c.l.b16 %v1868
        %v1948 = vunpack.c.h.b16 %v1868
        %v1949 = vunpack.c.l.b16 %v1869
        %v1950 = vunpack.c.h.b16 %v1869
        %v1951 = vunpack.c.l.b16 %v1870
        %v1952 = vunpack.c.h.b16 %v1870
        %v1953 = vunpack.c.l.b16 %v1871
        %v1954 = vunpack.c.h.b16 %v1871
        %v1955 = vunpack.c.l.b16 %v1872
        %v1956 = vunpack.c.h.b16 %v1872
        %v1957 = vunpack.c.l.b16 %v1873
        %v1958 = vunpack.c.h.b16 %v1873
        %v1959 = vunpack.c.l.b16 %v1874
        %v1960 = vunpack.c.h.b16 %v1874
        %v1961 = vunpack.c.l.b16 %v1875
        %v1962 = vunpack.c.h.b16 %v1875
        %v1963 = vunpack.c.l.b16 %v1876
        %v1964 = vunpack.c.h.b16 %v1876
        %v1965 = vunpack.c.l.b16 %v1877
        %v1966 = vunpack.c.h.b16 %v1877
        %v1967 = vunpack.c.l.b16 %v1878
        %v1968 = vunpack.c.h.b16 %v1878
        %v1969 = vunpack.c.l.b16 %v1879
        %v1970 = vunpack.c.h.b16 %v1879
        %v1971 = vunpack.c.l.b16 %v1880
        %v1972 = vunpack.c.h.b16 %v1880
        %v1973 = vunpack.c.l.b16 %v1881
        %v1974 = vunpack.c.h.b16 %v1881
        %v1975 = vunpack.c.l.b16 %v1882
        %v1976 = vunpack.c.h.b16 %v1882
        %v1977 = vunpack.c.l.b16 %v1883
        %v1978 = vunpack.c.h.b16 %v1883
        %v1979 = vunpack.c.l.b16 %v1884
        %v1980 = vunpack.c.h.b16 %v1884
        %v1981 = vpack.c.b16 %v1917, %v1917
        %v1982 = vpack.c.b16 %v1918, %v1918
        %v1983 = vpack.c.b16 %v1919, %v1919
        %v1984 = vpack.c.b16 %v1920, %v1920
        %v1985 = vpack.c.b16 %v1921, %v1921
        %v1986 = vpack.c.b16 %v1922, %v1922
        %v1987 = vpack.c.b16 %v1923, %v1923
        %v1988 = vpack.c.b16 %v1924, %v1924
        %v1989 = vpack.c.b16 %v1925, %v1925
        %v1990 = vpack.c.b16 %v1926, %v1926
        %v1991 = vpack.c.b16 %v1927, %v1927
        %v1992 = vpack.c.b16 %v1928, %v1928
        %v1993 = vpack.c.b16 %v1929, %v1929
        %v1994 = vpack.c.b16 %v1930, %v1930
        %v1995 = vpack.c.b16 %v1931, %v1931
        %v1996 = vpack.c.b16 %v1932, %v1932
        %v1997 = vpack.c.b16 %v1933, %v1933
        %v1998 = vpack.c.b16 %v1934, %v1934
        %v1999 = vpack.c.b16 %v1935, %v1935
        %v2000 = vpack.c.b16 %v1936, %v1936
        %v2001 = vpack.c.b16 %v1937, %v1937
        %v2002 = vpack.c.b16 %v1938, %v1938
        %v2003 = vpack.c.b16 %v1939, %v1939
        %v2004 = vpack.c.b16 %v1940, %v1940
        %v2005 = vpack.c.b16 %v1941, %v1941
        %v2006 = vpack.c.b16 %v1942, %v1942
        %v2007 = vpack.c.b16 %v1943, %v1943
        %v2008 = vpack.c.b16 %v1944, %v1944
        %v2009 = vpack.c.b16 %v1945, %v1945
        %v2010 = vpack.c.b16 %v1946, %v1946
        %v2011 = vpack.c.b16 %v1947, %v1947
        %v2012 = vpack.c.b16 %v1948, %v1948
        %v2013 = vpack.c.b16 %v1949, %v1949
        %v2014 = vpack.c.b16 %v1950, %v1950
        %v2015 = vpack.c.b16 %v1951, %v1951
        %v2016 = vpack.c.b16 %v1952, %v1952
        %v2017 = vpack.c.b16 %v1953, %v1953
        %v2018 = vpack.c.b16 %v1954, %v1954
        %v2019 = vpack.c.b16 %v1955, %v1955
        %v2020 = vpack.c.b16 %v1956, %v1956
        %v2021 = vpack.c.b16 %v1957, %v1957
        %v2022 = vpack.c.b16 %v1958, %v1958
        %v2023 = vpack.c.b16 %v1959, %v1959
        %v2024 = vpack.c.b16 %v1960, %v1960
        %v2025 = vpack.c.b16 %v1961, %v1961
        %v2026 = vpack.c.b16 %v1962, %v1962
        %v2027 = vpack.c.b16 %v1963, %v1963
        %v2028 = vpack.c.b16 %v1964, %v1964
        %v2029 = vpack.c.b16 %v1965, %v1965
        %v2030 = vpack.c.b16 %v1966, %v1966
        %v2031 = vpack.c.b16 %v1967, %v1967
        %v2032 = vpack.c.b16 %v1968, %v1968
        %v2033 = vpack.c.b16 %v1969, %v1969
        %v2034 = vpack.c.b16 %v1970, %v1970
        %v2035 = vpack.c.b16 %v1971, %v1971
        %v2036 = vpack.c.b16 %v1972, %v1972
        %v2037 = vpack.c.b16 %v1973, %v1973
        %v2038 = vpack.c.b16 %v1974, %v1974
        %v2039 = vpack.c.b16 %v1975, %v1975
        %v2040 = vpack.c.b16 %v1976, %v1976
        %v2041 = vpack.c.b16 %v1977, %v1977
        %v2042 = vpack.c.b16 %v1978, %v1978
        %v2043 = vpack.c.b16 %v1979, %v1979
        %v2044 = vpack.c.b16 %v1980, %v1980
        %vm2109 = vcmask 158720
        %2110 = vst.msk [vmem:[%s177] sm:$0xf] %vm2109, %v1981
        %2111 = vst.msk [vmem:[%s177 + $0x4] sm:$0xf] %vm2109, %v1982
        %2112 = vst.msk [vmem:[%s177 + $0x8] sm:$0xf] %vm2109, %v1983
        %2113 = vst.msk [vmem:[%s177 + $0xc] sm:$0xf] %vm2109, %v1984
        %2114 = vst.msk [vmem:[%s177 + $0x10] sm:$0xf] %vm2109, %v1985
        %2115 = vst.msk [vmem:[%s177 + $0x14] sm:$0xf] %vm2109, %v1986
        %2116 = vst.msk [vmem:[%s177 + $0x18] sm:$0xf] %vm2109, %v1987
        %2117 = vst.msk [vmem:[%s177 + $0x1c] sm:$0xf] %vm2109, %v1988
        %2118 = vst.msk [vmem:[%s177 + $0x20] sm:$0xf] %vm2109, %v1989
        %2119 = vst.msk [vmem:[%s177 + $0x24] sm:$0xf] %vm2109, %v1990
        %2120 = vst.msk [vmem:[%s177 + $0x28] sm:$0xf] %vm2109, %v1991
        %2121 = vst.msk [vmem:[%s177 + $0x2c] sm:$0xf] %vm2109, %v1992
        %2122 = vst.msk [vmem:[%s177 + $0x30] sm:$0xf] %vm2109, %v1993
        %2123 = vst.msk [vmem:[%s177 + $0x34] sm:$0xf] %vm2109, %v1994
        %2124 = vst.msk [vmem:[%s177 + $0x38] sm:$0xf] %vm2109, %v1995
        %2125 = vst.msk [vmem:[%s177 + $0x3c] sm:$0xf] %vm2109, %v1996
        %2126 = vst.msk [vmem:[%s177 + $0x40] sm:$0xf] %vm2109, %v1997
        %2127 = vst.msk [vmem:[%s177 + $0x44] sm:$0xf] %vm2109, %v1998
        %2128 = vst.msk [vmem:[%s177 + $0x48] sm:$0xf] %vm2109, %v1999
        %2129 = vst.msk [vmem:[%s177 + $0x4c] sm:$0xf] %vm2109, %v2000
        %2130 = vst.msk [vmem:[%s177 + $0x50] sm:$0xf] %vm2109, %v2001
        %2131 = vst.msk [vmem:[%s177 + $0x54] sm:$0xf] %vm2109, %v2002
        %2132 = vst.msk [vmem:[%s177 + $0x58] sm:$0xf] %vm2109, %v2003
        %2133 = vst.msk [vmem:[%s177 + $0x5c] sm:$0xf] %vm2109, %v2004
        %2134 = vst.msk [vmem:[%s177 + $0x60] sm:$0xf] %vm2109, %v2005
        %2135 = vst.msk [vmem:[%s177 + $0x64] sm:$0xf] %vm2109, %v2006
        %2136 = vst.msk [vmem:[%s177 + $0x68] sm:$0xf] %vm2109, %v2007
        %2137 = vst.msk [vmem:[%s177 + $0x6c] sm:$0xf] %vm2109, %v2008
        %2138 = vst.msk [vmem:[%s177 + $0x70] sm:$0xf] %vm2109, %v2009
        %2139 = vst.msk [vmem:[%s177 + $0x74] sm:$0xf] %vm2109, %v2010
        %2140 = vst.msk [vmem:[%s177 + $0x78] sm:$0xf] %vm2109, %v2011
        %2141 = vst.msk [vmem:[%s177 + $0x7c] sm:$0xf] %vm2109, %v2012
        %2142 = vst.msk [vmem:[%s177 + $0x80] sm:$0xf] %vm2109, %v2013
        %2143 = vst.msk [vmem:[%s177 + $0x84] sm:$0xf] %vm2109, %v2014
        %2144 = vst.msk [vmem:[%s177 + $0x88] sm:$0xf] %vm2109, %v2015
        %2145 = vst.msk [vmem:[%s177 + $0x8c] sm:$0xf] %vm2109, %v2016
        %2146 = vst.msk [vmem:[%s177 + $0x90] sm:$0xf] %vm2109, %v2017
        %2147 = vst.msk [vmem:[%s177 + $0x94] sm:$0xf] %vm2109, %v2018
        %2148 = vst.msk [vmem:[%s177 + $0x98] sm:$0xf] %vm2109, %v2019
        %2149 = vst.msk [vmem:[%s177 + $0x9c] sm:$0xf] %vm2109, %v2020
        %2150 = vst.msk [vmem:[%s177 + $0xa0] sm:$0xf] %vm2109, %v2021
        %2151 = vst.msk [vmem:[%s177 + $0xa4] sm:$0xf] %vm2109, %v2022
        %2152 = vst.msk [vmem:[%s177 + $0xa8] sm:$0xf] %vm2109, %v2023
        %2153 = vst.msk [vmem:[%s177 + $0xac] sm:$0xf] %vm2109, %v2024
        %2154 = vst.msk [vmem:[%s177 + $0xb0] sm:$0xf] %vm2109, %v2025
        %2155 = vst.msk [vmem:[%s177 + $0xb4] sm:$0xf] %vm2109, %v2026
        %2156 = vst.msk [vmem:[%s177 + $0xb8] sm:$0xf] %vm2109, %v2027
        %2157 = vst.msk [vmem:[%s177 + $0xbc] sm:$0xf] %vm2109, %v2028
        %2158 = vst.msk [vmem:[%s177 + $0xc0] sm:$0xf] %vm2109, %v2029
        %2159 = vst.msk [vmem:[%s177 + $0xc4] sm:$0xf] %vm2109, %v2030
        %2160 = vst.msk [vmem:[%s177 + $0xc8] sm:$0xf] %vm2109, %v2031
        %2161 = vst.msk [vmem:[%s177 + $0xcc] sm:$0xf] %vm2109, %v2032
        %2162 = vst.msk [vmem:[%s177 + $0xd0] sm:$0xf] %vm2109, %v2033
        %2163 = vst.msk [vmem:[%s177 + $0xd4] sm:$0xf] %vm2109, %v2034
        %2164 = vst.msk [vmem:[%s177 + $0xd8] sm:$0xf] %vm2109, %v2035
        %2165 = vst.msk [vmem:[%s177 + $0xdc] sm:$0xf] %vm2109, %v2036
        %2166 = vst.msk [vmem:[%s177 + $0xe0] sm:$0xf] %vm2109, %v2037
        %2167 = vst.msk [vmem:[%s177 + $0xe4] sm:$0xf] %vm2109, %v2038
        %2168 = vst.msk [vmem:[%s177 + $0xe8] sm:$0xf] %vm2109, %v2039
        %2169 = vst.msk [vmem:[%s177 + $0xec] sm:$0xf] %vm2109, %v2040
        %2170 = vst.msk [vmem:[%s177 + $0xf0] sm:$0xf] %vm2109, %v2041
        %2171 = vst.msk [vmem:[%s177 + $0xf4] sm:$0xf] %vm2109, %v2042
        %2172 = vst.msk [vmem:[%s177 + $0xf8] sm:$0xf] %vm2109, %v2043
        %2173 = vst.msk [vmem:[%s177 + $0xfc] sm:$0xf] %vm2109, %v2044
        %s2174 = sand.u32 %s90, 1
        %s2175 = sand.u32 %s90, 1
        %s2176 = smul.addr %s2175, 256
        %s2177 = scalar_lea.vmem [#allocation2], %s2176
        // Predicated region
        $region33: #{distg_block_forward.9} parent=31 // pred_check
          %p2178 = pneg %p100
        $region34: #{distg_block_forward.9} parent=31 // pred_check_branch
          %2180 = sbr.rel (%p2178) target = $region36
        $region35: #{distg_block_forward.9} parent=31 // pred_region
          %s2181 = smul.u32 64, %s14
          %s2182 = ssub.s32 160, %s2181
          %p2183 = scmp.lt.s32.totalorder %s2182, 64
          %s2184 = scalar_select %p2183, %s2182, 64
          %s2185 = smul.u32 64, %s2184
          %p2186 = scmp.ne.s32.totalorder 0, %s2185
          %s2187 = smul.addr %s2181, 4
          %s2188 = scalar_lea.vmem %s3, %s2187
          // Predicated region
          $region37: #{distg_block_forward.9} parent=35 // pred_check
            %p2189 = pneg %p2186
          $region38: #{distg_block_forward.9} parent=35 // pred_check_branch
            %2191 = sbr.rel (%p2189) target = $region40
          $region39: #{distg_block_forward.9} parent=35 // pred_region
            // Predicated region
            $region41: #{distg_block_forward.9} parent=39 // pred_check
              _
            $region42: #{distg_block_forward.9} parent=39 // pred_check_branch
              %2193 = sbr.rel target = $region44
            $region43: #{distg_block_forward.9} parent=39 // pred_region
              // Predicated region
              $region63: #{distg_block_forward.9} parent=43 // pred_check
                _
              $region64: #{distg_block_forward.9} parent=43 // pred_check_branch
                %2368 = sbr.rel (0) target = $region66
              $region65: #{distg_block_forward.9} parent=43 // pred_region
                %s2370 = sshrl.u32 %s2184, 6
                // While loop
                $region67: #{distg_block_forward.9} parent=65 // loop_pre_header
                  _
                $region68: #{distg_block_forward.9} parent=65 // loop_header
                  %s2372 = sphi 0, %s2374
                  %p2373 = scmp.ge.s32.totalorder %s2372, %s2370
                  %s2377 = sphi 0, %s2510
                  %s2378 = sphi %s2177, %s2513
                  %s2379 = sphi %s2188, %s2514
                $region69: #{distg_block_forward.9} parent=65 // loop_header_branch
                  %2376 = sbr.rel (%p2373) target = $region73
                $region70: #{distg_block_forward.9} parent=65 // loop_body
                  %v2380 = vld [vmem:[%s2378] sm:$0xf]
                  %2381 = vst [vmem:[%s2379] sm:$0xf] %v2380
                  %v2382 = vld [vmem:[%s2378 + $0x4] sm:$0xf]
                  %2383 = vst [vmem:[%s2379 + $0x4] sm:$0xf] %v2382
                  %v2384 = vld [vmem:[%s2378 + $0x8] sm:$0xf]
                  %2385 = vst [vmem:[%s2379 + $0x8] sm:$0xf] %v2384
                  %v2386 = vld [vmem:[%s2378 + $0xc] sm:$0xf]
                  %2387 = vst [vmem:[%s2379 + $0xc] sm:$0xf] %v2386
                  %v2388 = vld [vmem:[%s2378 + $0x10] sm:$0xf]
                  %2389 = vst [vmem:[%s2379 + $0x10] sm:$0xf] %v2388
                  %v2390 = vld [vmem:[%s2378 + $0x14] sm:$0xf]
                  %2391 = vst [vmem:[%s2379 + $0x14] sm:$0xf] %v2390
                  %v2392 = vld [vmem:[%s2378 + $0x18] sm:$0xf]
                  %2393 = vst [vmem:[%s2379 + $0x18] sm:$0xf] %v2392
                  %v2394 = vld [vmem:[%s2378 + $0x1c] sm:$0xf]
                  %2395 = vst [vmem:[%s2379 + $0x1c] sm:$0xf] %v2394
                  %v2396 = vld [vmem:[%s2378 + $0x20] sm:$0xf]
                  %2397 = vst [vmem:[%s2379 + $0x20] sm:$0xf] %v2396
                  %v2398 = vld [vmem:[%s2378 + $0x24] sm:$0xf]
                  %2399 = vst [vmem:[%s2379 + $0x24] sm:$0xf] %v2398
                  %v2400 = vld [vmem:[%s2378 + $0x28] sm:$0xf]
                  %2401 = vst [vmem:[%s2379 + $0x28] sm:$0xf] %v2400
                  %v2402 = vld [vmem:[%s2378 + $0x2c] sm:$0xf]
                  %2403 = vst [vmem:[%s2379 + $0x2c] sm:$0xf] %v2402
                  %v2404 = vld [vmem:[%s2378 + $0x30] sm:$0xf]
                  %2405 = vst [vmem:[%s2379 + $0x30] sm:$0xf] %v2404
                  %v2406 = vld [vmem:[%s2378 + $0x34] sm:$0xf]
                  %2407 = vst [vmem:[%s2379 + $0x34] sm:$0xf] %v2406
                  %v2408 = vld [vmem:[%s2378 + $0x38] sm:$0xf]
                  %2409 = vst [vmem:[%s2379 + $0x38] sm:$0xf] %v2408
                  %v2410 = vld [vmem:[%s2378 + $0x3c] sm:$0xf]
                  %2411 = vst [vmem:[%s2379 + $0x3c] sm:$0xf] %v2410
                  %v2412 = vld [vmem:[%s2378 + $0x40] sm:$0xf]
                  %2413 = vst [vmem:[%s2379 + $0x40] sm:$0xf] %v2412
                  %v2414 = vld [vmem:[%s2378 + $0x44] sm:$0xf]
                  %2415 = vst [vmem:[%s2379 + $0x44] sm:$0xf] %v2414
                  %v2416 = vld [vmem:[%s2378 + $0x48] sm:$0xf]
                  %2417 = vst [vmem:[%s2379 + $0x48] sm:$0xf] %v2416
                  %v2418 = vld [vmem:[%s2378 + $0x4c] sm:$0xf]
                  %2419 = vst [vmem:[%s2379 + $0x4c] sm:$0xf] %v2418
                  %v2420 = vld [vmem:[%s2378 + $0x50] sm:$0xf]
                  %2421 = vst [vmem:[%s2379 + $0x50] sm:$0xf] %v2420
                  %v2422 = vld [vmem:[%s2378 + $0x54] sm:$0xf]
                  %2423 = vst [vmem:[%s2379 + $0x54] sm:$0xf] %v2422
                  %v2424 = vld [vmem:[%s2378 + $0x58] sm:$0xf]
                  %2425 = vst [vmem:[%s2379 + $0x58] sm:$0xf] %v2424
                  %v2426 = vld [vmem:[%s2378 + $0x5c] sm:$0xf]
                  %2427 = vst [vmem:[%s2379 + $0x5c] sm:$0xf] %v2426
                  %v2428 = vld [vmem:[%s2378 + $0x60] sm:$0xf]
                  %2429 = vst [vmem:[%s2379 + $0x60] sm:$0xf] %v2428
                  %v2430 = vld [vmem:[%s2378 + $0x64] sm:$0xf]
                  %2431 = vst [vmem:[%s2379 + $0x64] sm:$0xf] %v2430
                  %v2432 = vld [vmem:[%s2378 + $0x68] sm:$0xf]
                  %2433 = vst [vmem:[%s2379 + $0x68] sm:$0xf] %v2432
                  %v2434 = vld [vmem:[%s2378 + $0x6c] sm:$0xf]
                  %2435 = vst [vmem:[%s2379 + $0x6c] sm:$0xf] %v2434
                  %v2436 = vld [vmem:[%s2378 + $0x70] sm:$0xf]
                  %2437 = vst [vmem:[%s2379 + $0x70] sm:$0xf] %v2436
                  %v2438 = vld [vmem:[%s2378 + $0x74] sm:$0xf]
                  %2439 = vst [vmem:[%s2379 + $0x74] sm:$0xf] %v2438
                  %v2440 = vld [vmem:[%s2378 + $0x78] sm:$0xf]
                  %2441 = vst [vmem:[%s2379 + $0x78] sm:$0xf] %v2440
                  %v2442 = vld [vmem:[%s2378 + $0x7c] sm:$0xf]
                  %2443 = vst [vmem:[%s2379 + $0x7c] sm:$0xf] %v2442
                  %v2444 = vld [vmem:[%s2378 + $0x80] sm:$0xf]
                  %2445 = vst [vmem:[%s2379 + $0x80] sm:$0xf] %v2444
                  %v2446 = vld [vmem:[%s2378 + $0x84] sm:$0xf]
                  %2447 = vst [vmem:[%s2379 + $0x84] sm:$0xf] %v2446
                  %v2448 = vld [vmem:[%s2378 + $0x88] sm:$0xf]
                  %2449 = vst [vmem:[%s2379 + $0x88] sm:$0xf] %v2448
                  %v2450 = vld [vmem:[%s2378 + $0x8c] sm:$0xf]
                  %2451 = vst [vmem:[%s2379 + $0x8c] sm:$0xf] %v2450
                  %v2452 = vld [vmem:[%s2378 + $0x90] sm:$0xf]
                  %2453 = vst [vmem:[%s2379 + $0x90] sm:$0xf] %v2452
                  %v2454 = vld [vmem:[%s2378 + $0x94] sm:$0xf]
                  %2455 = vst [vmem:[%s2379 + $0x94] sm:$0xf] %v2454
                  %v2456 = vld [vmem:[%s2378 + $0x98] sm:$0xf]
                  %2457 = vst [vmem:[%s2379 + $0x98] sm:$0xf] %v2456
                  %v2458 = vld [vmem:[%s2378 + $0x9c] sm:$0xf]
                  %2459 = vst [vmem:[%s2379 + $0x9c] sm:$0xf] %v2458
                  %v2460 = vld [vmem:[%s2378 + $0xa0] sm:$0xf]
                  %2461 = vst [vmem:[%s2379 + $0xa0] sm:$0xf] %v2460
                  %v2462 = vld [vmem:[%s2378 + $0xa4] sm:$0xf]
                  %2463 = vst [vmem:[%s2379 + $0xa4] sm:$0xf] %v2462
                  %v2464 = vld [vmem:[%s2378 + $0xa8] sm:$0xf]
                  %2465 = vst [vmem:[%s2379 + $0xa8] sm:$0xf] %v2464
                  %v2466 = vld [vmem:[%s2378 + $0xac] sm:$0xf]
                  %2467 = vst [vmem:[%s2379 + $0xac] sm:$0xf] %v2466
                  %v2468 = vld [vmem:[%s2378 + $0xb0] sm:$0xf]
                  %2469 = vst [vmem:[%s2379 + $0xb0] sm:$0xf] %v2468
                  %v2470 = vld [vmem:[%s2378 + $0xb4] sm:$0xf]
                  %2471 = vst [vmem:[%s2379 + $0xb4] sm:$0xf] %v2470
                  %v2472 = vld [vmem:[%s2378 + $0xb8] sm:$0xf]
                  %2473 = vst [vmem:[%s2379 + $0xb8] sm:$0xf] %v2472
                  %v2474 = vld [vmem:[%s2378 + $0xbc] sm:$0xf]
                  %2475 = vst [vmem:[%s2379 + $0xbc] sm:$0xf] %v2474
                  %v2476 = vld [vmem:[%s2378 + $0xc0] sm:$0xf]
                  %2477 = vst [vmem:[%s2379 + $0xc0] sm:$0xf] %v2476
                  %v2478 = vld [vmem:[%s2378 + $0xc4] sm:$0xf]
                  %2479 = vst [vmem:[%s2379 + $0xc4] sm:$0xf] %v2478
                  %v2480 = vld [vmem:[%s2378 + $0xc8] sm:$0xf]
                  %2481 = vst [vmem:[%s2379 + $0xc8] sm:$0xf] %v2480
                  %v2482 = vld [vmem:[%s2378 + $0xcc] sm:$0xf]
                  %2483 = vst [vmem:[%s2379 + $0xcc] sm:$0xf] %v2482
                  %v2484 = vld [vmem:[%s2378 + $0xd0] sm:$0xf]
                  %2485 = vst [vmem:[%s2379 + $0xd0] sm:$0xf] %v2484
                  %v2486 = vld [vmem:[%s2378 + $0xd4] sm:$0xf]
                  %2487 = vst [vmem:[%s2379 + $0xd4] sm:$0xf] %v2486
                  %v2488 = vld [vmem:[%s2378 + $0xd8] sm:$0xf]
                  %2489 = vst [vmem:[%s2379 + $0xd8] sm:$0xf] %v2488
                  %v2490 = vld [vmem:[%s2378 + $0xdc] sm:$0xf]
                  %2491 = vst [vmem:[%s2379 + $0xdc] sm:$0xf] %v2490
                  %v2492 = vld [vmem:[%s2378 + $0xe0] sm:$0xf]
                  %2493 = vst [vmem:[%s2379 + $0xe0] sm:$0xf] %v2492
                  %v2494 = vld [vmem:[%s2378 + $0xe4] sm:$0xf]
                  %2495 = vst [vmem:[%s2379 + $0xe4] sm:$0xf] %v2494
                  %v2496 = vld [vmem:[%s2378 + $0xe8] sm:$0xf]
                  %2497 = vst [vmem:[%s2379 + $0xe8] sm:$0xf] %v2496
                  %v2498 = vld [vmem:[%s2378 + $0xec] sm:$0xf]
                  %2499 = vst [vmem:[%s2379 + $0xec] sm:$0xf] %v2498
                  %v2500 = vld [vmem:[%s2378 + $0xf0] sm:$0xf]
                  %2501 = vst [vmem:[%s2379 + $0xf0] sm:$0xf] %v2500
                  %v2502 = vld [vmem:[%s2378 + $0xf4] sm:$0xf]
                  %2503 = vst [vmem:[%s2379 + $0xf4] sm:$0xf] %v2502
                  %v2504 = vld [vmem:[%s2378 + $0xf8] sm:$0xf]
                  %2505 = vst [vmem:[%s2379 + $0xf8] sm:$0xf] %v2504
                  %v2506 = vld [vmem:[%s2378 + $0xfc] sm:$0xf]
                  %2507 = vst [vmem:[%s2379 + $0xfc] sm:$0xf] %v2506
                  %s2508 = sadd.s32 1, %s2377
                  %p2509 = scmp.ge.s32.totalorder %s2508, %s2370
                  %s2510 = scalar_select %p2509, 0, %s2508
                  %s2511 = smul.u32 %s2510, 256
                  %s2512 = smul.u32 %s2510, 256
                  %s2513 = scalar_lea.vmem %s2177, %s2511 [#allocation2]
                  %s2514 = scalar_lea.vmem %s2188, %s2512
                $region71: #{distg_block_forward.9} parent=65 // loop_footer
                  %s2374 = sadd.s32 %s2372, 1
                $region72: #{distg_block_forward.9} parent=65 // loop_footer_branch
                  %2371 = sbr.rel target = $region68
                $region73: #{distg_block_forward.9} parent=65 // loop_exit
                  _
                %s2515 = sshrl.u32 %s2184, 6
                %s2516 = sand.u32 %s2184, 63
                %s2517 = smul.u32 %s2515, 64
                %s2518 = smul.u32 4, %s2517
                %s2519 = scalar_lea.vmem %s2177, %s2518 [#allocation2]
                %s2520 = smul.u32 4, %s2517
                %s2521 = scalar_lea.vmem %s2188, %s2520
                // While loop
                $region74: #{distg_block_forward.9} parent=65 // loop_pre_header
                  _
                $region75: #{distg_block_forward.9} parent=65 // loop_header
                  %s2523 = sphi 0, %s2525
                  %p2524 = scmp.ge.s32.totalorder %s2523, %s2516
                  %s2528 = sphi 0, %s2535
                  %s2529 = sphi %s2519, %s2538
                  %s2530 = sphi %s2521, %s2539
                $region76: #{distg_block_forward.9} parent=65 // loop_header_branch
                  %2527 = sbr.rel (%p2524) target = $region80
                $region77: #{distg_block_forward.9} parent=65 // loop_body
                  %v2531 = vld [vmem:[%s2529] sm:$0xf]
                  %2532 = vst [vmem:[%s2530] sm:$0xf] %v2531
                  %s2533 = sadd.s32 1, %s2528
                  %p2534 = scmp.ge.s32.totalorder %s2533, %s2516
                  %s2535 = scalar_select %p2534, 0, %s2533
                  %s2536 = smul.u32 %s2535, 4
                  %s2537 = smul.u32 %s2535, 4
                  %s2538 = scalar_lea.vmem %s2519, %s2536 [#allocation2]
                  %s2539 = scalar_lea.vmem %s2521, %s2537
                $region78: #{distg_block_forward.9} parent=65 // loop_footer
                  %s2525 = sadd.s32 %s2523, 1
                $region79: #{distg_block_forward.9} parent=65 // loop_footer_branch
                  %2522 = sbr.rel target = $region75
                $region80: #{distg_block_forward.9} parent=65 // loop_exit
                  _
              $region66: #{distg_block_forward.9} parent=43 // pred_fallthru
                _
            $region44: #{distg_block_forward.9} parent=39 // pred_fallthru
              _
            // Predicated region
            $region45: #{distg_block_forward.9} parent=39 // pred_check
              _
            $region46: #{distg_block_forward.9} parent=39 // pred_check_branch
              %2195 = sbr.rel (0) target = $region48
            $region47: #{distg_block_forward.9} parent=39 // pred_region
              %s2197 = sshrl.u32 %s2184, 6
              // While loop
              $region49: #{distg_block_forward.9} parent=47 // loop_pre_header
                _
              $region50: #{distg_block_forward.9} parent=47 // loop_header
                %s2199 = sphi 0, %s2201
                %p2200 = scmp.ge.s32.totalorder %s2199, %s2197
                %s2204 = sphi 0, %s2337
                %s2205 = sphi %s2177, %s2340
                %s2206 = sphi %s2188, %s2341
              $region51: #{distg_block_forward.9} parent=47 // loop_header_branch
                %2203 = sbr.rel (%p2200) target = $region55
              $region52: #{distg_block_forward.9} parent=47 // loop_body
                %v2207 = vld [vmem:[%s2205] sm:$0xf]
                %2208 = vst [vmem:[%s2206] sm:$0xf] %v2207
                %v2209 = vld [vmem:[%s2205 + $0x4] sm:$0xf]
                %2210 = vst [vmem:[%s2206 + $0x4] sm:$0xf] %v2209
                %v2211 = vld [vmem:[%s2205 + $0x8] sm:$0xf]
                %2212 = vst [vmem:[%s2206 + $0x8] sm:$0xf] %v2211
                %v2213 = vld [vmem:[%s2205 + $0xc] sm:$0xf]
                %2214 = vst [vmem:[%s2206 + $0xc] sm:$0xf] %v2213
                %v2215 = vld [vmem:[%s2205 + $0x10] sm:$0xf]
                %2216 = vst [vmem:[%s2206 + $0x10] sm:$0xf] %v2215
                %v2217 = vld [vmem:[%s2205 + $0x14] sm:$0xf]
                %2218 = vst [vmem:[%s2206 + $0x14] sm:$0xf] %v2217
                %v2219 = vld [vmem:[%s2205 + $0x18] sm:$0xf]
                %2220 = vst [vmem:[%s2206 + $0x18] sm:$0xf] %v2219
                %v2221 = vld [vmem:[%s2205 + $0x1c] sm:$0xf]
                %2222 = vst [vmem:[%s2206 + $0x1c] sm:$0xf] %v2221
                %v2223 = vld [vmem:[%s2205 + $0x20] sm:$0xf]
                %2224 = vst [vmem:[%s2206 + $0x20] sm:$0xf] %v2223
                %v2225 = vld [vmem:[%s2205 + $0x24] sm:$0xf]
                %2226 = vst [vmem:[%s2206 + $0x24] sm:$0xf] %v2225
                %v2227 = vld [vmem:[%s2205 + $0x28] sm:$0xf]
                %2228 = vst [vmem:[%s2206 + $0x28] sm:$0xf] %v2227
                %v2229 = vld [vmem:[%s2205 + $0x2c] sm:$0xf]
                %2230 = vst [vmem:[%s2206 + $0x2c] sm:$0xf] %v2229
                %v2231 = vld [vmem:[%s2205 + $0x30] sm:$0xf]
                %2232 = vst [vmem:[%s2206 + $0x30] sm:$0xf] %v2231
                %v2233 = vld [vmem:[%s2205 + $0x34] sm:$0xf]
                %2234 = vst [vmem:[%s2206 + $0x34] sm:$0xf] %v2233
                %v2235 = vld [vmem:[%s2205 + $0x38] sm:$0xf]
                %2236 = vst [vmem:[%s2206 + $0x38] sm:$0xf] %v2235
                %v2237 = vld [vmem:[%s2205 + $0x3c] sm:$0xf]
                %2238 = vst [vmem:[%s2206 + $0x3c] sm:$0xf] %v2237
                %v2239 = vld [vmem:[%s2205 + $0x40] sm:$0xf]
                %2240 = vst [vmem:[%s2206 + $0x40] sm:$0xf] %v2239
                %v2241 = vld [vmem:[%s2205 + $0x44] sm:$0xf]
                %2242 = vst [vmem:[%s2206 + $0x44] sm:$0xf] %v2241
                %v2243 = vld [vmem:[%s2205 + $0x48] sm:$0xf]
                %2244 = vst [vmem:[%s2206 + $0x48] sm:$0xf] %v2243
                %v2245 = vld [vmem:[%s2205 + $0x4c] sm:$0xf]
                %2246 = vst [vmem:[%s2206 + $0x4c] sm:$0xf] %v2245
                %v2247 = vld [vmem:[%s2205 + $0x50] sm:$0xf]
                %2248 = vst [vmem:[%s2206 + $0x50] sm:$0xf] %v2247
                %v2249 = vld [vmem:[%s2205 + $0x54] sm:$0xf]
                %2250 = vst [vmem:[%s2206 + $0x54] sm:$0xf] %v2249
                %v2251 = vld [vmem:[%s2205 + $0x58] sm:$0xf]
                %2252 = vst [vmem:[%s2206 + $0x58] sm:$0xf] %v2251
                %v2253 = vld [vmem:[%s2205 + $0x5c] sm:$0xf]
                %2254 = vst [vmem:[%s2206 + $0x5c] sm:$0xf] %v2253
                %v2255 = vld [vmem:[%s2205 + $0x60] sm:$0xf]
                %2256 = vst [vmem:[%s2206 + $0x60] sm:$0xf] %v2255
                %v2257 = vld [vmem:[%s2205 + $0x64] sm:$0xf]
                %2258 = vst [vmem:[%s2206 + $0x64] sm:$0xf] %v2257
                %v2259 = vld [vmem:[%s2205 + $0x68] sm:$0xf]
                %2260 = vst [vmem:[%s2206 + $0x68] sm:$0xf] %v2259
                %v2261 = vld [vmem:[%s2205 + $0x6c] sm:$0xf]
                %2262 = vst [vmem:[%s2206 + $0x6c] sm:$0xf] %v2261
                %v2263 = vld [vmem:[%s2205 + $0x70] sm:$0xf]
                %2264 = vst [vmem:[%s2206 + $0x70] sm:$0xf] %v2263
                %v2265 = vld [vmem:[%s2205 + $0x74] sm:$0xf]
                %2266 = vst [vmem:[%s2206 + $0x74] sm:$0xf] %v2265
                %v2267 = vld [vmem:[%s2205 + $0x78] sm:$0xf]
                %2268 = vst [vmem:[%s2206 + $0x78] sm:$0xf] %v2267
                %v2269 = vld [vmem:[%s2205 + $0x7c] sm:$0xf]
                %2270 = vst [vmem:[%s2206 + $0x7c] sm:$0xf] %v2269
                %v2271 = vld [vmem:[%s2205 + $0x80] sm:$0xf]
                %2272 = vst [vmem:[%s2206 + $0x80] sm:$0xf] %v2271
                %v2273 = vld [vmem:[%s2205 + $0x84] sm:$0xf]
                %2274 = vst [vmem:[%s2206 + $0x84] sm:$0xf] %v2273
                %v2275 = vld [vmem:[%s2205 + $0x88] sm:$0xf]
                %2276 = vst [vmem:[%s2206 + $0x88] sm:$0xf] %v2275
                %v2277 = vld [vmem:[%s2205 + $0x8c] sm:$0xf]
                %2278 = vst [vmem:[%s2206 + $0x8c] sm:$0xf] %v2277
                %v2279 = vld [vmem:[%s2205 + $0x90] sm:$0xf]
                %2280 = vst [vmem:[%s2206 + $0x90] sm:$0xf] %v2279
                %v2281 = vld [vmem:[%s2205 + $0x94] sm:$0xf]
                %2282 = vst [vmem:[%s2206 + $0x94] sm:$0xf] %v2281
                %v2283 = vld [vmem:[%s2205 + $0x98] sm:$0xf]
                %2284 = vst [vmem:[%s2206 + $0x98] sm:$0xf] %v2283
                %v2285 = vld [vmem:[%s2205 + $0x9c] sm:$0xf]
                %2286 = vst [vmem:[%s2206 + $0x9c] sm:$0xf] %v2285
                %v2287 = vld [vmem:[%s2205 + $0xa0] sm:$0xf]
                %2288 = vst [vmem:[%s2206 + $0xa0] sm:$0xf] %v2287
                %v2289 = vld [vmem:[%s2205 + $0xa4] sm:$0xf]
                %2290 = vst [vmem:[%s2206 + $0xa4] sm:$0xf] %v2289
                %v2291 = vld [vmem:[%s2205 + $0xa8] sm:$0xf]
                %2292 = vst [vmem:[%s2206 + $0xa8] sm:$0xf] %v2291
                %v2293 = vld [vmem:[%s2205 + $0xac] sm:$0xf]
                %2294 = vst [vmem:[%s2206 + $0xac] sm:$0xf] %v2293
                %v2295 = vld [vmem:[%s2205 + $0xb0] sm:$0xf]
                %2296 = vst [vmem:[%s2206 + $0xb0] sm:$0xf] %v2295
                %v2297 = vld [vmem:[%s2205 + $0xb4] sm:$0xf]
                %2298 = vst [vmem:[%s2206 + $0xb4] sm:$0xf] %v2297
                %v2299 = vld [vmem:[%s2205 + $0xb8] sm:$0xf]
                %2300 = vst [vmem:[%s2206 + $0xb8] sm:$0xf] %v2299
                %v2301 = vld [vmem:[%s2205 + $0xbc] sm:$0xf]
                %2302 = vst [vmem:[%s2206 + $0xbc] sm:$0xf] %v2301
                %v2303 = vld [vmem:[%s2205 + $0xc0] sm:$0xf]
                %2304 = vst [vmem:[%s2206 + $0xc0] sm:$0xf] %v2303
                %v2305 = vld [vmem:[%s2205 + $0xc4] sm:$0xf]
                %2306 = vst [vmem:[%s2206 + $0xc4] sm:$0xf] %v2305
                %v2307 = vld [vmem:[%s2205 + $0xc8] sm:$0xf]
                %2308 = vst [vmem:[%s2206 + $0xc8] sm:$0xf] %v2307
                %v2309 = vld [vmem:[%s2205 + $0xcc] sm:$0xf]
                %2310 = vst [vmem:[%s2206 + $0xcc] sm:$0xf] %v2309
                %v2311 = vld [vmem:[%s2205 + $0xd0] sm:$0xf]
                %2312 = vst [vmem:[%s2206 + $0xd0] sm:$0xf] %v2311
                %v2313 = vld [vmem:[%s2205 + $0xd4] sm:$0xf]
                %2314 = vst [vmem:[%s2206 + $0xd4] sm:$0xf] %v2313
                %v2315 = vld [vmem:[%s2205 + $0xd8] sm:$0xf]
                %2316 = vst [vmem:[%s2206 + $0xd8] sm:$0xf] %v2315
                %v2317 = vld [vmem:[%s2205 + $0xdc] sm:$0xf]
                %2318 = vst [vmem:[%s2206 + $0xdc] sm:$0xf] %v2317
                %v2319 = vld [vmem:[%s2205 + $0xe0] sm:$0xf]
                %2320 = vst [vmem:[%s2206 + $0xe0] sm:$0xf] %v2319
                %v2321 = vld [vmem:[%s2205 + $0xe4] sm:$0xf]
                %2322 = vst [vmem:[%s2206 + $0xe4] sm:$0xf] %v2321
                %v2323 = vld [vmem:[%s2205 + $0xe8] sm:$0xf]
                %2324 = vst [vmem:[%s2206 + $0xe8] sm:$0xf] %v2323
                %v2325 = vld [vmem:[%s2205 + $0xec] sm:$0xf]
                %2326 = vst [vmem:[%s2206 + $0xec] sm:$0xf] %v2325
                %v2327 = vld [vmem:[%s2205 + $0xf0] sm:$0xf]
                %2328 = vst [vmem:[%s2206 + $0xf0] sm:$0xf] %v2327
                %v2329 = vld [vmem:[%s2205 + $0xf4] sm:$0xf]
                %2330 = vst [vmem:[%s2206 + $0xf4] sm:$0xf] %v2329
                %v2331 = vld [vmem:[%s2205 + $0xf8] sm:$0xf]
                %2332 = vst [vmem:[%s2206 + $0xf8] sm:$0xf] %v2331
                %v2333 = vld [vmem:[%s2205 + $0xfc] sm:$0xf]
                %2334 = vst [vmem:[%s2206 + $0xfc] sm:$0xf] %v2333
                %s2335 = sadd.s32 1, %s2204
                %p2336 = scmp.ge.s32.totalorder %s2335, %s2197
                %s2337 = scalar_select %p2336, 0, %s2335
                %s2338 = smul.u32 %s2337, 256
                %s2339 = smul.u32 %s2337, 256
                %s2340 = scalar_lea.vmem %s2177, %s2338 [#allocation2]
                %s2341 = scalar_lea.vmem %s2188, %s2339
              $region53: #{distg_block_forward.9} parent=47 // loop_footer
                %s2201 = sadd.s32 %s2199, 1
              $region54: #{distg_block_forward.9} parent=47 // loop_footer_branch
                %2198 = sbr.rel target = $region50
              $region55: #{distg_block_forward.9} parent=47 // loop_exit
                _
              %s2342 = sshrl.u32 %s2184, 6
              %s2343 = sand.u32 %s2184, 63
              %s2344 = smul.u32 %s2342, 64
              %s2345 = smul.u32 4, %s2344
              %s2346 = scalar_lea.vmem %s2177, %s2345 [#allocation2]
              %s2347 = smul.u32 4, %s2344
              %s2348 = scalar_lea.vmem %s2188, %s2347
              // While loop
              $region56: #{distg_block_forward.9} parent=47 // loop_pre_header
                _
              $region57: #{distg_block_forward.9} parent=47 // loop_header
                %s2350 = sphi 0, %s2352
                %p2351 = scmp.ge.s32.totalorder %s2350, %s2343
                %s2355 = sphi 0, %s2362
                %s2356 = sphi %s2346, %s2365
                %s2357 = sphi %s2348, %s2366
              $region58: #{distg_block_forward.9} parent=47 // loop_header_branch
                %2354 = sbr.rel (%p2351) target = $region62
              $region59: #{distg_block_forward.9} parent=47 // loop_body
                %v2358 = vld [vmem:[%s2356] sm:$0xf]
                %2359 = vst [vmem:[%s2357] sm:$0xf] %v2358
                %s2360 = sadd.s32 1, %s2355
                %p2361 = scmp.ge.s32.totalorder %s2360, %s2343
                %s2362 = scalar_select %p2361, 0, %s2360
                %s2363 = smul.u32 %s2362, 4
                %s2364 = smul.u32 %s2362, 4
                %s2365 = scalar_lea.vmem %s2346, %s2363 [#allocation2]
                %s2366 = scalar_lea.vmem %s2348, %s2364
              $region60: #{distg_block_forward.9} parent=47 // loop_footer
                %s2352 = sadd.s32 %s2350, 1
              $region61: #{distg_block_forward.9} parent=47 // loop_footer_branch
                %2349 = sbr.rel target = $region57
              $region62: #{distg_block_forward.9} parent=47 // loop_exit
                _
            $region48: #{distg_block_forward.9} parent=39 // pred_fallthru
              _
          $region40: #{distg_block_forward.9} parent=35 // pred_fallthru
            _
          %2540 = vnop
        $region36: #{distg_block_forward.9} parent=31 // pred_fallthru
          _
      $region32: #{distg_block_forward.9} parent=5 // pred_fallthru
        _
      %p2541 = scmp.le.s32.totalorder 2, %s9
      // Predicated region
      $region81: #{distg_block_forward.9} parent=5 // pred_check
        %p2542 = pneg %p2541
      $region82: #{distg_block_forward.9} parent=5 // pred_check_branch
        %2544 = sbr.rel (%p2542) target = $region84
      $region83: #{distg_block_forward.9} parent=5 // pred_region
        %s2545 = ssub.s32 %s9, 2
        // Predicated region
        $region85: #{distg_block_forward.9} parent=83 // pred_check
          %p2546 = pneg %p106
        $region86: #{distg_block_forward.9} parent=83 // pred_check_branch
          %2548 = sbr.rel (%p2546) target = $region88
        $region87: #{distg_block_forward.9} parent=83 // pred_region
          %s2549 = sand.u32 %s91, 1
          %s2550 = sand.u32 %s91, 1
          %s2551 = smul.addr %s2550, 256
          %s2552 = scalar_lea.vmem [#allocation2], %s2551
        $region88: #{distg_block_forward.9} parent=83 // pred_fallthru
          _
      $region84: #{distg_block_forward.9} parent=5 // pred_fallthru
        _
    $region6: #{distg_block_forward.9} parent=1 // loop_footer
      %s13 = sadd.s32 1, %s9
    $region7: #{distg_block_forward.9} parent=1 // loop_footer_branch
      %8 = sbr.rel target = $region3
    $region8: #{distg_block_forward.9} parent=1 // loop_exit
      _

// kernel: distg_block_forward.8
$region0: #{distg_block_forward.8}
  #allocation0 [shape = 'u32[]', space=smem, size = 0x4, offset = 0x4, fixed_abs, tag = 'smem constant byte address 0x4 - core index']
  #allocation1 [shape = 'u32[144,128]{1,0:T(1,128)}', space=vmem, size = 0x12000, scoped, tag = 'internal scratch']
  %s0 = inlined_call_operand.vmem [shape: bf16[128,200], index: 0, kind: input, shape index: {}]
  %s1 = inlined_call_operand.vmem [shape: bf16[200,16], index: 1, kind: input, shape index: {}]
  %s2 = inlined_call_operand.vmem [shape: bf16[16,50], index: 2, kind: input, shape index: {}]
  %s3 = inlined_call_operand.vmem [shape: bf16[128,50], index: 3, kind: output, shape index: {}]
  %s4 = sld [smem:[#allocation0]]
  $region45: #{distg_block_forward.8} parent=0
    _
  %s6 = ssub.s32 1, %s4
  %s7 = scalar_select 0, %s6, %s4
  loop: start=0, step=1, limit=4
  $region2: #{distg_block_forward.8} parent=0 // loop_pre_header
    _
  $region3: #{distg_block_forward.8} parent=0 // loop_header
    %s9 = sphi 0, %s13
    %p10 = scmp.ge.s32.totalorder %s9, 4
    %s19 = sphi 0, %s21
    %s22 = sphi 0, %s19
    %s23 = sphi 0, %s22
    %s39 = sphi 0, %s23
    %s43 = sphi 0, %s43
    %s45 = sphi 0, %s43
    %s46 = sphi 0, %s45
    %s60 = sphi 0, %s46
    %s64 = sphi 0, %s64
    %s66 = sphi 0, %s64
    %s67 = sphi 0, %s66
    %s81 = sphi 0, %s67
    %s87 = sphi 0, %s89
    %s90 = sphi 0, %s87
    %s91 = sphi 0, %s90
    %s107 = sphi 0, %s91
  $region4: #{distg_block_forward.8} parent=0 // loop_header_branch
    %12 = sbr.rel (%p10) target = $region8
  $region5: #{distg_block_forward.8} parent=0 // loop_body
    %s14 = ssub.s32 %s9, 1
    %s15 = ssub.s32 %s9, 2
    %s16 = sadd.s32 %s9, 1
    %s17 = ssub.s32 %s9, %s16
    %p18 = scmp.eq.s32.totalorder %s17, 0
    %s20 = sadd.s32 %s19, 1
    %s21 = scalar_select %p18, %s19, %s20
    %p24 = pneg %p18
    %p25 = scmp.eq.s32.totalorder %s9, 1
    %p26 = por %p24, %p25
    %p27 = scmp.ne.s32.totalorder %s19, %s22
    %p28 = scmp.eq.s32.totalorder %s9, 0
    %p29 = por %p27, %p28
    %p30 = scmp.ne.s32.totalorder %s19, %s22
    %p31 = scmp.eq.s32.totalorder %s14, 1
    %p32 = por %p30, %p31
    %p33 = scmp.ne.s32.totalorder %s22, %s23
    %p34 = scmp.eq.s32.totalorder %s14, 0
    %p35 = por %p33, %p34
    %p36 = scmp.ne.s32.totalorder %s22, %s23
    %p37 = scmp.eq.s32.totalorder %s15, 1
    %p38 = por %p36, %p37
    %p40 = scmp.ne.s32.totalorder %s23, %s39
    %p41 = scmp.eq.s32.totalorder %s15, 0
    %p42 = por %p40, %p41
    %s44 = sadd.s32 %s43, 1
    %p47 = scmp.eq.s32.totalorder %s9, 1
    %p48 = scmp.ne.s32.totalorder %s43, %s45
    %p49 = scmp.eq.s32.totalorder %s9, 0
    %p50 = por %p48, %p49
    %p51 = scmp.ne.s32.totalorder %s43, %s45
    %p52 = scmp.eq.s32.totalorder %s14, 1
    %p53 = por %p51, %p52
    %p54 = scmp.ne.s32.totalorder %s45, %s46
    %p55 = scmp.eq.s32.totalorder %s14, 0
    %p56 = por %p54, %p55
    %p57 = scmp.ne.s32.totalorder %s45, %s46
    %p58 = scmp.eq.s32.totalorder %s15, 1
    %p59 = por %p57, %p58
    %p61 = scmp.ne.s32.totalorder %s46, %s60
    %p62 = scmp.eq.s32.totalorder %s15, 0
    %p63 = por %p61, %p62
    %s65 = sadd.s32 %s64, 1
    %p68 = scmp.eq.s32.totalorder %s9, 1
    %p69 = scmp.ne.s32.totalorder %s64, %s66
    %p70 = scmp.eq.s32.totalorder %s9, 0
    %p71 = por %p69, %p70
    %p72 = scmp.ne.s32.totalorder %s64, %s66
    %p73 = scmp.eq.s32.totalorder %s14, 1
    %p74 = por %p72, %p73
    %p75 = scmp.ne.s32.totalorder %s66, %s67
    %p76 = scmp.eq.s32.totalorder %s14, 0
    %p77 = por %p75, %p76
    %p78 = scmp.ne.s32.totalorder %s66, %s67
    %p79 = scmp.eq.s32.totalorder %s15, 1
    %p80 = por %p78, %p79
    %p82 = scmp.ne.s32.totalorder %s67, %s81
    %p83 = scmp.eq.s32.totalorder %s15, 0
    %p84 = por %p82, %p83
    %s85 = ssub.s32 %s9, %s16
    %p86 = scmp.eq.s32.totalorder %s85, 0
    %s88 = sadd.s32 %s87, 1
    %s89 = scalar_select %p86, %s87, %s88
    %p92 = pneg %p86
    %p93 = scmp.eq.s32.totalorder %s9, 1
    %p94 = por %p92, %p93
    %p95 = scmp.ne.s32.totalorder %s87, %s90
    %p96 = scmp.eq.s32.totalorder %s9, 0
    %p97 = por %p95, %p96
    %p98 = scmp.ne.s32.totalorder %s87, %s90
    %p99 = scmp.eq.s32.totalorder %s14, 1
    %p100 = por %p98, %p99
    %p101 = scmp.ne.s32.totalorder %s90, %s91
    %p102 = scmp.eq.s32.totalorder %s14, 0
    %p103 = por %p101, %p102
    %p104 = scmp.ne.s32.totalorder %s90, %s91
    %p105 = scmp.eq.s32.totalorder %s15, 1
    %p106 = por %p104, %p105
    %p108 = scmp.ne.s32.totalorder %s91, %s107
    %p109 = scmp.eq.s32.totalorder %s15, 0
    %p110 = por %p108, %p109
    %p111 = scmp.le.s32.totalorder 1, %s9
    %p112 = scmp.lt.s32.totalorder %s9, 3
    %p113 = pnand %p111, %p112
    %p114 = pneg %p113
    // Predicated region
    $region9: #{distg_block_forward.8} parent=5 // pred_check
      _
    $region10: #{distg_block_forward.8} parent=5 // pred_check_branch
      %116 = sbr.rel (%p113) target = $region12
    $region11: #{distg_block_forward.8} parent=5 // pred_region
      %s117 = ssub.s32 %s9, 1
      // Predicated region
      $region13: #{distg_block_forward.8} parent=11 // pred_check
        %p118 = pneg %p56
      $region14: #{distg_block_forward.8} parent=11 // pred_check_branch
        %120 = sbr.rel (%p118) target = $region16
      $region15: #{distg_block_forward.8} parent=11 // pred_region
        _
      $region16: #{distg_block_forward.8} parent=11 // pred_fallthru
        _
      // Predicated region
      $region17: #{distg_block_forward.8} parent=11 // pred_check
        %p121 = pneg %p77
      $region18: #{distg_block_forward.8} parent=11 // pred_check_branch
        %123 = sbr.rel (%p121) target = $region20
      $region19: #{distg_block_forward.8} parent=11 // pred_region
        _
      $region20: #{distg_block_forward.8} parent=11 // pred_fallthru
        _
    $region12: #{distg_block_forward.8} parent=5 // pred_fallthru
      _
    %p124 = scmp.lt.s32.totalorder %s9, 2
    // Predicated region
    $region21: #{distg_block_forward.8} parent=5 // pred_check
      %p125 = pneg %p124
    $region22: #{distg_block_forward.8} parent=5 // pred_check_branch
      %127 = sbr.rel (%p125) target = $region24
    $region23: #{distg_block_forward.8} parent=5 // pred_region
      // Predicated region
      $region25: #{distg_block_forward.8} parent=23 // pred_check
        %p128 = pneg %p29
      $region26: #{distg_block_forward.8} parent=23 // pred_check_branch
        %130 = sbr.rel (%p128) target = $region28
      $region27: #{distg_block_forward.8} parent=23 // pred_region
        %s131 = smul.u32 8, %s9
        %p132 = scmp.lt.s32.totalorder %s131, 15
        %s133 = scalar_select %p132, %s131, 15
        %s134 = smul.addr %s133, 2
        %s135 = smul.addr %s134, 4
        %s136 = scalar_lea.vmem %s0, %s135
        %s137 = smul.u32 8, %s9
      $region28: #{distg_block_forward.8} parent=23 // pred_fallthru
        _
    $region24: #{distg_block_forward.8} parent=5 // pred_fallthru
      _
    %p138 = scmp.le.s32.totalorder 1, %s9
    %p139 = scmp.lt.s32.totalorder %s9, 3
    %p140 = pnand %p138, %p139
    %p141 = pneg %p140
    // Predicated region
    $region29: #{distg_block_forward.8} parent=5 // pred_check
      _
    $region30: #{distg_block_forward.8} parent=5 // pred_check_branch
      %143 = sbr.rel (%p140) target = $region32
    $region31: #{distg_block_forward.8} parent=5 // pred_region
      %s144 = ssub.s32 %s9, 1
      %s145 = smul.u32 8, %s14
      %p146 = scmp.lt.s32.totalorder %s145, 15
      %s147 = scalar_select %p146, %s145, 15
      %s148 = smul.addr %s147, 2
      %s149 = smul.addr %s148, 4
      %s150 = scalar_lea.vmem %s0, %s149
      %p151 = pneg %p35
      %p152 = pneg %p32
      %p153 = pneg %p56
      %p154 = pneg %p53
      %p155 = pneg %p77
      %p156 = pneg %p74
      %p157 = pneg %p103
      %p158 = pneg %p100
      %s159 = smul.u32 8, %s14
      %p160 = scmp.lt.s32.totalorder %s159, 15
      %s161 = scalar_select %p160, %s159, 15
      %s162 = smul.addr %s161, 4
      %s163 = scalar_lea.vmem %s3, %s162
      %s164 = smul.u32 8, %s14
      %p165 = scmp.lt.s32.totalorder %s164, 15
      %s166 = scalar_select %p165, %s164, 15
      %s167 = smul.addr %s166, 2
      %s168 = smul.addr %s167, 4
      %s169 = scalar_lea.vmem %s0, %s168
      %s170 = smul.u32 8, %s14
      %s171 = smul.u32 8, %s14
      %p172 = scmp.lt.s32.totalorder %s171, 15
      %s173 = scalar_select %p172, %s171, 15
      %s174 = smul.addr %s173, 4
      %s175 = scalar_lea.vmem %s3, %s174
      %s176 = smul.u32 8, %s14
      %v178 = vld [vmem:[%s169] sm:$0xff]
      %v179 = vld [vmem:[%s169 + $0x8] sm:$0xff]
      %v180 = vld [vmem:[%s169 + $0x10] sm:$0xff]
      %v181 = vld [vmem:[%s169 + $0x18] sm:$0xff]
      %v182 = vld [vmem:[%s169 + $0x20] sm:$0xff]
      %v183 = vld [vmem:[%s169 + $0x28] sm:$0xff]
      %v184 = vld [vmem:[%s169 + $0x30] sm:$0xff]
      %v185 = vld [vmem:[%s169 + $0x38] sm:$0xff]
      %v186 = vld [vmem:[%s1] sm:$0xf]
      %v187 = vld [vmem:[%s1 + $0x4] sm:$0xf]
      %v188 = vld [vmem:[%s1 + $0x8] sm:$0xf]
      %v189 = vld [vmem:[%s1 + $0xc] sm:$0xf]
      %v190 = vld [vmem:[%s1 + $0x10] sm:$0xf]
      %v191 = vld [vmem:[%s1 + $0x14] sm:$0xf]
      %v192 = vld [vmem:[%s1 + $0x18] sm:$0xf]
      %v193 = vld [vmem:[%s1 + $0x1c] sm:$0xf]
      %v194 = vld [vmem:[%s1 + $0x20] sm:$0xf]
      %v195 = vld [vmem:[%s1 + $0x24] sm:$0xf]
      %v196 = vld [vmem:[%s1 + $0x28] sm:$0xf]
      %v197 = vld [vmem:[%s1 + $0x2c] sm:$0xf]
      %v198 = vld [vmem:[%s1 + $0x30] sm:$0xf]
      %v199 = vld [vmem:[%s1 + $0x34] sm:$0xf]
      %v200 = vld [vmem:[%s1 + $0x38] sm:$0xf]
      %v201 = vld [vmem:[%s1 + $0x3c] sm:$0xf]
      %v202 = vld [vmem:[%s1 + $0x40] sm:$0xf]
      %v203 = vld [vmem:[%s1 + $0x44] sm:$0xf]
      %v204 = vld [vmem:[%s1 + $0x48] sm:$0xf]
      %v205 = vld [vmem:[%s1 + $0x4c] sm:$0xf]
      %v206 = vld [vmem:[%s1 + $0x50] sm:$0xf]
      %v207 = vld [vmem:[%s1 + $0x54] sm:$0xf]
      %v208 = vld [vmem:[%s1 + $0x58] sm:$0xf]
      %v209 = vld [vmem:[%s1 + $0x5c] sm:$0xf]
      %v210 = vld [vmem:[%s1 + $0x60] sm:$0xf]
      %v219 = vunpack.c.l.b16 %v178
      %v220 = vunpack.c.h.b16 %v178
      %v221 = vunpack.c.l.b16 %v179
      %v222 = vunpack.c.h.b16 %v179
      %v223 = vunpack.c.l.b16 %v180
      %v224 = vunpack.c.h.b16 %v180
      %v225 = vunpack.c.l.b16 %v181
      %v226 = vunpack.c.h.b16 %v181
      %v227 = vunpack.c.l.b16 %v182
      %v228 = vunpack.c.h.b16 %v182
      %v229 = vunpack.c.l.b16 %v183
      %v230 = vunpack.c.h.b16 %v183
      %v231 = vunpack.c.l.b16 %v184
      %v232 = vunpack.c.h.b16 %v184
      %v233 = vunpack.c.l.b16 %v185
      %v234 = vunpack.c.h.b16 %v185
      %v235 = vpack.c.b16 %v221, %v219
      %v236 = vpack.c.b16 %v222, %v220
      %v237 = vpack.c.b16 %v225, %v223
      %v238 = vpack.c.b16 %v226, %v224
      %v239 = vpack.c.b16 %v229, %v227
      %v240 = vpack.c.b16 %v230, %v228
      %v241 = vpack.c.b16 %v233, %v231
      %v242 = vpack.c.b16 %v234, %v232
      %v272 = vunpack.c.l.b16 %v186
      %v273 = vunpack.c.l.b16 %v187
      %v274 = vunpack.c.l.b16 %v188
      %v275 = vunpack.c.l.b16 %v189
      %v276 = vunpack.c.l.b16 %v190
      %v277 = vunpack.c.l.b16 %v191
      %v278 = vunpack.c.l.b16 %v192
      %v279 = vunpack.c.l.b16 %v193
      %v280 = vunpack.c.l.b16 %v194
      %v281 = vunpack.c.l.b16 %v195
      %v282 = vunpack.c.l.b16 %v196
      %v283 = vunpack.c.l.b16 %v197
      %v284 = vunpack.c.l.b16 %v198
      %v285 = vunpack.c.l.b16 %v199
      %v286 = vunpack.c.l.b16 %v200
      %v287 = vunpack.c.l.b16 %v201
      %v288 = vunpack.c.l.b16 %v202
      %v289 = vunpack.c.l.b16 %v203
      %v290 = vunpack.c.l.b16 %v204
      %v291 = vunpack.c.l.b16 %v205
      %v292 = vunpack.c.l.b16 %v206
      %v293 = vunpack.c.l.b16 %v207
      %v294 = vunpack.c.l.b16 %v208
      %v295 = vunpack.c.l.b16 %v209
      %v296 = vunpack.c.l.b16 %v210
      %v297 = vpack.c.b16 %v273, %v272
      %v298 = vpack.c.b16 %v275, %v274
      %v299 = vpack.c.b16 %v277, %v276
      %v300 = vpack.c.b16 %v279, %v278
      %v301 = vpack.c.b16 %v281, %v280
      %v302 = vpack.c.b16 %v283, %v282
      %v303 = vpack.c.b16 %v285, %v284
      %v304 = vpack.c.b16 %v287, %v286
      %v305 = vpack.c.b16 %v289, %v288
      %v306 = vpack.c.b16 %v291, %v290
      %v307 = vpack.c.b16 %v293, %v292
      %v308 = vpack.c.b16 %v295, %v294
      %v309 = vpack.c.b16 %v296, %v296
      %vm322 = vcmask 588800
      %v324 = vsel %vm322, %v236, 0
      %v327 = vsel %vm322, %v238, 0
      %v330 = vsel %vm322, %v240, 0
      %v333 = vsel %vm322, %v242, 0
      %vm335 = vcmask 1043456
      %v337 = vsel %vm335, %v309, 0
      %339 = vmatprep.subr.bf16.mxu0 0
      %340 = vmatpush1.bf16.msra.mxu0 %v297
      %341 = vmatprep.subr.bf16.mxu0 0
      %342 = vmatpush1.bf16.msra.mxu0 %v298
      %343 = vmatprep.subr.bf16.mxu0 0
      %344 = vmatpush1.bf16.msra.mxu0 %v299
      %345 = vmatprep.subr.bf16.mxu0 0
      %346 = vmatpush1.bf16.msra.mxu0 %v300
      %347 = vmatprep.subr.bf16.mxu0 0
      %348 = vmatpush1.bf16.msra.mxu0 %v301
      %349 = vmatprep.subr.bf16.mxu0 0
      %350 = vmatpush1.bf16.msra.mxu0 %v302
      %351 = vmatprep.subr.bf16.mxu0 0
      %352 = vmatpush1.bf16.msra.mxu0 %v303
      %353 = vmatprep.subr.bf16.mxu0 0
      %354 = vmatpush1.bf16.msra.mxu0 %v304
      %355 = vmatprep.subr.bf16.mxu0 0
      %356 = vmatpush1.bf16.msra.mxu0 %v305
      %357 = vmatprep.subr.bf16.mxu0 0
      %358 = vmatpush1.bf16.msra.mxu0 %v306
      %359 = vmatprep.subr.bf16.mxu0 0
      %360 = vmatpush1.bf16.msra.mxu0 %v307
      %361 = vmatprep.subr.bf16.mxu0 0
      %362 = vmatpush1.bf16.msra.mxu0 %v308
      %363 = vmatprep.subr.bf16.mxu0 0
      %364 = vmatpush1.bf16.msra.mxu0 %v337
      %365 = vmatprep.subr.bf16.mxu0 0
      %366 = vmatpush1.bf16.msra.mxu0 0
      %367 = vmatprep.subr.bf16.mxu0 0
      %368 = vmatpush1.bf16.msra.mxu0 0
      %369 = vmatprep.subr.bf16.mxu0 0
      %370 = vmatpush1.bf16.msra.mxu0 0
      %371 = vmatprep.mubr.bf16.mxu0 %v324
      %372 = vmatmul.mubr.bf16.gmra.mrb[0].mxu0 %v235
      %v373 = vpop.f32.mrb[0].mxu0
      %v374 = vadd.f32 0.0, %v373
      %v375 = vpop.f32.mrb[0].mxu0
      %v376 = vpop.f32.mrb[0].mxu0
      %v377 = vadd.f32 0.0, %v376
      %v378 = vpop.f32.mrb[0].mxu0
      %379 = vmatprep.mubr.bf16.mxu0 %v327
      %380 = vmatmul.mubr.bf16.gmra.mrb[0].mxu0 %v237
      %v381 = vpop.f32.mrb[0].mxu0
      %v382 = vadd.f32 0.0, %v381
      %v383 = vpop.f32.mrb[0].mxu0
      %v384 = vpop.f32.mrb[0].mxu0
      %v385 = vadd.f32 0.0, %v384
      %v386 = vpop.f32.mrb[0].mxu0
      %387 = vmatprep.mubr.bf16.mxu0 %v330
      %388 = vmatmul.mubr.bf16.gmra.mrb[0].mxu0 %v239
      %v389 = vpop.f32.mrb[0].mxu0
      %v390 = vadd.f32 0.0, %v389
      %v391 = vpop.f32.mrb[0].mxu0
      %v392 = vpop.f32.mrb[0].mxu0
      %v393 = vadd.f32 0.0, %v392
      %v394 = vpop.f32.mrb[0].mxu0
      %395 = vmatprep.mubr.bf16.mxu0 %v333
      %396 = vmatmul.mubr.bf16.gmra.mrb[0].mxu0 %v241
      %v397 = vpop.f32.mrb[0].mxu0
      %v398 = vadd.f32 0.0, %v397
      %v399 = vpop.f32.mrb[0].mxu0
      %v400 = vpop.f32.mrb[0].mxu0
      %v401 = vadd.f32 0.0, %v400
      %v402 = vpop.f32.mrb[0].mxu0
      %403 = vdwg.mxu0
      %vm404 = vcmp.ge.f32.partialorder %v374, 0.0
      %vm405 = vcmp.ge.f32.partialorder %v377, 0.0
      %vm406 = vcmp.ge.f32.partialorder %v382, 0.0
      %vm407 = vcmp.ge.f32.partialorder %v385, 0.0
      %vm408 = vcmp.ge.f32.partialorder %v390, 0.0
      %vm409 = vcmp.ge.f32.partialorder %v393, 0.0
      %vm410 = vcmp.ge.f32.partialorder %v398, 0.0
      %vm411 = vcmp.ge.f32.partialorder %v401, 0.0
      %v412 = vmul.f32 %v374, 0.1
      %v413 = vmul.f32 %v377, 0.1
      %v414 = vmul.f32 %v382, 0.1
      %v415 = vmul.f32 %v385, 0.1
      %v416 = vmul.f32 %v390, 0.1
      %v417 = vmul.f32 %v393, 0.1
      %v418 = vmul.f32 %v398, 0.1
      %v419 = vmul.f32 %v401, 0.1
      %v420 = vsel %vm404, %v374, %v412
      %v421 = vsel %vm405, %v377, %v413
      %v422 = vsel %vm406, %v382, %v414
      %v423 = vsel %vm407, %v385, %v415
      %v424 = vsel %vm408, %v390, %v416
      %v425 = vsel %vm409, %v393, %v417
      %v426 = vsel %vm410, %v398, %v418
      %v427 = vsel %vm411, %v401, %v419
      %v428 = vld [vmem:[%s2] sm:$0xf]
      %v429 = vld [vmem:[%s2 + $0x4] sm:$0xf]
      %v430 = vpack.c.bf16 %v421, %v420
      %v431 = vpack.c.bf16 %v423, %v422
      %v432 = vpack.c.bf16 %v425, %v424
      %v433 = vpack.c.bf16 %v427, %v426
      %v436 = vunpack.c.l.b16 %v428
      %v437 = vunpack.c.l.b16 %v429
      %v438 = vpack.c.b16 %v437, %v436
      %vm440 = vcmask 130048
      %v442 = vsel %vm440, %v430, 0
      %v445 = vsel %vm440, %v431, 0
      %v448 = vsel %vm440, %v432, 0
      %v451 = vsel %vm440, %v433, 0
      %453 = vmatprep.subr.bf16.mxu0 0
      %454 = vmatpush1.bf16.msra.mxu0 %v438
      %455 = vmatprep.subr.bf16.mxu0 0
      %456 = vmatpush1.bf16.msra.mxu0 0
      %457 = vmatprep.subr.bf16.mxu0 0
      %458 = vmatpush1.bf16.msra.mxu0 0
      %459 = vmatprep.subr.bf16.mxu0 0
      %460 = vmatpush1.bf16.msra.mxu0 0
      %461 = vmatprep.subr.bf16.mxu0 0
      %462 = vmatpush1.bf16.msra.mxu0 0
      %463 = vmatprep.subr.bf16.mxu0 0
      %464 = vmatpush1.bf16.msra.mxu0 0
      %465 = vmatprep.subr.bf16.mxu0 0
      %466 = vmatpush1.bf16.msra.mxu0 0
      %467 = vmatprep.subr.bf16.mxu0 0
      %468 = vmatpush1.bf16.msra.mxu0 0
      %469 = vmatprep.subr.bf16.mxu0 0
      %470 = vmatpush1.bf16.msra.mxu0 0
      %471 = vmatprep.subr.bf16.mxu0 0
      %472 = vmatpush1.bf16.msra.mxu0 0
      %473 = vmatprep.subr.bf16.mxu0 0
      %474 = vmatpush1.bf16.msra.mxu0 0
      %475 = vmatprep.subr.bf16.mxu0 0
      %476 = vmatpush1.bf16.msra.mxu0 0
      %477 = vmatprep.subr.bf16.mxu0 0
      %478 = vmatpush1.bf16.msra.mxu0 0
      %479 = vmatprep.subr.bf16.mxu0 0
      %480 = vmatpush1.bf16.msra.mxu0 0
      %481 = vmatprep.subr.bf16.mxu0 0
      %482 = vmatpush1.bf16.msra.mxu0 0
      %483 = vmatprep.subr.bf16.mxu0 0
      %484 = vmatpush1.bf16.msra.mxu0 0
      %485 = vmatprep.mubr.bf16.mxu0 0
      %486 = vmatmul.mubr.bf16.gmra.mrb[0].mxu0 %v442
      %v487 = vpop.f32.mrb[0].mxu0
      %v488 = vadd.f32 0.0, %v487
      %v489 = vpop.f32.mrb[0].mxu0
      %v490 = vpop.f32.mrb[0].mxu0
      %v491 = vadd.f32 0.0, %v490
      %v492 = vpop.f32.mrb[0].mxu0
      %493 = vmatprep.mubr.bf16.mxu0 0
      %494 = vmatmul.mubr.bf16.gmra.mrb[0].mxu0 %v445
      %v495 = vpop.f32.mrb[0].mxu0
      %v496 = vadd.f32 0.0, %v495
      %v497 = vpop.f32.mrb[0].mxu0
      %v498 = vpop.f32.mrb[0].mxu0
      %v499 = vadd.f32 0.0, %v498
      %v500 = vpop.f32.mrb[0].mxu0
      %501 = vmatprep.mubr.bf16.mxu0 0
      %502 = vmatmul.mubr.bf16.gmra.mrb[0].mxu0 %v448
      %v503 = vpop.f32.mrb[0].mxu0
      %v504 = vadd.f32 0.0, %v503
      %v505 = vpop.f32.mrb[0].mxu0
      %v506 = vpop.f32.mrb[0].mxu0
      %v507 = vadd.f32 0.0, %v506
      %v508 = vpop.f32.mrb[0].mxu0
      %509 = vmatprep.mubr.bf16.mxu0 0
      %510 = vmatmul.mubr.bf16.gmra.mrb[0].mxu0 %v451
      %v511 = vpop.f32.mrb[0].mxu0
      %v512 = vadd.f32 0.0, %v511
      %v513 = vpop.f32.mrb[0].mxu0
      %v514 = vpop.f32.mrb[0].mxu0
      %v515 = vadd.f32 0.0, %v514
      %v516 = vpop.f32.mrb[0].mxu0
      %517 = vdwg.mxu0
      %vm518 = vcmp.ge.f32.partialorder %v488, 0.0
      %vm519 = vcmp.ge.f32.partialorder %v491, 0.0
      %vm520 = vcmp.ge.f32.partialorder %v496, 0.0
      %vm521 = vcmp.ge.f32.partialorder %v499, 0.0
      %vm522 = vcmp.ge.f32.partialorder %v504, 0.0
      %vm523 = vcmp.ge.f32.partialorder %v507, 0.0
      %vm524 = vcmp.ge.f32.partialorder %v512, 0.0
      %vm525 = vcmp.ge.f32.partialorder %v515, 0.0
      %v526 = vmul.f32 %v488, 0.1
      %v527 = vmul.f32 %v491, 0.1
      %v528 = vmul.f32 %v496, 0.1
      %v529 = vmul.f32 %v499, 0.1
      %v530 = vmul.f32 %v504, 0.1
      %v531 = vmul.f32 %v507, 0.1
      %v532 = vmul.f32 %v512, 0.1
      %v533 = vmul.f32 %v515, 0.1
      %v534 = vsel %vm518, %v488, %v526
      %v535 = vsel %vm519, %v491, %v527
      %v536 = vsel %vm520, %v496, %v528
      %v537 = vsel %vm521, %v499, %v529
      %v538 = vsel %vm522, %v504, %v530
      %v539 = vsel %vm523, %v507, %v531
      %v540 = vsel %vm524, %v512, %v532
      %v541 = vsel %vm525, %v515, %v533
      %v542 = vpack.c.bf16 %v535, %v534
      %v543 = vpack.c.bf16 %v537, %v536
      %v544 = vpack.c.bf16 %v539, %v538
      %v545 = vpack.c.bf16 %v541, %v540
      %v550 = vunpack.c.l.b16 %v542
      %v551 = vunpack.c.h.b16 %v542
      %v552 = vunpack.c.l.b16 %v543
      %v553 = vunpack.c.h.b16 %v543
      %v554 = vunpack.c.l.b16 %v544
      %v555 = vunpack.c.h.b16 %v544
      %v556 = vunpack.c.l.b16 %v545
      %v557 = vunpack.c.h.b16 %v545
      %v558 = vpack.c.b16 %v550, %v550
      %v559 = vpack.c.b16 %v551, %v551
      %v560 = vpack.c.b16 %v552, %v552
      %v561 = vpack.c.b16 %v553, %v553
      %v562 = vpack.c.b16 %v554, %v554
      %v563 = vpack.c.b16 %v555, %v555
      %v564 = vpack.c.b16 %v556, %v556
      %v565 = vpack.c.b16 %v557, %v557
      %vm574 = vcmask 404480
      %575 = vst.msk [vmem:[%s175] sm:$0xf] %vm574, %v558
      %576 = vst.msk [vmem:[%s175 + $0x4] sm:$0xf] %vm574, %v559
      %577 = vst.msk [vmem:[%s175 + $0x8] sm:$0xf] %vm574, %v560
      %578 = vst.msk [vmem:[%s175 + $0xc] sm:$0xf] %vm574, %v561
      %579 = vst.msk [vmem:[%s175 + $0x10] sm:$0xf] %vm574, %v562
      %580 = vst.msk [vmem:[%s175 + $0x14] sm:$0xf] %vm574, %v563
      %581 = vst.msk [vmem:[%s175 + $0x18] sm:$0xf] %vm574, %v564
      %582 = vst.msk [vmem:[%s175 + $0x1c] sm:$0xf] %vm574, %v565
      %s583 = smul.u32 8, %s14
      %p584 = scmp.lt.s32.totalorder %s583, 15
      %s585 = scalar_select %p584, %s583, 15
      %s586 = smul.addr %s585, 4
      %s587 = scalar_lea.vmem %s3, %s586
      // Predicated region
      $region33: #{distg_block_forward.8} parent=31 // pred_check
        %p588 = pneg %p100
      $region34: #{distg_block_forward.8} parent=31 // pred_check_branch
        %590 = sbr.rel (%p588) target = $region36
      $region35: #{distg_block_forward.8} parent=31 // pred_region
        %s591 = smul.u32 8, %s14
      $region36: #{distg_block_forward.8} parent=31 // pred_fallthru
        _
    $region32: #{distg_block_forward.8} parent=5 // pred_fallthru
      _
    %p592 = scmp.le.s32.totalorder 2, %s9
    // Predicated region
    $region37: #{distg_block_forward.8} parent=5 // pred_check
      %p593 = pneg %p592
    $region38: #{distg_block_forward.8} parent=5 // pred_check_branch
      %595 = sbr.rel (%p593) target = $region40
    $region39: #{distg_block_forward.8} parent=5 // pred_region
      %s596 = ssub.s32 %s9, 2
      // Predicated region
      $region41: #{distg_block_forward.8} parent=39 // pred_check
        %p597 = pneg %p106
      $region42: #{distg_block_forward.8} parent=39 // pred_check_branch
        %599 = sbr.rel (%p597) target = $region44
      $region43: #{distg_block_forward.8} parent=39 // pred_region
        %s600 = smul.u32 8, %s15
        %p601 = scmp.lt.s32.totalorder %s600, 15
        %s602 = scalar_select %p601, %s600, 15
        %s603 = smul.addr %s602, 4
        %s604 = scalar_lea.vmem %s3, %s603
      $region44: #{distg_block_forward.8} parent=39 // pred_fallthru
        _
    $region40: #{distg_block_forward.8} parent=5 // pred_fallthru
      _
  $region6: #{distg_block_forward.8} parent=0 // loop_footer
    %s13 = sadd.s32 1, %s9
  $region7: #{distg_block_forward.8} parent=0 // loop_footer_branch
    %8 = sbr.rel target = $region3
  $region8: #{distg_block_forward.8} parent=0 // loop_exit
    _

// kernel: distg_block_forward.6
$region0: #{distg_block_forward.6}
  #allocation0 [shape = 'u32[]', space=smem, size = 0x4, offset = 0x4, fixed_abs, tag = 'smem constant byte address 0x4 - core index']
  #allocation1 [shape = 'u32[144,128]{1,0:T(1,128)}', space=vmem, size = 0x12000, scoped, tag = 'internal scratch']
  %s0 = inlined_call_operand.vmem [shape: bf16[3200,72], index: 0, kind: input, shape index: {}]
  %s1 = inlined_call_operand.vmem [shape: bf16[72,8], index: 1, kind: input, shape index: {}]
  %s2 = inlined_call_operand.vmem [shape: bf16[3200,8], index: 2, kind: output, shape index: {}]
  %s3 = sld [smem:[#allocation0]]
  $region85: #{distg_block_forward.6} parent=0
    _
  %s5 = ssub.s32 1, %s3
  %s6 = scalar_select 0, %s5, %s3
  $region1: #{distg_block_forward.6} parent=0
    #allocation2 [shape = 'u8[262144]{0}', space=vmem, size = 0x40000, scoped, tag = 'output window, operand 0']
    loop: start=0, step=1, limit=9
    $region2: #{distg_block_forward.6} parent=1 // loop_pre_header
      _
    $region3: #{distg_block_forward.6} parent=1 // loop_header
      %s8 = sphi 0, %s12
      %p9 = scmp.ge.s32.totalorder %s8, 9
      %s18 = sphi 0, %s20
      %s21 = sphi 0, %s18
      %s22 = sphi 0, %s21
      %s38 = sphi 0, %s22
      %s42 = sphi 0, %s42
      %s44 = sphi 0, %s42
      %s45 = sphi 0, %s44
      %s59 = sphi 0, %s45
      %s65 = sphi 0, %s67
      %s68 = sphi 0, %s65
      %s69 = sphi 0, %s68
      %s85 = sphi 0, %s69
    $region4: #{distg_block_forward.6} parent=1 // loop_header_branch
      %11 = sbr.rel (%p9) target = $region8
    $region5: #{distg_block_forward.6} parent=1 // loop_body
      %s13 = ssub.s32 %s8, 1
      %s14 = ssub.s32 %s8, 2
      %s15 = sadd.s32 %s8, 1
      %s16 = ssub.s32 %s8, %s15
      %p17 = scmp.eq.s32.totalorder %s16, 0
      %s19 = sadd.s32 %s18, 1
      %s20 = scalar_select %p17, %s18, %s19
      %p23 = pneg %p17
      %p24 = scmp.eq.s32.totalorder %s8, 6
      %p25 = por %p23, %p24
      %p26 = scmp.ne.s32.totalorder %s18, %s21
      %p27 = scmp.eq.s32.totalorder %s8, 0
      %p28 = por %p26, %p27
      %p29 = scmp.ne.s32.totalorder %s18, %s21
      %p30 = scmp.eq.s32.totalorder %s13, 6
      %p31 = por %p29, %p30
      %p32 = scmp.ne.s32.totalorder %s21, %s22
      %p33 = scmp.eq.s32.totalorder %s13, 0
      %p34 = por %p32, %p33
      %p35 = scmp.ne.s32.totalorder %s21, %s22
      %p36 = scmp.eq.s32.totalorder %s14, 6
      %p37 = por %p35, %p36
      %p39 = scmp.ne.s32.totalorder %s22, %s38
      %p40 = scmp.eq.s32.totalorder %s14, 0
      %p41 = por %p39, %p40
      %s43 = sadd.s32 %s42, 1
      %p46 = scmp.eq.s32.totalorder %s8, 6
      %p47 = scmp.ne.s32.totalorder %s42, %s44
      %p48 = scmp.eq.s32.totalorder %s8, 0
      %p49 = por %p47, %p48
      %p50 = scmp.ne.s32.totalorder %s42, %s44
      %p51 = scmp.eq.s32.totalorder %s13, 6
      %p52 = por %p50, %p51
      %p53 = scmp.ne.s32.totalorder %s44, %s45
      %p54 = scmp.eq.s32.totalorder %s13, 0
      %p55 = por %p53, %p54
      %p56 = scmp.ne.s32.totalorder %s44, %s45
      %p57 = scmp.eq.s32.totalorder %s14, 6
      %p58 = por %p56, %p57
      %p60 = scmp.ne.s32.totalorder %s45, %s59
      %p61 = scmp.eq.s32.totalorder %s14, 0
      %p62 = por %p60, %p61
      %s63 = ssub.s32 %s8, %s15
      %p64 = scmp.eq.s32.totalorder %s63, 0
      %s66 = sadd.s32 %s65, 1
      %s67 = scalar_select %p64, %s65, %s66
      %p70 = pneg %p64
      %p71 = scmp.eq.s32.totalorder %s8, 6
      %p72 = por %p70, %p71
      %p73 = scmp.ne.s32.totalorder %s65, %s68
      %p74 = scmp.eq.s32.totalorder %s8, 0
      %p75 = por %p73, %p74
      %p76 = scmp.ne.s32.totalorder %s65, %s68
      %p77 = scmp.eq.s32.totalorder %s13, 6
      %p78 = por %p76, %p77
      %p79 = scmp.ne.s32.totalorder %s68, %s69
      %p80 = scmp.eq.s32.totalorder %s13, 0
      %p81 = por %p79, %p80
      %p82 = scmp.ne.s32.totalorder %s68, %s69
      %p83 = scmp.eq.s32.totalorder %s14, 6
      %p84 = por %p82, %p83
      %p86 = scmp.ne.s32.totalorder %s69, %s85
      %p87 = scmp.eq.s32.totalorder %s14, 0
      %p88 = por %p86, %p87
      %p89 = scmp.le.s32.totalorder 1, %s8
      %p90 = scmp.lt.s32.totalorder %s8, 8
      %p91 = pnand %p89, %p90
      %p92 = pneg %p91
      // Predicated region
      $region9: #{distg_block_forward.6} parent=5 // pred_check
        _
      $region10: #{distg_block_forward.6} parent=5 // pred_check_branch
        %94 = sbr.rel (%p91) target = $region12
      $region11: #{distg_block_forward.6} parent=5 // pred_region
        %s95 = ssub.s32 %s8, 1
        // Predicated region
        $region13: #{distg_block_forward.6} parent=11 // pred_check
          %p96 = pneg %p55
        $region14: #{distg_block_forward.6} parent=11 // pred_check_branch
          %98 = sbr.rel (%p96) target = $region16
        $region15: #{distg_block_forward.6} parent=11 // pred_region
          _
        $region16: #{distg_block_forward.6} parent=11 // pred_fallthru
          _
      $region12: #{distg_block_forward.6} parent=5 // pred_fallthru
        _
      %p99 = scmp.lt.s32.totalorder %s8, 7
      // Predicated region
      $region17: #{distg_block_forward.6} parent=5 // pred_check
        %p100 = pneg %p99
      $region18: #{distg_block_forward.6} parent=5 // pred_check_branch
        %102 = sbr.rel (%p100) target = $region20
      $region19: #{distg_block_forward.6} parent=5 // pred_region
        // Predicated region
        $region21: #{distg_block_forward.6} parent=19 // pred_check
          %p103 = pneg %p28
        $region22: #{distg_block_forward.6} parent=19 // pred_check_branch
          %105 = sbr.rel (%p103) target = $region24
        $region23: #{distg_block_forward.6} parent=19 // pred_region
          %s106 = smul.u32 64, %s8
          %s107 = ssub.s32 400, %s106
          %p108 = scmp.lt.s32.totalorder %s107, 64
          %s109 = scalar_select %p108, %s107, 64
          %s110 = smul.u32 64, %s109
          %p111 = scmp.lt.s32.totalorder %s106, 399
          %s112 = scalar_select %p111, %s106, 399
          %s113 = smul.addr %s112, 4
          %s114 = scalar_lea.vmem %s0, %s113
          %s115 = smul.u32 64, %s8
          %s116 = ssub.s32 400, %s115
          %p117 = scmp.lt.s32.totalorder %s116, 64
          %s118 = scalar_select %p117, %s116, 64
          %s119 = smul.u32 64, %s118
        $region24: #{distg_block_forward.6} parent=19 // pred_fallthru
          _
      $region20: #{distg_block_forward.6} parent=5 // pred_fallthru
        _
      %p120 = scmp.le.s32.totalorder 1, %s8
      %p121 = scmp.lt.s32.totalorder %s8, 8
      %p122 = pnand %p120, %p121
      %p123 = pneg %p122
      // Predicated region
      $region25: #{distg_block_forward.6} parent=5 // pred_check
        _
      $region26: #{distg_block_forward.6} parent=5 // pred_check_branch
        %125 = sbr.rel (%p122) target = $region28
      $region27: #{distg_block_forward.6} parent=5 // pred_region
        %s126 = ssub.s32 %s8, 1
        %s127 = smul.u32 64, %s13
        %s128 = ssub.s32 400, %s127
        %p129 = scmp.lt.s32.totalorder %s128, 64
        %s130 = scalar_select %p129, %s128, 64
        %s131 = smul.u32 64, %s130
        %p132 = scmp.lt.s32.totalorder %s127, 399
        %s133 = scalar_select %p132, %s127, 399
        %s134 = smul.addr %s133, 4
        %s135 = scalar_lea.vmem %s0, %s134
        %p136 = pneg %p34
        %p137 = pneg %p31
        %p138 = pneg %p55
        %p139 = pneg %p52
        %p140 = pneg %p81
        %p141 = pneg %p78
        %s142 = sand.u32 %s68, 1
        %s143 = sand.u32 %s68, 1
        %s144 = smul.addr %s143, 256
        %s145 = scalar_lea.vmem [#allocation2], %s144
        %s146 = smul.u32 64, %s13
        %s147 = ssub.s32 400, %s146
        %p148 = scmp.lt.s32.totalorder %s147, 64
        %s149 = scalar_select %p148, %s147, 64
        %s150 = smul.u32 64, %s149
        %p151 = scmp.lt.s32.totalorder %s146, 399
        %s152 = scalar_select %p151, %s146, 399
        %s153 = smul.addr %s152, 4
        %s154 = scalar_lea.vmem %s0, %s153
        %s155 = smul.u32 64, %s13
        %s156 = ssub.s32 400, %s155
        %p157 = scmp.lt.s32.totalorder %s156, 64
        %s158 = scalar_select %p157, %s156, 64
        %s159 = smul.u32 64, %s158
        %s160 = smul.u32 64, %s13
        %s161 = ssub.s32 400, %s160
        %p162 = scmp.lt.s32.totalorder %s161, 64
        %s163 = scalar_select %p162, %s161, 64
        %s164 = smul.u32 64, %s163
        %v166 = vld [vmem:[%s154] sm:$0xf]
        %v167 = vld [vmem:[%s154 + $0x4] sm:$0xf]
        %v168 = vld [vmem:[%s154 + $0x8] sm:$0xf]
        %v169 = vld [vmem:[%s154 + $0xc] sm:$0xf]
        %v170 = vld [vmem:[%s154 + $0x10] sm:$0xf]
        %v171 = vld [vmem:[%s154 + $0x14] sm:$0xf]
        %v172 = vld [vmem:[%s154 + $0x18] sm:$0xf]
        %v173 = vld [vmem:[%s154 + $0x1c] sm:$0xf]
        %v174 = vld [vmem:[%s154 + $0x20] sm:$0xf]
        %v175 = vld [vmem:[%s154 + $0x24] sm:$0xf]
        %v176 = vld [vmem:[%s154 + $0x28] sm:$0xf]
        %v177 = vld [vmem:[%s154 + $0x2c] sm:$0xf]
        %v178 = vld [vmem:[%s154 + $0x30] sm:$0xf]
        %v179 = vld [vmem:[%s154 + $0x34] sm:$0xf]
        %v180 = vld [vmem:[%s154 + $0x38] sm:$0xf]
        %v181 = vld [vmem:[%s154 + $0x3c] sm:$0xf]
        %v182 = vld [vmem:[%s154 + $0x40] sm:$0xf]
        %v183 = vld [vmem:[%s154 + $0x44] sm:$0xf]
        %v184 = vld [vmem:[%s154 + $0x48] sm:$0xf]
        %v185 = vld [vmem:[%s154 + $0x4c] sm:$0xf]
        %v186 = vld [vmem:[%s154 + $0x50] sm:$0xf]
        %v187 = vld [vmem:[%s154 + $0x54] sm:$0xf]
        %v188 = vld [vmem:[%s154 + $0x58] sm:$0xf]
        %v189 = vld [vmem:[%s154 + $0x5c] sm:$0xf]
        %v190 = vld [vmem:[%s154 + $0x60] sm:$0xf]
        %v191 = vld [vmem:[%s154 + $0x64] sm:$0xf]
        %v192 = vld [vmem:[%s154 + $0x68] sm:$0xf]
        %v193 = vld [vmem:[%s154 + $0x6c] sm:$0xf]
        %v194 = vld [vmem:[%s154 + $0x70] sm:$0xf]
        %v195 = vld [vmem:[%s154 + $0x74] sm:$0xf]
        %v196 = vld [vmem:[%s154 + $0x78] sm:$0xf]
        %v197 = vld [vmem:[%s154 + $0x7c] sm:$0xf]
        %v198 = vld [vmem:[%s154 + $0x80] sm:$0xf]
        %v199 = vld [vmem:[%s154 + $0x84] sm:$0xf]
        %v200 = vld [vmem:[%s154 + $0x88] sm:$0xf]
        %v201 = vld [vmem:[%s154 + $0x8c] sm:$0xf]
        %v202 = vld [vmem:[%s154 + $0x90] sm:$0xf]
        %v203 = vld [vmem:[%s154 + $0x94] sm:$0xf]
        %v204 = vld [vmem:[%s154 + $0x98] sm:$0xf]
        %v205 = vld [vmem:[%s154 + $0x9c] sm:$0xf]
        %v206 = vld [vmem:[%s154 + $0xa0] sm:$0xf]
        %v207 = vld [vmem:[%s154 + $0xa4] sm:$0xf]
        %v208 = vld [vmem:[%s154 + $0xa8] sm:$0xf]
        %v209 = vld [vmem:[%s154 + $0xac] sm:$0xf]
        %v210 = vld [vmem:[%s154 + $0xb0] sm:$0xf]
        %v211 = vld [vmem:[%s154 + $0xb4] sm:$0xf]
        %v212 = vld [vmem:[%s154 + $0xb8] sm:$0xf]
        %v213 = vld [vmem:[%s154 + $0xbc] sm:$0xf]
        %v214 = vld [vmem:[%s154 + $0xc0] sm:$0xf]
        %v215 = vld [vmem:[%s154 + $0xc4] sm:$0xf]
        %v216 = vld [vmem:[%s154 + $0xc8] sm:$0xf]
        %v217 = vld [vmem:[%s154 + $0xcc] sm:$0xf]
        %v218 = vld [vmem:[%s154 + $0xd0] sm:$0xf]
        %v219 = vld [vmem:[%s154 + $0xd4] sm:$0xf]
        %v220 = vld [vmem:[%s154 + $0xd8] sm:$0xf]
        %v221 = vld [vmem:[%s154 + $0xdc] sm:$0xf]
        %v222 = vld [vmem:[%s154 + $0xe0] sm:$0xf]
        %v223 = vld [vmem:[%s154 + $0xe4] sm:$0xf]
        %v224 = vld [vmem:[%s154 + $0xe8] sm:$0xf]
        %v225 = vld [vmem:[%s154 + $0xec] sm:$0xf]
        %v226 = vld [vmem:[%s154 + $0xf0] sm:$0xf]
        %v227 = vld [vmem:[%s154 + $0xf4] sm:$0xf]
        %v228 = vld [vmem:[%s154 + $0xf8] sm:$0xf]
        %v229 = vld [vmem:[%s154 + $0xfc] sm:$0xf]
        %v230 = vld [vmem:[%s1] sm:$0xf]
        %v231 = vld [vmem:[%s1 + $0x4] sm:$0xf]
        %v232 = vld [vmem:[%s1 + $0x8] sm:$0xf]
        %v233 = vld [vmem:[%s1 + $0xc] sm:$0xf]
        %v234 = vld [vmem:[%s1 + $0x10] sm:$0xf]
        %v235 = vld [vmem:[%s1 + $0x14] sm:$0xf]
        %v236 = vld [vmem:[%s1 + $0x18] sm:$0xf]
        %v237 = vld [vmem:[%s1 + $0x1c] sm:$0xf]
        %v238 = vld [vmem:[%s1 + $0x20] sm:$0xf]
        %v303 = vunpack.c.l.b16 %v166
        %v304 = vunpack.c.l.b16 %v167
        %v305 = vunpack.c.l.b16 %v168
        %v306 = vunpack.c.l.b16 %v169
        %v307 = vunpack.c.l.b16 %v170
        %v308 = vunpack.c.l.b16 %v171
        %v309 = vunpack.c.l.b16 %v172
        %v310 = vunpack.c.l.b16 %v173
        %v311 = vunpack.c.l.b16 %v174
        %v312 = vunpack.c.l.b16 %v175
        %v313 = vunpack.c.l.b16 %v176
        %v314 = vunpack.c.l.b16 %v177
        %v315 = vunpack.c.l.b16 %v178
        %v316 = vunpack.c.l.b16 %v179
        %v317 = vunpack.c.l.b16 %v180
        %v318 = vunpack.c.l.b16 %v181
        %v319 = vunpack.c.l.b16 %v182
        %v320 = vunpack.c.l.b16 %v183
        %v321 = vunpack.c.l.b16 %v184
        %v322 = vunpack.c.l.b16 %v185
        %v323 = vunpack.c.l.b16 %v186
        %v324 = vunpack.c.l.b16 %v187
        %v325 = vunpack.c.l.b16 %v188
        %v326 = vunpack.c.l.b16 %v189
        %v327 = vunpack.c.l.b16 %v190
        %v328 = vunpack.c.l.b16 %v191
        %v329 = vunpack.c.l.b16 %v192
        %v330 = vunpack.c.l.b16 %v193
        %v331 = vunpack.c.l.b16 %v194
        %v332 = vunpack.c.l.b16 %v195
        %v333 = vunpack.c.l.b16 %v196
        %v334 = vunpack.c.l.b16 %v197
        %v335 = vunpack.c.l.b16 %v198
        %v336 = vunpack.c.l.b16 %v199
        %v337 = vunpack.c.l.b16 %v200
        %v338 = vunpack.c.l.b16 %v201
        %v339 = vunpack.c.l.b16 %v202
        %v340 = vunpack.c.l.b16 %v203
        %v341 = vunpack.c.l.b16 %v204
        %v342 = vunpack.c.l.b16 %v205
        %v343 = vunpack.c.l.b16 %v206
        %v344 = vunpack.c.l.b16 %v207
        %v345 = vunpack.c.l.b16 %v208
        %v346 = vunpack.c.l.b16 %v209
        %v347 = vunpack.c.l.b16 %v210
        %v348 = vunpack.c.l.b16 %v211
        %v349 = vunpack.c.l.b16 %v212
        %v350 = vunpack.c.l.b16 %v213
        %v351 = vunpack.c.l.b16 %v214
        %v352 = vunpack.c.l.b16 %v215
        %v353 = vunpack.c.l.b16 %v216
        %v354 = vunpack.c.l.b16 %v217
        %v355 = vunpack.c.l.b16 %v218
        %v356 = vunpack.c.l.b16 %v219
        %v357 = vunpack.c.l.b16 %v220
        %v358 = vunpack.c.l.b16 %v221
        %v359 = vunpack.c.l.b16 %v222
        %v360 = vunpack.c.l.b16 %v223
        %v361 = vunpack.c.l.b16 %v224
        %v362 = vunpack.c.l.b16 %v225
        %v363 = vunpack.c.l.b16 %v226
        %v364 = vunpack.c.l.b16 %v227
        %v365 = vunpack.c.l.b16 %v228
        %v366 = vunpack.c.l.b16 %v229
        %v367 = vpack.c.b16 %v304, %v303
        %v368 = vpack.c.b16 %v306, %v305
        %v369 = vpack.c.b16 %v308, %v307
        %v370 = vpack.c.b16 %v310, %v309
        %v371 = vpack.c.b16 %v312, %v311
        %v372 = vpack.c.b16 %v314, %v313
        %v373 = vpack.c.b16 %v316, %v315
        %v374 = vpack.c.b16 %v318, %v317
        %v375 = vpack.c.b16 %v320, %v319
        %v376 = vpack.c.b16 %v322, %v321
        %v377 = vpack.c.b16 %v324, %v323
        %v378 = vpack.c.b16 %v326, %v325
        %v379 = vpack.c.b16 %v328, %v327
        %v380 = vpack.c.b16 %v330, %v329
        %v381 = vpack.c.b16 %v332, %v331
        %v382 = vpack.c.b16 %v334, %v333
        %v383 = vpack.c.b16 %v336, %v335
        %v384 = vpack.c.b16 %v338, %v337
        %v385 = vpack.c.b16 %v340, %v339
        %v386 = vpack.c.b16 %v342, %v341
        %v387 = vpack.c.b16 %v344, %v343
        %v388 = vpack.c.b16 %v346, %v345
        %v389 = vpack.c.b16 %v348, %v347
        %v390 = vpack.c.b16 %v350, %v349
        %v391 = vpack.c.b16 %v352, %v351
        %v392 = vpack.c.b16 %v354, %v353
        %v393 = vpack.c.b16 %v356, %v355
        %v394 = vpack.c.b16 %v358, %v357
        %v395 = vpack.c.b16 %v360, %v359
        %v396 = vpack.c.b16 %v362, %v361
        %v397 = vpack.c.b16 %v364, %v363
        %v398 = vpack.c.b16 %v366, %v365
        %v408 = vunpack.c.l.b16 %v230
        %v409 = vunpack.c.l.b16 %v231
        %v410 = vunpack.c.l.b16 %v232
        %v411 = vunpack.c.l.b16 %v233
        %v412 = vunpack.c.l.b16 %v234
        %v413 = vunpack.c.l.b16 %v235
        %v414 = vunpack.c.l.b16 %v236
        %v415 = vunpack.c.l.b16 %v237
        %v416 = vunpack.c.l.b16 %v238
        %v417 = vpack.c.b16 %v409, %v408
        %v418 = vpack.c.b16 %v411, %v410
        %v419 = vpack.c.b16 %v413, %v412
        %v420 = vpack.c.b16 %v415, %v414
        %v421 = vpack.c.b16 %v416, %v416
        %vm426 = vcmask 588800
        %v428 = vsel %vm426, %v367, 0
        %v431 = vsel %vm426, %v368, 0
        %v434 = vsel %vm426, %v369, 0
        %v437 = vsel %vm426, %v370, 0
        %v440 = vsel %vm426, %v371, 0
        %v443 = vsel %vm426, %v372, 0
        %v446 = vsel %vm426, %v373, 0
        %v449 = vsel %vm426, %v374, 0
        %v452 = vsel %vm426, %v375, 0
        %v455 = vsel %vm426, %v376, 0
        %v458 = vsel %vm426, %v377, 0
        %v461 = vsel %vm426, %v378, 0
        %v464 = vsel %vm426, %v379, 0
        %v467 = vsel %vm426, %v380, 0
        %v470 = vsel %vm426, %v381, 0
        %v473 = vsel %vm426, %v382, 0
        %v476 = vsel %vm426, %v383, 0
        %v479 = vsel %vm426, %v384, 0
        %v482 = vsel %vm426, %v385, 0
        %v485 = vsel %vm426, %v386, 0
        %v488 = vsel %vm426, %v387, 0
        %v491 = vsel %vm426, %v388, 0
        %v494 = vsel %vm426, %v389, 0
        %v497 = vsel %vm426, %v390, 0
        %v500 = vsel %vm426, %v391, 0
        %v503 = vsel %vm426, %v392, 0
        %v506 = vsel %vm426, %v393, 0
        %v509 = vsel %vm426, %v394, 0
        %v512 = vsel %vm426, %v395, 0
        %v515 = vsel %vm426, %v396, 0
        %v518 = vsel %vm426, %v397, 0
        %v521 = vsel %vm426, %v398, 0
        %vm523 = vcmask 1043456
        %v525 = vsel %vm523, %v421, 0
        %527 = vmatprep.subr.bf16.mxu0 0
        %528 = vmatpush1.bf16.msra.mxu0 %v417
        %529 = vmatprep.subr.bf16.mxu0 0
        %530 = vmatpush1.bf16.msra.mxu0 %v418
        %531 = vmatprep.subr.bf16.mxu0 0
        %532 = vmatpush1.bf16.msra.mxu0 %v419
        %533 = vmatprep.subr.bf16.mxu0 0
        %534 = vmatpush1.bf16.msra.mxu0 %v420
        %535 = vmatprep.subr.bf16.mxu0 0
        %536 = vmatpush1.bf16.msra.mxu0 %v525
        %537 = vmatprep.subr.bf16.mxu0 0
        %538 = vmatpush1.bf16.msra.mxu0 0
        %539 = vmatprep.subr.bf16.mxu0 0
        %540 = vmatpush1.bf16.msra.mxu0 0
        %541 = vmatprep.subr.bf16.mxu0 0
        %542 = vmatpush1.bf16.msra.mxu0 0
        %543 = vmatprep.subr.bf16.mxu0 0
        %544 = vmatpush1.bf16.msra.mxu0 0
        %545 = vmatprep.subr.bf16.mxu0 0
        %546 = vmatpush1.bf16.msra.mxu0 0
        %547 = vmatprep.subr.bf16.mxu0 0
        %548 = vmatpush1.bf16.msra.mxu0 0
        %549 = vmatprep.subr.bf16.mxu0 0
        %550 = vmatpush1.bf16.msra.mxu0 0
        %551 = vmatprep.subr.bf16.mxu0 0
        %552 = vmatpush1.bf16.msra.mxu0 0
        %553 = vmatprep.subr.bf16.mxu0 0
        %554 = vmatpush1.bf16.msra.mxu0 0
        %555 = vmatprep.subr.bf16.mxu0 0
        %556 = vmatpush1.bf16.msra.mxu0 0
        %557 = vmatprep.subr.bf16.mxu0 0
        %558 = vmatpush1.bf16.msra.mxu0 0
        %559 = vmatprep.mubr.bf16.mxu0 0
        %560 = vmatmul.mubr.bf16.gmra.mrb[0].mxu0 %v428
        %v561 = vpop.f32.mrb[0].mxu0
        %v562 = vadd.f32 0.0, %v561
        %v563 = vpop.f32.mrb[0].mxu0
        %v564 = vpop.f32.mrb[0].mxu0
        %v565 = vadd.f32 0.0, %v564
        %v566 = vpop.f32.mrb[0].mxu0
        %567 = vmatprep.mubr.bf16.mxu0 0
        %568 = vmatmul.mubr.bf16.gmra.mrb[0].mxu0 %v431
        %v569 = vpop.f32.mrb[0].mxu0
        %v570 = vadd.f32 0.0, %v569
        %v571 = vpop.f32.mrb[0].mxu0
        %v572 = vpop.f32.mrb[0].mxu0
        %v573 = vadd.f32 0.0, %v572
        %v574 = vpop.f32.mrb[0].mxu0
        %575 = vmatprep.mubr.bf16.mxu0 0
        %576 = vmatmul.mubr.bf16.gmra.mrb[0].mxu0 %v434
        %v577 = vpop.f32.mrb[0].mxu0
        %v578 = vadd.f32 0.0, %v577
        %v579 = vpop.f32.mrb[0].mxu0
        %v580 = vpop.f32.mrb[0].mxu0
        %v581 = vadd.f32 0.0, %v580
        %v582 = vpop.f32.mrb[0].mxu0
        %583 = vmatprep.mubr.bf16.mxu0 0
        %584 = vmatmul.mubr.bf16.gmra.mrb[0].mxu0 %v437
        %v585 = vpop.f32.mrb[0].mxu0
        %v586 = vadd.f32 0.0, %v585
        %v587 = vpop.f32.mrb[0].mxu0
        %v588 = vpop.f32.mrb[0].mxu0
        %v589 = vadd.f32 0.0, %v588
        %v590 = vpop.f32.mrb[0].mxu0
        %591 = vmatprep.mubr.bf16.mxu0 0
        %592 = vmatmul.mubr.bf16.gmra.mrb[0].mxu0 %v440
        %v593 = vpop.f32.mrb[0].mxu0
        %v594 = vadd.f32 0.0, %v593
        %v595 = vpop.f32.mrb[0].mxu0
        %v596 = vpop.f32.mrb[0].mxu0
        %v597 = vadd.f32 0.0, %v596
        %v598 = vpop.f32.mrb[0].mxu0
        %599 = vmatprep.mubr.bf16.mxu0 0
        %600 = vmatmul.mubr.bf16.gmra.mrb[0].mxu0 %v443
        %v601 = vpop.f32.mrb[0].mxu0
        %v602 = vadd.f32 0.0, %v601
        %v603 = vpop.f32.mrb[0].mxu0
        %v604 = vpop.f32.mrb[0].mxu0
        %v605 = vadd.f32 0.0, %v604
        %v606 = vpop.f32.mrb[0].mxu0
        %607 = vmatprep.mubr.bf16.mxu0 0
        %608 = vmatmul.mubr.bf16.gmra.mrb[0].mxu0 %v446
        %v609 = vpop.f32.mrb[0].mxu0
        %v610 = vadd.f32 0.0, %v609
        %v611 = vpop.f32.mrb[0].mxu0
        %v612 = vpop.f32.mrb[0].mxu0
        %v613 = vadd.f32 0.0, %v612
        %v614 = vpop.f32.mrb[0].mxu0
        %615 = vmatprep.mubr.bf16.mxu0 0
        %616 = vmatmul.mubr.bf16.gmra.mrb[0].mxu0 %v449
        %v617 = vpop.f32.mrb[0].mxu0
        %v618 = vadd.f32 0.0, %v617
        %v619 = vpop.f32.mrb[0].mxu0
        %v620 = vpop.f32.mrb[0].mxu0
        %v621 = vadd.f32 0.0, %v620
        %v622 = vpop.f32.mrb[0].mxu0
        %623 = vmatprep.mubr.bf16.mxu0 0
        %624 = vmatmul.mubr.bf16.gmra.mrb[0].mxu0 %v452
        %v625 = vpop.f32.mrb[0].mxu0
        %v626 = vadd.f32 0.0, %v625
        %v627 = vpop.f32.mrb[0].mxu0
        %v628 = vpop.f32.mrb[0].mxu0
        %v629 = vadd.f32 0.0, %v628
        %v630 = vpop.f32.mrb[0].mxu0
        %631 = vmatprep.mubr.bf16.mxu0 0
        %632 = vmatmul.mubr.bf16.gmra.mrb[0].mxu0 %v455
        %v633 = vpop.f32.mrb[0].mxu0
        %v634 = vadd.f32 0.0, %v633
        %v635 = vpop.f32.mrb[0].mxu0
        %v636 = vpop.f32.mrb[0].mxu0
        %v637 = vadd.f32 0.0, %v636
        %v638 = vpop.f32.mrb[0].mxu0
        %639 = vmatprep.mubr.bf16.mxu0 0
        %640 = vmatmul.mubr.bf16.gmra.mrb[0].mxu0 %v458
        %v641 = vpop.f32.mrb[0].mxu0
        %v642 = vadd.f32 0.0, %v641
        %v643 = vpop.f32.mrb[0].mxu0
        %v644 = vpop.f32.mrb[0].mxu0
        %v645 = vadd.f32 0.0, %v644
        %v646 = vpop.f32.mrb[0].mxu0
        %647 = vmatprep.mubr.bf16.mxu0 0
        %648 = vmatmul.mubr.bf16.gmra.mrb[0].mxu0 %v461
        %v649 = vpop.f32.mrb[0].mxu0
        %v650 = vadd.f32 0.0, %v649
        %v651 = vpop.f32.mrb[0].mxu0
        %v652 = vpop.f32.mrb[0].mxu0
        %v653 = vadd.f32 0.0, %v652
        %v654 = vpop.f32.mrb[0].mxu0
        %655 = vmatprep.mubr.bf16.mxu0 0
        %656 = vmatmul.mubr.bf16.gmra.mrb[0].mxu0 %v464
        %v657 = vpop.f32.mrb[0].mxu0
        %v658 = vadd.f32 0.0, %v657
        %v659 = vpop.f32.mrb[0].mxu0
        %v660 = vpop.f32.mrb[0].mxu0
        %v661 = vadd.f32 0.0, %v660
        %v662 = vpop.f32.mrb[0].mxu0
        %663 = vmatprep.mubr.bf16.mxu0 0
        %664 = vmatmul.mubr.bf16.gmra.mrb[0].mxu0 %v467
        %v665 = vpop.f32.mrb[0].mxu0
        %v666 = vadd.f32 0.0, %v665
        %v667 = vpop.f32.mrb[0].mxu0
        %v668 = vpop.f32.mrb[0].mxu0
        %v669 = vadd.f32 0.0, %v668
        %v670 = vpop.f32.mrb[0].mxu0
        %671 = vmatprep.mubr.bf16.mxu0 0
        %672 = vmatmul.mubr.bf16.gmra.mrb[0].mxu0 %v470
        %v673 = vpop.f32.mrb[0].mxu0
        %v674 = vadd.f32 0.0, %v673
        %v675 = vpop.f32.mrb[0].mxu0
        %v676 = vpop.f32.mrb[0].mxu0
        %v677 = vadd.f32 0.0, %v676
        %v678 = vpop.f32.mrb[0].mxu0
        %679 = vmatprep.mubr.bf16.mxu0 0
        %680 = vmatmul.mubr.bf16.gmra.mrb[0].mxu0 %v473
        %v681 = vpop.f32.mrb[0].mxu0
        %v682 = vadd.f32 0.0, %v681
        %v683 = vpop.f32.mrb[0].mxu0
        %v684 = vpop.f32.mrb[0].mxu0
        %v685 = vadd.f32 0.0, %v684
        %v686 = vpop.f32.mrb[0].mxu0
        %687 = vmatprep.mubr.bf16.mxu0 0
        %688 = vmatmul.mubr.bf16.gmra.mrb[0].mxu0 %v476
        %v689 = vpop.f32.mrb[0].mxu0
        %v690 = vadd.f32 0.0, %v689
        %v691 = vpop.f32.mrb[0].mxu0
        %v692 = vpop.f32.mrb[0].mxu0
        %v693 = vadd.f32 0.0, %v692
        %v694 = vpop.f32.mrb[0].mxu0
        %695 = vmatprep.mubr.bf16.mxu0 0
        %696 = vmatmul.mubr.bf16.gmra.mrb[0].mxu0 %v479
        %v697 = vpop.f32.mrb[0].mxu0
        %v698 = vadd.f32 0.0, %v697
        %v699 = vpop.f32.mrb[0].mxu0
        %v700 = vpop.f32.mrb[0].mxu0
        %v701 = vadd.f32 0.0, %v700
        %v702 = vpop.f32.mrb[0].mxu0
        %703 = vmatprep.mubr.bf16.mxu0 0
        %704 = vmatmul.mubr.bf16.gmra.mrb[0].mxu0 %v482
        %v705 = vpop.f32.mrb[0].mxu0
        %v706 = vadd.f32 0.0, %v705
        %v707 = vpop.f32.mrb[0].mxu0
        %v708 = vpop.f32.mrb[0].mxu0
        %v709 = vadd.f32 0.0, %v708
        %v710 = vpop.f32.mrb[0].mxu0
        %711 = vmatprep.mubr.bf16.mxu0 0
        %712 = vmatmul.mubr.bf16.gmra.mrb[0].mxu0 %v485
        %v713 = vpop.f32.mrb[0].mxu0
        %v714 = vadd.f32 0.0, %v713
        %v715 = vpop.f32.mrb[0].mxu0
        %v716 = vpop.f32.mrb[0].mxu0
        %v717 = vadd.f32 0.0, %v716
        %v718 = vpop.f32.mrb[0].mxu0
        %719 = vmatprep.mubr.bf16.mxu0 0
        %720 = vmatmul.mubr.bf16.gmra.mrb[0].mxu0 %v488
        %v721 = vpop.f32.mrb[0].mxu0
        %v722 = vadd.f32 0.0, %v721
        %v723 = vpop.f32.mrb[0].mxu0
        %v724 = vpop.f32.mrb[0].mxu0
        %v725 = vadd.f32 0.0, %v724
        %v726 = vpop.f32.mrb[0].mxu0
        %727 = vmatprep.mubr.bf16.mxu0 0
        %728 = vmatmul.mubr.bf16.gmra.mrb[0].mxu0 %v491
        %v729 = vpop.f32.mrb[0].mxu0
        %v730 = vadd.f32 0.0, %v729
        %v731 = vpop.f32.mrb[0].mxu0
        %v732 = vpop.f32.mrb[0].mxu0
        %v733 = vadd.f32 0.0, %v732
        %v734 = vpop.f32.mrb[0].mxu0
        %735 = vmatprep.mubr.bf16.mxu0 0
        %736 = vmatmul.mubr.bf16.gmra.mrb[0].mxu0 %v494
        %v737 = vpop.f32.mrb[0].mxu0
        %v738 = vadd.f32 0.0, %v737
        %v739 = vpop.f32.mrb[0].mxu0
        %v740 = vpop.f32.mrb[0].mxu0
        %v741 = vadd.f32 0.0, %v740
        %v742 = vpop.f32.mrb[0].mxu0
        %743 = vmatprep.mubr.bf16.mxu0 0
        %744 = vmatmul.mubr.bf16.gmra.mrb[0].mxu0 %v497
        %v745 = vpop.f32.mrb[0].mxu0
        %v746 = vadd.f32 0.0, %v745
        %v747 = vpop.f32.mrb[0].mxu0
        %v748 = vpop.f32.mrb[0].mxu0
        %v749 = vadd.f32 0.0, %v748
        %v750 = vpop.f32.mrb[0].mxu0
        %751 = vmatprep.mubr.bf16.mxu0 0
        %752 = vmatmul.mubr.bf16.gmra.mrb[0].mxu0 %v500
        %v753 = vpop.f32.mrb[0].mxu0
        %v754 = vadd.f32 0.0, %v753
        %v755 = vpop.f32.mrb[0].mxu0
        %v756 = vpop.f32.mrb[0].mxu0
        %v757 = vadd.f32 0.0, %v756
        %v758 = vpop.f32.mrb[0].mxu0
        %759 = vmatprep.mubr.bf16.mxu0 0
        %760 = vmatmul.mubr.bf16.gmra.mrb[0].mxu0 %v503
        %v761 = vpop.f32.mrb[0].mxu0
        %v762 = vadd.f32 0.0, %v761
        %v763 = vpop.f32.mrb[0].mxu0
        %v764 = vpop.f32.mrb[0].mxu0
        %v765 = vadd.f32 0.0, %v764
        %v766 = vpop.f32.mrb[0].mxu0
        %767 = vmatprep.mubr.bf16.mxu0 0
        %768 = vmatmul.mubr.bf16.gmra.mrb[0].mxu0 %v506
        %v769 = vpop.f32.mrb[0].mxu0
        %v770 = vadd.f32 0.0, %v769
        %v771 = vpop.f32.mrb[0].mxu0
        %v772 = vpop.f32.mrb[0].mxu0
        %v773 = vadd.f32 0.0, %v772
        %v774 = vpop.f32.mrb[0].mxu0
        %775 = vmatprep.mubr.bf16.mxu0 0
        %776 = vmatmul.mubr.bf16.gmra.mrb[0].mxu0 %v509
        %v777 = vpop.f32.mrb[0].mxu0
        %v778 = vadd.f32 0.0, %v777
        %v779 = vpop.f32.mrb[0].mxu0
        %v780 = vpop.f32.mrb[0].mxu0
        %v781 = vadd.f32 0.0, %v780
        %v782 = vpop.f32.mrb[0].mxu0
        %783 = vmatprep.mubr.bf16.mxu0 0
        %784 = vmatmul.mubr.bf16.gmra.mrb[0].mxu0 %v512
        %v785 = vpop.f32.mrb[0].mxu0
        %v786 = vadd.f32 0.0, %v785
        %v787 = vpop.f32.mrb[0].mxu0
        %v788 = vpop.f32.mrb[0].mxu0
        %v789 = vadd.f32 0.0, %v788
        %v790 = vpop.f32.mrb[0].mxu0
        %791 = vmatprep.mubr.bf16.mxu0 0
        %792 = vmatmul.mubr.bf16.gmra.mrb[0].mxu0 %v515
        %v793 = vpop.f32.mrb[0].mxu0
        %v794 = vadd.f32 0.0, %v793
        %v795 = vpop.f32.mrb[0].mxu0
        %v796 = vpop.f32.mrb[0].mxu0
        %v797 = vadd.f32 0.0, %v796
        %v798 = vpop.f32.mrb[0].mxu0
        %799 = vmatprep.mubr.bf16.mxu0 0
        %800 = vmatmul.mubr.bf16.gmra.mrb[0].mxu0 %v518
        %v801 = vpop.f32.mrb[0].mxu0
        %v802 = vadd.f32 0.0, %v801
        %v803 = vpop.f32.mrb[0].mxu0
        %v804 = vpop.f32.mrb[0].mxu0
        %v805 = vadd.f32 0.0, %v804
        %v806 = vpop.f32.mrb[0].mxu0
        %807 = vmatprep.mubr.bf16.mxu0 0
        %808 = vmatmul.mubr.bf16.gmra.mrb[0].mxu0 %v521
        %v809 = vpop.f32.mrb[0].mxu0
        %v810 = vadd.f32 0.0, %v809
        %v811 = vpop.f32.mrb[0].mxu0
        %v812 = vpop.f32.mrb[0].mxu0
        %v813 = vadd.f32 0.0, %v812
        %v814 = vpop.f32.mrb[0].mxu0
        %815 = vdwg.mxu0
        %vm816 = vcmp.ge.f32.partialorder %v562, 0.0
        %vm817 = vcmp.ge.f32.partialorder %v565, 0.0
        %vm818 = vcmp.ge.f32.partialorder %v570, 0.0
        %vm819 = vcmp.ge.f32.partialorder %v573, 0.0
        %vm820 = vcmp.ge.f32.partialorder %v578, 0.0
        %vm821 = vcmp.ge.f32.partialorder %v581, 0.0
        %vm822 = vcmp.ge.f32.partialorder %v586, 0.0
        %vm823 = vcmp.ge.f32.partialorder %v589, 0.0
        %vm824 = vcmp.ge.f32.partialorder %v594, 0.0
        %vm825 = vcmp.ge.f32.partialorder %v597, 0.0
        %vm826 = vcmp.ge.f32.partialorder %v602, 0.0
        %vm827 = vcmp.ge.f32.partialorder %v605, 0.0
        %vm828 = vcmp.ge.f32.partialorder %v610, 0.0
        %vm829 = vcmp.ge.f32.partialorder %v613, 0.0
        %vm830 = vcmp.ge.f32.partialorder %v618, 0.0
        %vm831 = vcmp.ge.f32.partialorder %v621, 0.0
        %vm832 = vcmp.ge.f32.partialorder %v626, 0.0
        %vm833 = vcmp.ge.f32.partialorder %v629, 0.0
        %vm834 = vcmp.ge.f32.partialorder %v634, 0.0
        %vm835 = vcmp.ge.f32.partialorder %v637, 0.0
        %vm836 = vcmp.ge.f32.partialorder %v642, 0.0
        %vm837 = vcmp.ge.f32.partialorder %v645, 0.0
        %vm838 = vcmp.ge.f32.partialorder %v650, 0.0
        %vm839 = vcmp.ge.f32.partialorder %v653, 0.0
        %vm840 = vcmp.ge.f32.partialorder %v658, 0.0
        %vm841 = vcmp.ge.f32.partialorder %v661, 0.0
        %vm842 = vcmp.ge.f32.partialorder %v666, 0.0
        %vm843 = vcmp.ge.f32.partialorder %v669, 0.0
        %vm844 = vcmp.ge.f32.partialorder %v674, 0.0
        %vm845 = vcmp.ge.f32.partialorder %v677, 0.0
        %vm846 = vcmp.ge.f32.partialorder %v682, 0.0
        %vm847 = vcmp.ge.f32.partialorder %v685, 0.0
        %vm848 = vcmp.ge.f32.partialorder %v690, 0.0
        %vm849 = vcmp.ge.f32.partialorder %v693, 0.0
        %vm850 = vcmp.ge.f32.partialorder %v698, 0.0
        %vm851 = vcmp.ge.f32.partialorder %v701, 0.0
        %vm852 = vcmp.ge.f32.partialorder %v706, 0.0
        %vm853 = vcmp.ge.f32.partialorder %v709, 0.0
        %vm854 = vcmp.ge.f32.partialorder %v714, 0.0
        %vm855 = vcmp.ge.f32.partialorder %v717, 0.0
        %vm856 = vcmp.ge.f32.partialorder %v722, 0.0
        %vm857 = vcmp.ge.f32.partialorder %v725, 0.0
        %vm858 = vcmp.ge.f32.partialorder %v730, 0.0
        %vm859 = vcmp.ge.f32.partialorder %v733, 0.0
        %vm860 = vcmp.ge.f32.partialorder %v738, 0.0
        %vm861 = vcmp.ge.f32.partialorder %v741, 0.0
        %vm862 = vcmp.ge.f32.partialorder %v746, 0.0
        %vm863 = vcmp.ge.f32.partialorder %v749, 0.0
        %vm864 = vcmp.ge.f32.partialorder %v754, 0.0
        %vm865 = vcmp.ge.f32.partialorder %v757, 0.0
        %vm866 = vcmp.ge.f32.partialorder %v762, 0.0
        %vm867 = vcmp.ge.f32.partialorder %v765, 0.0
        %vm868 = vcmp.ge.f32.partialorder %v770, 0.0
        %vm869 = vcmp.ge.f32.partialorder %v773, 0.0
        %vm870 = vcmp.ge.f32.partialorder %v778, 0.0
        %vm871 = vcmp.ge.f32.partialorder %v781, 0.0
        %vm872 = vcmp.ge.f32.partialorder %v786, 0.0
        %vm873 = vcmp.ge.f32.partialorder %v789, 0.0
        %vm874 = vcmp.ge.f32.partialorder %v794, 0.0
        %vm875 = vcmp.ge.f32.partialorder %v797, 0.0
        %vm876 = vcmp.ge.f32.partialorder %v802, 0.0
        %vm877 = vcmp.ge.f32.partialorder %v805, 0.0
        %vm878 = vcmp.ge.f32.partialorder %v810, 0.0
        %vm879 = vcmp.ge.f32.partialorder %v813, 0.0
        %v880 = vmul.f32 %v562, 0.1
        %v881 = vmul.f32 %v565, 0.1
        %v882 = vmul.f32 %v570, 0.1
        %v883 = vmul.f32 %v573, 0.1
        %v884 = vmul.f32 %v578, 0.1
        %v885 = vmul.f32 %v581, 0.1
        %v886 = vmul.f32 %v586, 0.1
        %v887 = vmul.f32 %v589, 0.1
        %v888 = vmul.f32 %v594, 0.1
        %v889 = vmul.f32 %v597, 0.1
        %v890 = vmul.f32 %v602, 0.1
        %v891 = vmul.f32 %v605, 0.1
        %v892 = vmul.f32 %v610, 0.1
        %v893 = vmul.f32 %v613, 0.1
        %v894 = vmul.f32 %v618, 0.1
        %v895 = vmul.f32 %v621, 0.1
        %v896 = vmul.f32 %v626, 0.1
        %v897 = vmul.f32 %v629, 0.1
        %v898 = vmul.f32 %v634, 0.1
        %v899 = vmul.f32 %v637, 0.1
        %v900 = vmul.f32 %v642, 0.1
        %v901 = vmul.f32 %v645, 0.1
        %v902 = vmul.f32 %v650, 0.1
        %v903 = vmul.f32 %v653, 0.1
        %v904 = vmul.f32 %v658, 0.1
        %v905 = vmul.f32 %v661, 0.1
        %v906 = vmul.f32 %v666, 0.1
        %v907 = vmul.f32 %v669, 0.1
        %v908 = vmul.f32 %v674, 0.1
        %v909 = vmul.f32 %v677, 0.1
        %v910 = vmul.f32 %v682, 0.1
        %v911 = vmul.f32 %v685, 0.1
        %v912 = vmul.f32 %v690, 0.1
        %v913 = vmul.f32 %v693, 0.1
        %v914 = vmul.f32 %v698, 0.1
        %v915 = vmul.f32 %v701, 0.1
        %v916 = vmul.f32 %v706, 0.1
        %v917 = vmul.f32 %v709, 0.1
        %v918 = vmul.f32 %v714, 0.1
        %v919 = vmul.f32 %v717, 0.1
        %v920 = vmul.f32 %v722, 0.1
        %v921 = vmul.f32 %v725, 0.1
        %v922 = vmul.f32 %v730, 0.1
        %v923 = vmul.f32 %v733, 0.1
        %v924 = vmul.f32 %v738, 0.1
        %v925 = vmul.f32 %v741, 0.1
        %v926 = vmul.f32 %v746, 0.1
        %v927 = vmul.f32 %v749, 0.1
        %v928 = vmul.f32 %v754, 0.1
        %v929 = vmul.f32 %v757, 0.1
        %v930 = vmul.f32 %v762, 0.1
        %v931 = vmul.f32 %v765, 0.1
        %v932 = vmul.f32 %v770, 0.1
        %v933 = vmul.f32 %v773, 0.1
        %v934 = vmul.f32 %v778, 0.1
        %v935 = vmul.f32 %v781, 0.1
        %v936 = vmul.f32 %v786, 0.1
        %v937 = vmul.f32 %v789, 0.1
        %v938 = vmul.f32 %v794, 0.1
        %v939 = vmul.f32 %v797, 0.1
        %v940 = vmul.f32 %v802, 0.1
        %v941 = vmul.f32 %v805, 0.1
        %v942 = vmul.f32 %v810, 0.1
        %v943 = vmul.f32 %v813, 0.1
        %v944 = vsel %vm816, %v562, %v880
        %v945 = vsel %vm817, %v565, %v881
        %v946 = vsel %vm818, %v570, %v882
        %v947 = vsel %vm819, %v573, %v883
        %v948 = vsel %vm820, %v578, %v884
        %v949 = vsel %vm821, %v581, %v885
        %v950 = vsel %vm822, %v586, %v886
        %v951 = vsel %vm823, %v589, %v887
        %v952 = vsel %vm824, %v594, %v888
        %v953 = vsel %vm825, %v597, %v889
        %v954 = vsel %vm826, %v602, %v890
        %v955 = vsel %vm827, %v605, %v891
        %v956 = vsel %vm828, %v610, %v892
        %v957 = vsel %vm829, %v613, %v893
        %v958 = vsel %vm830, %v618, %v894
        %v959 = vsel %vm831, %v621, %v895
        %v960 = vsel %vm832, %v626, %v896
        %v961 = vsel %vm833, %v629, %v897
        %v962 = vsel %vm834, %v634, %v898
        %v963 = vsel %vm835, %v637, %v899
        %v964 = vsel %vm836, %v642, %v900
        %v965 = vsel %vm837, %v645, %v901
        %v966 = vsel %vm838, %v650, %v902
        %v967 = vsel %vm839, %v653, %v903
        %v968 = vsel %vm840, %v658, %v904
        %v969 = vsel %vm841, %v661, %v905
        %v970 = vsel %vm842, %v666, %v906
        %v971 = vsel %vm843, %v669, %v907
        %v972 = vsel %vm844, %v674, %v908
        %v973 = vsel %vm845, %v677, %v909
        %v974 = vsel %vm846, %v682, %v910
        %v975 = vsel %vm847, %v685, %v911
        %v976 = vsel %vm848, %v690, %v912
        %v977 = vsel %vm849, %v693, %v913
        %v978 = vsel %vm850, %v698, %v914
        %v979 = vsel %vm851, %v701, %v915
        %v980 = vsel %vm852, %v706, %v916
        %v981 = vsel %vm853, %v709, %v917
        %v982 = vsel %vm854, %v714, %v918
        %v983 = vsel %vm855, %v717, %v919
        %v984 = vsel %vm856, %v722, %v920
        %v985 = vsel %vm857, %v725, %v921
        %v986 = vsel %vm858, %v730, %v922
        %v987 = vsel %vm859, %v733, %v923
        %v988 = vsel %vm860, %v738, %v924
        %v989 = vsel %vm861, %v741, %v925
        %v990 = vsel %vm862, %v746, %v926
        %v991 = vsel %vm863, %v749, %v927
        %v992 = vsel %vm864, %v754, %v928
        %v993 = vsel %vm865, %v757, %v929
        %v994 = vsel %vm866, %v762, %v930
        %v995 = vsel %vm867, %v765, %v931
        %v996 = vsel %vm868, %v770, %v932
        %v997 = vsel %vm869, %v773, %v933
        %v998 = vsel %vm870, %v778, %v934
        %v999 = vsel %vm871, %v781, %v935
        %v1000 = vsel %vm872, %v786, %v936
        %v1001 = vsel %vm873, %v789, %v937
        %v1002 = vsel %vm874, %v794, %v938
        %v1003 = vsel %vm875, %v797, %v939
        %v1004 = vsel %vm876, %v802, %v940
        %v1005 = vsel %vm877, %v805, %v941
        %v1006 = vsel %vm878, %v810, %v942
        %v1007 = vsel %vm879, %v813, %v943
        %v1008 = vpack.c.bf16 %v945, %v944
        %v1009 = vpack.c.bf16 %v947, %v946
        %v1010 = vpack.c.bf16 %v949, %v948
        %v1011 = vpack.c.bf16 %v951, %v950
        %v1012 = vpack.c.bf16 %v953, %v952
        %v1013 = vpack.c.bf16 %v955, %v954
        %v1014 = vpack.c.bf16 %v957, %v956
        %v1015 = vpack.c.bf16 %v959, %v958
        %v1016 = vpack.c.bf16 %v961, %v960
        %v1017 = vpack.c.bf16 %v963, %v962
        %v1018 = vpack.c.bf16 %v965, %v964
        %v1019 = vpack.c.bf16 %v967, %v966
        %v1020 = vpack.c.bf16 %v969, %v968
        %v1021 = vpack.c.bf16 %v971, %v970
        %v1022 = vpack.c.bf16 %v973, %v972
        %v1023 = vpack.c.bf16 %v975, %v974
        %v1024 = vpack.c.bf16 %v977, %v976
        %v1025 = vpack.c.bf16 %v979, %v978
        %v1026 = vpack.c.bf16 %v981, %v980
        %v1027 = vpack.c.bf16 %v983, %v982
        %v1028 = vpack.c.bf16 %v985, %v984
        %v1029 = vpack.c.bf16 %v987, %v986
        %v1030 = vpack.c.bf16 %v989, %v988
        %v1031 = vpack.c.bf16 %v991, %v990
        %v1032 = vpack.c.bf16 %v993, %v992
        %v1033 = vpack.c.bf16 %v995, %v994
        %v1034 = vpack.c.bf16 %v997, %v996
        %v1035 = vpack.c.bf16 %v999, %v998
        %v1036 = vpack.c.bf16 %v1001, %v1000
        %v1037 = vpack.c.bf16 %v1003, %v1002
        %v1038 = vpack.c.bf16 %v1005, %v1004
        %v1039 = vpack.c.bf16 %v1007, %v1006
        %v1072 = vunpack.c.l.b16 %v1008
        %v1073 = vunpack.c.h.b16 %v1008
        %v1074 = vunpack.c.l.b16 %v1009
        %v1075 = vunpack.c.h.b16 %v1009
        %v1076 = vunpack.c.l.b16 %v1010
        %v1077 = vunpack.c.h.b16 %v1010
        %v1078 = vunpack.c.l.b16 %v1011
        %v1079 = vunpack.c.h.b16 %v1011
        %v1080 = vunpack.c.l.b16 %v1012
        %v1081 = vunpack.c.h.b16 %v1012
        %v1082 = vunpack.c.l.b16 %v1013
        %v1083 = vunpack.c.h.b16 %v1013
        %v1084 = vunpack.c.l.b16 %v1014
        %v1085 = vunpack.c.h.b16 %v1014
        %v1086 = vunpack.c.l.b16 %v1015
        %v1087 = vunpack.c.h.b16 %v1015
        %v1088 = vunpack.c.l.b16 %v1016
        %v1089 = vunpack.c.h.b16 %v1016
        %v1090 = vunpack.c.l.b16 %v1017
        %v1091 = vunpack.c.h.b16 %v1017
        %v1092 = vunpack.c.l.b16 %v1018
        %v1093 = vunpack.c.h.b16 %v1018
        %v1094 = vunpack.c.l.b16 %v1019
        %v1095 = vunpack.c.h.b16 %v1019
        %v1096 = vunpack.c.l.b16 %v1020
        %v1097 = vunpack.c.h.b16 %v1020
        %v1098 = vunpack.c.l.b16 %v1021
        %v1099 = vunpack.c.h.b16 %v1021
        %v1100 = vunpack.c.l.b16 %v1022
        %v1101 = vunpack.c.h.b16 %v1022
        %v1102 = vunpack.c.l.b16 %v1023
        %v1103 = vunpack.c.h.b16 %v1023
        %v1104 = vunpack.c.l.b16 %v1024
        %v1105 = vunpack.c.h.b16 %v1024
        %v1106 = vunpack.c.l.b16 %v1025
        %v1107 = vunpack.c.h.b16 %v1025
        %v1108 = vunpack.c.l.b16 %v1026
        %v1109 = vunpack.c.h.b16 %v1026
        %v1110 = vunpack.c.l.b16 %v1027
        %v1111 = vunpack.c.h.b16 %v1027
        %v1112 = vunpack.c.l.b16 %v1028
        %v1113 = vunpack.c.h.b16 %v1028
        %v1114 = vunpack.c.l.b16 %v1029
        %v1115 = vunpack.c.h.b16 %v1029
        %v1116 = vunpack.c.l.b16 %v1030
        %v1117 = vunpack.c.h.b16 %v1030
        %v1118 = vunpack.c.l.b16 %v1031
        %v1119 = vunpack.c.h.b16 %v1031
        %v1120 = vunpack.c.l.b16 %v1032
        %v1121 = vunpack.c.h.b16 %v1032
        %v1122 = vunpack.c.l.b16 %v1033
        %v1123 = vunpack.c.h.b16 %v1033
        %v1124 = vunpack.c.l.b16 %v1034
        %v1125 = vunpack.c.h.b16 %v1034
        %v1126 = vunpack.c.l.b16 %v1035
        %v1127 = vunpack.c.h.b16 %v1035
        %v1128 = vunpack.c.l.b16 %v1036
        %v1129 = vunpack.c.h.b16 %v1036
        %v1130 = vunpack.c.l.b16 %v1037
        %v1131 = vunpack.c.h.b16 %v1037
        %v1132 = vunpack.c.l.b16 %v1038
        %v1133 = vunpack.c.h.b16 %v1038
        %v1134 = vunpack.c.l.b16 %v1039
        %v1135 = vunpack.c.h.b16 %v1039
        %v1136 = vpack.c.b16 %v1072, %v1072
        %v1137 = vpack.c.b16 %v1073, %v1073
        %v1138 = vpack.c.b16 %v1074, %v1074
        %v1139 = vpack.c.b16 %v1075, %v1075
        %v1140 = vpack.c.b16 %v1076, %v1076
        %v1141 = vpack.c.b16 %v1077, %v1077
        %v1142 = vpack.c.b16 %v1078, %v1078
        %v1143 = vpack.c.b16 %v1079, %v1079
        %v1144 = vpack.c.b16 %v1080, %v1080
        %v1145 = vpack.c.b16 %v1081, %v1081
        %v1146 = vpack.c.b16 %v1082, %v1082
        %v1147 = vpack.c.b16 %v1083, %v1083
        %v1148 = vpack.c.b16 %v1084, %v1084
        %v1149 = vpack.c.b16 %v1085, %v1085
        %v1150 = vpack.c.b16 %v1086, %v1086
        %v1151 = vpack.c.b16 %v1087, %v1087
        %v1152 = vpack.c.b16 %v1088, %v1088
        %v1153 = vpack.c.b16 %v1089, %v1089
        %v1154 = vpack.c.b16 %v1090, %v1090
        %v1155 = vpack.c.b16 %v1091, %v1091
        %v1156 = vpack.c.b16 %v1092, %v1092
        %v1157 = vpack.c.b16 %v1093, %v1093
        %v1158 = vpack.c.b16 %v1094, %v1094
        %v1159 = vpack.c.b16 %v1095, %v1095
        %v1160 = vpack.c.b16 %v1096, %v1096
        %v1161 = vpack.c.b16 %v1097, %v1097
        %v1162 = vpack.c.b16 %v1098, %v1098
        %v1163 = vpack.c.b16 %v1099, %v1099
        %v1164 = vpack.c.b16 %v1100, %v1100
        %v1165 = vpack.c.b16 %v1101, %v1101
        %v1166 = vpack.c.b16 %v1102, %v1102
        %v1167 = vpack.c.b16 %v1103, %v1103
        %v1168 = vpack.c.b16 %v1104, %v1104
        %v1169 = vpack.c.b16 %v1105, %v1105
        %v1170 = vpack.c.b16 %v1106, %v1106
        %v1171 = vpack.c.b16 %v1107, %v1107
        %v1172 = vpack.c.b16 %v1108, %v1108
        %v1173 = vpack.c.b16 %v1109, %v1109
        %v1174 = vpack.c.b16 %v1110, %v1110
        %v1175 = vpack.c.b16 %v1111, %v1111
        %v1176 = vpack.c.b16 %v1112, %v1112
        %v1177 = vpack.c.b16 %v1113, %v1113
        %v1178 = vpack.c.b16 %v1114, %v1114
        %v1179 = vpack.c.b16 %v1115, %v1115
        %v1180 = vpack.c.b16 %v1116, %v1116
        %v1181 = vpack.c.b16 %v1117, %v1117
        %v1182 = vpack.c.b16 %v1118, %v1118
        %v1183 = vpack.c.b16 %v1119, %v1119
        %v1184 = vpack.c.b16 %v1120, %v1120
        %v1185 = vpack.c.b16 %v1121, %v1121
        %v1186 = vpack.c.b16 %v1122, %v1122
        %v1187 = vpack.c.b16 %v1123, %v1123
        %v1188 = vpack.c.b16 %v1124, %v1124
        %v1189 = vpack.c.b16 %v1125, %v1125
        %v1190 = vpack.c.b16 %v1126, %v1126
        %v1191 = vpack.c.b16 %v1127, %v1127
        %v1192 = vpack.c.b16 %v1128, %v1128
        %v1193 = vpack.c.b16 %v1129, %v1129
        %v1194 = vpack.c.b16 %v1130, %v1130
        %v1195 = vpack.c.b16 %v1131, %v1131
        %v1196 = vpack.c.b16 %v1132, %v1132
        %v1197 = vpack.c.b16 %v1133, %v1133
        %v1198 = vpack.c.b16 %v1134, %v1134
        %v1199 = vpack.c.b16 %v1135, %v1135
        %vm1264 = vcmask 60416
        %1265 = vst.msk [vmem:[%s145] sm:$0xf] %vm1264, %v1136
        %1266 = vst.msk [vmem:[%s145 + $0x4] sm:$0xf] %vm1264, %v1137
        %1267 = vst.msk [vmem:[%s145 + $0x8] sm:$0xf] %vm1264, %v1138
        %1268 = vst.msk [vmem:[%s145 + $0xc] sm:$0xf] %vm1264, %v1139
        %1269 = vst.msk [vmem:[%s145 + $0x10] sm:$0xf] %vm1264, %v1140
        %1270 = vst.msk [vmem:[%s145 + $0x14] sm:$0xf] %vm1264, %v1141
        %1271 = vst.msk [vmem:[%s145 + $0x18] sm:$0xf] %vm1264, %v1142
        %1272 = vst.msk [vmem:[%s145 + $0x1c] sm:$0xf] %vm1264, %v1143
        %1273 = vst.msk [vmem:[%s145 + $0x20] sm:$0xf] %vm1264, %v1144
        %1274 = vst.msk [vmem:[%s145 + $0x24] sm:$0xf] %vm1264, %v1145
        %1275 = vst.msk [vmem:[%s145 + $0x28] sm:$0xf] %vm1264, %v1146
        %1276 = vst.msk [vmem:[%s145 + $0x2c] sm:$0xf] %vm1264, %v1147
        %1277 = vst.msk [vmem:[%s145 + $0x30] sm:$0xf] %vm1264, %v1148
        %1278 = vst.msk [vmem:[%s145 + $0x34] sm:$0xf] %vm1264, %v1149
        %1279 = vst.msk [vmem:[%s145 + $0x38] sm:$0xf] %vm1264, %v1150
        %1280 = vst.msk [vmem:[%s145 + $0x3c] sm:$0xf] %vm1264, %v1151
        %1281 = vst.msk [vmem:[%s145 + $0x40] sm:$0xf] %vm1264, %v1152
        %1282 = vst.msk [vmem:[%s145 + $0x44] sm:$0xf] %vm1264, %v1153
        %1283 = vst.msk [vmem:[%s145 + $0x48] sm:$0xf] %vm1264, %v1154
        %1284 = vst.msk [vmem:[%s145 + $0x4c] sm:$0xf] %vm1264, %v1155
        %1285 = vst.msk [vmem:[%s145 + $0x50] sm:$0xf] %vm1264, %v1156
        %1286 = vst.msk [vmem:[%s145 + $0x54] sm:$0xf] %vm1264, %v1157
        %1287 = vst.msk [vmem:[%s145 + $0x58] sm:$0xf] %vm1264, %v1158
        %1288 = vst.msk [vmem:[%s145 + $0x5c] sm:$0xf] %vm1264, %v1159
        %1289 = vst.msk [vmem:[%s145 + $0x60] sm:$0xf] %vm1264, %v1160
        %1290 = vst.msk [vmem:[%s145 + $0x64] sm:$0xf] %vm1264, %v1161
        %1291 = vst.msk [vmem:[%s145 + $0x68] sm:$0xf] %vm1264, %v1162
        %1292 = vst.msk [vmem:[%s145 + $0x6c] sm:$0xf] %vm1264, %v1163
        %1293 = vst.msk [vmem:[%s145 + $0x70] sm:$0xf] %vm1264, %v1164
        %1294 = vst.msk [vmem:[%s145 + $0x74] sm:$0xf] %vm1264, %v1165
        %1295 = vst.msk [vmem:[%s145 + $0x78] sm:$0xf] %vm1264, %v1166
        %1296 = vst.msk [vmem:[%s145 + $0x7c] sm:$0xf] %vm1264, %v1167
        %1297 = vst.msk [vmem:[%s145 + $0x80] sm:$0xf] %vm1264, %v1168
        %1298 = vst.msk [vmem:[%s145 + $0x84] sm:$0xf] %vm1264, %v1169
        %1299 = vst.msk [vmem:[%s145 + $0x88] sm:$0xf] %vm1264, %v1170
        %1300 = vst.msk [vmem:[%s145 + $0x8c] sm:$0xf] %vm1264, %v1171
        %1301 = vst.msk [vmem:[%s145 + $0x90] sm:$0xf] %vm1264, %v1172
        %1302 = vst.msk [vmem:[%s145 + $0x94] sm:$0xf] %vm1264, %v1173
        %1303 = vst.msk [vmem:[%s145 + $0x98] sm:$0xf] %vm1264, %v1174
        %1304 = vst.msk [vmem:[%s145 + $0x9c] sm:$0xf] %vm1264, %v1175
        %1305 = vst.msk [vmem:[%s145 + $0xa0] sm:$0xf] %vm1264, %v1176
        %1306 = vst.msk [vmem:[%s145 + $0xa4] sm:$0xf] %vm1264, %v1177
        %1307 = vst.msk [vmem:[%s145 + $0xa8] sm:$0xf] %vm1264, %v1178
        %1308 = vst.msk [vmem:[%s145 + $0xac] sm:$0xf] %vm1264, %v1179
        %1309 = vst.msk [vmem:[%s145 + $0xb0] sm:$0xf] %vm1264, %v1180
        %1310 = vst.msk [vmem:[%s145 + $0xb4] sm:$0xf] %vm1264, %v1181
        %1311 = vst.msk [vmem:[%s145 + $0xb8] sm:$0xf] %vm1264, %v1182
        %1312 = vst.msk [vmem:[%s145 + $0xbc] sm:$0xf] %vm1264, %v1183
        %1313 = vst.msk [vmem:[%s145 + $0xc0] sm:$0xf] %vm1264, %v1184
        %1314 = vst.msk [vmem:[%s145 + $0xc4] sm:$0xf] %vm1264, %v1185
        %1315 = vst.msk [vmem:[%s145 + $0xc8] sm:$0xf] %vm1264, %v1186
        %1316 = vst.msk [vmem:[%s145 + $0xcc] sm:$0xf] %vm1264, %v1187
        %1317 = vst.msk [vmem:[%s145 + $0xd0] sm:$0xf] %vm1264, %v1188
        %1318 = vst.msk [vmem:[%s145 + $0xd4] sm:$0xf] %vm1264, %v1189
        %1319 = vst.msk [vmem:[%s145 + $0xd8] sm:$0xf] %vm1264, %v1190
        %1320 = vst.msk [vmem:[%s145 + $0xdc] sm:$0xf] %vm1264, %v1191
        %1321 = vst.msk [vmem:[%s145 + $0xe0] sm:$0xf] %vm1264, %v1192
        %1322 = vst.msk [vmem:[%s145 + $0xe4] sm:$0xf] %vm1264, %v1193
        %1323 = vst.msk [vmem:[%s145 + $0xe8] sm:$0xf] %vm1264, %v1194
        %1324 = vst.msk [vmem:[%s145 + $0xec] sm:$0xf] %vm1264, %v1195
        %1325 = vst.msk [vmem:[%s145 + $0xf0] sm:$0xf] %vm1264, %v1196
        %1326 = vst.msk [vmem:[%s145 + $0xf4] sm:$0xf] %vm1264, %v1197
        %1327 = vst.msk [vmem:[%s145 + $0xf8] sm:$0xf] %vm1264, %v1198
        %1328 = vst.msk [vmem:[%s145 + $0xfc] sm:$0xf] %vm1264, %v1199
        %s1329 = sand.u32 %s68, 1
        %s1330 = sand.u32 %s68, 1
        %s1331 = smul.addr %s1330, 256
        %s1332 = scalar_lea.vmem [#allocation2], %s1331
        // Predicated region
        $region29: #{distg_block_forward.6} parent=27 // pred_check
          %p1333 = pneg %p78
        $region30: #{distg_block_forward.6} parent=27 // pred_check_branch
          %1335 = sbr.rel (%p1333) target = $region32
        $region31: #{distg_block_forward.6} parent=27 // pred_region
          %s1336 = smul.u32 64, %s13
          %s1337 = ssub.s32 400, %s1336
          %p1338 = scmp.lt.s32.totalorder %s1337, 64
          %s1339 = scalar_select %p1338, %s1337, 64
          %s1340 = smul.u32 64, %s1339
          %p1341 = scmp.ne.s32.totalorder 0, %s1340
          %s1342 = smul.addr %s1336, 4
          %s1343 = scalar_lea.vmem %s2, %s1342
          // Predicated region
          $region33: #{distg_block_forward.6} parent=31 // pred_check
            %p1344 = pneg %p1341
          $region34: #{distg_block_forward.6} parent=31 // pred_check_branch
            %1346 = sbr.rel (%p1344) target = $region36
          $region35: #{distg_block_forward.6} parent=31 // pred_region
            // Predicated region
            $region37: #{distg_block_forward.6} parent=35 // pred_check
              _
            $region38: #{distg_block_forward.6} parent=35 // pred_check_branch
              %1348 = sbr.rel target = $region40
            $region39: #{distg_block_forward.6} parent=35 // pred_region
              // Predicated region
              $region59: #{distg_block_forward.6} parent=39 // pred_check
                _
              $region60: #{distg_block_forward.6} parent=39 // pred_check_branch
                %1523 = sbr.rel (0) target = $region62
              $region61: #{distg_block_forward.6} parent=39 // pred_region
                %s1525 = sshrl.u32 %s1339, 6
                // While loop
                $region63: #{distg_block_forward.6} parent=61 // loop_pre_header
                  _
                $region64: #{distg_block_forward.6} parent=61 // loop_header
                  %s1527 = sphi 0, %s1529
                  %p1528 = scmp.ge.s32.totalorder %s1527, %s1525
                  %s1532 = sphi 0, %s1665
                  %s1533 = sphi %s1332, %s1668
                  %s1534 = sphi %s1343, %s1669
                $region65: #{distg_block_forward.6} parent=61 // loop_header_branch
                  %1531 = sbr.rel (%p1528) target = $region69
                $region66: #{distg_block_forward.6} parent=61 // loop_body
                  %v1535 = vld [vmem:[%s1533] sm:$0xf]
                  %1536 = vst [vmem:[%s1534] sm:$0xf] %v1535
                  %v1537 = vld [vmem:[%s1533 + $0x4] sm:$0xf]
                  %1538 = vst [vmem:[%s1534 + $0x4] sm:$0xf] %v1537
                  %v1539 = vld [vmem:[%s1533 + $0x8] sm:$0xf]
                  %1540 = vst [vmem:[%s1534 + $0x8] sm:$0xf] %v1539
                  %v1541 = vld [vmem:[%s1533 + $0xc] sm:$0xf]
                  %1542 = vst [vmem:[%s1534 + $0xc] sm:$0xf] %v1541
                  %v1543 = vld [vmem:[%s1533 + $0x10] sm:$0xf]
                  %1544 = vst [vmem:[%s1534 + $0x10] sm:$0xf] %v1543
                  %v1545 = vld [vmem:[%s1533 + $0x14] sm:$0xf]
                  %1546 = vst [vmem:[%s1534 + $0x14] sm:$0xf] %v1545
                  %v1547 = vld [vmem:[%s1533 + $0x18] sm:$0xf]
                  %1548 = vst [vmem:[%s1534 + $0x18] sm:$0xf] %v1547
                  %v1549 = vld [vmem:[%s1533 + $0x1c] sm:$0xf]
                  %1550 = vst [vmem:[%s1534 + $0x1c] sm:$0xf] %v1549
                  %v1551 = vld [vmem:[%s1533 + $0x20] sm:$0xf]
                  %1552 = vst [vmem:[%s1534 + $0x20] sm:$0xf] %v1551
                  %v1553 = vld [vmem:[%s1533 + $0x24] sm:$0xf]
                  %1554 = vst [vmem:[%s1534 + $0x24] sm:$0xf] %v1553
                  %v1555 = vld [vmem:[%s1533 + $0x28] sm:$0xf]
                  %1556 = vst [vmem:[%s1534 + $0x28] sm:$0xf] %v1555
                  %v1557 = vld [vmem:[%s1533 + $0x2c] sm:$0xf]
                  %1558 = vst [vmem:[%s1534 + $0x2c] sm:$0xf] %v1557
                  %v1559 = vld [vmem:[%s1533 + $0x30] sm:$0xf]
                  %1560 = vst [vmem:[%s1534 + $0x30] sm:$0xf] %v1559
                  %v1561 = vld [vmem:[%s1533 + $0x34] sm:$0xf]
                  %1562 = vst [vmem:[%s1534 + $0x34] sm:$0xf] %v1561
                  %v1563 = vld [vmem:[%s1533 + $0x38] sm:$0xf]
                  %1564 = vst [vmem:[%s1534 + $0x38] sm:$0xf] %v1563
                  %v1565 = vld [vmem:[%s1533 + $0x3c] sm:$0xf]
                  %1566 = vst [vmem:[%s1534 + $0x3c] sm:$0xf] %v1565
                  %v1567 = vld [vmem:[%s1533 + $0x40] sm:$0xf]
                  %1568 = vst [vmem:[%s1534 + $0x40] sm:$0xf] %v1567
                  %v1569 = vld [vmem:[%s1533 + $0x44] sm:$0xf]
                  %1570 = vst [vmem:[%s1534 + $0x44] sm:$0xf] %v1569
                  %v1571 = vld [vmem:[%s1533 + $0x48] sm:$0xf]
                  %1572 = vst [vmem:[%s1534 + $0x48] sm:$0xf] %v1571
                  %v1573 = vld [vmem:[%s1533 + $0x4c] sm:$0xf]
                  %1574 = vst [vmem:[%s1534 + $0x4c] sm:$0xf] %v1573
                  %v1575 = vld [vmem:[%s1533 + $0x50] sm:$0xf]
                  %1576 = vst [vmem:[%s1534 + $0x50] sm:$0xf] %v1575
                  %v1577 = vld [vmem:[%s1533 + $0x54] sm:$0xf]
                  %1578 = vst [vmem:[%s1534 + $0x54] sm:$0xf] %v1577
                  %v1579 = vld [vmem:[%s1533 + $0x58] sm:$0xf]
                  %1580 = vst [vmem:[%s1534 + $0x58] sm:$0xf] %v1579
                  %v1581 = vld [vmem:[%s1533 + $0x5c] sm:$0xf]
                  %1582 = vst [vmem:[%s1534 + $0x5c] sm:$0xf] %v1581
                  %v1583 = vld [vmem:[%s1533 + $0x60] sm:$0xf]
                  %1584 = vst [vmem:[%s1534 + $0x60] sm:$0xf] %v1583
                  %v1585 = vld [vmem:[%s1533 + $0x64] sm:$0xf]
                  %1586 = vst [vmem:[%s1534 + $0x64] sm:$0xf] %v1585
                  %v1587 = vld [vmem:[%s1533 + $0x68] sm:$0xf]
                  %1588 = vst [vmem:[%s1534 + $0x68] sm:$0xf] %v1587
                  %v1589 = vld [vmem:[%s1533 + $0x6c] sm:$0xf]
                  %1590 = vst [vmem:[%s1534 + $0x6c] sm:$0xf] %v1589
                  %v1591 = vld [vmem:[%s1533 + $0x70] sm:$0xf]
                  %1592 = vst [vmem:[%s1534 + $0x70] sm:$0xf] %v1591
                  %v1593 = vld [vmem:[%s1533 + $0x74] sm:$0xf]
                  %1594 = vst [vmem:[%s1534 + $0x74] sm:$0xf] %v1593
                  %v1595 = vld [vmem:[%s1533 + $0x78] sm:$0xf]
                  %1596 = vst [vmem:[%s1534 + $0x78] sm:$0xf] %v1595
                  %v1597 = vld [vmem:[%s1533 + $0x7c] sm:$0xf]
                  %1598 = vst [vmem:[%s1534 + $0x7c] sm:$0xf] %v1597
                  %v1599 = vld [vmem:[%s1533 + $0x80] sm:$0xf]
                  %1600 = vst [vmem:[%s1534 + $0x80] sm:$0xf] %v1599
                  %v1601 = vld [vmem:[%s1533 + $0x84] sm:$0xf]
                  %1602 = vst [vmem:[%s1534 + $0x84] sm:$0xf] %v1601
                  %v1603 = vld [vmem:[%s1533 + $0x88] sm:$0xf]
                  %1604 = vst [vmem:[%s1534 + $0x88] sm:$0xf] %v1603
                  %v1605 = vld [vmem:[%s1533 + $0x8c] sm:$0xf]
                  %1606 = vst [vmem:[%s1534 + $0x8c] sm:$0xf] %v1605
                  %v1607 = vld [vmem:[%s1533 + $0x90] sm:$0xf]
                  %1608 = vst [vmem:[%s1534 + $0x90] sm:$0xf] %v1607
                  %v1609 = vld [vmem:[%s1533 + $0x94] sm:$0xf]
                  %1610 = vst [vmem:[%s1534 + $0x94] sm:$0xf] %v1609
                  %v1611 = vld [vmem:[%s1533 + $0x98] sm:$0xf]
                  %1612 = vst [vmem:[%s1534 + $0x98] sm:$0xf] %v1611
                  %v1613 = vld [vmem:[%s1533 + $0x9c] sm:$0xf]
                  %1614 = vst [vmem:[%s1534 + $0x9c] sm:$0xf] %v1613
                  %v1615 = vld [vmem:[%s1533 + $0xa0] sm:$0xf]
                  %1616 = vst [vmem:[%s1534 + $0xa0] sm:$0xf] %v1615
                  %v1617 = vld [vmem:[%s1533 + $0xa4] sm:$0xf]
                  %1618 = vst [vmem:[%s1534 + $0xa4] sm:$0xf] %v1617
                  %v1619 = vld [vmem:[%s1533 + $0xa8] sm:$0xf]
                  %1620 = vst [vmem:[%s1534 + $0xa8] sm:$0xf] %v1619
                  %v1621 = vld [vmem:[%s1533 + $0xac] sm:$0xf]
                  %1622 = vst [vmem:[%s1534 + $0xac] sm:$0xf] %v1621
                  %v1623 = vld [vmem:[%s1533 + $0xb0] sm:$0xf]
                  %1624 = vst [vmem:[%s1534 + $0xb0] sm:$0xf] %v1623
                  %v1625 = vld [vmem:[%s1533 + $0xb4] sm:$0xf]
                  %1626 = vst [vmem:[%s1534 + $0xb4] sm:$0xf] %v1625
                  %v1627 = vld [vmem:[%s1533 + $0xb8] sm:$0xf]
                  %1628 = vst [vmem:[%s1534 + $0xb8] sm:$0xf] %v1627
                  %v1629 = vld [vmem:[%s1533 + $0xbc] sm:$0xf]
                  %1630 = vst [vmem:[%s1534 + $0xbc] sm:$0xf] %v1629
                  %v1631 = vld [vmem:[%s1533 + $0xc0] sm:$0xf]
                  %1632 = vst [vmem:[%s1534 + $0xc0] sm:$0xf] %v1631
                  %v1633 = vld [vmem:[%s1533 + $0xc4] sm:$0xf]
                  %1634 = vst [vmem:[%s1534 + $0xc4] sm:$0xf] %v1633
                  %v1635 = vld [vmem:[%s1533 + $0xc8] sm:$0xf]
                  %1636 = vst [vmem:[%s1534 + $0xc8] sm:$0xf] %v1635
                  %v1637 = vld [vmem:[%s1533 + $0xcc] sm:$0xf]
                  %1638 = vst [vmem:[%s1534 + $0xcc] sm:$0xf] %v1637
                  %v1639 = vld [vmem:[%s1533 + $0xd0] sm:$0xf]
                  %1640 = vst [vmem:[%s1534 + $0xd0] sm:$0xf] %v1639
                  %v1641 = vld [vmem:[%s1533 + $0xd4] sm:$0xf]
                  %1642 = vst [vmem:[%s1534 + $0xd4] sm:$0xf] %v1641
                  %v1643 = vld [vmem:[%s1533 + $0xd8] sm:$0xf]
                  %1644 = vst [vmem:[%s1534 + $0xd8] sm:$0xf] %v1643
                  %v1645 = vld [vmem:[%s1533 + $0xdc] sm:$0xf]
                  %1646 = vst [vmem:[%s1534 + $0xdc] sm:$0xf] %v1645
                  %v1647 = vld [vmem:[%s1533 + $0xe0] sm:$0xf]
                  %1648 = vst [vmem:[%s1534 + $0xe0] sm:$0xf] %v1647
                  %v1649 = vld [vmem:[%s1533 + $0xe4] sm:$0xf]
                  %1650 = vst [vmem:[%s1534 + $0xe4] sm:$0xf] %v1649
                  %v1651 = vld [vmem:[%s1533 + $0xe8] sm:$0xf]
                  %1652 = vst [vmem:[%s1534 + $0xe8] sm:$0xf] %v1651
                  %v1653 = vld [vmem:[%s1533 + $0xec] sm:$0xf]
                  %1654 = vst [vmem:[%s1534 + $0xec] sm:$0xf] %v1653
                  %v1655 = vld [vmem:[%s1533 + $0xf0] sm:$0xf]
                  %1656 = vst [vmem:[%s1534 + $0xf0] sm:$0xf] %v1655
                  %v1657 = vld [vmem:[%s1533 + $0xf4] sm:$0xf]
                  %1658 = vst [vmem:[%s1534 + $0xf4] sm:$0xf] %v1657
                  %v1659 = vld [vmem:[%s1533 + $0xf8] sm:$0xf]
                  %1660 = vst [vmem:[%s1534 + $0xf8] sm:$0xf] %v1659
                  %v1661 = vld [vmem:[%s1533 + $0xfc] sm:$0xf]
                  %1662 = vst [vmem:[%s1534 + $0xfc] sm:$0xf] %v1661
                  %s1663 = sadd.s32 1, %s1532
                  %p1664 = scmp.ge.s32.totalorder %s1663, %s1525
                  %s1665 = scalar_select %p1664, 0, %s1663
                  %s1666 = smul.u32 %s1665, 256
                  %s1667 = smul.u32 %s1665, 256
                  %s1668 = scalar_lea.vmem %s1332, %s1666 [#allocation2]
                  %s1669 = scalar_lea.vmem %s1343, %s1667
                $region67: #{distg_block_forward.6} parent=61 // loop_footer
                  %s1529 = sadd.s32 %s1527, 1
                $region68: #{distg_block_forward.6} parent=61 // loop_footer_branch
                  %1526 = sbr.rel target = $region64
                $region69: #{distg_block_forward.6} parent=61 // loop_exit
                  _
                %s1670 = sshrl.u32 %s1339, 6
                %s1671 = sand.u32 %s1339, 63
                %s1672 = smul.u32 %s1670, 64
                %s1673 = smul.u32 4, %s1672
                %s1674 = scalar_lea.vmem %s1332, %s1673 [#allocation2]
                %s1675 = smul.u32 4, %s1672
                %s1676 = scalar_lea.vmem %s1343, %s1675
                // While loop
                $region70: #{distg_block_forward.6} parent=61 // loop_pre_header
                  _
                $region71: #{distg_block_forward.6} parent=61 // loop_header
                  %s1678 = sphi 0, %s1680
                  %p1679 = scmp.ge.s32.totalorder %s1678, %s1671
                  %s1683 = sphi 0, %s1690
                  %s1684 = sphi %s1674, %s1693
                  %s1685 = sphi %s1676, %s1694
                $region72: #{distg_block_forward.6} parent=61 // loop_header_branch
                  %1682 = sbr.rel (%p1679) target = $region76
                $region73: #{distg_block_forward.6} parent=61 // loop_body
                  %v1686 = vld [vmem:[%s1684] sm:$0xf]
                  %1687 = vst [vmem:[%s1685] sm:$0xf] %v1686
                  %s1688 = sadd.s32 1, %s1683
                  %p1689 = scmp.ge.s32.totalorder %s1688, %s1671
                  %s1690 = scalar_select %p1689, 0, %s1688
                  %s1691 = smul.u32 %s1690, 4
                  %s1692 = smul.u32 %s1690, 4
                  %s1693 = scalar_lea.vmem %s1674, %s1691 [#allocation2]
                  %s1694 = scalar_lea.vmem %s1676, %s1692
                $region74: #{distg_block_forward.6} parent=61 // loop_footer
                  %s1680 = sadd.s32 %s1678, 1
                $region75: #{distg_block_forward.6} parent=61 // loop_footer_branch
                  %1677 = sbr.rel target = $region71
                $region76: #{distg_block_forward.6} parent=61 // loop_exit
                  _
              $region62: #{distg_block_forward.6} parent=39 // pred_fallthru
                _
            $region40: #{distg_block_forward.6} parent=35 // pred_fallthru
              _
            // Predicated region
            $region41: #{distg_block_forward.6} parent=35 // pred_check
              _
            $region42: #{distg_block_forward.6} parent=35 // pred_check_branch
              %1350 = sbr.rel (0) target = $region44
            $region43: #{distg_block_forward.6} parent=35 // pred_region
              %s1352 = sshrl.u32 %s1339, 6
              // While loop
              $region45: #{distg_block_forward.6} parent=43 // loop_pre_header
                _
              $region46: #{distg_block_forward.6} parent=43 // loop_header
                %s1354 = sphi 0, %s1356
                %p1355 = scmp.ge.s32.totalorder %s1354, %s1352
                %s1359 = sphi 0, %s1492
                %s1360 = sphi %s1332, %s1495
                %s1361 = sphi %s1343, %s1496
              $region47: #{distg_block_forward.6} parent=43 // loop_header_branch
                %1358 = sbr.rel (%p1355) target = $region51
              $region48: #{distg_block_forward.6} parent=43 // loop_body
                %v1362 = vld [vmem:[%s1360] sm:$0xf]
                %1363 = vst [vmem:[%s1361] sm:$0xf] %v1362
                %v1364 = vld [vmem:[%s1360 + $0x4] sm:$0xf]
                %1365 = vst [vmem:[%s1361 + $0x4] sm:$0xf] %v1364
                %v1366 = vld [vmem:[%s1360 + $0x8] sm:$0xf]
                %1367 = vst [vmem:[%s1361 + $0x8] sm:$0xf] %v1366
                %v1368 = vld [vmem:[%s1360 + $0xc] sm:$0xf]
                %1369 = vst [vmem:[%s1361 + $0xc] sm:$0xf] %v1368
                %v1370 = vld [vmem:[%s1360 + $0x10] sm:$0xf]
                %1371 = vst [vmem:[%s1361 + $0x10] sm:$0xf] %v1370
                %v1372 = vld [vmem:[%s1360 + $0x14] sm:$0xf]
                %1373 = vst [vmem:[%s1361 + $0x14] sm:$0xf] %v1372
                %v1374 = vld [vmem:[%s1360 + $0x18] sm:$0xf]
                %1375 = vst [vmem:[%s1361 + $0x18] sm:$0xf] %v1374
                %v1376 = vld [vmem:[%s1360 + $0x1c] sm:$0xf]
                %1377 = vst [vmem:[%s1361 + $0x1c] sm:$0xf] %v1376
                %v1378 = vld [vmem:[%s1360 + $0x20] sm:$0xf]
                %1379 = vst [vmem:[%s1361 + $0x20] sm:$0xf] %v1378
                %v1380 = vld [vmem:[%s1360 + $0x24] sm:$0xf]
                %1381 = vst [vmem:[%s1361 + $0x24] sm:$0xf] %v1380
                %v1382 = vld [vmem:[%s1360 + $0x28] sm:$0xf]
                %1383 = vst [vmem:[%s1361 + $0x28] sm:$0xf] %v1382
                %v1384 = vld [vmem:[%s1360 + $0x2c] sm:$0xf]
                %1385 = vst [vmem:[%s1361 + $0x2c] sm:$0xf] %v1384
                %v1386 = vld [vmem:[%s1360 + $0x30] sm:$0xf]
                %1387 = vst [vmem:[%s1361 + $0x30] sm:$0xf] %v1386
                %v1388 = vld [vmem:[%s1360 + $0x34] sm:$0xf]
                %1389 = vst [vmem:[%s1361 + $0x34] sm:$0xf] %v1388
                %v1390 = vld [vmem:[%s1360 + $0x38] sm:$0xf]
                %1391 = vst [vmem:[%s1361 + $0x38] sm:$0xf] %v1390
                %v1392 = vld [vmem:[%s1360 + $0x3c] sm:$0xf]
                %1393 = vst [vmem:[%s1361 + $0x3c] sm:$0xf] %v1392
                %v1394 = vld [vmem:[%s1360 + $0x40] sm:$0xf]
                %1395 = vst [vmem:[%s1361 + $0x40] sm:$0xf] %v1394
                %v1396 = vld [vmem:[%s1360 + $0x44] sm:$0xf]
                %1397 = vst [vmem:[%s1361 + $0x44] sm:$0xf] %v1396
                %v1398 = vld [vmem:[%s1360 + $0x48] sm:$0xf]
                %1399 = vst [vmem:[%s1361 + $0x48] sm:$0xf] %v1398
                %v1400 = vld [vmem:[%s1360 + $0x4c] sm:$0xf]
                %1401 = vst [vmem:[%s1361 + $0x4c] sm:$0xf] %v1400
                %v1402 = vld [vmem:[%s1360 + $0x50] sm:$0xf]
                %1403 = vst [vmem:[%s1361 + $0x50] sm:$0xf] %v1402
                %v1404 = vld [vmem:[%s1360 + $0x54] sm:$0xf]
                %1405 = vst [vmem:[%s1361 + $0x54] sm:$0xf] %v1404
                %v1406 = vld [vmem:[%s1360 + $0x58] sm:$0xf]
                %1407 = vst [vmem:[%s1361 + $0x58] sm:$0xf] %v1406
                %v1408 = vld [vmem:[%s1360 + $0x5c] sm:$0xf]
                %1409 = vst [vmem:[%s1361 + $0x5c] sm:$0xf] %v1408
                %v1410 = vld [vmem:[%s1360 + $0x60] sm:$0xf]
                %1411 = vst [vmem:[%s1361 + $0x60] sm:$0xf] %v1410
                %v1412 = vld [vmem:[%s1360 + $0x64] sm:$0xf]
                %1413 = vst [vmem:[%s1361 + $0x64] sm:$0xf] %v1412
                %v1414 = vld [vmem:[%s1360 + $0x68] sm:$0xf]
                %1415 = vst [vmem:[%s1361 + $0x68] sm:$0xf] %v1414
                %v1416 = vld [vmem:[%s1360 + $0x6c] sm:$0xf]
                %1417 = vst [vmem:[%s1361 + $0x6c] sm:$0xf] %v1416
                %v1418 = vld [vmem:[%s1360 + $0x70] sm:$0xf]
                %1419 = vst [vmem:[%s1361 + $0x70] sm:$0xf] %v1418
                %v1420 = vld [vmem:[%s1360 + $0x74] sm:$0xf]
                %1421 = vst [vmem:[%s1361 + $0x74] sm:$0xf] %v1420
                %v1422 = vld [vmem:[%s1360 + $0x78] sm:$0xf]
                %1423 = vst [vmem:[%s1361 + $0x78] sm:$0xf] %v1422
                %v1424 = vld [vmem:[%s1360 + $0x7c] sm:$0xf]
                %1425 = vst [vmem:[%s1361 + $0x7c] sm:$0xf] %v1424
                %v1426 = vld [vmem:[%s1360 + $0x80] sm:$0xf]
                %1427 = vst [vmem:[%s1361 + $0x80] sm:$0xf] %v1426
                %v1428 = vld [vmem:[%s1360 + $0x84] sm:$0xf]
                %1429 = vst [vmem:[%s1361 + $0x84] sm:$0xf] %v1428
                %v1430 = vld [vmem:[%s1360 + $0x88] sm:$0xf]
                %1431 = vst [vmem:[%s1361 + $0x88] sm:$0xf] %v1430
                %v1432 = vld [vmem:[%s1360 + $0x8c] sm:$0xf]
                %1433 = vst [vmem:[%s1361 + $0x8c] sm:$0xf] %v1432
                %v1434 = vld [vmem:[%s1360 + $0x90] sm:$0xf]
                %1435 = vst [vmem:[%s1361 + $0x90] sm:$0xf] %v1434
                %v1436 = vld [vmem:[%s1360 + $0x94] sm:$0xf]
                %1437 = vst [vmem:[%s1361 + $0x94] sm:$0xf] %v1436
                %v1438 = vld [vmem:[%s1360 + $0x98] sm:$0xf]
                %1439 = vst [vmem:[%s1361 + $0x98] sm:$0xf] %v1438
                %v1440 = vld [vmem:[%s1360 + $0x9c] sm:$0xf]
                %1441 = vst [vmem:[%s1361 + $0x9c] sm:$0xf] %v1440
                %v1442 = vld [vmem:[%s1360 + $0xa0] sm:$0xf]
                %1443 = vst [vmem:[%s1361 + $0xa0] sm:$0xf] %v1442
                %v1444 = vld [vmem:[%s1360 + $0xa4] sm:$0xf]
                %1445 = vst [vmem:[%s1361 + $0xa4] sm:$0xf] %v1444
                %v1446 = vld [vmem:[%s1360 + $0xa8] sm:$0xf]
                %1447 = vst [vmem:[%s1361 + $0xa8] sm:$0xf] %v1446
                %v1448 = vld [vmem:[%s1360 + $0xac] sm:$0xf]
                %1449 = vst [vmem:[%s1361 + $0xac] sm:$0xf] %v1448
                %v1450 = vld [vmem:[%s1360 + $0xb0] sm:$0xf]
                %1451 = vst [vmem:[%s1361 + $0xb0] sm:$0xf] %v1450
                %v1452 = vld [vmem:[%s1360 + $0xb4] sm:$0xf]
                %1453 = vst [vmem:[%s1361 + $0xb4] sm:$0xf] %v1452
                %v1454 = vld [vmem:[%s1360 + $0xb8] sm:$0xf]
                %1455 = vst [vmem:[%s1361 + $0xb8] sm:$0xf] %v1454
                %v1456 = vld [vmem:[%s1360 + $0xbc] sm:$0xf]
                %1457 = vst [vmem:[%s1361 + $0xbc] sm:$0xf] %v1456
                %v1458 = vld [vmem:[%s1360 + $0xc0] sm:$0xf]
                %1459 = vst [vmem:[%s1361 + $0xc0] sm:$0xf] %v1458
                %v1460 = vld [vmem:[%s1360 + $0xc4] sm:$0xf]
                %1461 = vst [vmem:[%s1361 + $0xc4] sm:$0xf] %v1460
                %v1462 = vld [vmem:[%s1360 + $0xc8] sm:$0xf]
                %1463 = vst [vmem:[%s1361 + $0xc8] sm:$0xf] %v1462
                %v1464 = vld [vmem:[%s1360 + $0xcc] sm:$0xf]
                %1465 = vst [vmem:[%s1361 + $0xcc] sm:$0xf] %v1464
                %v1466 = vld [vmem:[%s1360 + $0xd0] sm:$0xf]
                %1467 = vst [vmem:[%s1361 + $0xd0] sm:$0xf] %v1466
                %v1468 = vld [vmem:[%s1360 + $0xd4] sm:$0xf]
                %1469 = vst [vmem:[%s1361 + $0xd4] sm:$0xf] %v1468
                %v1470 = vld [vmem:[%s1360 + $0xd8] sm:$0xf]
                %1471 = vst [vmem:[%s1361 + $0xd8] sm:$0xf] %v1470
                %v1472 = vld [vmem:[%s1360 + $0xdc] sm:$0xf]
                %1473 = vst [vmem:[%s1361 + $0xdc] sm:$0xf] %v1472
                %v1474 = vld [vmem:[%s1360 + $0xe0] sm:$0xf]
                %1475 = vst [vmem:[%s1361 + $0xe0] sm:$0xf] %v1474
                %v1476 = vld [vmem:[%s1360 + $0xe4] sm:$0xf]
                %1477 = vst [vmem:[%s1361 + $0xe4] sm:$0xf] %v1476
                %v1478 = vld [vmem:[%s1360 + $0xe8] sm:$0xf]
                %1479 = vst [vmem:[%s1361 + $0xe8] sm:$0xf] %v1478
                %v1480 = vld [vmem:[%s1360 + $0xec] sm:$0xf]
                %1481 = vst [vmem:[%s1361 + $0xec] sm:$0xf] %v1480
                %v1482 = vld [vmem:[%s1360 + $0xf0] sm:$0xf]
                %1483 = vst [vmem:[%s1361 + $0xf0] sm:$0xf] %v1482
                %v1484 = vld [vmem:[%s1360 + $0xf4] sm:$0xf]
                %1485 = vst [vmem:[%s1361 + $0xf4] sm:$0xf] %v1484
                %v1486 = vld [vmem:[%s1360 + $0xf8] sm:$0xf]
                %1487 = vst [vmem:[%s1361 + $0xf8] sm:$0xf] %v1486
                %v1488 = vld [vmem:[%s1360 + $0xfc] sm:$0xf]
                %1489 = vst [vmem:[%s1361 + $0xfc] sm:$0xf] %v1488
                %s1490 = sadd.s32 1, %s1359
                %p1491 = scmp.ge.s32.totalorder %s1490, %s1352
                %s1492 = scalar_select %p1491, 0, %s1490
                %s1493 = smul.u32 %s1492, 256
                %s1494 = smul.u32 %s1492, 256
                %s1495 = scalar_lea.vmem %s1332, %s1493 [#allocation2]
                %s1496 = scalar_lea.vmem %s1343, %s1494
              $region49: #{distg_block_forward.6} parent=43 // loop_footer
                %s1356 = sadd.s32 %s1354, 1
              $region50: #{distg_block_forward.6} parent=43 // loop_footer_branch
                %1353 = sbr.rel target = $region46
              $region51: #{distg_block_forward.6} parent=43 // loop_exit
                _
              %s1497 = sshrl.u32 %s1339, 6
              %s1498 = sand.u32 %s1339, 63
              %s1499 = smul.u32 %s1497, 64
              %s1500 = smul.u32 4, %s1499
              %s1501 = scalar_lea.vmem %s1332, %s1500 [#allocation2]
              %s1502 = smul.u32 4, %s1499
              %s1503 = scalar_lea.vmem %s1343, %s1502
              // While loop
              $region52: #{distg_block_forward.6} parent=43 // loop_pre_header
                _
              $region53: #{distg_block_forward.6} parent=43 // loop_header
                %s1505 = sphi 0, %s1507
                %p1506 = scmp.ge.s32.totalorder %s1505, %s1498
                %s1510 = sphi 0, %s1517
                %s1511 = sphi %s1501, %s1520
                %s1512 = sphi %s1503, %s1521
              $region54: #{distg_block_forward.6} parent=43 // loop_header_branch
                %1509 = sbr.rel (%p1506) target = $region58
              $region55: #{distg_block_forward.6} parent=43 // loop_body
                %v1513 = vld [vmem:[%s1511] sm:$0xf]
                %1514 = vst [vmem:[%s1512] sm:$0xf] %v1513
                %s1515 = sadd.s32 1, %s1510
                %p1516 = scmp.ge.s32.totalorder %s1515, %s1498
                %s1517 = scalar_select %p1516, 0, %s1515
                %s1518 = smul.u32 %s1517, 4
                %s1519 = smul.u32 %s1517, 4
                %s1520 = scalar_lea.vmem %s1501, %s1518 [#allocation2]
                %s1521 = scalar_lea.vmem %s1503, %s1519
              $region56: #{distg_block_forward.6} parent=43 // loop_footer
                %s1507 = sadd.s32 %s1505, 1
              $region57: #{distg_block_forward.6} parent=43 // loop_footer_branch
                %1504 = sbr.rel target = $region53
              $region58: #{distg_block_forward.6} parent=43 // loop_exit
                _
            $region44: #{distg_block_forward.6} parent=35 // pred_fallthru
              _
          $region36: #{distg_block_forward.6} parent=31 // pred_fallthru
            _
          %1695 = vnop
        $region32: #{distg_block_forward.6} parent=27 // pred_fallthru
          _
      $region28: #{distg_block_forward.6} parent=5 // pred_fallthru
        _
      %p1696 = scmp.le.s32.totalorder 2, %s8
      // Predicated region
      $region77: #{distg_block_forward.6} parent=5 // pred_check
        %p1697 = pneg %p1696
      $region78: #{distg_block_forward.6} parent=5 // pred_check_branch
        %1699 = sbr.rel (%p1697) target = $region80
      $region79: #{distg_block_forward.6} parent=5 // pred_region
        %s1700 = ssub.s32 %s8, 2
        // Predicated region
        $region81: #{distg_block_forward.6} parent=79 // pred_check
          %p1701 = pneg %p84
        $region82: #{distg_block_forward.6} parent=79 // pred_check_branch
          %1703 = sbr.rel (%p1701) target = $region84
        $region83: #{distg_block_forward.6} parent=79 // pred_region
          %s1704 = sand.u32 %s69, 1
          %s1705 = sand.u32 %s69, 1
          %s1706 = smul.addr %s1705, 256
          %s1707 = scalar_lea.vmem [#allocation2], %s1706
        $region84: #{distg_block_forward.6} parent=79 // pred_fallthru
          _
      $region80: #{distg_block_forward.6} parent=5 // pred_fallthru
        _
    $region6: #{distg_block_forward.6} parent=1 // loop_footer
      %s12 = sadd.s32 1, %s8
    $region7: #{distg_block_forward.6} parent=1 // loop_footer_branch
      %7 = sbr.rel target = $region3
    $region8: #{distg_block_forward.6} parent=1 // loop_exit
      _

// kernel: distg_block_forward.10
$region0: #{distg_block_forward.10}
  #allocation0 [shape = 'u32[]', space=smem, size = 0x4, offset = 0x4, fixed_abs, tag = 'smem constant byte address 0x4 - core index']
  #allocation1 [shape = 'u32[144,128]{1,0:T(1,128)}', space=vmem, size = 0x12000, scoped, tag = 'internal scratch']
  %s0 = inlined_call_operand.vmem [shape: bf16[3200,18], index: 0, kind: input, shape index: {}]
  %s1 = inlined_call_operand.vmem [shape: bf16[18,8], index: 1, kind: input, shape index: {}]
  %s2 = inlined_call_operand.vmem [shape: bf16[3200,8], index: 2, kind: output, shape index: {}]
  %s3 = sld [smem:[#allocation0]]
  $region85: #{distg_block_forward.10} parent=0
    _
  %s5 = ssub.s32 1, %s3
  %s6 = scalar_select 0, %s5, %s3
  $region1: #{distg_block_forward.10} parent=0
    #allocation2 [shape = 'u8[262144]{0}', space=vmem, size = 0x40000, scoped, tag = 'output window, operand 0']
    loop: start=0, step=1, limit=9
    $region2: #{distg_block_forward.10} parent=1 // loop_pre_header
      _
    $region3: #{distg_block_forward.10} parent=1 // loop_header
      %s8 = sphi 0, %s12
      %p9 = scmp.ge.s32.totalorder %s8, 9
      %s18 = sphi 0, %s20
      %s21 = sphi 0, %s18
      %s22 = sphi 0, %s21
      %s38 = sphi 0, %s22
      %s42 = sphi 0, %s42
      %s44 = sphi 0, %s42
      %s45 = sphi 0, %s44
      %s59 = sphi 0, %s45
      %s65 = sphi 0, %s67
      %s68 = sphi 0, %s65
      %s69 = sphi 0, %s68
      %s85 = sphi 0, %s69
    $region4: #{distg_block_forward.10} parent=1 // loop_header_branch
      %11 = sbr.rel (%p9) target = $region8
    $region5: #{distg_block_forward.10} parent=1 // loop_body
      %s13 = ssub.s32 %s8, 1
      %s14 = ssub.s32 %s8, 2
      %s15 = sadd.s32 %s8, 1
      %s16 = ssub.s32 %s8, %s15
      %p17 = scmp.eq.s32.totalorder %s16, 0
      %s19 = sadd.s32 %s18, 1
      %s20 = scalar_select %p17, %s18, %s19
      %p23 = pneg %p17
      %p24 = scmp.eq.s32.totalorder %s8, 6
      %p25 = por %p23, %p24
      %p26 = scmp.ne.s32.totalorder %s18, %s21
      %p27 = scmp.eq.s32.totalorder %s8, 0
      %p28 = por %p26, %p27
      %p29 = scmp.ne.s32.totalorder %s18, %s21
      %p30 = scmp.eq.s32.totalorder %s13, 6
      %p31 = por %p29, %p30
      %p32 = scmp.ne.s32.totalorder %s21, %s22
      %p33 = scmp.eq.s32.totalorder %s13, 0
      %p34 = por %p32, %p33
      %p35 = scmp.ne.s32.totalorder %s21, %s22
      %p36 = scmp.eq.s32.totalorder %s14, 6
      %p37 = por %p35, %p36
      %p39 = scmp.ne.s32.totalorder %s22, %s38
      %p40 = scmp.eq.s32.totalorder %s14, 0
      %p41 = por %p39, %p40
      %s43 = sadd.s32 %s42, 1
      %p46 = scmp.eq.s32.totalorder %s8, 6
      %p47 = scmp.ne.s32.totalorder %s42, %s44
      %p48 = scmp.eq.s32.totalorder %s8, 0
      %p49 = por %p47, %p48
      %p50 = scmp.ne.s32.totalorder %s42, %s44
      %p51 = scmp.eq.s32.totalorder %s13, 6
      %p52 = por %p50, %p51
      %p53 = scmp.ne.s32.totalorder %s44, %s45
      %p54 = scmp.eq.s32.totalorder %s13, 0
      %p55 = por %p53, %p54
      %p56 = scmp.ne.s32.totalorder %s44, %s45
      %p57 = scmp.eq.s32.totalorder %s14, 6
      %p58 = por %p56, %p57
      %p60 = scmp.ne.s32.totalorder %s45, %s59
      %p61 = scmp.eq.s32.totalorder %s14, 0
      %p62 = por %p60, %p61
      %s63 = ssub.s32 %s8, %s15
      %p64 = scmp.eq.s32.totalorder %s63, 0
      %s66 = sadd.s32 %s65, 1
      %s67 = scalar_select %p64, %s65, %s66
      %p70 = pneg %p64
      %p71 = scmp.eq.s32.totalorder %s8, 6
      %p72 = por %p70, %p71
      %p73 = scmp.ne.s32.totalorder %s65, %s68
      %p74 = scmp.eq.s32.totalorder %s8, 0
      %p75 = por %p73, %p74
      %p76 = scmp.ne.s32.totalorder %s65, %s68
      %p77 = scmp.eq.s32.totalorder %s13, 6
      %p78 = por %p76, %p77
      %p79 = scmp.ne.s32.totalorder %s68, %s69
      %p80 = scmp.eq.s32.totalorder %s13, 0
      %p81 = por %p79, %p80
      %p82 = scmp.ne.s32.totalorder %s68, %s69
      %p83 = scmp.eq.s32.totalorder %s14, 6
      %p84 = por %p82, %p83
      %p86 = scmp.ne.s32.totalorder %s69, %s85
      %p87 = scmp.eq.s32.totalorder %s14, 0
      %p88 = por %p86, %p87
      %p89 = scmp.le.s32.totalorder 1, %s8
      %p90 = scmp.lt.s32.totalorder %s8, 8
      %p91 = pnand %p89, %p90
      %p92 = pneg %p91
      // Predicated region
      $region9: #{distg_block_forward.10} parent=5 // pred_check
        _
      $region10: #{distg_block_forward.10} parent=5 // pred_check_branch
        %94 = sbr.rel (%p91) target = $region12
      $region11: #{distg_block_forward.10} parent=5 // pred_region
        %s95 = ssub.s32 %s8, 1
        // Predicated region
        $region13: #{distg_block_forward.10} parent=11 // pred_check
          %p96 = pneg %p55
        $region14: #{distg_block_forward.10} parent=11 // pred_check_branch
          %98 = sbr.rel (%p96) target = $region16
        $region15: #{distg_block_forward.10} parent=11 // pred_region
          _
        $region16: #{distg_block_forward.10} parent=11 // pred_fallthru
          _
      $region12: #{distg_block_forward.10} parent=5 // pred_fallthru
        _
      %p99 = scmp.lt.s32.totalorder %s8, 7
      // Predicated region
      $region17: #{distg_block_forward.10} parent=5 // pred_check
        %p100 = pneg %p99
      $region18: #{distg_block_forward.10} parent=5 // pred_check_branch
        %102 = sbr.rel (%p100) target = $region20
      $region19: #{distg_block_forward.10} parent=5 // pred_region
        // Predicated region
        $region21: #{distg_block_forward.10} parent=19 // pred_check
          %p103 = pneg %p28
        $region22: #{distg_block_forward.10} parent=19 // pred_check_branch
          %105 = sbr.rel (%p103) target = $region24
        $region23: #{distg_block_forward.10} parent=19 // pred_region
          %s106 = smul.u32 64, %s8
          %s107 = ssub.s32 400, %s106
          %p108 = scmp.lt.s32.totalorder %s107, 64
          %s109 = scalar_select %p108, %s107, 64
          %s110 = smul.u32 64, %s109
          %p111 = scmp.lt.s32.totalorder %s106, 399
          %s112 = scalar_select %p111, %s106, 399
          %s113 = smul.addr %s112, 4
          %s114 = scalar_lea.vmem %s0, %s113
          %s115 = smul.u32 64, %s8
          %s116 = ssub.s32 400, %s115
          %p117 = scmp.lt.s32.totalorder %s116, 64
          %s118 = scalar_select %p117, %s116, 64
          %s119 = smul.u32 64, %s118
        $region24: #{distg_block_forward.10} parent=19 // pred_fallthru
          _
      $region20: #{distg_block_forward.10} parent=5 // pred_fallthru
        _
      %p120 = scmp.le.s32.totalorder 1, %s8
      %p121 = scmp.lt.s32.totalorder %s8, 8
      %p122 = pnand %p120, %p121
      %p123 = pneg %p122
      // Predicated region
      $region25: #{distg_block_forward.10} parent=5 // pred_check
        _
      $region26: #{distg_block_forward.10} parent=5 // pred_check_branch
        %125 = sbr.rel (%p122) target = $region28
      $region27: #{distg_block_forward.10} parent=5 // pred_region
        %s126 = ssub.s32 %s8, 1
        %s127 = smul.u32 64, %s13
        %s128 = ssub.s32 400, %s127
        %p129 = scmp.lt.s32.totalorder %s128, 64
        %s130 = scalar_select %p129, %s128, 64
        %s131 = smul.u32 64, %s130
        %p132 = scmp.lt.s32.totalorder %s127, 399
        %s133 = scalar_select %p132, %s127, 399
        %s134 = smul.addr %s133, 4
        %s135 = scalar_lea.vmem %s0, %s134
        %p136 = pneg %p34
        %p137 = pneg %p31
        %p138 = pneg %p55
        %p139 = pneg %p52
        %p140 = pneg %p81
        %p141 = pneg %p78
        %s142 = sand.u32 %s68, 1
        %s143 = sand.u32 %s68, 1
        %s144 = smul.addr %s143, 256
        %s145 = scalar_lea.vmem [#allocation2], %s144
        %s146 = smul.u32 64, %s13
        %s147 = ssub.s32 400, %s146
        %p148 = scmp.lt.s32.totalorder %s147, 64
        %s149 = scalar_select %p148, %s147, 64
        %s150 = smul.u32 64, %s149
        %p151 = scmp.lt.s32.totalorder %s146, 399
        %s152 = scalar_select %p151, %s146, 399
        %s153 = smul.addr %s152, 4
        %s154 = scalar_lea.vmem %s0, %s153
        %s155 = smul.u32 64, %s13
        %s156 = ssub.s32 400, %s155
        %p157 = scmp.lt.s32.totalorder %s156, 64
        %s158 = scalar_select %p157, %s156, 64
        %s159 = smul.u32 64, %s158
        %s160 = smul.u32 64, %s13
        %s161 = ssub.s32 400, %s160
        %p162 = scmp.lt.s32.totalorder %s161, 64
        %s163 = scalar_select %p162, %s161, 64
        %s164 = smul.u32 64, %s163
        %v166 = vld [vmem:[%s154] sm:$0xf]
        %v167 = vld [vmem:[%s154 + $0x4] sm:$0xf]
        %v168 = vld [vmem:[%s154 + $0x8] sm:$0xf]
        %v169 = vld [vmem:[%s154 + $0xc] sm:$0xf]
        %v170 = vld [vmem:[%s154 + $0x10] sm:$0xf]
        %v171 = vld [vmem:[%s154 + $0x14] sm:$0xf]
        %v172 = vld [vmem:[%s154 + $0x18] sm:$0xf]
        %v173 = vld [vmem:[%s154 + $0x1c] sm:$0xf]
        %v174 = vld [vmem:[%s154 + $0x20] sm:$0xf]
        %v175 = vld [vmem:[%s154 + $0x24] sm:$0xf]
        %v176 = vld [vmem:[%s154 + $0x28] sm:$0xf]
        %v177 = vld [vmem:[%s154 + $0x2c] sm:$0xf]
        %v178 = vld [vmem:[%s154 + $0x30] sm:$0xf]
        %v179 = vld [vmem:[%s154 + $0x34] sm:$0xf]
        %v180 = vld [vmem:[%s154 + $0x38] sm:$0xf]
        %v181 = vld [vmem:[%s154 + $0x3c] sm:$0xf]
        %v182 = vld [vmem:[%s154 + $0x40] sm:$0xf]
        %v183 = vld [vmem:[%s154 + $0x44] sm:$0xf]
        %v184 = vld [vmem:[%s154 + $0x48] sm:$0xf]
        %v185 = vld [vmem:[%s154 + $0x4c] sm:$0xf]
        %v186 = vld [vmem:[%s154 + $0x50] sm:$0xf]
        %v187 = vld [vmem:[%s154 + $0x54] sm:$0xf]
        %v188 = vld [vmem:[%s154 + $0x58] sm:$0xf]
        %v189 = vld [vmem:[%s154 + $0x5c] sm:$0xf]
        %v190 = vld [vmem:[%s154 + $0x60] sm:$0xf]
        %v191 = vld [vmem:[%s154 + $0x64] sm:$0xf]
        %v192 = vld [vmem:[%s154 + $0x68] sm:$0xf]
        %v193 = vld [vmem:[%s154 + $0x6c] sm:$0xf]
        %v194 = vld [vmem:[%s154 + $0x70] sm:$0xf]
        %v195 = vld [vmem:[%s154 + $0x74] sm:$0xf]
        %v196 = vld [vmem:[%s154 + $0x78] sm:$0xf]
        %v197 = vld [vmem:[%s154 + $0x7c] sm:$0xf]
        %v198 = vld [vmem:[%s154 + $0x80] sm:$0xf]
        %v199 = vld [vmem:[%s154 + $0x84] sm:$0xf]
        %v200 = vld [vmem:[%s154 + $0x88] sm:$0xf]
        %v201 = vld [vmem:[%s154 + $0x8c] sm:$0xf]
        %v202 = vld [vmem:[%s154 + $0x90] sm:$0xf]
        %v203 = vld [vmem:[%s154 + $0x94] sm:$0xf]
        %v204 = vld [vmem:[%s154 + $0x98] sm:$0xf]
        %v205 = vld [vmem:[%s154 + $0x9c] sm:$0xf]
        %v206 = vld [vmem:[%s154 + $0xa0] sm:$0xf]
        %v207 = vld [vmem:[%s154 + $0xa4] sm:$0xf]
        %v208 = vld [vmem:[%s154 + $0xa8] sm:$0xf]
        %v209 = vld [vmem:[%s154 + $0xac] sm:$0xf]
        %v210 = vld [vmem:[%s154 + $0xb0] sm:$0xf]
        %v211 = vld [vmem:[%s154 + $0xb4] sm:$0xf]
        %v212 = vld [vmem:[%s154 + $0xb8] sm:$0xf]
        %v213 = vld [vmem:[%s154 + $0xbc] sm:$0xf]
        %v214 = vld [vmem:[%s154 + $0xc0] sm:$0xf]
        %v215 = vld [vmem:[%s154 + $0xc4] sm:$0xf]
        %v216 = vld [vmem:[%s154 + $0xc8] sm:$0xf]
        %v217 = vld [vmem:[%s154 + $0xcc] sm:$0xf]
        %v218 = vld [vmem:[%s154 + $0xd0] sm:$0xf]
        %v219 = vld [vmem:[%s154 + $0xd4] sm:$0xf]
        %v220 = vld [vmem:[%s154 + $0xd8] sm:$0xf]
        %v221 = vld [vmem:[%s154 + $0xdc] sm:$0xf]
        %v222 = vld [vmem:[%s154 + $0xe0] sm:$0xf]
        %v223 = vld [vmem:[%s154 + $0xe4] sm:$0xf]
        %v224 = vld [vmem:[%s154 + $0xe8] sm:$0xf]
        %v225 = vld [vmem:[%s154 + $0xec] sm:$0xf]
        %v226 = vld [vmem:[%s154 + $0xf0] sm:$0xf]
        %v227 = vld [vmem:[%s154 + $0xf4] sm:$0xf]
        %v228 = vld [vmem:[%s154 + $0xf8] sm:$0xf]
        %v229 = vld [vmem:[%s154 + $0xfc] sm:$0xf]
        %v230 = vld [vmem:[%s1] sm:$0xf]
        %v231 = vld [vmem:[%s1 + $0x4] sm:$0xf]
        %v232 = vld [vmem:[%s1 + $0x8] sm:$0x1]
        %v297 = vunpack.c.l.b16 %v166
        %v298 = vunpack.c.l.b16 %v167
        %v299 = vunpack.c.l.b16 %v168
        %v300 = vunpack.c.l.b16 %v169
        %v301 = vunpack.c.l.b16 %v170
        %v302 = vunpack.c.l.b16 %v171
        %v303 = vunpack.c.l.b16 %v172
        %v304 = vunpack.c.l.b16 %v173
        %v305 = vunpack.c.l.b16 %v174
        %v306 = vunpack.c.l.b16 %v175
        %v307 = vunpack.c.l.b16 %v176
        %v308 = vunpack.c.l.b16 %v177
        %v309 = vunpack.c.l.b16 %v178
        %v310 = vunpack.c.l.b16 %v179
        %v311 = vunpack.c.l.b16 %v180
        %v312 = vunpack.c.l.b16 %v181
        %v313 = vunpack.c.l.b16 %v182
        %v314 = vunpack.c.l.b16 %v183
        %v315 = vunpack.c.l.b16 %v184
        %v316 = vunpack.c.l.b16 %v185
        %v317 = vunpack.c.l.b16 %v186
        %v318 = vunpack.c.l.b16 %v187
        %v319 = vunpack.c.l.b16 %v188
        %v320 = vunpack.c.l.b16 %v189
        %v321 = vunpack.c.l.b16 %v190
        %v322 = vunpack.c.l.b16 %v191
        %v323 = vunpack.c.l.b16 %v192
        %v324 = vunpack.c.l.b16 %v193
        %v325 = vunpack.c.l.b16 %v194
        %v326 = vunpack.c.l.b16 %v195
        %v327 = vunpack.c.l.b16 %v196
        %v328 = vunpack.c.l.b16 %v197
        %v329 = vunpack.c.l.b16 %v198
        %v330 = vunpack.c.l.b16 %v199
        %v331 = vunpack.c.l.b16 %v200
        %v332 = vunpack.c.l.b16 %v201
        %v333 = vunpack.c.l.b16 %v202
        %v334 = vunpack.c.l.b16 %v203
        %v335 = vunpack.c.l.b16 %v204
        %v336 = vunpack.c.l.b16 %v205
        %v337 = vunpack.c.l.b16 %v206
        %v338 = vunpack.c.l.b16 %v207
        %v339 = vunpack.c.l.b16 %v208
        %v340 = vunpack.c.l.b16 %v209
        %v341 = vunpack.c.l.b16 %v210
        %v342 = vunpack.c.l.b16 %v211
        %v343 = vunpack.c.l.b16 %v212
        %v344 = vunpack.c.l.b16 %v213
        %v345 = vunpack.c.l.b16 %v214
        %v346 = vunpack.c.l.b16 %v215
        %v347 = vunpack.c.l.b16 %v216
        %v348 = vunpack.c.l.b16 %v217
        %v349 = vunpack.c.l.b16 %v218
        %v350 = vunpack.c.l.b16 %v219
        %v351 = vunpack.c.l.b16 %v220
        %v352 = vunpack.c.l.b16 %v221
        %v353 = vunpack.c.l.b16 %v222
        %v354 = vunpack.c.l.b16 %v223
        %v355 = vunpack.c.l.b16 %v224
        %v356 = vunpack.c.l.b16 %v225
        %v357 = vunpack.c.l.b16 %v226
        %v358 = vunpack.c.l.b16 %v227
        %v359 = vunpack.c.l.b16 %v228
        %v360 = vunpack.c.l.b16 %v229
        %v361 = vpack.c.b16 %v298, %v297
        %v362 = vpack.c.b16 %v300, %v299
        %v363 = vpack.c.b16 %v302, %v301
        %v364 = vpack.c.b16 %v304, %v303
        %v365 = vpack.c.b16 %v306, %v305
        %v366 = vpack.c.b16 %v308, %v307
        %v367 = vpack.c.b16 %v310, %v309
        %v368 = vpack.c.b16 %v312, %v311
        %v369 = vpack.c.b16 %v314, %v313
        %v370 = vpack.c.b16 %v316, %v315
        %v371 = vpack.c.b16 %v318, %v317
        %v372 = vpack.c.b16 %v320, %v319
        %v373 = vpack.c.b16 %v322, %v321
        %v374 = vpack.c.b16 %v324, %v323
        %v375 = vpack.c.b16 %v326, %v325
        %v376 = vpack.c.b16 %v328, %v327
        %v377 = vpack.c.b16 %v330, %v329
        %v378 = vpack.c.b16 %v332, %v331
        %v379 = vpack.c.b16 %v334, %v333
        %v380 = vpack.c.b16 %v336, %v335
        %v381 = vpack.c.b16 %v338, %v337
        %v382 = vpack.c.b16 %v340, %v339
        %v383 = vpack.c.b16 %v342, %v341
        %v384 = vpack.c.b16 %v344, %v343
        %v385 = vpack.c.b16 %v346, %v345
        %v386 = vpack.c.b16 %v348, %v347
        %v387 = vpack.c.b16 %v350, %v349
        %v388 = vpack.c.b16 %v352, %v351
        %v389 = vpack.c.b16 %v354, %v353
        %v390 = vpack.c.b16 %v356, %v355
        %v391 = vpack.c.b16 %v358, %v357
        %v392 = vpack.c.b16 %v360, %v359
        %v396 = vunpack.c.l.b16 %v230
        %v397 = vunpack.c.l.b16 %v231
        %v398 = vunpack.c.l.b16 %v232
        %v399 = vpack.c.b16 %v397, %v396
        %v400 = vpack.c.b16 %v398, %v398
        %vm402 = vcmask 146432
        %v404 = vsel %vm402, %v361, 0
        %v407 = vsel %vm402, %v362, 0
        %v410 = vsel %vm402, %v363, 0
        %v413 = vsel %vm402, %v364, 0
        %v416 = vsel %vm402, %v365, 0
        %v419 = vsel %vm402, %v366, 0
        %v422 = vsel %vm402, %v367, 0
        %v425 = vsel %vm402, %v368, 0
        %v428 = vsel %vm402, %v369, 0
        %v431 = vsel %vm402, %v370, 0
        %v434 = vsel %vm402, %v371, 0
        %v437 = vsel %vm402, %v372, 0
        %v440 = vsel %vm402, %v373, 0
        %v443 = vsel %vm402, %v374, 0
        %v446 = vsel %vm402, %v375, 0
        %v449 = vsel %vm402, %v376, 0
        %v452 = vsel %vm402, %v377, 0
        %v455 = vsel %vm402, %v378, 0
        %v458 = vsel %vm402, %v379, 0
        %v461 = vsel %vm402, %v380, 0
        %v464 = vsel %vm402, %v381, 0
        %v467 = vsel %vm402, %v382, 0
        %v470 = vsel %vm402, %v383, 0
        %v473 = vsel %vm402, %v384, 0
        %v476 = vsel %vm402, %v385, 0
        %v479 = vsel %vm402, %v386, 0
        %v482 = vsel %vm402, %v387, 0
        %v485 = vsel %vm402, %v388, 0
        %v488 = vsel %vm402, %v389, 0
        %v491 = vsel %vm402, %v390, 0
        %v494 = vsel %vm402, %v391, 0
        %v497 = vsel %vm402, %v392, 0
        %vm499 = vcmask 1040384
        %v501 = vsel %vm499, %v400, 0
        %503 = vmatprep.subr.bf16.mxu0 0
        %504 = vmatpush1.bf16.msra.mxu0 %v399
        %505 = vmatprep.subr.bf16.mxu0 0
        %506 = vmatpush1.bf16.msra.mxu0 %v501
        %507 = vmatprep.subr.bf16.mxu0 0
        %508 = vmatpush1.bf16.msra.mxu0 0
        %509 = vmatprep.subr.bf16.mxu0 0
        %510 = vmatpush1.bf16.msra.mxu0 0
        %511 = vmatprep.subr.bf16.mxu0 0
        %512 = vmatpush1.bf16.msra.mxu0 0
        %513 = vmatprep.subr.bf16.mxu0 0
        %514 = vmatpush1.bf16.msra.mxu0 0
        %515 = vmatprep.subr.bf16.mxu0 0
        %516 = vmatpush1.bf16.msra.mxu0 0
        %517 = vmatprep.subr.bf16.mxu0 0
        %518 = vmatpush1.bf16.msra.mxu0 0
        %519 = vmatprep.subr.bf16.mxu0 0
        %520 = vmatpush1.bf16.msra.mxu0 0
        %521 = vmatprep.subr.bf16.mxu0 0
        %522 = vmatpush1.bf16.msra.mxu0 0
        %523 = vmatprep.subr.bf16.mxu0 0
        %524 = vmatpush1.bf16.msra.mxu0 0
        %525 = vmatprep.subr.bf16.mxu0 0
        %526 = vmatpush1.bf16.msra.mxu0 0
        %527 = vmatprep.subr.bf16.mxu0 0
        %528 = vmatpush1.bf16.msra.mxu0 0
        %529 = vmatprep.subr.bf16.mxu0 0
        %530 = vmatpush1.bf16.msra.mxu0 0
        %531 = vmatprep.subr.bf16.mxu0 0
        %532 = vmatpush1.bf16.msra.mxu0 0
        %533 = vmatprep.subr.bf16.mxu0 0
        %534 = vmatpush1.bf16.msra.mxu0 0
        %535 = vmatprep.mubr.bf16.mxu0 0
        %536 = vmatmul.mubr.bf16.gmra.mrb[0].mxu0 %v404
        %v537 = vpop.f32.mrb[0].mxu0
        %v538 = vadd.f32 0.0, %v537
        %v539 = vpop.f32.mrb[0].mxu0
        %v540 = vpop.f32.mrb[0].mxu0
        %v541 = vadd.f32 0.0, %v540
        %v542 = vpop.f32.mrb[0].mxu0
        %543 = vmatprep.mubr.bf16.mxu0 0
        %544 = vmatmul.mubr.bf16.gmra.mrb[0].mxu0 %v407
        %v545 = vpop.f32.mrb[0].mxu0
        %v546 = vadd.f32 0.0, %v545
        %v547 = vpop.f32.mrb[0].mxu0
        %v548 = vpop.f32.mrb[0].mxu0
        %v549 = vadd.f32 0.0, %v548
        %v550 = vpop.f32.mrb[0].mxu0
        %551 = vmatprep.mubr.bf16.mxu0 0
        %552 = vmatmul.mubr.bf16.gmra.mrb[0].mxu0 %v410
        %v553 = vpop.f32.mrb[0].mxu0
        %v554 = vadd.f32 0.0, %v553
        %v555 = vpop.f32.mrb[0].mxu0
        %v556 = vpop.f32.mrb[0].mxu0
        %v557 = vadd.f32 0.0, %v556
        %v558 = vpop.f32.mrb[0].mxu0
        %559 = vmatprep.mubr.bf16.mxu0 0
        %560 = vmatmul.mubr.bf16.gmra.mrb[0].mxu0 %v413
        %v561 = vpop.f32.mrb[0].mxu0
        %v562 = vadd.f32 0.0, %v561
        %v563 = vpop.f32.mrb[0].mxu0
        %v564 = vpop.f32.mrb[0].mxu0
        %v565 = vadd.f32 0.0, %v564
        %v566 = vpop.f32.mrb[0].mxu0
        %567 = vmatprep.mubr.bf16.mxu0 0
        %568 = vmatmul.mubr.bf16.gmra.mrb[0].mxu0 %v416
        %v569 = vpop.f32.mrb[0].mxu0
        %v570 = vadd.f32 0.0, %v569
        %v571 = vpop.f32.mrb[0].mxu0
        %v572 = vpop.f32.mrb[0].mxu0
        %v573 = vadd.f32 0.0, %v572
        %v574 = vpop.f32.mrb[0].mxu0
        %575 = vmatprep.mubr.bf16.mxu0 0
        %576 = vmatmul.mubr.bf16.gmra.mrb[0].mxu0 %v419
        %v577 = vpop.f32.mrb[0].mxu0
        %v578 = vadd.f32 0.0, %v577
        %v579 = vpop.f32.mrb[0].mxu0
        %v580 = vpop.f32.mrb[0].mxu0
        %v581 = vadd.f32 0.0, %v580
        %v582 = vpop.f32.mrb[0].mxu0
        %583 = vmatprep.mubr.bf16.mxu0 0
        %584 = vmatmul.mubr.bf16.gmra.mrb[0].mxu0 %v422
        %v585 = vpop.f32.mrb[0].mxu0
        %v586 = vadd.f32 0.0, %v585
        %v587 = vpop.f32.mrb[0].mxu0
        %v588 = vpop.f32.mrb[0].mxu0
        %v589 = vadd.f32 0.0, %v588
        %v590 = vpop.f32.mrb[0].mxu0
        %591 = vmatprep.mubr.bf16.mxu0 0
        %592 = vmatmul.mubr.bf16.gmra.mrb[0].mxu0 %v425
        %v593 = vpop.f32.mrb[0].mxu0
        %v594 = vadd.f32 0.0, %v593
        %v595 = vpop.f32.mrb[0].mxu0
        %v596 = vpop.f32.mrb[0].mxu0
        %v597 = vadd.f32 0.0, %v596
        %v598 = vpop.f32.mrb[0].mxu0
        %599 = vmatprep.mubr.bf16.mxu0 0
        %600 = vmatmul.mubr.bf16.gmra.mrb[0].mxu0 %v428
        %v601 = vpop.f32.mrb[0].mxu0
        %v602 = vadd.f32 0.0, %v601
        %v603 = vpop.f32.mrb[0].mxu0
        %v604 = vpop.f32.mrb[0].mxu0
        %v605 = vadd.f32 0.0, %v604
        %v606 = vpop.f32.mrb[0].mxu0
        %607 = vmatprep.mubr.bf16.mxu0 0
        %608 = vmatmul.mubr.bf16.gmra.mrb[0].mxu0 %v431
        %v609 = vpop.f32.mrb[0].mxu0
        %v610 = vadd.f32 0.0, %v609
        %v611 = vpop.f32.mrb[0].mxu0
        %v612 = vpop.f32.mrb[0].mxu0
        %v613 = vadd.f32 0.0, %v612
        %v614 = vpop.f32.mrb[0].mxu0
        %615 = vmatprep.mubr.bf16.mxu0 0
        %616 = vmatmul.mubr.bf16.gmra.mrb[0].mxu0 %v434
        %v617 = vpop.f32.mrb[0].mxu0
        %v618 = vadd.f32 0.0, %v617
        %v619 = vpop.f32.mrb[0].mxu0
        %v620 = vpop.f32.mrb[0].mxu0
        %v621 = vadd.f32 0.0, %v620
        %v622 = vpop.f32.mrb[0].mxu0
        %623 = vmatprep.mubr.bf16.mxu0 0
        %624 = vmatmul.mubr.bf16.gmra.mrb[0].mxu0 %v437
        %v625 = vpop.f32.mrb[0].mxu0
        %v626 = vadd.f32 0.0, %v625
        %v627 = vpop.f32.mrb[0].mxu0
        %v628 = vpop.f32.mrb[0].mxu0
        %v629 = vadd.f32 0.0, %v628
        %v630 = vpop.f32.mrb[0].mxu0
        %631 = vmatprep.mubr.bf16.mxu0 0
        %632 = vmatmul.mubr.bf16.gmra.mrb[0].mxu0 %v440
        %v633 = vpop.f32.mrb[0].mxu0
        %v634 = vadd.f32 0.0, %v633
        %v635 = vpop.f32.mrb[0].mxu0
        %v636 = vpop.f32.mrb[0].mxu0
        %v637 = vadd.f32 0.0, %v636
        %v638 = vpop.f32.mrb[0].mxu0
        %639 = vmatprep.mubr.bf16.mxu0 0
        %640 = vmatmul.mubr.bf16.gmra.mrb[0].mxu0 %v443
        %v641 = vpop.f32.mrb[0].mxu0
        %v642 = vadd.f32 0.0, %v641
        %v643 = vpop.f32.mrb[0].mxu0
        %v644 = vpop.f32.mrb[0].mxu0
        %v645 = vadd.f32 0.0, %v644
        %v646 = vpop.f32.mrb[0].mxu0
        %647 = vmatprep.mubr.bf16.mxu0 0
        %648 = vmatmul.mubr.bf16.gmra.mrb[0].mxu0 %v446
        %v649 = vpop.f32.mrb[0].mxu0
        %v650 = vadd.f32 0.0, %v649
        %v651 = vpop.f32.mrb[0].mxu0
        %v652 = vpop.f32.mrb[0].mxu0
        %v653 = vadd.f32 0.0, %v652
        %v654 = vpop.f32.mrb[0].mxu0
        %655 = vmatprep.mubr.bf16.mxu0 0
        %656 = vmatmul.mubr.bf16.gmra.mrb[0].mxu0 %v449
        %v657 = vpop.f32.mrb[0].mxu0
        %v658 = vadd.f32 0.0, %v657
        %v659 = vpop.f32.mrb[0].mxu0
        %v660 = vpop.f32.mrb[0].mxu0
        %v661 = vadd.f32 0.0, %v660
        %v662 = vpop.f32.mrb[0].mxu0
        %663 = vmatprep.mubr.bf16.mxu0 0
        %664 = vmatmul.mubr.bf16.gmra.mrb[0].mxu0 %v452
        %v665 = vpop.f32.mrb[0].mxu0
        %v666 = vadd.f32 0.0, %v665
        %v667 = vpop.f32.mrb[0].mxu0
        %v668 = vpop.f32.mrb[0].mxu0
        %v669 = vadd.f32 0.0, %v668
        %v670 = vpop.f32.mrb[0].mxu0
        %671 = vmatprep.mubr.bf16.mxu0 0
        %672 = vmatmul.mubr.bf16.gmra.mrb[0].mxu0 %v455
        %v673 = vpop.f32.mrb[0].mxu0
        %v674 = vadd.f32 0.0, %v673
        %v675 = vpop.f32.mrb[0].mxu0
        %v676 = vpop.f32.mrb[0].mxu0
        %v677 = vadd.f32 0.0, %v676
        %v678 = vpop.f32.mrb[0].mxu0
        %679 = vmatprep.mubr.bf16.mxu0 0
        %680 = vmatmul.mubr.bf16.gmra.mrb[0].mxu0 %v458
        %v681 = vpop.f32.mrb[0].mxu0
        %v682 = vadd.f32 0.0, %v681
        %v683 = vpop.f32.mrb[0].mxu0
        %v684 = vpop.f32.mrb[0].mxu0
        %v685 = vadd.f32 0.0, %v684
        %v686 = vpop.f32.mrb[0].mxu0
        %687 = vmatprep.mubr.bf16.mxu0 0
        %688 = vmatmul.mubr.bf16.gmra.mrb[0].mxu0 %v461
        %v689 = vpop.f32.mrb[0].mxu0
        %v690 = vadd.f32 0.0, %v689
        %v691 = vpop.f32.mrb[0].mxu0
        %v692 = vpop.f32.mrb[0].mxu0
        %v693 = vadd.f32 0.0, %v692
        %v694 = vpop.f32.mrb[0].mxu0
        %695 = vmatprep.mubr.bf16.mxu0 0
        %696 = vmatmul.mubr.bf16.gmra.mrb[0].mxu0 %v464
        %v697 = vpop.f32.mrb[0].mxu0
        %v698 = vadd.f32 0.0, %v697
        %v699 = vpop.f32.mrb[0].mxu0
        %v700 = vpop.f32.mrb[0].mxu0
        %v701 = vadd.f32 0.0, %v700
        %v702 = vpop.f32.mrb[0].mxu0
        %703 = vmatprep.mubr.bf16.mxu0 0
        %704 = vmatmul.mubr.bf16.gmra.mrb[0].mxu0 %v467
        %v705 = vpop.f32.mrb[0].mxu0
        %v706 = vadd.f32 0.0, %v705
        %v707 = vpop.f32.mrb[0].mxu0
        %v708 = vpop.f32.mrb[0].mxu0
        %v709 = vadd.f32 0.0, %v708
        %v710 = vpop.f32.mrb[0].mxu0
        %711 = vmatprep.mubr.bf16.mxu0 0
        %712 = vmatmul.mubr.bf16.gmra.mrb[0].mxu0 %v470
        %v713 = vpop.f32.mrb[0].mxu0
        %v714 = vadd.f32 0.0, %v713
        %v715 = vpop.f32.mrb[0].mxu0
        %v716 = vpop.f32.mrb[0].mxu0
        %v717 = vadd.f32 0.0, %v716
        %v718 = vpop.f32.mrb[0].mxu0
        %719 = vmatprep.mubr.bf16.mxu0 0
        %720 = vmatmul.mubr.bf16.gmra.mrb[0].mxu0 %v473
        %v721 = vpop.f32.mrb[0].mxu0
        %v722 = vadd.f32 0.0, %v721
        %v723 = vpop.f32.mrb[0].mxu0
        %v724 = vpop.f32.mrb[0].mxu0
        %v725 = vadd.f32 0.0, %v724
        %v726 = vpop.f32.mrb[0].mxu0
        %727 = vmatprep.mubr.bf16.mxu0 0
        %728 = vmatmul.mubr.bf16.gmra.mrb[0].mxu0 %v476
        %v729 = vpop.f32.mrb[0].mxu0
        %v730 = vadd.f32 0.0, %v729
        %v731 = vpop.f32.mrb[0].mxu0
        %v732 = vpop.f32.mrb[0].mxu0
        %v733 = vadd.f32 0.0, %v732
        %v734 = vpop.f32.mrb[0].mxu0
        %735 = vmatprep.mubr.bf16.mxu0 0
        %736 = vmatmul.mubr.bf16.gmra.mrb[0].mxu0 %v479
        %v737 = vpop.f32.mrb[0].mxu0
        %v738 = vadd.f32 0.0, %v737
        %v739 = vpop.f32.mrb[0].mxu0
        %v740 = vpop.f32.mrb[0].mxu0
        %v741 = vadd.f32 0.0, %v740
        %v742 = vpop.f32.mrb[0].mxu0
        %743 = vmatprep.mubr.bf16.mxu0 0
        %744 = vmatmul.mubr.bf16.gmra.mrb[0].mxu0 %v482
        %v745 = vpop.f32.mrb[0].mxu0
        %v746 = vadd.f32 0.0, %v745
        %v747 = vpop.f32.mrb[0].mxu0
        %v748 = vpop.f32.mrb[0].mxu0
        %v749 = vadd.f32 0.0, %v748
        %v750 = vpop.f32.mrb[0].mxu0
        %751 = vmatprep.mubr.bf16.mxu0 0
        %752 = vmatmul.mubr.bf16.gmra.mrb[0].mxu0 %v485
        %v753 = vpop.f32.mrb[0].mxu0
        %v754 = vadd.f32 0.0, %v753
        %v755 = vpop.f32.mrb[0].mxu0
        %v756 = vpop.f32.mrb[0].mxu0
        %v757 = vadd.f32 0.0, %v756
        %v758 = vpop.f32.mrb[0].mxu0
        %759 = vmatprep.mubr.bf16.mxu0 0
        %760 = vmatmul.mubr.bf16.gmra.mrb[0].mxu0 %v488
        %v761 = vpop.f32.mrb[0].mxu0
        %v762 = vadd.f32 0.0, %v761
        %v763 = vpop.f32.mrb[0].mxu0
        %v764 = vpop.f32.mrb[0].mxu0
        %v765 = vadd.f32 0.0, %v764
        %v766 = vpop.f32.mrb[0].mxu0
        %767 = vmatprep.mubr.bf16.mxu0 0
        %768 = vmatmul.mubr.bf16.gmra.mrb[0].mxu0 %v491
        %v769 = vpop.f32.mrb[0].mxu0
        %v770 = vadd.f32 0.0, %v769
        %v771 = vpop.f32.mrb[0].mxu0
        %v772 = vpop.f32.mrb[0].mxu0
        %v773 = vadd.f32 0.0, %v772
        %v774 = vpop.f32.mrb[0].mxu0
        %775 = vmatprep.mubr.bf16.mxu0 0
        %776 = vmatmul.mubr.bf16.gmra.mrb[0].mxu0 %v494
        %v777 = vpop.f32.mrb[0].mxu0
        %v778 = vadd.f32 0.0, %v777
        %v779 = vpop.f32.mrb[0].mxu0
        %v780 = vpop.f32.mrb[0].mxu0
        %v781 = vadd.f32 0.0, %v780
        %v782 = vpop.f32.mrb[0].mxu0
        %783 = vmatprep.mubr.bf16.mxu0 0
        %784 = vmatmul.mubr.bf16.gmra.mrb[0].mxu0 %v497
        %v785 = vpop.f32.mrb[0].mxu0
        %v786 = vadd.f32 0.0, %v785
        %v787 = vpop.f32.mrb[0].mxu0
        %v788 = vpop.f32.mrb[0].mxu0
        %v789 = vadd.f32 0.0, %v788
        %v790 = vpop.f32.mrb[0].mxu0
        %791 = vdwg.mxu0
        %vm792 = vcmp.ge.f32.partialorder %v538, 0.0
        %vm793 = vcmp.ge.f32.partialorder %v541, 0.0
        %vm794 = vcmp.ge.f32.partialorder %v546, 0.0
        %vm795 = vcmp.ge.f32.partialorder %v549, 0.0
        %vm796 = vcmp.ge.f32.partialorder %v554, 0.0
        %vm797 = vcmp.ge.f32.partialorder %v557, 0.0
        %vm798 = vcmp.ge.f32.partialorder %v562, 0.0
        %vm799 = vcmp.ge.f32.partialorder %v565, 0.0
        %vm800 = vcmp.ge.f32.partialorder %v570, 0.0
        %vm801 = vcmp.ge.f32.partialorder %v573, 0.0
        %vm802 = vcmp.ge.f32.partialorder %v578, 0.0
        %vm803 = vcmp.ge.f32.partialorder %v581, 0.0
        %vm804 = vcmp.ge.f32.partialorder %v586, 0.0
        %vm805 = vcmp.ge.f32.partialorder %v589, 0.0
        %vm806 = vcmp.ge.f32.partialorder %v594, 0.0
        %vm807 = vcmp.ge.f32.partialorder %v597, 0.0
        %vm808 = vcmp.ge.f32.partialorder %v602, 0.0
        %vm809 = vcmp.ge.f32.partialorder %v605, 0.0
        %vm810 = vcmp.ge.f32.partialorder %v610, 0.0
        %vm811 = vcmp.ge.f32.partialorder %v613, 0.0
        %vm812 = vcmp.ge.f32.partialorder %v618, 0.0
        %vm813 = vcmp.ge.f32.partialorder %v621, 0.0
        %vm814 = vcmp.ge.f32.partialorder %v626, 0.0
        %vm815 = vcmp.ge.f32.partialorder %v629, 0.0
        %vm816 = vcmp.ge.f32.partialorder %v634, 0.0
        %vm817 = vcmp.ge.f32.partialorder %v637, 0.0
        %vm818 = vcmp.ge.f32.partialorder %v642, 0.0
        %vm819 = vcmp.ge.f32.partialorder %v645, 0.0
        %vm820 = vcmp.ge.f32.partialorder %v650, 0.0
        %vm821 = vcmp.ge.f32.partialorder %v653, 0.0
        %vm822 = vcmp.ge.f32.partialorder %v658, 0.0
        %vm823 = vcmp.ge.f32.partialorder %v661, 0.0
        %vm824 = vcmp.ge.f32.partialorder %v666, 0.0
        %vm825 = vcmp.ge.f32.partialorder %v669, 0.0
        %vm826 = vcmp.ge.f32.partialorder %v674, 0.0
        %vm827 = vcmp.ge.f32.partialorder %v677, 0.0
        %vm828 = vcmp.ge.f32.partialorder %v682, 0.0
        %vm829 = vcmp.ge.f32.partialorder %v685, 0.0
        %vm830 = vcmp.ge.f32.partialorder %v690, 0.0
        %vm831 = vcmp.ge.f32.partialorder %v693, 0.0
        %vm832 = vcmp.ge.f32.partialorder %v698, 0.0
        %vm833 = vcmp.ge.f32.partialorder %v701, 0.0
        %vm834 = vcmp.ge.f32.partialorder %v706, 0.0
        %vm835 = vcmp.ge.f32.partialorder %v709, 0.0
        %vm836 = vcmp.ge.f32.partialorder %v714, 0.0
        %vm837 = vcmp.ge.f32.partialorder %v717, 0.0
        %vm838 = vcmp.ge.f32.partialorder %v722, 0.0
        %vm839 = vcmp.ge.f32.partialorder %v725, 0.0
        %vm840 = vcmp.ge.f32.partialorder %v730, 0.0
        %vm841 = vcmp.ge.f32.partialorder %v733, 0.0
        %vm842 = vcmp.ge.f32.partialorder %v738, 0.0
        %vm843 = vcmp.ge.f32.partialorder %v741, 0.0
        %vm844 = vcmp.ge.f32.partialorder %v746, 0.0
        %vm845 = vcmp.ge.f32.partialorder %v749, 0.0
        %vm846 = vcmp.ge.f32.partialorder %v754, 0.0
        %vm847 = vcmp.ge.f32.partialorder %v757, 0.0
        %vm848 = vcmp.ge.f32.partialorder %v762, 0.0
        %vm849 = vcmp.ge.f32.partialorder %v765, 0.0
        %vm850 = vcmp.ge.f32.partialorder %v770, 0.0
        %vm851 = vcmp.ge.f32.partialorder %v773, 0.0
        %vm852 = vcmp.ge.f32.partialorder %v778, 0.0
        %vm853 = vcmp.ge.f32.partialorder %v781, 0.0
        %vm854 = vcmp.ge.f32.partialorder %v786, 0.0
        %vm855 = vcmp.ge.f32.partialorder %v789, 0.0
        %v856 = vmul.f32 %v538, 0.1
        %v857 = vmul.f32 %v541, 0.1
        %v858 = vmul.f32 %v546, 0.1
        %v859 = vmul.f32 %v549, 0.1
        %v860 = vmul.f32 %v554, 0.1
        %v861 = vmul.f32 %v557, 0.1
        %v862 = vmul.f32 %v562, 0.1
        %v863 = vmul.f32 %v565, 0.1
        %v864 = vmul.f32 %v570, 0.1
        %v865 = vmul.f32 %v573, 0.1
        %v866 = vmul.f32 %v578, 0.1
        %v867 = vmul.f32 %v581, 0.1
        %v868 = vmul.f32 %v586, 0.1
        %v869 = vmul.f32 %v589, 0.1
        %v870 = vmul.f32 %v594, 0.1
        %v871 = vmul.f32 %v597, 0.1
        %v872 = vmul.f32 %v602, 0.1
        %v873 = vmul.f32 %v605, 0.1
        %v874 = vmul.f32 %v610, 0.1
        %v875 = vmul.f32 %v613, 0.1
        %v876 = vmul.f32 %v618, 0.1
        %v877 = vmul.f32 %v621, 0.1
        %v878 = vmul.f32 %v626, 0.1
        %v879 = vmul.f32 %v629, 0.1
        %v880 = vmul.f32 %v634, 0.1
        %v881 = vmul.f32 %v637, 0.1
        %v882 = vmul.f32 %v642, 0.1
        %v883 = vmul.f32 %v645, 0.1
        %v884 = vmul.f32 %v650, 0.1
        %v885 = vmul.f32 %v653, 0.1
        %v886 = vmul.f32 %v658, 0.1
        %v887 = vmul.f32 %v661, 0.1
        %v888 = vmul.f32 %v666, 0.1
        %v889 = vmul.f32 %v669, 0.1
        %v890 = vmul.f32 %v674, 0.1
        %v891 = vmul.f32 %v677, 0.1
        %v892 = vmul.f32 %v682, 0.1
        %v893 = vmul.f32 %v685, 0.1
        %v894 = vmul.f32 %v690, 0.1
        %v895 = vmul.f32 %v693, 0.1
        %v896 = vmul.f32 %v698, 0.1
        %v897 = vmul.f32 %v701, 0.1
        %v898 = vmul.f32 %v706, 0.1
        %v899 = vmul.f32 %v709, 0.1
        %v900 = vmul.f32 %v714, 0.1
        %v901 = vmul.f32 %v717, 0.1
        %v902 = vmul.f32 %v722, 0.1
        %v903 = vmul.f32 %v725, 0.1
        %v904 = vmul.f32 %v730, 0.1
        %v905 = vmul.f32 %v733, 0.1
        %v906 = vmul.f32 %v738, 0.1
        %v907 = vmul.f32 %v741, 0.1
        %v908 = vmul.f32 %v746, 0.1
        %v909 = vmul.f32 %v749, 0.1
        %v910 = vmul.f32 %v754, 0.1
        %v911 = vmul.f32 %v757, 0.1
        %v912 = vmul.f32 %v762, 0.1
        %v913 = vmul.f32 %v765, 0.1
        %v914 = vmul.f32 %v770, 0.1
        %v915 = vmul.f32 %v773, 0.1
        %v916 = vmul.f32 %v778, 0.1
        %v917 = vmul.f32 %v781, 0.1
        %v918 = vmul.f32 %v786, 0.1
        %v919 = vmul.f32 %v789, 0.1
        %v920 = vsel %vm792, %v538, %v856
        %v921 = vsel %vm793, %v541, %v857
        %v922 = vsel %vm794, %v546, %v858
        %v923 = vsel %vm795, %v549, %v859
        %v924 = vsel %vm796, %v554, %v860
        %v925 = vsel %vm797, %v557, %v861
        %v926 = vsel %vm798, %v562, %v862
        %v927 = vsel %vm799, %v565, %v863
        %v928 = vsel %vm800, %v570, %v864
        %v929 = vsel %vm801, %v573, %v865
        %v930 = vsel %vm802, %v578, %v866
        %v931 = vsel %vm803, %v581, %v867
        %v932 = vsel %vm804, %v586, %v868
        %v933 = vsel %vm805, %v589, %v869
        %v934 = vsel %vm806, %v594, %v870
        %v935 = vsel %vm807, %v597, %v871
        %v936 = vsel %vm808, %v602, %v872
        %v937 = vsel %vm809, %v605, %v873
        %v938 = vsel %vm810, %v610, %v874
        %v939 = vsel %vm811, %v613, %v875
        %v940 = vsel %vm812, %v618, %v876
        %v941 = vsel %vm813, %v621, %v877
        %v942 = vsel %vm814, %v626, %v878
        %v943 = vsel %vm815, %v629, %v879
        %v944 = vsel %vm816, %v634, %v880
        %v945 = vsel %vm817, %v637, %v881
        %v946 = vsel %vm818, %v642, %v882
        %v947 = vsel %vm819, %v645, %v883
        %v948 = vsel %vm820, %v650, %v884
        %v949 = vsel %vm821, %v653, %v885
        %v950 = vsel %vm822, %v658, %v886
        %v951 = vsel %vm823, %v661, %v887
        %v952 = vsel %vm824, %v666, %v888
        %v953 = vsel %vm825, %v669, %v889
        %v954 = vsel %vm826, %v674, %v890
        %v955 = vsel %vm827, %v677, %v891
        %v956 = vsel %vm828, %v682, %v892
        %v957 = vsel %vm829, %v685, %v893
        %v958 = vsel %vm830, %v690, %v894
        %v959 = vsel %vm831, %v693, %v895
        %v960 = vsel %vm832, %v698, %v896
        %v961 = vsel %vm833, %v701, %v897
        %v962 = vsel %vm834, %v706, %v898
        %v963 = vsel %vm835, %v709, %v899
        %v964 = vsel %vm836, %v714, %v900
        %v965 = vsel %vm837, %v717, %v901
        %v966 = vsel %vm838, %v722, %v902
        %v967 = vsel %vm839, %v725, %v903
        %v968 = vsel %vm840, %v730, %v904
        %v969 = vsel %vm841, %v733, %v905
        %v970 = vsel %vm842, %v738, %v906
        %v971 = vsel %vm843, %v741, %v907
        %v972 = vsel %vm844, %v746, %v908
        %v973 = vsel %vm845, %v749, %v909
        %v974 = vsel %vm846, %v754, %v910
        %v975 = vsel %vm847, %v757, %v911
        %v976 = vsel %vm848, %v762, %v912
        %v977 = vsel %vm849, %v765, %v913
        %v978 = vsel %vm850, %v770, %v914
        %v979 = vsel %vm851, %v773, %v915
        %v980 = vsel %vm852, %v778, %v916
        %v981 = vsel %vm853, %v781, %v917
        %v982 = vsel %vm854, %v786, %v918
        %v983 = vsel %vm855, %v789, %v919
        %v984 = vpack.c.bf16 %v921, %v920
        %v985 = vpack.c.bf16 %v923, %v922
        %v986 = vpack.c.bf16 %v925, %v924
        %v987 = vpack.c.bf16 %v927, %v926
        %v988 = vpack.c.bf16 %v929, %v928
        %v989 = vpack.c.bf16 %v931, %v930
        %v990 = vpack.c.bf16 %v933, %v932
        %v991 = vpack.c.bf16 %v935, %v934
        %v992 = vpack.c.bf16 %v937, %v936
        %v993 = vpack.c.bf16 %v939, %v938
        %v994 = vpack.c.bf16 %v941, %v940
        %v995 = vpack.c.bf16 %v943, %v942
        %v996 = vpack.c.bf16 %v945, %v944
        %v997 = vpack.c.bf16 %v947, %v946
        %v998 = vpack.c.bf16 %v949, %v948
        %v999 = vpack.c.bf16 %v951, %v950
        %v1000 = vpack.c.bf16 %v953, %v952
        %v1001 = vpack.c.bf16 %v955, %v954
        %v1002 = vpack.c.bf16 %v957, %v956
        %v1003 = vpack.c.bf16 %v959, %v958
        %v1004 = vpack.c.bf16 %v961, %v960
        %v1005 = vpack.c.bf16 %v963, %v962
        %v1006 = vpack.c.bf16 %v965, %v964
        %v1007 = vpack.c.bf16 %v967, %v966
        %v1008 = vpack.c.bf16 %v969, %v968
        %v1009 = vpack.c.bf16 %v971, %v970
        %v1010 = vpack.c.bf16 %v973, %v972
        %v1011 = vpack.c.bf16 %v975, %v974
        %v1012 = vpack.c.bf16 %v977, %v976
        %v1013 = vpack.c.bf16 %v979, %v978
        %v1014 = vpack.c.bf16 %v981, %v980
        %v1015 = vpack.c.bf16 %v983, %v982
        %v1048 = vunpack.c.l.b16 %v984
        %v1049 = vunpack.c.h.b16 %v984
        %v1050 = vunpack.c.l.b16 %v985
        %v1051 = vunpack.c.h.b16 %v985
        %v1052 = vunpack.c.l.b16 %v986
        %v1053 = vunpack.c.h.b16 %v986
        %v1054 = vunpack.c.l.b16 %v987
        %v1055 = vunpack.c.h.b16 %v987
        %v1056 = vunpack.c.l.b16 %v988
        %v1057 = vunpack.c.h.b16 %v988
        %v1058 = vunpack.c.l.b16 %v989
        %v1059 = vunpack.c.h.b16 %v989
        %v1060 = vunpack.c.l.b16 %v990
        %v1061 = vunpack.c.h.b16 %v990
        %v1062 = vunpack.c.l.b16 %v991
        %v1063 = vunpack.c.h.b16 %v991
        %v1064 = vunpack.c.l.b16 %v992
        %v1065 = vunpack.c.h.b16 %v992
        %v1066 = vunpack.c.l.b16 %v993
        %v1067 = vunpack.c.h.b16 %v993
        %v1068 = vunpack.c.l.b16 %v994
        %v1069 = vunpack.c.h.b16 %v994
        %v1070 = vunpack.c.l.b16 %v995
        %v1071 = vunpack.c.h.b16 %v995
        %v1072 = vunpack.c.l.b16 %v996
        %v1073 = vunpack.c.h.b16 %v996
        %v1074 = vunpack.c.l.b16 %v997
        %v1075 = vunpack.c.h.b16 %v997
        %v1076 = vunpack.c.l.b16 %v998
        %v1077 = vunpack.c.h.b16 %v998
        %v1078 = vunpack.c.l.b16 %v999
        %v1079 = vunpack.c.h.b16 %v999
        %v1080 = vunpack.c.l.b16 %v1000
        %v1081 = vunpack.c.h.b16 %v1000
        %v1082 = vunpack.c.l.b16 %v1001
        %v1083 = vunpack.c.h.b16 %v1001
        %v1084 = vunpack.c.l.b16 %v1002
        %v1085 = vunpack.c.h.b16 %v1002
        %v1086 = vunpack.c.l.b16 %v1003
        %v1087 = vunpack.c.h.b16 %v1003
        %v1088 = vunpack.c.l.b16 %v1004
        %v1089 = vunpack.c.h.b16 %v1004
        %v1090 = vunpack.c.l.b16 %v1005
        %v1091 = vunpack.c.h.b16 %v1005
        %v1092 = vunpack.c.l.b16 %v1006
        %v1093 = vunpack.c.h.b16 %v1006
        %v1094 = vunpack.c.l.b16 %v1007
        %v1095 = vunpack.c.h.b16 %v1007
        %v1096 = vunpack.c.l.b16 %v1008
        %v1097 = vunpack.c.h.b16 %v1008
        %v1098 = vunpack.c.l.b16 %v1009
        %v1099 = vunpack.c.h.b16 %v1009
        %v1100 = vunpack.c.l.b16 %v1010
        %v1101 = vunpack.c.h.b16 %v1010
        %v1102 = vunpack.c.l.b16 %v1011
        %v1103 = vunpack.c.h.b16 %v1011
        %v1104 = vunpack.c.l.b16 %v1012
        %v1105 = vunpack.c.h.b16 %v1012
        %v1106 = vunpack.c.l.b16 %v1013
        %v1107 = vunpack.c.h.b16 %v1013
        %v1108 = vunpack.c.l.b16 %v1014
        %v1109 = vunpack.c.h.b16 %v1014
        %v1110 = vunpack.c.l.b16 %v1015
        %v1111 = vunpack.c.h.b16 %v1015
        %v1112 = vpack.c.b16 %v1048, %v1048
        %v1113 = vpack.c.b16 %v1049, %v1049
        %v1114 = vpack.c.b16 %v1050, %v1050
        %v1115 = vpack.c.b16 %v1051, %v1051
        %v1116 = vpack.c.b16 %v1052, %v1052
        %v1117 = vpack.c.b16 %v1053, %v1053
        %v1118 = vpack.c.b16 %v1054, %v1054
        %v1119 = vpack.c.b16 %v1055, %v1055
        %v1120 = vpack.c.b16 %v1056, %v1056
        %v1121 = vpack.c.b16 %v1057, %v1057
        %v1122 = vpack.c.b16 %v1058, %v1058
        %v1123 = vpack.c.b16 %v1059, %v1059
        %v1124 = vpack.c.b16 %v1060, %v1060
        %v1125 = vpack.c.b16 %v1061, %v1061
        %v1126 = vpack.c.b16 %v1062, %v1062
        %v1127 = vpack.c.b16 %v1063, %v1063
        %v1128 = vpack.c.b16 %v1064, %v1064
        %v1129 = vpack.c.b16 %v1065, %v1065
        %v1130 = vpack.c.b16 %v1066, %v1066
        %v1131 = vpack.c.b16 %v1067, %v1067
        %v1132 = vpack.c.b16 %v1068, %v1068
        %v1133 = vpack.c.b16 %v1069, %v1069
        %v1134 = vpack.c.b16 %v1070, %v1070
        %v1135 = vpack.c.b16 %v1071, %v1071
        %v1136 = vpack.c.b16 %v1072, %v1072
        %v1137 = vpack.c.b16 %v1073, %v1073
        %v1138 = vpack.c.b16 %v1074, %v1074
        %v1139 = vpack.c.b16 %v1075, %v1075
        %v1140 = vpack.c.b16 %v1076, %v1076
        %v1141 = vpack.c.b16 %v1077, %v1077
        %v1142 = vpack.c.b16 %v1078, %v1078
        %v1143 = vpack.c.b16 %v1079, %v1079
        %v1144 = vpack.c.b16 %v1080, %v1080
        %v1145 = vpack.c.b16 %v1081, %v1081
        %v1146 = vpack.c.b16 %v1082, %v1082
        %v1147 = vpack.c.b16 %v1083, %v1083
        %v1148 = vpack.c.b16 %v1084, %v1084
        %v1149 = vpack.c.b16 %v1085, %v1085
        %v1150 = vpack.c.b16 %v1086, %v1086
        %v1151 = vpack.c.b16 %v1087, %v1087
        %v1152 = vpack.c.b16 %v1088, %v1088
        %v1153 = vpack.c.b16 %v1089, %v1089
        %v1154 = vpack.c.b16 %v1090, %v1090
        %v1155 = vpack.c.b16 %v1091, %v1091
        %v1156 = vpack.c.b16 %v1092, %v1092
        %v1157 = vpack.c.b16 %v1093, %v1093
        %v1158 = vpack.c.b16 %v1094, %v1094
        %v1159 = vpack.c.b16 %v1095, %v1095
        %v1160 = vpack.c.b16 %v1096, %v1096
        %v1161 = vpack.c.b16 %v1097, %v1097
        %v1162 = vpack.c.b16 %v1098, %v1098
        %v1163 = vpack.c.b16 %v1099, %v1099
        %v1164 = vpack.c.b16 %v1100, %v1100
        %v1165 = vpack.c.b16 %v1101, %v1101
        %v1166 = vpack.c.b16 %v1102, %v1102
        %v1167 = vpack.c.b16 %v1103, %v1103
        %v1168 = vpack.c.b16 %v1104, %v1104
        %v1169 = vpack.c.b16 %v1105, %v1105
        %v1170 = vpack.c.b16 %v1106, %v1106
        %v1171 = vpack.c.b16 %v1107, %v1107
        %v1172 = vpack.c.b16 %v1108, %v1108
        %v1173 = vpack.c.b16 %v1109, %v1109
        %v1174 = vpack.c.b16 %v1110, %v1110
        %v1175 = vpack.c.b16 %v1111, %v1111
        %vm1240 = vcmask 60416
        %1241 = vst.msk [vmem:[%s145] sm:$0xf] %vm1240, %v1112
        %1242 = vst.msk [vmem:[%s145 + $0x4] sm:$0xf] %vm1240, %v1113
        %1243 = vst.msk [vmem:[%s145 + $0x8] sm:$0xf] %vm1240, %v1114
        %1244 = vst.msk [vmem:[%s145 + $0xc] sm:$0xf] %vm1240, %v1115
        %1245 = vst.msk [vmem:[%s145 + $0x10] sm:$0xf] %vm1240, %v1116
        %1246 = vst.msk [vmem:[%s145 + $0x14] sm:$0xf] %vm1240, %v1117
        %1247 = vst.msk [vmem:[%s145 + $0x18] sm:$0xf] %vm1240, %v1118
        %1248 = vst.msk [vmem:[%s145 + $0x1c] sm:$0xf] %vm1240, %v1119
        %1249 = vst.msk [vmem:[%s145 + $0x20] sm:$0xf] %vm1240, %v1120
        %1250 = vst.msk [vmem:[%s145 + $0x24] sm:$0xf] %vm1240, %v1121
        %1251 = vst.msk [vmem:[%s145 + $0x28] sm:$0xf] %vm1240, %v1122
        %1252 = vst.msk [vmem:[%s145 + $0x2c] sm:$0xf] %vm1240, %v1123
        %1253 = vst.msk [vmem:[%s145 + $0x30] sm:$0xf] %vm1240, %v1124
        %1254 = vst.msk [vmem:[%s145 + $0x34] sm:$0xf] %vm1240, %v1125
        %1255 = vst.msk [vmem:[%s145 + $0x38] sm:$0xf] %vm1240, %v1126
        %1256 = vst.msk [vmem:[%s145 + $0x3c] sm:$0xf] %vm1240, %v1127
        %1257 = vst.msk [vmem:[%s145 + $0x40] sm:$0xf] %vm1240, %v1128
        %1258 = vst.msk [vmem:[%s145 + $0x44] sm:$0xf] %vm1240, %v1129
        %1259 = vst.msk [vmem:[%s145 + $0x48] sm:$0xf] %vm1240, %v1130
        %1260 = vst.msk [vmem:[%s145 + $0x4c] sm:$0xf] %vm1240, %v1131
        %1261 = vst.msk [vmem:[%s145 + $0x50] sm:$0xf] %vm1240, %v1132
        %1262 = vst.msk [vmem:[%s145 + $0x54] sm:$0xf] %vm1240, %v1133
        %1263 = vst.msk [vmem:[%s145 + $0x58] sm:$0xf] %vm1240, %v1134
        %1264 = vst.msk [vmem:[%s145 + $0x5c] sm:$0xf] %vm1240, %v1135
        %1265 = vst.msk [vmem:[%s145 + $0x60] sm:$0xf] %vm1240, %v1136
        %1266 = vst.msk [vmem:[%s145 + $0x64] sm:$0xf] %vm1240, %v1137
        %1267 = vst.msk [vmem:[%s145 + $0x68] sm:$0xf] %vm1240, %v1138
        %1268 = vst.msk [vmem:[%s145 + $0x6c] sm:$0xf] %vm1240, %v1139
        %1269 = vst.msk [vmem:[%s145 + $0x70] sm:$0xf] %vm1240, %v1140
        %1270 = vst.msk [vmem:[%s145 + $0x74] sm:$0xf] %vm1240, %v1141
        %1271 = vst.msk [vmem:[%s145 + $0x78] sm:$0xf] %vm1240, %v1142
        %1272 = vst.msk [vmem:[%s145 + $0x7c] sm:$0xf] %vm1240, %v1143
        %1273 = vst.msk [vmem:[%s145 + $0x80] sm:$0xf] %vm1240, %v1144
        %1274 = vst.msk [vmem:[%s145 + $0x84] sm:$0xf] %vm1240, %v1145
        %1275 = vst.msk [vmem:[%s145 + $0x88] sm:$0xf] %vm1240, %v1146
        %1276 = vst.msk [vmem:[%s145 + $0x8c] sm:$0xf] %vm1240, %v1147
        %1277 = vst.msk [vmem:[%s145 + $0x90] sm:$0xf] %vm1240, %v1148
        %1278 = vst.msk [vmem:[%s145 + $0x94] sm:$0xf] %vm1240, %v1149
        %1279 = vst.msk [vmem:[%s145 + $0x98] sm:$0xf] %vm1240, %v1150
        %1280 = vst.msk [vmem:[%s145 + $0x9c] sm:$0xf] %vm1240, %v1151
        %1281 = vst.msk [vmem:[%s145 + $0xa0] sm:$0xf] %vm1240, %v1152
        %1282 = vst.msk [vmem:[%s145 + $0xa4] sm:$0xf] %vm1240, %v1153
        %1283 = vst.msk [vmem:[%s145 + $0xa8] sm:$0xf] %vm1240, %v1154
        %1284 = vst.msk [vmem:[%s145 + $0xac] sm:$0xf] %vm1240, %v1155
        %1285 = vst.msk [vmem:[%s145 + $0xb0] sm:$0xf] %vm1240, %v1156
        %1286 = vst.msk [vmem:[%s145 + $0xb4] sm:$0xf] %vm1240, %v1157
        %1287 = vst.msk [vmem:[%s145 + $0xb8] sm:$0xf] %vm1240, %v1158
        %1288 = vst.msk [vmem:[%s145 + $0xbc] sm:$0xf] %vm1240, %v1159
        %1289 = vst.msk [vmem:[%s145 + $0xc0] sm:$0xf] %vm1240, %v1160
        %1290 = vst.msk [vmem:[%s145 + $0xc4] sm:$0xf] %vm1240, %v1161
        %1291 = vst.msk [vmem:[%s145 + $0xc8] sm:$0xf] %vm1240, %v1162
        %1292 = vst.msk [vmem:[%s145 + $0xcc] sm:$0xf] %vm1240, %v1163
        %1293 = vst.msk [vmem:[%s145 + $0xd0] sm:$0xf] %vm1240, %v1164
        %1294 = vst.msk [vmem:[%s145 + $0xd4] sm:$0xf] %vm1240, %v1165
        %1295 = vst.msk [vmem:[%s145 + $0xd8] sm:$0xf] %vm1240, %v1166
        %1296 = vst.msk [vmem:[%s145 + $0xdc] sm:$0xf] %vm1240, %v1167
        %1297 = vst.msk [vmem:[%s145 + $0xe0] sm:$0xf] %vm1240, %v1168
        %1298 = vst.msk [vmem:[%s145 + $0xe4] sm:$0xf] %vm1240, %v1169
        %1299 = vst.msk [vmem:[%s145 + $0xe8] sm:$0xf] %vm1240, %v1170
        %1300 = vst.msk [vmem:[%s145 + $0xec] sm:$0xf] %vm1240, %v1171
        %1301 = vst.msk [vmem:[%s145 + $0xf0] sm:$0xf] %vm1240, %v1172
        %1302 = vst.msk [vmem:[%s145 + $0xf4] sm:$0xf] %vm1240, %v1173
        %1303 = vst.msk [vmem:[%s145 + $0xf8] sm:$0xf] %vm1240, %v1174
        %1304 = vst.msk [vmem:[%s145 + $0xfc] sm:$0xf] %vm1240, %v1175
        %s1305 = sand.u32 %s68, 1
        %s1306 = sand.u32 %s68, 1
        %s1307 = smul.addr %s1306, 256
        %s1308 = scalar_lea.vmem [#allocation2], %s1307
        // Predicated region
        $region29: #{distg_block_forward.10} parent=27 // pred_check
          %p1309 = pneg %p78
        $region30: #{distg_block_forward.10} parent=27 // pred_check_branch
          %1311 = sbr.rel (%p1309) target = $region32
        $region31: #{distg_block_forward.10} parent=27 // pred_region
          %s1312 = smul.u32 64, %s13
          %s1313 = ssub.s32 400, %s1312
          %p1314 = scmp.lt.s32.totalorder %s1313, 64
          %s1315 = scalar_select %p1314, %s1313, 64
          %s1316 = smul.u32 64, %s1315
          %p1317 = scmp.ne.s32.totalorder 0, %s1316
          %s1318 = smul.addr %s1312, 4
          %s1319 = scalar_lea.vmem %s2, %s1318
          // Predicated region
          $region33: #{distg_block_forward.10} parent=31 // pred_check
            %p1320 = pneg %p1317
          $region34: #{distg_block_forward.10} parent=31 // pred_check_branch
            %1322 = sbr.rel (%p1320) target = $region36
          $region35: #{distg_block_forward.10} parent=31 // pred_region
            // Predicated region
            $region37: #{distg_block_forward.10} parent=35 // pred_check
              _
            $region38: #{distg_block_forward.10} parent=35 // pred_check_branch
              %1324 = sbr.rel target = $region40
            $region39: #{distg_block_forward.10} parent=35 // pred_region
              // Predicated region
              $region59: #{distg_block_forward.10} parent=39 // pred_check
                _
              $region60: #{distg_block_forward.10} parent=39 // pred_check_branch
                %1499 = sbr.rel (0) target = $region62
              $region61: #{distg_block_forward.10} parent=39 // pred_region
                %s1501 = sshrl.u32 %s1315, 6
                // While loop
                $region63: #{distg_block_forward.10} parent=61 // loop_pre_header
                  _
                $region64: #{distg_block_forward.10} parent=61 // loop_header
                  %s1503 = sphi 0, %s1505
                  %p1504 = scmp.ge.s32.totalorder %s1503, %s1501
                  %s1508 = sphi 0, %s1641
                  %s1509 = sphi %s1308, %s1644
                  %s1510 = sphi %s1319, %s1645
                $region65: #{distg_block_forward.10} parent=61 // loop_header_branch
                  %1507 = sbr.rel (%p1504) target = $region69
                $region66: #{distg_block_forward.10} parent=61 // loop_body
                  %v1511 = vld [vmem:[%s1509] sm:$0xf]
                  %1512 = vst [vmem:[%s1510] sm:$0xf] %v1511
                  %v1513 = vld [vmem:[%s1509 + $0x4] sm:$0xf]
                  %1514 = vst [vmem:[%s1510 + $0x4] sm:$0xf] %v1513
                  %v1515 = vld [vmem:[%s1509 + $0x8] sm:$0xf]
                  %1516 = vst [vmem:[%s1510 + $0x8] sm:$0xf] %v1515
                  %v1517 = vld [vmem:[%s1509 + $0xc] sm:$0xf]
                  %1518 = vst [vmem:[%s1510 + $0xc] sm:$0xf] %v1517
                  %v1519 = vld [vmem:[%s1509 + $0x10] sm:$0xf]
                  %1520 = vst [vmem:[%s1510 + $0x10] sm:$0xf] %v1519
                  %v1521 = vld [vmem:[%s1509 + $0x14] sm:$0xf]
                  %1522 = vst [vmem:[%s1510 + $0x14] sm:$0xf] %v1521
                  %v1523 = vld [vmem:[%s1509 + $0x18] sm:$0xf]
                  %1524 = vst [vmem:[%s1510 + $0x18] sm:$0xf] %v1523
                  %v1525 = vld [vmem:[%s1509 + $0x1c] sm:$0xf]
                  %1526 = vst [vmem:[%s1510 + $0x1c] sm:$0xf] %v1525
                  %v1527 = vld [vmem:[%s1509 + $0x20] sm:$0xf]
                  %1528 = vst [vmem:[%s1510 + $0x20] sm:$0xf] %v1527
                  %v1529 = vld [vmem:[%s1509 + $0x24] sm:$0xf]
                  %1530 = vst [vmem:[%s1510 + $0x24] sm:$0xf] %v1529
                  %v1531 = vld [vmem:[%s1509 + $0x28] sm:$0xf]
                  %1532 = vst [vmem:[%s1510 + $0x28] sm:$0xf] %v1531
                  %v1533 = vld [vmem:[%s1509 + $0x2c] sm:$0xf]
                  %1534 = vst [vmem:[%s1510 + $0x2c] sm:$0xf] %v1533
                  %v1535 = vld [vmem:[%s1509 + $0x30] sm:$0xf]
                  %1536 = vst [vmem:[%s1510 + $0x30] sm:$0xf] %v1535
                  %v1537 = vld [vmem:[%s1509 + $0x34] sm:$0xf]
                  %1538 = vst [vmem:[%s1510 + $0x34] sm:$0xf] %v1537
                  %v1539 = vld [vmem:[%s1509 + $0x38] sm:$0xf]
                  %1540 = vst [vmem:[%s1510 + $0x38] sm:$0xf] %v1539
                  %v1541 = vld [vmem:[%s1509 + $0x3c] sm:$0xf]
                  %1542 = vst [vmem:[%s1510 + $0x3c] sm:$0xf] %v1541
                  %v1543 = vld [vmem:[%s1509 + $0x40] sm:$0xf]
                  %1544 = vst [vmem:[%s1510 + $0x40] sm:$0xf] %v1543
                  %v1545 = vld [vmem:[%s1509 + $0x44] sm:$0xf]
                  %1546 = vst [vmem:[%s1510 + $0x44] sm:$0xf] %v1545
                  %v1547 = vld [vmem:[%s1509 + $0x48] sm:$0xf]
                  %1548 = vst [vmem:[%s1510 + $0x48] sm:$0xf] %v1547
                  %v1549 = vld [vmem:[%s1509 + $0x4c] sm:$0xf]
                  %1550 = vst [vmem:[%s1510 + $0x4c] sm:$0xf] %v1549
                  %v1551 = vld [vmem:[%s1509 + $0x50] sm:$0xf]
                  %1552 = vst [vmem:[%s1510 + $0x50] sm:$0xf] %v1551
                  %v1553 = vld [vmem:[%s1509 + $0x54] sm:$0xf]
                  %1554 = vst [vmem:[%s1510 + $0x54] sm:$0xf] %v1553
                  %v1555 = vld [vmem:[%s1509 + $0x58] sm:$0xf]
                  %1556 = vst [vmem:[%s1510 + $0x58] sm:$0xf] %v1555
                  %v1557 = vld [vmem:[%s1509 + $0x5c] sm:$0xf]
                  %1558 = vst [vmem:[%s1510 + $0x5c] sm:$0xf] %v1557
                  %v1559 = vld [vmem:[%s1509 + $0x60] sm:$0xf]
                  %1560 = vst [vmem:[%s1510 + $0x60] sm:$0xf] %v1559
                  %v1561 = vld [vmem:[%s1509 + $0x64] sm:$0xf]
                  %1562 = vst [vmem:[%s1510 + $0x64] sm:$0xf] %v1561
                  %v1563 = vld [vmem:[%s1509 + $0x68] sm:$0xf]
                  %1564 = vst [vmem:[%s1510 + $0x68] sm:$0xf] %v1563
                  %v1565 = vld [vmem:[%s1509 + $0x6c] sm:$0xf]
                  %1566 = vst [vmem:[%s1510 + $0x6c] sm:$0xf] %v1565
                  %v1567 = vld [vmem:[%s1509 + $0x70] sm:$0xf]
                  %1568 = vst [vmem:[%s1510 + $0x70] sm:$0xf] %v1567
                  %v1569 = vld [vmem:[%s1509 + $0x74] sm:$0xf]
                  %1570 = vst [vmem:[%s1510 + $0x74] sm:$0xf] %v1569
                  %v1571 = vld [vmem:[%s1509 + $0x78] sm:$0xf]
                  %1572 = vst [vmem:[%s1510 + $0x78] sm:$0xf] %v1571
                  %v1573 = vld [vmem:[%s1509 + $0x7c] sm:$0xf]
                  %1574 = vst [vmem:[%s1510 + $0x7c] sm:$0xf] %v1573
                  %v1575 = vld [vmem:[%s1509 + $0x80] sm:$0xf]
                  %1576 = vst [vmem:[%s1510 + $0x80] sm:$0xf] %v1575
                  %v1577 = vld [vmem:[%s1509 + $0x84] sm:$0xf]
                  %1578 = vst [vmem:[%s1510 + $0x84] sm:$0xf] %v1577
                  %v1579 = vld [vmem:[%s1509 + $0x88] sm:$0xf]
                  %1580 = vst [vmem:[%s1510 + $0x88] sm:$0xf] %v1579
                  %v1581 = vld [vmem:[%s1509 + $0x8c] sm:$0xf]
                  %1582 = vst [vmem:[%s1510 + $0x8c] sm:$0xf] %v1581
                  %v1583 = vld [vmem:[%s1509 + $0x90] sm:$0xf]
                  %1584 = vst [vmem:[%s1510 + $0x90] sm:$0xf] %v1583
                  %v1585 = vld [vmem:[%s1509 + $0x94] sm:$0xf]
                  %1586 = vst [vmem:[%s1510 + $0x94] sm:$0xf] %v1585
                  %v1587 = vld [vmem:[%s1509 + $0x98] sm:$0xf]
                  %1588 = vst [vmem:[%s1510 + $0x98] sm:$0xf] %v1587
                  %v1589 = vld [vmem:[%s1509 + $0x9c] sm:$0xf]
                  %1590 = vst [vmem:[%s1510 + $0x9c] sm:$0xf] %v1589
                  %v1591 = vld [vmem:[%s1509 + $0xa0] sm:$0xf]
                  %1592 = vst [vmem:[%s1510 + $0xa0] sm:$0xf] %v1591
                  %v1593 = vld [vmem:[%s1509 + $0xa4] sm:$0xf]
                  %1594 = vst [vmem:[%s1510 + $0xa4] sm:$0xf] %v1593
                  %v1595 = vld [vmem:[%s1509 + $0xa8] sm:$0xf]
                  %1596 = vst [vmem:[%s1510 + $0xa8] sm:$0xf] %v1595
                  %v1597 = vld [vmem:[%s1509 + $0xac] sm:$0xf]
                  %1598 = vst [vmem:[%s1510 + $0xac] sm:$0xf] %v1597
                  %v1599 = vld [vmem:[%s1509 + $0xb0] sm:$0xf]
                  %1600 = vst [vmem:[%s1510 + $0xb0] sm:$0xf] %v1599
                  %v1601 = vld [vmem:[%s1509 + $0xb4] sm:$0xf]
                  %1602 = vst [vmem:[%s1510 + $0xb4] sm:$0xf] %v1601
                  %v1603 = vld [vmem:[%s1509 + $0xb8] sm:$0xf]
                  %1604 = vst [vmem:[%s1510 + $0xb8] sm:$0xf] %v1603
                  %v1605 = vld [vmem:[%s1509 + $0xbc] sm:$0xf]
                  %1606 = vst [vmem:[%s1510 + $0xbc] sm:$0xf] %v1605
                  %v1607 = vld [vmem:[%s1509 + $0xc0] sm:$0xf]
                  %1608 = vst [vmem:[%s1510 + $0xc0] sm:$0xf] %v1607
                  %v1609 = vld [vmem:[%s1509 + $0xc4] sm:$0xf]
                  %1610 = vst [vmem:[%s1510 + $0xc4] sm:$0xf] %v1609
                  %v1611 = vld [vmem:[%s1509 + $0xc8] sm:$0xf]
                  %1612 = vst [vmem:[%s1510 + $0xc8] sm:$0xf] %v1611
                  %v1613 = vld [vmem:[%s1509 + $0xcc] sm:$0xf]
                  %1614 = vst [vmem:[%s1510 + $0xcc] sm:$0xf] %v1613
                  %v1615 = vld [vmem:[%s1509 + $0xd0] sm:$0xf]
                  %1616 = vst [vmem:[%s1510 + $0xd0] sm:$0xf] %v1615
                  %v1617 = vld [vmem:[%s1509 + $0xd4] sm:$0xf]
                  %1618 = vst [vmem:[%s1510 + $0xd4] sm:$0xf] %v1617
                  %v1619 = vld [vmem:[%s1509 + $0xd8] sm:$0xf]
                  %1620 = vst [vmem:[%s1510 + $0xd8] sm:$0xf] %v1619
                  %v1621 = vld [vmem:[%s1509 + $0xdc] sm:$0xf]
                  %1622 = vst [vmem:[%s1510 + $0xdc] sm:$0xf] %v1621
                  %v1623 = vld [vmem:[%s1509 + $0xe0] sm:$0xf]
                  %1624 = vst [vmem:[%s1510 + $0xe0] sm:$0xf] %v1623
                  %v1625 = vld [vmem:[%s1509 + $0xe4] sm:$0xf]
                  %1626 = vst [vmem:[%s1510 + $0xe4] sm:$0xf] %v1625
                  %v1627 = vld [vmem:[%s1509 + $0xe8] sm:$0xf]
                  %1628 = vst [vmem:[%s1510 + $0xe8] sm:$0xf] %v1627
                  %v1629 = vld [vmem:[%s1509 + $0xec] sm:$0xf]
                  %1630 = vst [vmem:[%s1510 + $0xec] sm:$0xf] %v1629
                  %v1631 = vld [vmem:[%s1509 + $0xf0] sm:$0xf]
                  %1632 = vst [vmem:[%s1510 + $0xf0] sm:$0xf] %v1631
                  %v1633 = vld [vmem:[%s1509 + $0xf4] sm:$0xf]
                  %1634 = vst [vmem:[%s1510 + $0xf4] sm:$0xf] %v1633
                  %v1635 = vld [vmem:[%s1509 + $0xf8] sm:$0xf]
                  %1636 = vst [vmem:[%s1510 + $0xf8] sm:$0xf] %v1635
                  %v1637 = vld [vmem:[%s1509 + $0xfc] sm:$0xf]
                  %1638 = vst [vmem:[%s1510 + $0xfc] sm:$0xf] %v1637
                  %s1639 = sadd.s32 1, %s1508
                  %p1640 = scmp.ge.s32.totalorder %s1639, %s1501
                  %s1641 = scalar_select %p1640, 0, %s1639
                  %s1642 = smul.u32 %s1641, 256
                  %s1643 = smul.u32 %s1641, 256
                  %s1644 = scalar_lea.vmem %s1308, %s1642 [#allocation2]
                  %s1645 = scalar_lea.vmem %s1319, %s1643
                $region67: #{distg_block_forward.10} parent=61 // loop_footer
                  %s1505 = sadd.s32 %s1503, 1
                $region68: #{distg_block_forward.10} parent=61 // loop_footer_branch
                  %1502 = sbr.rel target = $region64
                $region69: #{distg_block_forward.10} parent=61 // loop_exit
                  _
                %s1646 = sshrl.u32 %s1315, 6
                %s1647 = sand.u32 %s1315, 63
                %s1648 = smul.u32 %s1646, 64
                %s1649 = smul.u32 4, %s1648
                %s1650 = scalar_lea.vmem %s1308, %s1649 [#allocation2]
                %s1651 = smul.u32 4, %s1648
                %s1652 = scalar_lea.vmem %s1319, %s1651
                // While loop
                $region70: #{distg_block_forward.10} parent=61 // loop_pre_header
                  _
                $region71: #{distg_block_forward.10} parent=61 // loop_header
                  %s1654 = sphi 0, %s1656
                  %p1655 = scmp.ge.s32.totalorder %s1654, %s1647
                  %s1659 = sphi 0, %s1666
                  %s1660 = sphi %s1650, %s1669
                  %s1661 = sphi %s1652, %s1670
                $region72: #{distg_block_forward.10} parent=61 // loop_header_branch
                  %1658 = sbr.rel (%p1655) target = $region76
                $region73: #{distg_block_forward.10} parent=61 // loop_body
                  %v1662 = vld [vmem:[%s1660] sm:$0xf]
                  %1663 = vst [vmem:[%s1661] sm:$0xf] %v1662
                  %s1664 = sadd.s32 1, %s1659
                  %p1665 = scmp.ge.s32.totalorder %s1664, %s1647
                  %s1666 = scalar_select %p1665, 0, %s1664
                  %s1667 = smul.u32 %s1666, 4
                  %s1668 = smul.u32 %s1666, 4
                  %s1669 = scalar_lea.vmem %s1650, %s1667 [#allocation2]
                  %s1670 = scalar_lea.vmem %s1652, %s1668
                $region74: #{distg_block_forward.10} parent=61 // loop_footer
                  %s1656 = sadd.s32 %s1654, 1
                $region75: #{distg_block_forward.10} parent=61 // loop_footer_branch
                  %1653 = sbr.rel target = $region71
                $region76: #{distg_block_forward.10} parent=61 // loop_exit
                  _
              $region62: #{distg_block_forward.10} parent=39 // pred_fallthru
                _
            $region40: #{distg_block_forward.10} parent=35 // pred_fallthru
              _
            // Predicated region
            $region41: #{distg_block_forward.10} parent=35 // pred_check
              _
            $region42: #{distg_block_forward.10} parent=35 // pred_check_branch
              %1326 = sbr.rel (0) target = $region44
            $region43: #{distg_block_forward.10} parent=35 // pred_region
              %s1328 = sshrl.u32 %s1315, 6
              // While loop
              $region45: #{distg_block_forward.10} parent=43 // loop_pre_header
                _
              $region46: #{distg_block_forward.10} parent=43 // loop_header
                %s1330 = sphi 0, %s1332
                %p1331 = scmp.ge.s32.totalorder %s1330, %s1328
                %s1335 = sphi 0, %s1468
                %s1336 = sphi %s1308, %s1471
                %s1337 = sphi %s1319, %s1472
              $region47: #{distg_block_forward.10} parent=43 // loop_header_branch
                %1334 = sbr.rel (%p1331) target = $region51
              $region48: #{distg_block_forward.10} parent=43 // loop_body
                %v1338 = vld [vmem:[%s1336] sm:$0xf]
                %1339 = vst [vmem:[%s1337] sm:$0xf] %v1338
                %v1340 = vld [vmem:[%s1336 + $0x4] sm:$0xf]
                %1341 = vst [vmem:[%s1337 + $0x4] sm:$0xf] %v1340
                %v1342 = vld [vmem:[%s1336 + $0x8] sm:$0xf]
                %1343 = vst [vmem:[%s1337 + $0x8] sm:$0xf] %v1342
                %v1344 = vld [vmem:[%s1336 + $0xc] sm:$0xf]
                %1345 = vst [vmem:[%s1337 + $0xc] sm:$0xf] %v1344
                %v1346 = vld [vmem:[%s1336 + $0x10] sm:$0xf]
                %1347 = vst [vmem:[%s1337 + $0x10] sm:$0xf] %v1346
                %v1348 = vld [vmem:[%s1336 + $0x14] sm:$0xf]
                %1349 = vst [vmem:[%s1337 + $0x14] sm:$0xf] %v1348
                %v1350 = vld [vmem:[%s1336 + $0x18] sm:$0xf]
                %1351 = vst [vmem:[%s1337 + $0x18] sm:$0xf] %v1350
                %v1352 = vld [vmem:[%s1336 + $0x1c] sm:$0xf]
                %1353 = vst [vmem:[%s1337 + $0x1c] sm:$0xf] %v1352
                %v1354 = vld [vmem:[%s1336 + $0x20] sm:$0xf]
                %1355 = vst [vmem:[%s1337 + $0x20] sm:$0xf] %v1354
                %v1356 = vld [vmem:[%s1336 + $0x24] sm:$0xf]
                %1357 = vst [vmem:[%s1337 + $0x24] sm:$0xf] %v1356
                %v1358 = vld [vmem:[%s1336 + $0x28] sm:$0xf]
                %1359 = vst [vmem:[%s1337 + $0x28] sm:$0xf] %v1358
                %v1360 = vld [vmem:[%s1336 + $0x2c] sm:$0xf]
                %1361 = vst [vmem:[%s1337 + $0x2c] sm:$0xf] %v1360
                %v1362 = vld [vmem:[%s1336 + $0x30] sm:$0xf]
                %1363 = vst [vmem:[%s1337 + $0x30] sm:$0xf] %v1362
                %v1364 = vld [vmem:[%s1336 + $0x34] sm:$0xf]
                %1365 = vst [vmem:[%s1337 + $0x34] sm:$0xf] %v1364
                %v1366 = vld [vmem:[%s1336 + $0x38] sm:$0xf]
                %1367 = vst [vmem:[%s1337 + $0x38] sm:$0xf] %v1366
                %v1368 = vld [vmem:[%s1336 + $0x3c] sm:$0xf]
                %1369 = vst [vmem:[%s1337 + $0x3c] sm:$0xf] %v1368
                %v1370 = vld [vmem:[%s1336 + $0x40] sm:$0xf]
                %1371 = vst [vmem:[%s1337 + $0x40] sm:$0xf] %v1370
                %v1372 = vld [vmem:[%s1336 + $0x44] sm:$0xf]
                %1373 = vst [vmem:[%s1337 + $0x44] sm:$0xf] %v1372
                %v1374 = vld [vmem:[%s1336 + $0x48] sm:$0xf]
                %1375 = vst [vmem:[%s1337 + $0x48] sm:$0xf] %v1374
                %v1376 = vld [vmem:[%s1336 + $0x4c] sm:$0xf]
                %1377 = vst [vmem:[%s1337 + $0x4c] sm:$0xf] %v1376
                %v1378 = vld [vmem:[%s1336 + $0x50] sm:$0xf]
                %1379 = vst [vmem:[%s1337 + $0x50] sm:$0xf] %v1378
                %v1380 = vld [vmem:[%s1336 + $0x54] sm:$0xf]
                %1381 = vst [vmem:[%s1337 + $0x54] sm:$0xf] %v1380
                %v1382 = vld [vmem:[%s1336 + $0x58] sm:$0xf]
                %1383 = vst [vmem:[%s1337 + $0x58] sm:$0xf] %v1382
                %v1384 = vld [vmem:[%s1336 + $0x5c] sm:$0xf]
                %1385 = vst [vmem:[%s1337 + $0x5c] sm:$0xf] %v1384
                %v1386 = vld [vmem:[%s1336 + $0x60] sm:$0xf]
                %1387 = vst [vmem:[%s1337 + $0x60] sm:$0xf] %v1386
                %v1388 = vld [vmem:[%s1336 + $0x64] sm:$0xf]
                %1389 = vst [vmem:[%s1337 + $0x64] sm:$0xf] %v1388
                %v1390 = vld [vmem:[%s1336 + $0x68] sm:$0xf]
                %1391 = vst [vmem:[%s1337 + $0x68] sm:$0xf] %v1390
                %v1392 = vld [vmem:[%s1336 + $0x6c] sm:$0xf]
                %1393 = vst [vmem:[%s1337 + $0x6c] sm:$0xf] %v1392
                %v1394 = vld [vmem:[%s1336 + $0x70] sm:$0xf]
                %1395 = vst [vmem:[%s1337 + $0x70] sm:$0xf] %v1394
                %v1396 = vld [vmem:[%s1336 + $0x74] sm:$0xf]
                %1397 = vst [vmem:[%s1337 + $0x74] sm:$0xf] %v1396
                %v1398 = vld [vmem:[%s1336 + $0x78] sm:$0xf]
                %1399 = vst [vmem:[%s1337 + $0x78] sm:$0xf] %v1398
                %v1400 = vld [vmem:[%s1336 + $0x7c] sm:$0xf]
                %1401 = vst [vmem:[%s1337 + $0x7c] sm:$0xf] %v1400
                %v1402 = vld [vmem:[%s1336 + $0x80] sm:$0xf]
                %1403 = vst [vmem:[%s1337 + $0x80] sm:$0xf] %v1402
                %v1404 = vld [vmem:[%s1336 + $0x84] sm:$0xf]
                %1405 = vst [vmem:[%s1337 + $0x84] sm:$0xf] %v1404
                %v1406 = vld [vmem:[%s1336 + $0x88] sm:$0xf]
                %1407 = vst [vmem:[%s1337 + $0x88] sm:$0xf] %v1406
                %v1408 = vld [vmem:[%s1336 + $0x8c] sm:$0xf]
                %1409 = vst [vmem:[%s1337 + $0x8c] sm:$0xf] %v1408
                %v1410 = vld [vmem:[%s1336 + $0x90] sm:$0xf]
                %1411 = vst [vmem:[%s1337 + $0x90] sm:$0xf] %v1410
                %v1412 = vld [vmem:[%s1336 + $0x94] sm:$0xf]
                %1413 = vst [vmem:[%s1337 + $0x94] sm:$0xf] %v1412
                %v1414 = vld [vmem:[%s1336 + $0x98] sm:$0xf]
                %1415 = vst [vmem:[%s1337 + $0x98] sm:$0xf] %v1414
                %v1416 = vld [vmem:[%s1336 + $0x9c] sm:$0xf]
                %1417 = vst [vmem:[%s1337 + $0x9c] sm:$0xf] %v1416
                %v1418 = vld [vmem:[%s1336 + $0xa0] sm:$0xf]
                %1419 = vst [vmem:[%s1337 + $0xa0] sm:$0xf] %v1418
                %v1420 = vld [vmem:[%s1336 + $0xa4] sm:$0xf]
                %1421 = vst [vmem:[%s1337 + $0xa4] sm:$0xf] %v1420
                %v1422 = vld [vmem:[%s1336 + $0xa8] sm:$0xf]
                %1423 = vst [vmem:[%s1337 + $0xa8] sm:$0xf] %v1422
                %v1424 = vld [vmem:[%s1336 + $0xac] sm:$0xf]
                %1425 = vst [vmem:[%s1337 + $0xac] sm:$0xf] %v1424
                %v1426 = vld [vmem:[%s1336 + $0xb0] sm:$0xf]
                %1427 = vst [vmem:[%s1337 + $0xb0] sm:$0xf] %v1426
                %v1428 = vld [vmem:[%s1336 + $0xb4] sm:$0xf]
                %1429 = vst [vmem:[%s1337 + $0xb4] sm:$0xf] %v1428
                %v1430 = vld [vmem:[%s1336 + $0xb8] sm:$0xf]
                %1431 = vst [vmem:[%s1337 + $0xb8] sm:$0xf] %v1430
                %v1432 = vld [vmem:[%s1336 + $0xbc] sm:$0xf]
                %1433 = vst [vmem:[%s1337 + $0xbc] sm:$0xf] %v1432
                %v1434 = vld [vmem:[%s1336 + $0xc0] sm:$0xf]
                %1435 = vst [vmem:[%s1337 + $0xc0] sm:$0xf] %v1434
                %v1436 = vld [vmem:[%s1336 + $0xc4] sm:$0xf]
                %1437 = vst [vmem:[%s1337 + $0xc4] sm:$0xf] %v1436
                %v1438 = vld [vmem:[%s1336 + $0xc8] sm:$0xf]
                %1439 = vst [vmem:[%s1337 + $0xc8] sm:$0xf] %v1438
                %v1440 = vld [vmem:[%s1336 + $0xcc] sm:$0xf]
                %1441 = vst [vmem:[%s1337 + $0xcc] sm:$0xf] %v1440
                %v1442 = vld [vmem:[%s1336 + $0xd0] sm:$0xf]
                %1443 = vst [vmem:[%s1337 + $0xd0] sm:$0xf] %v1442
                %v1444 = vld [vmem:[%s1336 + $0xd4] sm:$0xf]
                %1445 = vst [vmem:[%s1337 + $0xd4] sm:$0xf] %v1444
                %v1446 = vld [vmem:[%s1336 + $0xd8] sm:$0xf]
                %1447 = vst [vmem:[%s1337 + $0xd8] sm:$0xf] %v1446
                %v1448 = vld [vmem:[%s1336 + $0xdc] sm:$0xf]
                %1449 = vst [vmem:[%s1337 + $0xdc] sm:$0xf] %v1448
                %v1450 = vld [vmem:[%s1336 + $0xe0] sm:$0xf]
                %1451 = vst [vmem:[%s1337 + $0xe0] sm:$0xf] %v1450
                %v1452 = vld [vmem:[%s1336 + $0xe4] sm:$0xf]
                %1453 = vst [vmem:[%s1337 + $0xe4] sm:$0xf] %v1452
                %v1454 = vld [vmem:[%s1336 + $0xe8] sm:$0xf]
                %1455 = vst [vmem:[%s1337 + $0xe8] sm:$0xf] %v1454
                %v1456 = vld [vmem:[%s1336 + $0xec] sm:$0xf]
                %1457 = vst [vmem:[%s1337 + $0xec] sm:$0xf] %v1456
                %v1458 = vld [vmem:[%s1336 + $0xf0] sm:$0xf]
                %1459 = vst [vmem:[%s1337 + $0xf0] sm:$0xf] %v1458
                %v1460 = vld [vmem:[%s1336 + $0xf4] sm:$0xf]
                %1461 = vst [vmem:[%s1337 + $0xf4] sm:$0xf] %v1460
                %v1462 = vld [vmem:[%s1336 + $0xf8] sm:$0xf]
                %1463 = vst [vmem:[%s1337 + $0xf8] sm:$0xf] %v1462
                %v1464 = vld [vmem:[%s1336 + $0xfc] sm:$0xf]
                %1465 = vst [vmem:[%s1337 + $0xfc] sm:$0xf] %v1464
                %s1466 = sadd.s32 1, %s1335
                %p1467 = scmp.ge.s32.totalorder %s1466, %s1328
                %s1468 = scalar_select %p1467, 0, %s1466
                %s1469 = smul.u32 %s1468, 256
                %s1470 = smul.u32 %s1468, 256
                %s1471 = scalar_lea.vmem %s1308, %s1469 [#allocation2]
                %s1472 = scalar_lea.vmem %s1319, %s1470
              $region49: #{distg_block_forward.10} parent=43 // loop_footer
                %s1332 = sadd.s32 %s1330, 1
              $region50: #{distg_block_forward.10} parent=43 // loop_footer_branch
                %1329 = sbr.rel target = $region46
              $region51: #{distg_block_forward.10} parent=43 // loop_exit
                _
              %s1473 = sshrl.u32 %s1315, 6
              %s1474 = sand.u32 %s1315, 63
              %s1475 = smul.u32 %s1473, 64
              %s1476 = smul.u32 4, %s1475
              %s1477 = scalar_lea.vmem %s1308, %s1476 [#allocation2]
              %s1478 = smul.u32 4, %s1475
              %s1479 = scalar_lea.vmem %s1319, %s1478
              // While loop
              $region52: #{distg_block_forward.10} parent=43 // loop_pre_header
                _
              $region53: #{distg_block_forward.10} parent=43 // loop_header
                %s1481 = sphi 0, %s1483
                %p1482 = scmp.ge.s32.totalorder %s1481, %s1474
                %s1486 = sphi 0, %s1493
                %s1487 = sphi %s1477, %s1496
                %s1488 = sphi %s1479, %s1497
              $region54: #{distg_block_forward.10} parent=43 // loop_header_branch
                %1485 = sbr.rel (%p1482) target = $region58
              $region55: #{distg_block_forward.10} parent=43 // loop_body
                %v1489 = vld [vmem:[%s1487] sm:$0xf]
                %1490 = vst [vmem:[%s1488] sm:$0xf] %v1489
                %s1491 = sadd.s32 1, %s1486
                %p1492 = scmp.ge.s32.totalorder %s1491, %s1474
                %s1493 = scalar_select %p1492, 0, %s1491
                %s1494 = smul.u32 %s1493, 4
                %s1495 = smul.u32 %s1493, 4
                %s1496 = scalar_lea.vmem %s1477, %s1494 [#allocation2]
                %s1497 = scalar_lea.vmem %s1479, %s1495
              $region56: #{distg_block_forward.10} parent=43 // loop_footer
                %s1483 = sadd.s32 %s1481, 1
              $region57: #{distg_block_forward.10} parent=43 // loop_footer_branch
                %1480 = sbr.rel target = $region53
              $region58: #{distg_block_forward.10} parent=43 // loop_exit
                _
            $region44: #{distg_block_forward.10} parent=35 // pred_fallthru
              _
          $region36: #{distg_block_forward.10} parent=31 // pred_fallthru
            _
          %1671 = vnop
        $region32: #{distg_block_forward.10} parent=27 // pred_fallthru
          _
      $region28: #{distg_block_forward.10} parent=5 // pred_fallthru
        _
      %p1672 = scmp.le.s32.totalorder 2, %s8
      // Predicated region
      $region77: #{distg_block_forward.10} parent=5 // pred_check
        %p1673 = pneg %p1672
      $region78: #{distg_block_forward.10} parent=5 // pred_check_branch
        %1675 = sbr.rel (%p1673) target = $region80
      $region79: #{distg_block_forward.10} parent=5 // pred_region
        %s1676 = ssub.s32 %s8, 2
        // Predicated region
        $region81: #{distg_block_forward.10} parent=79 // pred_check
          %p1677 = pneg %p84
        $region82: #{distg_block_forward.10} parent=79 // pred_check_branch
          %1679 = sbr.rel (%p1677) target = $region84
        $region83: #{distg_block_forward.10} parent=79 // pred_region
          %s1680 = sand.u32 %s69, 1
          %s1681 = sand.u32 %s69, 1
          %s1682 = smul.addr %s1681, 256
          %s1683 = scalar_lea.vmem [#allocation2], %s1682
        $region84: #{distg_block_forward.10} parent=79 // pred_fallthru
          _
      $region80: #{distg_block_forward.10} parent=5 // pred_fallthru
        _
    $region6: #{distg_block_forward.10} parent=1 // loop_footer
      %s12 = sadd.s32 1, %s8
    $region7: #{distg_block_forward.10} parent=1 // loop_footer_branch
      %7 = sbr.rel target = $region3
    $region8: #{distg_block_forward.10} parent=1 // loop_exit
      _

// kernel: distg_block_forward.11
$region0: #{distg_block_forward.11}
  #allocation0 [shape = 'u32[]', space=smem, size = 0x4, offset = 0x4, fixed_abs, tag = 'smem constant byte address 0x4 - core index']
  #allocation1 [shape = 'u32[144,128]{1,0:T(1,128)}', space=vmem, size = 0x12000, scoped, tag = 'internal scratch']
  %s0 = inlined_call_operand.vmem [shape: bf16[3200,72], index: 0, kind: input, shape index: {}]
  %s1 = inlined_call_operand.vmem [shape: bf16[72,8], index: 1, kind: input, shape index: {}]
  %s2 = inlined_call_operand.vmem [shape: f32[3200,8], index: 2, kind: input, shape index: {}]
  %s3 = inlined_call_operand.vmem [shape: f32[3200,8], index: 3, kind: output, shape index: {}]
  %s4 = sld [smem:[#allocation0]]
  $region93: #{distg_block_forward.11} parent=0
    _
  %s6 = ssub.s32 1, %s4
  %s7 = scalar_select 0, %s6, %s4
  $region1: #{distg_block_forward.11} parent=0
    #allocation2 [shape = 'u8[524288]{0}', space=vmem, size = 0x80000, scoped, tag = 'output window, operand 0']
    loop: start=0, step=1, limit=9
    $region2: #{distg_block_forward.11} parent=1 // loop_pre_header
      _
    $region3: #{distg_block_forward.11} parent=1 // loop_header
      %s9 = sphi 0, %s13
      %p10 = scmp.ge.s32.totalorder %s9, 9
      %s19 = sphi 0, %s21
      %s22 = sphi 0, %s19
      %s23 = sphi 0, %s22
      %s39 = sphi 0, %s23
      %s43 = sphi 0, %s43
      %s45 = sphi 0, %s43
      %s46 = sphi 0, %s45
      %s60 = sphi 0, %s46
      %s66 = sphi 0, %s68
      %s69 = sphi 0, %s66
      %s70 = sphi 0, %s69
      %s86 = sphi 0, %s70
      %s92 = sphi 0, %s94
      %s95 = sphi 0, %s92
      %s96 = sphi 0, %s95
      %s112 = sphi 0, %s96
    $region4: #{distg_block_forward.11} parent=1 // loop_header_branch
      %12 = sbr.rel (%p10) target = $region8
    $region5: #{distg_block_forward.11} parent=1 // loop_body
      %s14 = ssub.s32 %s9, 1
      %s15 = ssub.s32 %s9, 2
      %s16 = sadd.s32 %s9, 1
      %s17 = ssub.s32 %s9, %s16
      %p18 = scmp.eq.s32.totalorder %s17, 0
      %s20 = sadd.s32 %s19, 1
      %s21 = scalar_select %p18, %s19, %s20
      %p24 = pneg %p18
      %p25 = scmp.eq.s32.totalorder %s9, 6
      %p26 = por %p24, %p25
      %p27 = scmp.ne.s32.totalorder %s19, %s22
      %p28 = scmp.eq.s32.totalorder %s9, 0
      %p29 = por %p27, %p28
      %p30 = scmp.ne.s32.totalorder %s19, %s22
      %p31 = scmp.eq.s32.totalorder %s14, 6
      %p32 = por %p30, %p31
      %p33 = scmp.ne.s32.totalorder %s22, %s23
      %p34 = scmp.eq.s32.totalorder %s14, 0
      %p35 = por %p33, %p34
      %p36 = scmp.ne.s32.totalorder %s22, %s23
      %p37 = scmp.eq.s32.totalorder %s15, 6
      %p38 = por %p36, %p37
      %p40 = scmp.ne.s32.totalorder %s23, %s39
      %p41 = scmp.eq.s32.totalorder %s15, 0
      %p42 = por %p40, %p41
      %s44 = sadd.s32 %s43, 1
      %p47 = scmp.eq.s32.totalorder %s9, 6
      %p48 = scmp.ne.s32.totalorder %s43, %s45
      %p49 = scmp.eq.s32.totalorder %s9, 0
      %p50 = por %p48, %p49
      %p51 = scmp.ne.s32.totalorder %s43, %s45
      %p52 = scmp.eq.s32.totalorder %s14, 6
      %p53 = por %p51, %p52
      %p54 = scmp.ne.s32.totalorder %s45, %s46
      %p55 = scmp.eq.s32.totalorder %s14, 0
      %p56 = por %p54, %p55
      %p57 = scmp.ne.s32.totalorder %s45, %s46
      %p58 = scmp.eq.s32.totalorder %s15, 6
      %p59 = por %p57, %p58
      %p61 = scmp.ne.s32.totalorder %s46, %s60
      %p62 = scmp.eq.s32.totalorder %s15, 0
      %p63 = por %p61, %p62
      %s64 = ssub.s32 %s9, %s16
      %p65 = scmp.eq.s32.totalorder %s64, 0
      %s67 = sadd.s32 %s66, 1
      %s68 = scalar_select %p65, %s66, %s67
      %p71 = pneg %p65
      %p72 = scmp.eq.s32.totalorder %s9, 6
      %p73 = por %p71, %p72
      %p74 = scmp.ne.s32.totalorder %s66, %s69
      %p75 = scmp.eq.s32.totalorder %s9, 0
      %p76 = por %p74, %p75
      %p77 = scmp.ne.s32.totalorder %s66, %s69
      %p78 = scmp.eq.s32.totalorder %s14, 6
      %p79 = por %p77, %p78
      %p80 = scmp.ne.s32.totalorder %s69, %s70
      %p81 = scmp.eq.s32.totalorder %s14, 0
      %p82 = por %p80, %p81
      %p83 = scmp.ne.s32.totalorder %s69, %s70
      %p84 = scmp.eq.s32.totalorder %s15, 6
      %p85 = por %p83, %p84
      %p87 = scmp.ne.s32.totalorder %s70, %s86
      %p88 = scmp.eq.s32.totalorder %s15, 0
      %p89 = por %p87, %p88
      %s90 = ssub.s32 %s9, %s16
      %p91 = scmp.eq.s32.totalorder %s90, 0
      %s93 = sadd.s32 %s92, 1
      %s94 = scalar_select %p91, %s92, %s93
      %p97 = pneg %p91
      %p98 = scmp.eq.s32.totalorder %s9, 6
      %p99 = por %p97, %p98
      %p100 = scmp.ne.s32.totalorder %s92, %s95
      %p101 = scmp.eq.s32.totalorder %s9, 0
      %p102 = por %p100, %p101
      %p103 = scmp.ne.s32.totalorder %s92, %s95
      %p104 = scmp.eq.s32.totalorder %s14, 6
      %p105 = por %p103, %p104
      %p106 = scmp.ne.s32.totalorder %s95, %s96
      %p107 = scmp.eq.s32.totalorder %s14, 0
      %p108 = por %p106, %p107
      %p109 = scmp.ne.s32.totalorder %s95, %s96
      %p110 = scmp.eq.s32.totalorder %s15, 6
      %p111 = por %p109, %p110
      %p113 = scmp.ne.s32.totalorder %s96, %s112
      %p114 = scmp.eq.s32.totalorder %s15, 0
      %p115 = por %p113, %p114
      %p116 = scmp.le.s32.totalorder 1, %s9
      %p117 = scmp.lt.s32.totalorder %s9, 8
      %p118 = pnand %p116, %p117
      %p119 = pneg %p118
      // Predicated region
      $region9: #{distg_block_forward.11} parent=5 // pred_check
        _
      $region10: #{distg_block_forward.11} parent=5 // pred_check_branch
        %121 = sbr.rel (%p118) target = $region12
      $region11: #{distg_block_forward.11} parent=5 // pred_region
        %s122 = ssub.s32 %s9, 1
        // Predicated region
        $region13: #{distg_block_forward.11} parent=11 // pred_check
          %p123 = pneg %p56
        $region14: #{distg_block_forward.11} parent=11 // pred_check_branch
          %125 = sbr.rel (%p123) target = $region16
        $region15: #{distg_block_forward.11} parent=11 // pred_region
          _
        $region16: #{distg_block_forward.11} parent=11 // pred_fallthru
          _
      $region12: #{distg_block_forward.11} parent=5 // pred_fallthru
        _
      %p126 = scmp.lt.s32.totalorder %s9, 7
      // Predicated region
      $region17: #{distg_block_forward.11} parent=5 // pred_check
        %p127 = pneg %p126
      $region18: #{distg_block_forward.11} parent=5 // pred_check_branch
        %129 = sbr.rel (%p127) target = $region20
      $region19: #{distg_block_forward.11} parent=5 // pred_region
        // Predicated region
        $region21: #{distg_block_forward.11} parent=19 // pred_check
          %p130 = pneg %p29
        $region22: #{distg_block_forward.11} parent=19 // pred_check_branch
          %132 = sbr.rel (%p130) target = $region24
        $region23: #{distg_block_forward.11} parent=19 // pred_region
          %s133 = smul.u32 64, %s9
          %s134 = ssub.s32 400, %s133
          %p135 = scmp.lt.s32.totalorder %s134, 64
          %s136 = scalar_select %p135, %s134, 64
          %s137 = smul.u32 64, %s136
          %p138 = scmp.lt.s32.totalorder %s133, 399
          %s139 = scalar_select %p138, %s133, 399
          %s140 = smul.addr %s139, 4
          %s141 = scalar_lea.vmem %s0, %s140
          %s142 = smul.u32 64, %s9
          %s143 = ssub.s32 400, %s142
          %p144 = scmp.lt.s32.totalorder %s143, 64
          %s145 = scalar_select %p144, %s143, 64
          %s146 = smul.u32 64, %s145
        $region24: #{distg_block_forward.11} parent=19 // pred_fallthru
          _
        // Predicated region
        $region25: #{distg_block_forward.11} parent=19 // pred_check
          %p147 = pneg %p76
        $region26: #{distg_block_forward.11} parent=19 // pred_check_branch
          %149 = sbr.rel (%p147) target = $region28
        $region27: #{distg_block_forward.11} parent=19 // pred_region
          %s150 = smul.u32 64, %s9
          %s151 = ssub.s32 400, %s150
          %p152 = scmp.lt.s32.totalorder %s151, 64
          %s153 = scalar_select %p152, %s151, 64
          %s154 = smul.u32 128, %s153
          %p155 = scmp.lt.s32.totalorder %s150, 399
          %s156 = scalar_select %p155, %s150, 399
          %s157 = smul.addr %s156, 8
          %s158 = scalar_lea.vmem %s2, %s157
          %s159 = smul.u32 64, %s9
          %s160 = ssub.s32 400, %s159
          %p161 = scmp.lt.s32.totalorder %s160, 64
          %s162 = scalar_select %p161, %s160, 64
          %s163 = smul.u32 128, %s162
        $region28: #{distg_block_forward.11} parent=19 // pred_fallthru
          _
      $region20: #{distg_block_forward.11} parent=5 // pred_fallthru
        _
      %p164 = scmp.le.s32.totalorder 1, %s9
      %p165 = scmp.lt.s32.totalorder %s9, 8
      %p166 = pnand %p164, %p165
      %p167 = pneg %p166
      // Predicated region
      $region29: #{distg_block_forward.11} parent=5 // pred_check
        _
      $region30: #{distg_block_forward.11} parent=5 // pred_check_branch
        %169 = sbr.rel (%p166) target = $region32
      $region31: #{distg_block_forward.11} parent=5 // pred_region
        %s170 = ssub.s32 %s9, 1
        %s171 = smul.u32 64, %s14
        %s172 = ssub.s32 400, %s171
        %p173 = scmp.lt.s32.totalorder %s172, 64
        %s174 = scalar_select %p173, %s172, 64
        %s175 = smul.u32 64, %s174
        %p176 = scmp.lt.s32.totalorder %s171, 399
        %s177 = scalar_select %p176, %s171, 399
        %s178 = smul.addr %s177, 4
        %s179 = scalar_lea.vmem %s0, %s178
        %p180 = pneg %p35
        %p181 = pneg %p32
        %p182 = pneg %p56
        %p183 = pneg %p53
        %s184 = smul.u32 64, %s14
        %s185 = ssub.s32 400, %s184
        %p186 = scmp.lt.s32.totalorder %s185, 64
        %s187 = scalar_select %p186, %s185, 64
        %s188 = smul.u32 128, %s187
        %p189 = scmp.lt.s32.totalorder %s184, 399
        %s190 = scalar_select %p189, %s184, 399
        %s191 = smul.addr %s190, 8
        %s192 = scalar_lea.vmem %s2, %s191
        %p193 = pneg %p82
        %p194 = pneg %p79
        %p195 = pneg %p108
        %p196 = pneg %p105
        %s197 = sand.u32 %s95, 1
        %s198 = sand.u32 %s95, 1
        %s199 = smul.addr %s198, 512
        %s200 = scalar_lea.vmem [#allocation2], %s199
        %s201 = smul.u32 64, %s14
        %s202 = ssub.s32 400, %s201
        %p203 = scmp.lt.s32.totalorder %s202, 64
        %s204 = scalar_select %p203, %s202, 64
        %s205 = smul.u32 64, %s204
        %p206 = scmp.lt.s32.totalorder %s201, 399
        %s207 = scalar_select %p206, %s201, 399
        %s208 = smul.addr %s207, 4
        %s209 = scalar_lea.vmem %s0, %s208
        %s210 = smul.u32 64, %s14
        %s211 = ssub.s32 400, %s210
        %p212 = scmp.lt.s32.totalorder %s211, 64
        %s213 = scalar_select %p212, %s211, 64
        %s214 = smul.u32 64, %s213
        %s215 = smul.u32 64, %s14
        %s216 = ssub.s32 400, %s215
        %p217 = scmp.lt.s32.totalorder %s216, 64
        %s218 = scalar_select %p217, %s216, 64
        %s219 = smul.u32 128, %s218
        %p220 = scmp.lt.s32.totalorder %s215, 399
        %s221 = scalar_select %p220, %s215, 399
        %s222 = smul.addr %s221, 8
        %s223 = scalar_lea.vmem %s2, %s222
        %s224 = smul.u32 64, %s14
        %s225 = ssub.s32 400, %s224
        %p226 = scmp.lt.s32.totalorder %s225, 64
        %s227 = scalar_select %p226, %s225, 64
        %s228 = smul.u32 128, %s227
        %s229 = smul.u32 64, %s14
        %s230 = ssub.s32 400, %s229
        %p231 = scmp.lt.s32.totalorder %s230, 64
        %s232 = scalar_select %p231, %s230, 64
        %s233 = smul.u32 128, %s232
        %v235 = vld [vmem:[%s209] sm:$0xf]
        %v236 = vld [vmem:[%s209 + $0x4] sm:$0xf]
        %v237 = vld [vmem:[%s209 + $0x8] sm:$0xf]
        %v238 = vld [vmem:[%s209 + $0xc] sm:$0xf]
        %v239 = vld [vmem:[%s209 + $0x10] sm:$0xf]
        %v240 = vld [vmem:[%s209 + $0x14] sm:$0xf]
        %v241 = vld [vmem:[%s209 + $0x18] sm:$0xf]
        %v242 = vld [vmem:[%s209 + $0x1c] sm:$0xf]
        %v243 = vld [vmem:[%s209 + $0x20] sm:$0xf]
        %v244 = vld [vmem:[%s209 + $0x24] sm:$0xf]
        %v245 = vld [vmem:[%s209 + $0x28] sm:$0xf]
        %v246 = vld [vmem:[%s209 + $0x2c] sm:$0xf]
        %v247 = vld [vmem:[%s209 + $0x30] sm:$0xf]
        %v248 = vld [vmem:[%s209 + $0x34] sm:$0xf]
        %v249 = vld [vmem:[%s209 + $0x38] sm:$0xf]
        %v250 = vld [vmem:[%s209 + $0x3c] sm:$0xf]
        %v251 = vld [vmem:[%s209 + $0x40] sm:$0xf]
        %v252 = vld [vmem:[%s209 + $0x44] sm:$0xf]
        %v253 = vld [vmem:[%s209 + $0x48] sm:$0xf]
        %v254 = vld [vmem:[%s209 + $0x4c] sm:$0xf]
        %v255 = vld [vmem:[%s209 + $0x50] sm:$0xf]
        %v256 = vld [vmem:[%s209 + $0x54] sm:$0xf]
        %v257 = vld [vmem:[%s209 + $0x58] sm:$0xf]
        %v258 = vld [vmem:[%s209 + $0x5c] sm:$0xf]
        %v259 = vld [vmem:[%s209 + $0x60] sm:$0xf]
        %v260 = vld [vmem:[%s209 + $0x64] sm:$0xf]
        %v261 = vld [vmem:[%s209 + $0x68] sm:$0xf]
        %v262 = vld [vmem:[%s209 + $0x6c] sm:$0xf]
        %v263 = vld [vmem:[%s209 + $0x70] sm:$0xf]
        %v264 = vld [vmem:[%s209 + $0x74] sm:$0xf]
        %v265 = vld [vmem:[%s209 + $0x78] sm:$0xf]
        %v266 = vld [vmem:[%s209 + $0x7c] sm:$0xf]
        %v267 = vld [vmem:[%s209 + $0x80] sm:$0xf]
        %v268 = vld [vmem:[%s209 + $0x84] sm:$0xf]
        %v269 = vld [vmem:[%s209 + $0x88] sm:$0xf]
        %v270 = vld [vmem:[%s209 + $0x8c] sm:$0xf]
        %v271 = vld [vmem:[%s209 + $0x90] sm:$0xf]
        %v272 = vld [vmem:[%s209 + $0x94] sm:$0xf]
        %v273 = vld [vmem:[%s209 + $0x98] sm:$0xf]
        %v274 = vld [vmem:[%s209 + $0x9c] sm:$0xf]
        %v275 = vld [vmem:[%s209 + $0xa0] sm:$0xf]
        %v276 = vld [vmem:[%s209 + $0xa4] sm:$0xf]
        %v277 = vld [vmem:[%s209 + $0xa8] sm:$0xf]
        %v278 = vld [vmem:[%s209 + $0xac] sm:$0xf]
        %v279 = vld [vmem:[%s209 + $0xb0] sm:$0xf]
        %v280 = vld [vmem:[%s209 + $0xb4] sm:$0xf]
        %v281 = vld [vmem:[%s209 + $0xb8] sm:$0xf]
        %v282 = vld [vmem:[%s209 + $0xbc] sm:$0xf]
        %v283 = vld [vmem:[%s209 + $0xc0] sm:$0xf]
        %v284 = vld [vmem:[%s209 + $0xc4] sm:$0xf]
        %v285 = vld [vmem:[%s209 + $0xc8] sm:$0xf]
        %v286 = vld [vmem:[%s209 + $0xcc] sm:$0xf]
        %v287 = vld [vmem:[%s209 + $0xd0] sm:$0xf]
        %v288 = vld [vmem:[%s209 + $0xd4] sm:$0xf]
        %v289 = vld [vmem:[%s209 + $0xd8] sm:$0xf]
        %v290 = vld [vmem:[%s209 + $0xdc] sm:$0xf]
        %v291 = vld [vmem:[%s209 + $0xe0] sm:$0xf]
        %v292 = vld [vmem:[%s209 + $0xe4] sm:$0xf]
        %v293 = vld [vmem:[%s209 + $0xe8] sm:$0xf]
        %v294 = vld [vmem:[%s209 + $0xec] sm:$0xf]
        %v295 = vld [vmem:[%s209 + $0xf0] sm:$0xf]
        %v296 = vld [vmem:[%s209 + $0xf4] sm:$0xf]
        %v297 = vld [vmem:[%s209 + $0xf8] sm:$0xf]
        %v298 = vld [vmem:[%s209 + $0xfc] sm:$0xf]
        %v299 = vld [vmem:[%s1] sm:$0xf]
        %v300 = vld [vmem:[%s1 + $0x4] sm:$0xf]
        %v301 = vld [vmem:[%s1 + $0x8] sm:$0xf]
        %v302 = vld [vmem:[%s1 + $0xc] sm:$0xf]
        %v303 = vld [vmem:[%s1 + $0x10] sm:$0xf]
        %v304 = vld [vmem:[%s1 + $0x14] sm:$0xf]
        %v305 = vld [vmem:[%s1 + $0x18] sm:$0xf]
        %v306 = vld [vmem:[%s1 + $0x1c] sm:$0xf]
        %v307 = vld [vmem:[%s1 + $0x20] sm:$0xf]
        %v308 = vld [vmem:[%s223] sm:$0xff]
        %v309 = vld [vmem:[%s223 + $0x8] sm:$0xff]
        %v310 = vld [vmem:[%s223 + $0x10] sm:$0xff]
        %v311 = vld [vmem:[%s223 + $0x18] sm:$0xff]
        %v312 = vld [vmem:[%s223 + $0x20] sm:$0xff]
        %v313 = vld [vmem:[%s223 + $0x28] sm:$0xff]
        %v314 = vld [vmem:[%s223 + $0x30] sm:$0xff]
        %v315 = vld [vmem:[%s223 + $0x38] sm:$0xff]
        %v316 = vld [vmem:[%s223 + $0x40] sm:$0xff]
        %v317 = vld [vmem:[%s223 + $0x48] sm:$0xff]
        %v318 = vld [vmem:[%s223 + $0x50] sm:$0xff]
        %v319 = vld [vmem:[%s223 + $0x58] sm:$0xff]
        %v320 = vld [vmem:[%s223 + $0x60] sm:$0xff]
        %v321 = vld [vmem:[%s223 + $0x68] sm:$0xff]
        %v322 = vld [vmem:[%s223 + $0x70] sm:$0xff]
        %v323 = vld [vmem:[%s223 + $0x78] sm:$0xff]
        %v324 = vld [vmem:[%s223 + $0x80] sm:$0xff]
        %v325 = vld [vmem:[%s223 + $0x88] sm:$0xff]
        %v326 = vld [vmem:[%s223 + $0x90] sm:$0xff]
        %v327 = vld [vmem:[%s223 + $0x98] sm:$0xff]
        %v328 = vld [vmem:[%s223 + $0xa0] sm:$0xff]
        %v329 = vld [vmem:[%s223 + $0xa8] sm:$0xff]
        %v330 = vld [vmem:[%s223 + $0xb0] sm:$0xff]
        %v331 = vld [vmem:[%s223 + $0xb8] sm:$0xff]
        %v332 = vld [vmem:[%s223 + $0xc0] sm:$0xff]
        %v333 = vld [vmem:[%s223 + $0xc8] sm:$0xff]
        %v334 = vld [vmem:[%s223 + $0xd0] sm:$0xff]
        %v335 = vld [vmem:[%s223 + $0xd8] sm:$0xff]
        %v336 = vld [vmem:[%s223 + $0xe0] sm:$0xff]
        %v337 = vld [vmem:[%s223 + $0xe8] sm:$0xff]
        %v338 = vld [vmem:[%s223 + $0xf0] sm:$0xff]
        %v339 = vld [vmem:[%s223 + $0xf8] sm:$0xff]
        %v340 = vld [vmem:[%s223 + $0x100] sm:$0xff]
        %v341 = vld [vmem:[%s223 + $0x108] sm:$0xff]
        %v342 = vld [vmem:[%s223 + $0x110] sm:$0xff]
        %v343 = vld [vmem:[%s223 + $0x118] sm:$0xff]
        %v344 = vld [vmem:[%s223 + $0x120] sm:$0xff]
        %v345 = vld [vmem:[%s223 + $0x128] sm:$0xff]
        %v346 = vld [vmem:[%s223 + $0x130] sm:$0xff]
        %v347 = vld [vmem:[%s223 + $0x138] sm:$0xff]
        %v348 = vld [vmem:[%s223 + $0x140] sm:$0xff]
        %v349 = vld [vmem:[%s223 + $0x148] sm:$0xff]
        %v350 = vld [vmem:[%s223 + $0x150] sm:$0xff]
        %v351 = vld [vmem:[%s223 + $0x158] sm:$0xff]
        %v352 = vld [vmem:[%s223 + $0x160] sm:$0xff]
        %v353 = vld [vmem:[%s223 + $0x168] sm:$0xff]
        %v354 = vld [vmem:[%s223 + $0x170] sm:$0xff]
        %v355 = vld [vmem:[%s223 + $0x178] sm:$0xff]
        %v356 = vld [vmem:[%s223 + $0x180] sm:$0xff]
        %v357 = vld [vmem:[%s223 + $0x188] sm:$0xff]
        %v358 = vld [vmem:[%s223 + $0x190] sm:$0xff]
        %v359 = vld [vmem:[%s223 + $0x198] sm:$0xff]
        %v360 = vld [vmem:[%s223 + $0x1a0] sm:$0xff]
        %v361 = vld [vmem:[%s223 + $0x1a8] sm:$0xff]
        %v362 = vld [vmem:[%s223 + $0x1b0] sm:$0xff]
        %v363 = vld [vmem:[%s223 + $0x1b8] sm:$0xff]
        %v364 = vld [vmem:[%s223 + $0x1c0] sm:$0xff]
        %v365 = vld [vmem:[%s223 + $0x1c8] sm:$0xff]
        %v366 = vld [vmem:[%s223 + $0x1d0] sm:$0xff]
        %v367 = vld [vmem:[%s223 + $0x1d8] sm:$0xff]
        %v368 = vld [vmem:[%s223 + $0x1e0] sm:$0xff]
        %v369 = vld [vmem:[%s223 + $0x1e8] sm:$0xff]
        %v370 = vld [vmem:[%s223 + $0x1f0] sm:$0xff]
        %v371 = vld [vmem:[%s223 + $0x1f8] sm:$0xff]
        %v436 = vunpack.c.l.b16 %v235
        %v437 = vunpack.c.l.b16 %v236
        %v438 = vunpack.c.l.b16 %v237
        %v439 = vunpack.c.l.b16 %v238
        %v440 = vunpack.c.l.b16 %v239
        %v441 = vunpack.c.l.b16 %v240
        %v442 = vunpack.c.l.b16 %v241
        %v443 = vunpack.c.l.b16 %v242
        %v444 = vunpack.c.l.b16 %v243
        %v445 = vunpack.c.l.b16 %v244
        %v446 = vunpack.c.l.b16 %v245
        %v447 = vunpack.c.l.b16 %v246
        %v448 = vunpack.c.l.b16 %v247
        %v449 = vunpack.c.l.b16 %v248
        %v450 = vunpack.c.l.b16 %v249
        %v451 = vunpack.c.l.b16 %v250
        %v452 = vunpack.c.l.b16 %v251
        %v453 = vunpack.c.l.b16 %v252
        %v454 = vunpack.c.l.b16 %v253
        %v455 = vunpack.c.l.b16 %v254
        %v456 = vunpack.c.l.b16 %v255
        %v457 = vunpack.c.l.b16 %v256
        %v458 = vunpack.c.l.b16 %v257
        %v459 = vunpack.c.l.b16 %v258
        %v460 = vunpack.c.l.b16 %v259
        %v461 = vunpack.c.l.b16 %v260
        %v462 = vunpack.c.l.b16 %v261
        %v463 = vunpack.c.l.b16 %v262
        %v464 = vunpack.c.l.b16 %v263
        %v465 = vunpack.c.l.b16 %v264
        %v466 = vunpack.c.l.b16 %v265
        %v467 = vunpack.c.l.b16 %v266
        %v468 = vunpack.c.l.b16 %v267
        %v469 = vunpack.c.l.b16 %v268
        %v470 = vunpack.c.l.b16 %v269
        %v471 = vunpack.c.l.b16 %v270
        %v472 = vunpack.c.l.b16 %v271
        %v473 = vunpack.c.l.b16 %v272
        %v474 = vunpack.c.l.b16 %v273
        %v475 = vunpack.c.l.b16 %v274
        %v476 = vunpack.c.l.b16 %v275
        %v477 = vunpack.c.l.b16 %v276
        %v478 = vunpack.c.l.b16 %v277
        %v479 = vunpack.c.l.b16 %v278
        %v480 = vunpack.c.l.b16 %v279
        %v481 = vunpack.c.l.b16 %v280
        %v482 = vunpack.c.l.b16 %v281
        %v483 = vunpack.c.l.b16 %v282
        %v484 = vunpack.c.l.b16 %v283
        %v485 = vunpack.c.l.b16 %v284
        %v486 = vunpack.c.l.b16 %v285
        %v487 = vunpack.c.l.b16 %v286
        %v488 = vunpack.c.l.b16 %v287
        %v489 = vunpack.c.l.b16 %v288
        %v490 = vunpack.c.l.b16 %v289
        %v491 = vunpack.c.l.b16 %v290
        %v492 = vunpack.c.l.b16 %v291
        %v493 = vunpack.c.l.b16 %v292
        %v494 = vunpack.c.l.b16 %v293
        %v495 = vunpack.c.l.b16 %v294
        %v496 = vunpack.c.l.b16 %v295
        %v497 = vunpack.c.l.b16 %v296
        %v498 = vunpack.c.l.b16 %v297
        %v499 = vunpack.c.l.b16 %v298
        %v500 = vpack.c.b16 %v437, %v436
        %v501 = vpack.c.b16 %v439, %v438
        %v502 = vpack.c.b16 %v441, %v440
        %v503 = vpack.c.b16 %v443, %v442
        %v504 = vpack.c.b16 %v445, %v444
        %v505 = vpack.c.b16 %v447, %v446
        %v506 = vpack.c.b16 %v449, %v448
        %v507 = vpack.c.b16 %v451, %v450
        %v508 = vpack.c.b16 %v453, %v452
        %v509 = vpack.c.b16 %v455, %v454
        %v510 = vpack.c.b16 %v457, %v456
        %v511 = vpack.c.b16 %v459, %v458
        %v512 = vpack.c.b16 %v461, %v460
        %v513 = vpack.c.b16 %v463, %v462
        %v514 = vpack.c.b16 %v465, %v464
        %v515 = vpack.c.b16 %v467, %v466
        %v516 = vpack.c.b16 %v469, %v468
        %v517 = vpack.c.b16 %v471, %v470
        %v518 = vpack.c.b16 %v473, %v472
        %v519 = vpack.c.b16 %v475, %v474
        %v520 = vpack.c.b16 %v477, %v476
        %v521 = vpack.c.b16 %v479, %v478
        %v522 = vpack.c.b16 %v481, %v480
        %v523 = vpack.c.b16 %v483, %v482
        %v524 = vpack.c.b16 %v485, %v484
        %v525 = vpack.c.b16 %v487, %v486
        %v526 = vpack.c.b16 %v489, %v488
        %v527 = vpack.c.b16 %v491, %v490
        %v528 = vpack.c.b16 %v493, %v492
        %v529 = vpack.c.b16 %v495, %v494
        %v530 = vpack.c.b16 %v497, %v496
        %v531 = vpack.c.b16 %v499, %v498
        %v541 = vunpack.c.l.b16 %v299
        %v542 = vunpack.c.l.b16 %v300
        %v543 = vunpack.c.l.b16 %v301
        %v544 = vunpack.c.l.b16 %v302
        %v545 = vunpack.c.l.b16 %v303
        %v546 = vunpack.c.l.b16 %v304
        %v547 = vunpack.c.l.b16 %v305
        %v548 = vunpack.c.l.b16 %v306
        %v549 = vunpack.c.l.b16 %v307
        %v550 = vpack.c.b16 %v542, %v541
        %v551 = vpack.c.b16 %v544, %v543
        %v552 = vpack.c.b16 %v546, %v545
        %v553 = vpack.c.b16 %v548, %v547
        %v554 = vpack.c.b16 %v549, %v549
        %vm559 = vcmask 588800
        %v561 = vsel %vm559, %v500, 0
        %v564 = vsel %vm559, %v501, 0
        %v567 = vsel %vm559, %v502, 0
        %v570 = vsel %vm559, %v503, 0
        %v573 = vsel %vm559, %v504, 0
        %v576 = vsel %vm559, %v505, 0
        %v579 = vsel %vm559, %v506, 0
        %v582 = vsel %vm559, %v507, 0
        %v585 = vsel %vm559, %v508, 0
        %v588 = vsel %vm559, %v509, 0
        %v591 = vsel %vm559, %v510, 0
        %v594 = vsel %vm559, %v511, 0
        %v597 = vsel %vm559, %v512, 0
        %v600 = vsel %vm559, %v513, 0
        %v603 = vsel %vm559, %v514, 0
        %v606 = vsel %vm559, %v515, 0
        %v609 = vsel %vm559, %v516, 0
        %v612 = vsel %vm559, %v517, 0
        %v615 = vsel %vm559, %v518, 0
        %v618 = vsel %vm559, %v519, 0
        %v621 = vsel %vm559, %v520, 0
        %v624 = vsel %vm559, %v521, 0
        %v627 = vsel %vm559, %v522, 0
        %v630 = vsel %vm559, %v523, 0
        %v633 = vsel %vm559, %v524, 0
        %v636 = vsel %vm559, %v525, 0
        %v639 = vsel %vm559, %v526, 0
        %v642 = vsel %vm559, %v527, 0
        %v645 = vsel %vm559, %v528, 0
        %v648 = vsel %vm559, %v529, 0
        %v651 = vsel %vm559, %v530, 0
        %v654 = vsel %vm559, %v531, 0
        %vm656 = vcmask 1043456
        %v658 = vsel %vm656, %v554, 0
        %660 = vmatprep.subr.bf16.mxu0 0
        %661 = vmatpush1.bf16.msra.mxu0 %v550
        %662 = vmatprep.subr.bf16.mxu0 0
        %663 = vmatpush1.bf16.msra.mxu0 %v551
        %664 = vmatprep.subr.bf16.mxu0 0
        %665 = vmatpush1.bf16.msra.mxu0 %v552
        %666 = vmatprep.subr.bf16.mxu0 0
        %667 = vmatpush1.bf16.msra.mxu0 %v553
        %668 = vmatprep.subr.bf16.mxu0 0
        %669 = vmatpush1.bf16.msra.mxu0 %v658
        %670 = vmatprep.subr.bf16.mxu0 0
        %671 = vmatpush1.bf16.msra.mxu0 0
        %672 = vmatprep.subr.bf16.mxu0 0
        %673 = vmatpush1.bf16.msra.mxu0 0
        %674 = vmatprep.subr.bf16.mxu0 0
        %675 = vmatpush1.bf16.msra.mxu0 0
        %676 = vmatprep.subr.bf16.mxu0 0
        %677 = vmatpush1.bf16.msra.mxu0 0
        %678 = vmatprep.subr.bf16.mxu0 0
        %679 = vmatpush1.bf16.msra.mxu0 0
        %680 = vmatprep.subr.bf16.mxu0 0
        %681 = vmatpush1.bf16.msra.mxu0 0
        %682 = vmatprep.subr.bf16.mxu0 0
        %683 = vmatpush1.bf16.msra.mxu0 0
        %684 = vmatprep.subr.bf16.mxu0 0
        %685 = vmatpush1.bf16.msra.mxu0 0
        %686 = vmatprep.subr.bf16.mxu0 0
        %687 = vmatpush1.bf16.msra.mxu0 0
        %688 = vmatprep.subr.bf16.mxu0 0
        %689 = vmatpush1.bf16.msra.mxu0 0
        %690 = vmatprep.subr.bf16.mxu0 0
        %691 = vmatpush1.bf16.msra.mxu0 0
        %692 = vmatprep.mubr.bf16.mxu0 0
        %693 = vmatmul.mubr.bf16.gmra.mrb[0].mxu0 %v561
        %v694 = vpop.f32.mrb[0].mxu0
        %v695 = vadd.f32 %v308, %v694
        %v696 = vpop.f32.mrb[0].mxu0
        %v697 = vpop.f32.mrb[0].mxu0
        %v698 = vadd.f32 %v309, %v697
        %v699 = vpop.f32.mrb[0].mxu0
        %700 = vmatprep.mubr.bf16.mxu0 0
        %701 = vmatmul.mubr.bf16.gmra.mrb[0].mxu0 %v564
        %v702 = vpop.f32.mrb[0].mxu0
        %v703 = vadd.f32 %v310, %v702
        %v704 = vpop.f32.mrb[0].mxu0
        %v705 = vpop.f32.mrb[0].mxu0
        %v706 = vadd.f32 %v311, %v705
        %v707 = vpop.f32.mrb[0].mxu0
        %708 = vmatprep.mubr.bf16.mxu0 0
        %709 = vmatmul.mubr.bf16.gmra.mrb[0].mxu0 %v567
        %v710 = vpop.f32.mrb[0].mxu0
        %v711 = vadd.f32 %v312, %v710
        %v712 = vpop.f32.mrb[0].mxu0
        %v713 = vpop.f32.mrb[0].mxu0
        %v714 = vadd.f32 %v313, %v713
        %v715 = vpop.f32.mrb[0].mxu0
        %716 = vmatprep.mubr.bf16.mxu0 0
        %717 = vmatmul.mubr.bf16.gmra.mrb[0].mxu0 %v570
        %v718 = vpop.f32.mrb[0].mxu0
        %v719 = vadd.f32 %v314, %v718
        %v720 = vpop.f32.mrb[0].mxu0
        %v721 = vpop.f32.mrb[0].mxu0
        %v722 = vadd.f32 %v315, %v721
        %v723 = vpop.f32.mrb[0].mxu0
        %724 = vmatprep.mubr.bf16.mxu0 0
        %725 = vmatmul.mubr.bf16.gmra.mrb[0].mxu0 %v573
        %v726 = vpop.f32.mrb[0].mxu0
        %v727 = vadd.f32 %v316, %v726
        %v728 = vpop.f32.mrb[0].mxu0
        %v729 = vpop.f32.mrb[0].mxu0
        %v730 = vadd.f32 %v317, %v729
        %v731 = vpop.f32.mrb[0].mxu0
        %732 = vmatprep.mubr.bf16.mxu0 0
        %733 = vmatmul.mubr.bf16.gmra.mrb[0].mxu0 %v576
        %v734 = vpop.f32.mrb[0].mxu0
        %v735 = vadd.f32 %v318, %v734
        %v736 = vpop.f32.mrb[0].mxu0
        %v737 = vpop.f32.mrb[0].mxu0
        %v738 = vadd.f32 %v319, %v737
        %v739 = vpop.f32.mrb[0].mxu0
        %740 = vmatprep.mubr.bf16.mxu0 0
        %741 = vmatmul.mubr.bf16.gmra.mrb[0].mxu0 %v579
        %v742 = vpop.f32.mrb[0].mxu0
        %v743 = vadd.f32 %v320, %v742
        %v744 = vpop.f32.mrb[0].mxu0
        %v745 = vpop.f32.mrb[0].mxu0
        %v746 = vadd.f32 %v321, %v745
        %v747 = vpop.f32.mrb[0].mxu0
        %748 = vmatprep.mubr.bf16.mxu0 0
        %749 = vmatmul.mubr.bf16.gmra.mrb[0].mxu0 %v582
        %v750 = vpop.f32.mrb[0].mxu0
        %v751 = vadd.f32 %v322, %v750
        %v752 = vpop.f32.mrb[0].mxu0
        %v753 = vpop.f32.mrb[0].mxu0
        %v754 = vadd.f32 %v323, %v753
        %v755 = vpop.f32.mrb[0].mxu0
        %756 = vmatprep.mubr.bf16.mxu0 0
        %757 = vmatmul.mubr.bf16.gmra.mrb[0].mxu0 %v585
        %v758 = vpop.f32.mrb[0].mxu0
        %v759 = vadd.f32 %v324, %v758
        %v760 = vpop.f32.mrb[0].mxu0
        %v761 = vpop.f32.mrb[0].mxu0
        %v762 = vadd.f32 %v325, %v761
        %v763 = vpop.f32.mrb[0].mxu0
        %764 = vmatprep.mubr.bf16.mxu0 0
        %765 = vmatmul.mubr.bf16.gmra.mrb[0].mxu0 %v588
        %v766 = vpop.f32.mrb[0].mxu0
        %v767 = vadd.f32 %v326, %v766
        %v768 = vpop.f32.mrb[0].mxu0
        %v769 = vpop.f32.mrb[0].mxu0
        %v770 = vadd.f32 %v327, %v769
        %v771 = vpop.f32.mrb[0].mxu0
        %772 = vmatprep.mubr.bf16.mxu0 0
        %773 = vmatmul.mubr.bf16.gmra.mrb[0].mxu0 %v591
        %v774 = vpop.f32.mrb[0].mxu0
        %v775 = vadd.f32 %v328, %v774
        %v776 = vpop.f32.mrb[0].mxu0
        %v777 = vpop.f32.mrb[0].mxu0
        %v778 = vadd.f32 %v329, %v777
        %v779 = vpop.f32.mrb[0].mxu0
        %780 = vmatprep.mubr.bf16.mxu0 0
        %781 = vmatmul.mubr.bf16.gmra.mrb[0].mxu0 %v594
        %v782 = vpop.f32.mrb[0].mxu0
        %v783 = vadd.f32 %v330, %v782
        %v784 = vpop.f32.mrb[0].mxu0
        %v785 = vpop.f32.mrb[0].mxu0
        %v786 = vadd.f32 %v331, %v785
        %v787 = vpop.f32.mrb[0].mxu0
        %788 = vmatprep.mubr.bf16.mxu0 0
        %789 = vmatmul.mubr.bf16.gmra.mrb[0].mxu0 %v597
        %v790 = vpop.f32.mrb[0].mxu0
        %v791 = vadd.f32 %v332, %v790
        %v792 = vpop.f32.mrb[0].mxu0
        %v793 = vpop.f32.mrb[0].mxu0
        %v794 = vadd.f32 %v333, %v793
        %v795 = vpop.f32.mrb[0].mxu0
        %796 = vmatprep.mubr.bf16.mxu0 0
        %797 = vmatmul.mubr.bf16.gmra.mrb[0].mxu0 %v600
        %v798 = vpop.f32.mrb[0].mxu0
        %v799 = vadd.f32 %v334, %v798
        %v800 = vpop.f32.mrb[0].mxu0
        %v801 = vpop.f32.mrb[0].mxu0
        %v802 = vadd.f32 %v335, %v801
        %v803 = vpop.f32.mrb[0].mxu0
        %804 = vmatprep.mubr.bf16.mxu0 0
        %805 = vmatmul.mubr.bf16.gmra.mrb[0].mxu0 %v603
        %v806 = vpop.f32.mrb[0].mxu0
        %v807 = vadd.f32 %v336, %v806
        %v808 = vpop.f32.mrb[0].mxu0
        %v809 = vpop.f32.mrb[0].mxu0
        %v810 = vadd.f32 %v337, %v809
        %v811 = vpop.f32.mrb[0].mxu0
        %812 = vmatprep.mubr.bf16.mxu0 0
        %813 = vmatmul.mubr.bf16.gmra.mrb[0].mxu0 %v606
        %v814 = vpop.f32.mrb[0].mxu0
        %v815 = vadd.f32 %v338, %v814
        %v816 = vpop.f32.mrb[0].mxu0
        %v817 = vpop.f32.mrb[0].mxu0
        %v818 = vadd.f32 %v339, %v817
        %v819 = vpop.f32.mrb[0].mxu0
        %820 = vmatprep.mubr.bf16.mxu0 0
        %821 = vmatmul.mubr.bf16.gmra.mrb[0].mxu0 %v609
        %v822 = vpop.f32.mrb[0].mxu0
        %v823 = vadd.f32 %v340, %v822
        %v824 = vpop.f32.mrb[0].mxu0
        %v825 = vpop.f32.mrb[0].mxu0
        %v826 = vadd.f32 %v341, %v825
        %v827 = vpop.f32.mrb[0].mxu0
        %828 = vmatprep.mubr.bf16.mxu0 0
        %829 = vmatmul.mubr.bf16.gmra.mrb[0].mxu0 %v612
        %v830 = vpop.f32.mrb[0].mxu0
        %v831 = vadd.f32 %v342, %v830
        %v832 = vpop.f32.mrb[0].mxu0
        %v833 = vpop.f32.mrb[0].mxu0
        %v834 = vadd.f32 %v343, %v833
        %v835 = vpop.f32.mrb[0].mxu0
        %836 = vmatprep.mubr.bf16.mxu0 0
        %837 = vmatmul.mubr.bf16.gmra.mrb[0].mxu0 %v615
        %v838 = vpop.f32.mrb[0].mxu0
        %v839 = vadd.f32 %v344, %v838
        %v840 = vpop.f32.mrb[0].mxu0
        %v841 = vpop.f32.mrb[0].mxu0
        %v842 = vadd.f32 %v345, %v841
        %v843 = vpop.f32.mrb[0].mxu0
        %844 = vmatprep.mubr.bf16.mxu0 0
        %845 = vmatmul.mubr.bf16.gmra.mrb[0].mxu0 %v618
        %v846 = vpop.f32.mrb[0].mxu0
        %v847 = vadd.f32 %v346, %v846
        %v848 = vpop.f32.mrb[0].mxu0
        %v849 = vpop.f32.mrb[0].mxu0
        %v850 = vadd.f32 %v347, %v849
        %v851 = vpop.f32.mrb[0].mxu0
        %852 = vmatprep.mubr.bf16.mxu0 0
        %853 = vmatmul.mubr.bf16.gmra.mrb[0].mxu0 %v621
        %v854 = vpop.f32.mrb[0].mxu0
        %v855 = vadd.f32 %v348, %v854
        %v856 = vpop.f32.mrb[0].mxu0
        %v857 = vpop.f32.mrb[0].mxu0
        %v858 = vadd.f32 %v349, %v857
        %v859 = vpop.f32.mrb[0].mxu0
        %860 = vmatprep.mubr.bf16.mxu0 0
        %861 = vmatmul.mubr.bf16.gmra.mrb[0].mxu0 %v624
        %v862 = vpop.f32.mrb[0].mxu0
        %v863 = vadd.f32 %v350, %v862
        %v864 = vpop.f32.mrb[0].mxu0
        %v865 = vpop.f32.mrb[0].mxu0
        %v866 = vadd.f32 %v351, %v865
        %v867 = vpop.f32.mrb[0].mxu0
        %868 = vmatprep.mubr.bf16.mxu0 0
        %869 = vmatmul.mubr.bf16.gmra.mrb[0].mxu0 %v627
        %v870 = vpop.f32.mrb[0].mxu0
        %v871 = vadd.f32 %v352, %v870
        %v872 = vpop.f32.mrb[0].mxu0
        %v873 = vpop.f32.mrb[0].mxu0
        %v874 = vadd.f32 %v353, %v873
        %v875 = vpop.f32.mrb[0].mxu0
        %876 = vmatprep.mubr.bf16.mxu0 0
        %877 = vmatmul.mubr.bf16.gmra.mrb[0].mxu0 %v630
        %v878 = vpop.f32.mrb[0].mxu0
        %v879 = vadd.f32 %v354, %v878
        %v880 = vpop.f32.mrb[0].mxu0
        %v881 = vpop.f32.mrb[0].mxu0
        %v882 = vadd.f32 %v355, %v881
        %v883 = vpop.f32.mrb[0].mxu0
        %884 = vmatprep.mubr.bf16.mxu0 0
        %885 = vmatmul.mubr.bf16.gmra.mrb[0].mxu0 %v633
        %v886 = vpop.f32.mrb[0].mxu0
        %v887 = vadd.f32 %v356, %v886
        %v888 = vpop.f32.mrb[0].mxu0
        %v889 = vpop.f32.mrb[0].mxu0
        %v890 = vadd.f32 %v357, %v889
        %v891 = vpop.f32.mrb[0].mxu0
        %892 = vmatprep.mubr.bf16.mxu0 0
        %893 = vmatmul.mubr.bf16.gmra.mrb[0].mxu0 %v636
        %v894 = vpop.f32.mrb[0].mxu0
        %v895 = vadd.f32 %v358, %v894
        %v896 = vpop.f32.mrb[0].mxu0
        %v897 = vpop.f32.mrb[0].mxu0
        %v898 = vadd.f32 %v359, %v897
        %v899 = vpop.f32.mrb[0].mxu0
        %900 = vmatprep.mubr.bf16.mxu0 0
        %901 = vmatmul.mubr.bf16.gmra.mrb[0].mxu0 %v639
        %v902 = vpop.f32.mrb[0].mxu0
        %v903 = vadd.f32 %v360, %v902
        %v904 = vpop.f32.mrb[0].mxu0
        %v905 = vpop.f32.mrb[0].mxu0
        %v906 = vadd.f32 %v361, %v905
        %v907 = vpop.f32.mrb[0].mxu0
        %908 = vmatprep.mubr.bf16.mxu0 0
        %909 = vmatmul.mubr.bf16.gmra.mrb[0].mxu0 %v642
        %v910 = vpop.f32.mrb[0].mxu0
        %v911 = vadd.f32 %v362, %v910
        %v912 = vpop.f32.mrb[0].mxu0
        %v913 = vpop.f32.mrb[0].mxu0
        %v914 = vadd.f32 %v363, %v913
        %v915 = vpop.f32.mrb[0].mxu0
        %916 = vmatprep.mubr.bf16.mxu0 0
        %917 = vmatmul.mubr.bf16.gmra.mrb[0].mxu0 %v645
        %v918 = vpop.f32.mrb[0].mxu0
        %v919 = vadd.f32 %v364, %v918
        %v920 = vpop.f32.mrb[0].mxu0
        %v921 = vpop.f32.mrb[0].mxu0
        %v922 = vadd.f32 %v365, %v921
        %v923 = vpop.f32.mrb[0].mxu0
        %924 = vmatprep.mubr.bf16.mxu0 0
        %925 = vmatmul.mubr.bf16.gmra.mrb[0].mxu0 %v648
        %v926 = vpop.f32.mrb[0].mxu0
        %v927 = vadd.f32 %v366, %v926
        %v928 = vpop.f32.mrb[0].mxu0
        %v929 = vpop.f32.mrb[0].mxu0
        %v930 = vadd.f32 %v367, %v929
        %v931 = vpop.f32.mrb[0].mxu0
        %932 = vmatprep.mubr.bf16.mxu0 0
        %933 = vmatmul.mubr.bf16.gmra.mrb[0].mxu0 %v651
        %v934 = vpop.f32.mrb[0].mxu0
        %v935 = vadd.f32 %v368, %v934
        %v936 = vpop.f32.mrb[0].mxu0
        %v937 = vpop.f32.mrb[0].mxu0
        %v938 = vadd.f32 %v369, %v937
        %v939 = vpop.f32.mrb[0].mxu0
        %940 = vmatprep.mubr.bf16.mxu0 0
        %941 = vmatmul.mubr.bf16.gmra.mrb[0].mxu0 %v654
        %v942 = vpop.f32.mrb[0].mxu0
        %v943 = vadd.f32 %v370, %v942
        %v944 = vpop.f32.mrb[0].mxu0
        %v945 = vpop.f32.mrb[0].mxu0
        %v946 = vadd.f32 %v371, %v945
        %v947 = vpop.f32.mrb[0].mxu0
        %948 = vdwg.mxu0
        %vm949 = vcmask 64512
        %950 = vst.msk [vmem:[%s200] sm:$0xff] %vm949, %v695
        %951 = vst.msk [vmem:[%s200 + $0x8] sm:$0xff] %vm949, %v698
        %952 = vst.msk [vmem:[%s200 + $0x10] sm:$0xff] %vm949, %v703
        %953 = vst.msk [vmem:[%s200 + $0x18] sm:$0xff] %vm949, %v706
        %954 = vst.msk [vmem:[%s200 + $0x20] sm:$0xff] %vm949, %v711
        %955 = vst.msk [vmem:[%s200 + $0x28] sm:$0xff] %vm949, %v714
        %956 = vst.msk [vmem:[%s200 + $0x30] sm:$0xff] %vm949, %v719
        %957 = vst.msk [vmem:[%s200 + $0x38] sm:$0xff] %vm949, %v722
        %958 = vst.msk [vmem:[%s200 + $0x40] sm:$0xff] %vm949, %v727
        %959 = vst.msk [vmem:[%s200 + $0x48] sm:$0xff] %vm949, %v730
        %960 = vst.msk [vmem:[%s200 + $0x50] sm:$0xff] %vm949, %v735
        %961 = vst.msk [vmem:[%s200 + $0x58] sm:$0xff] %vm949, %v738
        %962 = vst.msk [vmem:[%s200 + $0x60] sm:$0xff] %vm949, %v743
        %963 = vst.msk [vmem:[%s200 + $0x68] sm:$0xff] %vm949, %v746
        %964 = vst.msk [vmem:[%s200 + $0x70] sm:$0xff] %vm949, %v751
        %965 = vst.msk [vmem:[%s200 + $0x78] sm:$0xff] %vm949, %v754
        %966 = vst.msk [vmem:[%s200 + $0x80] sm:$0xff] %vm949, %v759
        %967 = vst.msk [vmem:[%s200 + $0x88] sm:$0xff] %vm949, %v762
        %968 = vst.msk [vmem:[%s200 + $0x90] sm:$0xff] %vm949, %v767
        %969 = vst.msk [vmem:[%s200 + $0x98] sm:$0xff] %vm949, %v770
        %970 = vst.msk [vmem:[%s200 + $0xa0] sm:$0xff] %vm949, %v775
        %971 = vst.msk [vmem:[%s200 + $0xa8] sm:$0xff] %vm949, %v778
        %972 = vst.msk [vmem:[%s200 + $0xb0] sm:$0xff] %vm949, %v783
        %973 = vst.msk [vmem:[%s200 + $0xb8] sm:$0xff] %vm949, %v786
        %974 = vst.msk [vmem:[%s200 + $0xc0] sm:$0xff] %vm949, %v791
        %975 = vst.msk [vmem:[%s200 + $0xc8] sm:$0xff] %vm949, %v794
        %976 = vst.msk [vmem:[%s200 + $0xd0] sm:$0xff] %vm949, %v799
        %977 = vst.msk [vmem:[%s200 + $0xd8] sm:$0xff] %vm949, %v802
        %978 = vst.msk [vmem:[%s200 + $0xe0] sm:$0xff] %vm949, %v807
        %979 = vst.msk [vmem:[%s200 + $0xe8] sm:$0xff] %vm949, %v810
        %980 = vst.msk [vmem:[%s200 + $0xf0] sm:$0xff] %vm949, %v815
        %981 = vst.msk [vmem:[%s200 + $0xf8] sm:$0xff] %vm949, %v818
        %982 = vst.msk [vmem:[%s200 + $0x100] sm:$0xff] %vm949, %v823
        %983 = vst.msk [vmem:[%s200 + $0x108] sm:$0xff] %vm949, %v826
        %984 = vst.msk [vmem:[%s200 + $0x110] sm:$0xff] %vm949, %v831
        %985 = vst.msk [vmem:[%s200 + $0x118] sm:$0xff] %vm949, %v834
        %986 = vst.msk [vmem:[%s200 + $0x120] sm:$0xff] %vm949, %v839
        %987 = vst.msk [vmem:[%s200 + $0x128] sm:$0xff] %vm949, %v842
        %988 = vst.msk [vmem:[%s200 + $0x130] sm:$0xff] %vm949, %v847
        %989 = vst.msk [vmem:[%s200 + $0x138] sm:$0xff] %vm949, %v850
        %990 = vst.msk [vmem:[%s200 + $0x140] sm:$0xff] %vm949, %v855
        %991 = vst.msk [vmem:[%s200 + $0x148] sm:$0xff] %vm949, %v858
        %992 = vst.msk [vmem:[%s200 + $0x150] sm:$0xff] %vm949, %v863
        %993 = vst.msk [vmem:[%s200 + $0x158] sm:$0xff] %vm949, %v866
        %994 = vst.msk [vmem:[%s200 + $0x160] sm:$0xff] %vm949, %v871
        %995 = vst.msk [vmem:[%s200 + $0x168] sm:$0xff] %vm949, %v874
        %996 = vst.msk [vmem:[%s200 + $0x170] sm:$0xff] %vm949, %v879
        %997 = vst.msk [vmem:[%s200 + $0x178] sm:$0xff] %vm949, %v882
        %998 = vst.msk [vmem:[%s200 + $0x180] sm:$0xff] %vm949, %v887
        %999 = vst.msk [vmem:[%s200 + $0x188] sm:$0xff] %vm949, %v890
        %1000 = vst.msk [vmem:[%s200 + $0x190] sm:$0xff] %vm949, %v895
        %1001 = vst.msk [vmem:[%s200 + $0x198] sm:$0xff] %vm949, %v898
        %1002 = vst.msk [vmem:[%s200 + $0x1a0] sm:$0xff] %vm949, %v903
        %1003 = vst.msk [vmem:[%s200 + $0x1a8] sm:$0xff] %vm949, %v906
        %1004 = vst.msk [vmem:[%s200 + $0x1b0] sm:$0xff] %vm949, %v911
        %1005 = vst.msk [vmem:[%s200 + $0x1b8] sm:$0xff] %vm949, %v914
        %1006 = vst.msk [vmem:[%s200 + $0x1c0] sm:$0xff] %vm949, %v919
        %1007 = vst.msk [vmem:[%s200 + $0x1c8] sm:$0xff] %vm949, %v922
        %1008 = vst.msk [vmem:[%s200 + $0x1d0] sm:$0xff] %vm949, %v927
        %1009 = vst.msk [vmem:[%s200 + $0x1d8] sm:$0xff] %vm949, %v930
        %1010 = vst.msk [vmem:[%s200 + $0x1e0] sm:$0xff] %vm949, %v935
        %1011 = vst.msk [vmem:[%s200 + $0x1e8] sm:$0xff] %vm949, %v938
        %1012 = vst.msk [vmem:[%s200 + $0x1f0] sm:$0xff] %vm949, %v943
        %1013 = vst.msk [vmem:[%s200 + $0x1f8] sm:$0xff] %vm949, %v946
        %s1014 = sand.u32 %s95, 1
        %s1015 = sand.u32 %s95, 1
        %s1016 = smul.addr %s1015, 512
        %s1017 = scalar_lea.vmem [#allocation2], %s1016
        // Predicated region
        $region33: #{distg_block_forward.11} parent=31 // pred_check
          %p1018 = pneg %p105
        $region34: #{distg_block_forward.11} parent=31 // pred_check_branch
          %1020 = sbr.rel (%p1018) target = $region36
        $region35: #{distg_block_forward.11} parent=31 // pred_region
          %s1021 = smul.u32 64, %s14
          %s1022 = ssub.s32 400, %s1021
          %p1023 = scmp.lt.s32.totalorder %s1022, 64
          %s1024 = scalar_select %p1023, %s1022, 64
          %s1025 = smul.u32 128, %s1024
          %p1026 = scmp.ne.s32.totalorder 0, %s1025
          %s1027 = smul.addr %s1021, 8
          %s1028 = scalar_lea.vmem %s3, %s1027
          // Predicated region
          $region37: #{distg_block_forward.11} parent=35 // pred_check
            %p1029 = pneg %p1026
          $region38: #{distg_block_forward.11} parent=35 // pred_check_branch
            %1031 = sbr.rel (%p1029) target = $region40
          $region39: #{distg_block_forward.11} parent=35 // pred_region
            // Predicated region
            $region41: #{distg_block_forward.11} parent=39 // pred_check
              _
            $region42: #{distg_block_forward.11} parent=39 // pred_check_branch
              %1033 = sbr.rel (0) target = $region44
            $region43: #{distg_block_forward.11} parent=39 // pred_region
              // Predicated region
              $region63: #{distg_block_forward.11} parent=43 // pred_check
                _
              $region64: #{distg_block_forward.11} parent=43 // pred_check_branch
                %1208 = sbr.rel (0) target = $region66
              $region65: #{distg_block_forward.11} parent=43 // pred_region
                %s1209 = sshrl.u32 %s1024, 6
                // While loop
                $region67: #{distg_block_forward.11} parent=65 // loop_pre_header
                  _
                $region68: #{distg_block_forward.11} parent=65 // loop_header
                  %s1211 = sphi 0, %s1213
                  %p1212 = scmp.ge.s32.totalorder %s1211, %s1209
                  %s1216 = sphi 0, %s1349
                  %s1217 = sphi %s1017, %s1352
                  %s1218 = sphi %s1028, %s1353
                $region69: #{distg_block_forward.11} parent=65 // loop_header_branch
                  %1215 = sbr.rel (%p1212) target = $region73
                $region70: #{distg_block_forward.11} parent=65 // loop_body
                  %v1219 = vld [vmem:[%s1217] sm:$0xff]
                  %1220 = vst [vmem:[%s1218] sm:$0xff] %v1219
                  %v1221 = vld [vmem:[%s1217 + $0x8] sm:$0xff]
                  %1222 = vst [vmem:[%s1218 + $0x8] sm:$0xff] %v1221
                  %v1223 = vld [vmem:[%s1217 + $0x10] sm:$0xff]
                  %1224 = vst [vmem:[%s1218 + $0x10] sm:$0xff] %v1223
                  %v1225 = vld [vmem:[%s1217 + $0x18] sm:$0xff]
                  %1226 = vst [vmem:[%s1218 + $0x18] sm:$0xff] %v1225
                  %v1227 = vld [vmem:[%s1217 + $0x20] sm:$0xff]
                  %1228 = vst [vmem:[%s1218 + $0x20] sm:$0xff] %v1227
                  %v1229 = vld [vmem:[%s1217 + $0x28] sm:$0xff]
                  %1230 = vst [vmem:[%s1218 + $0x28] sm:$0xff] %v1229
                  %v1231 = vld [vmem:[%s1217 + $0x30] sm:$0xff]
                  %1232 = vst [vmem:[%s1218 + $0x30] sm:$0xff] %v1231
                  %v1233 = vld [vmem:[%s1217 + $0x38] sm:$0xff]
                  %1234 = vst [vmem:[%s1218 + $0x38] sm:$0xff] %v1233
                  %v1235 = vld [vmem:[%s1217 + $0x40] sm:$0xff]
                  %1236 = vst [vmem:[%s1218 + $0x40] sm:$0xff] %v1235
                  %v1237 = vld [vmem:[%s1217 + $0x48] sm:$0xff]
                  %1238 = vst [vmem:[%s1218 + $0x48] sm:$0xff] %v1237
                  %v1239 = vld [vmem:[%s1217 + $0x50] sm:$0xff]
                  %1240 = vst [vmem:[%s1218 + $0x50] sm:$0xff] %v1239
                  %v1241 = vld [vmem:[%s1217 + $0x58] sm:$0xff]
                  %1242 = vst [vmem:[%s1218 + $0x58] sm:$0xff] %v1241
                  %v1243 = vld [vmem:[%s1217 + $0x60] sm:$0xff]
                  %1244 = vst [vmem:[%s1218 + $0x60] sm:$0xff] %v1243
                  %v1245 = vld [vmem:[%s1217 + $0x68] sm:$0xff]
                  %1246 = vst [vmem:[%s1218 + $0x68] sm:$0xff] %v1245
                  %v1247 = vld [vmem:[%s1217 + $0x70] sm:$0xff]
                  %1248 = vst [vmem:[%s1218 + $0x70] sm:$0xff] %v1247
                  %v1249 = vld [vmem:[%s1217 + $0x78] sm:$0xff]
                  %1250 = vst [vmem:[%s1218 + $0x78] sm:$0xff] %v1249
                  %v1251 = vld [vmem:[%s1217 + $0x80] sm:$0xff]
                  %1252 = vst [vmem:[%s1218 + $0x80] sm:$0xff] %v1251
                  %v1253 = vld [vmem:[%s1217 + $0x88] sm:$0xff]
                  %1254 = vst [vmem:[%s1218 + $0x88] sm:$0xff] %v1253
                  %v1255 = vld [vmem:[%s1217 + $0x90] sm:$0xff]
                  %1256 = vst [vmem:[%s1218 + $0x90] sm:$0xff] %v1255
                  %v1257 = vld [vmem:[%s1217 + $0x98] sm:$0xff]
                  %1258 = vst [vmem:[%s1218 + $0x98] sm:$0xff] %v1257
                  %v1259 = vld [vmem:[%s1217 + $0xa0] sm:$0xff]
                  %1260 = vst [vmem:[%s1218 + $0xa0] sm:$0xff] %v1259
                  %v1261 = vld [vmem:[%s1217 + $0xa8] sm:$0xff]
                  %1262 = vst [vmem:[%s1218 + $0xa8] sm:$0xff] %v1261
                  %v1263 = vld [vmem:[%s1217 + $0xb0] sm:$0xff]
                  %1264 = vst [vmem:[%s1218 + $0xb0] sm:$0xff] %v1263
                  %v1265 = vld [vmem:[%s1217 + $0xb8] sm:$0xff]
                  %1266 = vst [vmem:[%s1218 + $0xb8] sm:$0xff] %v1265
                  %v1267 = vld [vmem:[%s1217 + $0xc0] sm:$0xff]
                  %1268 = vst [vmem:[%s1218 + $0xc0] sm:$0xff] %v1267
                  %v1269 = vld [vmem:[%s1217 + $0xc8] sm:$0xff]
                  %1270 = vst [vmem:[%s1218 + $0xc8] sm:$0xff] %v1269
                  %v1271 = vld [vmem:[%s1217 + $0xd0] sm:$0xff]
                  %1272 = vst [vmem:[%s1218 + $0xd0] sm:$0xff] %v1271
                  %v1273 = vld [vmem:[%s1217 + $0xd8] sm:$0xff]
                  %1274 = vst [vmem:[%s1218 + $0xd8] sm:$0xff] %v1273
                  %v1275 = vld [vmem:[%s1217 + $0xe0] sm:$0xff]
                  %1276 = vst [vmem:[%s1218 + $0xe0] sm:$0xff] %v1275
                  %v1277 = vld [vmem:[%s1217 + $0xe8] sm:$0xff]
                  %1278 = vst [vmem:[%s1218 + $0xe8] sm:$0xff] %v1277
                  %v1279 = vld [vmem:[%s1217 + $0xf0] sm:$0xff]
                  %1280 = vst [vmem:[%s1218 + $0xf0] sm:$0xff] %v1279
                  %v1281 = vld [vmem:[%s1217 + $0xf8] sm:$0xff]
                  %1282 = vst [vmem:[%s1218 + $0xf8] sm:$0xff] %v1281
                  %v1283 = vld [vmem:[%s1217 + $0x100] sm:$0xff]
                  %1284 = vst [vmem:[%s1218 + $0x100] sm:$0xff] %v1283
                  %v1285 = vld [vmem:[%s1217 + $0x108] sm:$0xff]
                  %1286 = vst [vmem:[%s1218 + $0x108] sm:$0xff] %v1285
                  %v1287 = vld [vmem:[%s1217 + $0x110] sm:$0xff]
                  %1288 = vst [vmem:[%s1218 + $0x110] sm:$0xff] %v1287
                  %v1289 = vld [vmem:[%s1217 + $0x118] sm:$0xff]
                  %1290 = vst [vmem:[%s1218 + $0x118] sm:$0xff] %v1289
                  %v1291 = vld [vmem:[%s1217 + $0x120] sm:$0xff]
                  %1292 = vst [vmem:[%s1218 + $0x120] sm:$0xff] %v1291
                  %v1293 = vld [vmem:[%s1217 + $0x128] sm:$0xff]
                  %1294 = vst [vmem:[%s1218 + $0x128] sm:$0xff] %v1293
                  %v1295 = vld [vmem:[%s1217 + $0x130] sm:$0xff]
                  %1296 = vst [vmem:[%s1218 + $0x130] sm:$0xff] %v1295
                  %v1297 = vld [vmem:[%s1217 + $0x138] sm:$0xff]
                  %1298 = vst [vmem:[%s1218 + $0x138] sm:$0xff] %v1297
                  %v1299 = vld [vmem:[%s1217 + $0x140] sm:$0xff]
                  %1300 = vst [vmem:[%s1218 + $0x140] sm:$0xff] %v1299
                  %v1301 = vld [vmem:[%s1217 + $0x148] sm:$0xff]
                  %1302 = vst [vmem:[%s1218 + $0x148] sm:$0xff] %v1301
                  %v1303 = vld [vmem:[%s1217 + $0x150] sm:$0xff]
                  %1304 = vst [vmem:[%s1218 + $0x150] sm:$0xff] %v1303
                  %v1305 = vld [vmem:[%s1217 + $0x158] sm:$0xff]
                  %1306 = vst [vmem:[%s1218 + $0x158] sm:$0xff] %v1305
                  %v1307 = vld [vmem:[%s1217 + $0x160] sm:$0xff]
                  %1308 = vst [vmem:[%s1218 + $0x160] sm:$0xff] %v1307
                  %v1309 = vld [vmem:[%s1217 + $0x168] sm:$0xff]
                  %1310 = vst [vmem:[%s1218 + $0x168] sm:$0xff] %v1309
                  %v1311 = vld [vmem:[%s1217 + $0x170] sm:$0xff]
                  %1312 = vst [vmem:[%s1218 + $0x170] sm:$0xff] %v1311
                  %v1313 = vld [vmem:[%s1217 + $0x178] sm:$0xff]
                  %1314 = vst [vmem:[%s1218 + $0x178] sm:$0xff] %v1313
                  %v1315 = vld [vmem:[%s1217 + $0x180] sm:$0xff]
                  %1316 = vst [vmem:[%s1218 + $0x180] sm:$0xff] %v1315
                  %v1317 = vld [vmem:[%s1217 + $0x188] sm:$0xff]
                  %1318 = vst [vmem:[%s1218 + $0x188] sm:$0xff] %v1317
                  %v1319 = vld [vmem:[%s1217 + $0x190] sm:$0xff]
                  %1320 = vst [vmem:[%s1218 + $0x190] sm:$0xff] %v1319
                  %v1321 = vld [vmem:[%s1217 + $0x198] sm:$0xff]
                  %1322 = vst [vmem:[%s1218 + $0x198] sm:$0xff] %v1321
                  %v1323 = vld [vmem:[%s1217 + $0x1a0] sm:$0xff]
                  %1324 = vst [vmem:[%s1218 + $0x1a0] sm:$0xff] %v1323
                  %v1325 = vld [vmem:[%s1217 + $0x1a8] sm:$0xff]
                  %1326 = vst [vmem:[%s1218 + $0x1a8] sm:$0xff] %v1325
                  %v1327 = vld [vmem:[%s1217 + $0x1b0] sm:$0xff]
                  %1328 = vst [vmem:[%s1218 + $0x1b0] sm:$0xff] %v1327
                  %v1329 = vld [vmem:[%s1217 + $0x1b8] sm:$0xff]
                  %1330 = vst [vmem:[%s1218 + $0x1b8] sm:$0xff] %v1329
                  %v1331 = vld [vmem:[%s1217 + $0x1c0] sm:$0xff]
                  %1332 = vst [vmem:[%s1218 + $0x1c0] sm:$0xff] %v1331
                  %v1333 = vld [vmem:[%s1217 + $0x1c8] sm:$0xff]
                  %1334 = vst [vmem:[%s1218 + $0x1c8] sm:$0xff] %v1333
                  %v1335 = vld [vmem:[%s1217 + $0x1d0] sm:$0xff]
                  %1336 = vst [vmem:[%s1218 + $0x1d0] sm:$0xff] %v1335
                  %v1337 = vld [vmem:[%s1217 + $0x1d8] sm:$0xff]
                  %1338 = vst [vmem:[%s1218 + $0x1d8] sm:$0xff] %v1337
                  %v1339 = vld [vmem:[%s1217 + $0x1e0] sm:$0xff]
                  %1340 = vst [vmem:[%s1218 + $0x1e0] sm:$0xff] %v1339
                  %v1341 = vld [vmem:[%s1217 + $0x1e8] sm:$0xff]
                  %1342 = vst [vmem:[%s1218 + $0x1e8] sm:$0xff] %v1341
                  %v1343 = vld [vmem:[%s1217 + $0x1f0] sm:$0xff]
                  %1344 = vst [vmem:[%s1218 + $0x1f0] sm:$0xff] %v1343
                  %v1345 = vld [vmem:[%s1217 + $0x1f8] sm:$0xff]
                  %1346 = vst [vmem:[%s1218 + $0x1f8] sm:$0xff] %v1345
                  %s1347 = sadd.s32 1, %s1216
                  %p1348 = scmp.ge.s32.totalorder %s1347, %s1209
                  %s1349 = scalar_select %p1348, 0, %s1347
                  %s1350 = smul.u32 %s1349, 512
                  %s1351 = smul.u32 %s1349, 512
                  %s1352 = scalar_lea.vmem %s1017, %s1350 [#allocation2]
                  %s1353 = scalar_lea.vmem %s1028, %s1351
                $region71: #{distg_block_forward.11} parent=65 // loop_footer
                  %s1213 = sadd.s32 %s1211, 1
                $region72: #{distg_block_forward.11} parent=65 // loop_footer_branch
                  %1210 = sbr.rel target = $region68
                $region73: #{distg_block_forward.11} parent=65 // loop_exit
                  _
                %s1354 = sshrl.u32 %s1024, 6
                %s1355 = sand.u32 %s1024, 63
                %s1356 = smul.u32 %s1354, 64
                %s1357 = smul.u32 8, %s1356
                %s1358 = scalar_lea.vmem %s1017, %s1357 [#allocation2]
                %s1359 = smul.u32 8, %s1356
                %s1360 = scalar_lea.vmem %s1028, %s1359
                // While loop
                $region74: #{distg_block_forward.11} parent=65 // loop_pre_header
                  _
                $region75: #{distg_block_forward.11} parent=65 // loop_header
                  %s1362 = sphi 0, %s1364
                  %p1363 = scmp.ge.s32.totalorder %s1362, %s1355
                  %s1367 = sphi 0, %s1374
                  %s1368 = sphi %s1358, %s1377
                  %s1369 = sphi %s1360, %s1378
                $region76: #{distg_block_forward.11} parent=65 // loop_header_branch
                  %1366 = sbr.rel (%p1363) target = $region80
                $region77: #{distg_block_forward.11} parent=65 // loop_body
                  %v1370 = vld [vmem:[%s1368] sm:$0xff]
                  %1371 = vst [vmem:[%s1369] sm:$0xff] %v1370
                  %s1372 = sadd.s32 1, %s1367
                  %p1373 = scmp.ge.s32.totalorder %s1372, %s1355
                  %s1374 = scalar_select %p1373, 0, %s1372
                  %s1375 = smul.u32 %s1374, 8
                  %s1376 = smul.u32 %s1374, 8
                  %s1377 = scalar_lea.vmem %s1358, %s1375 [#allocation2]
                  %s1378 = scalar_lea.vmem %s1360, %s1376
                $region78: #{distg_block_forward.11} parent=65 // loop_footer
                  %s1364 = sadd.s32 %s1362, 1
                $region79: #{distg_block_forward.11} parent=65 // loop_footer_branch
                  %1361 = sbr.rel target = $region75
                $region80: #{distg_block_forward.11} parent=65 // loop_exit
                  _
              $region66: #{distg_block_forward.11} parent=43 // pred_fallthru
                _
              // Predicated region
              $region81: #{distg_block_forward.11} parent=43 // pred_check
                _
              $region82: #{distg_block_forward.11} parent=43 // pred_check_branch
                %1380 = sbr.rel target = $region84
              $region83: #{distg_block_forward.11} parent=43 // pred_region
                _
              $region84: #{distg_block_forward.11} parent=43 // pred_fallthru
                _
            $region44: #{distg_block_forward.11} parent=39 // pred_fallthru
              _
            // Predicated region
            $region45: #{distg_block_forward.11} parent=39 // pred_check
              _
            $region46: #{distg_block_forward.11} parent=39 // pred_check_branch
              %1035 = sbr.rel target = $region48
            $region47: #{distg_block_forward.11} parent=39 // pred_region
              %s1037 = sshrl.u32 %s1024, 6
              // While loop
              $region49: #{distg_block_forward.11} parent=47 // loop_pre_header
                _
              $region50: #{distg_block_forward.11} parent=47 // loop_header
                %s1039 = sphi 0, %s1041
                %p1040 = scmp.ge.s32.totalorder %s1039, %s1037
                %s1044 = sphi 0, %s1177
                %s1045 = sphi %s1017, %s1180
                %s1046 = sphi %s1028, %s1181
              $region51: #{distg_block_forward.11} parent=47 // loop_header_branch
                %1043 = sbr.rel (%p1040) target = $region55
              $region52: #{distg_block_forward.11} parent=47 // loop_body
                %v1047 = vld [vmem:[%s1045] sm:$0xff]
                %1048 = vst [vmem:[%s1046] sm:$0xff] %v1047
                %v1049 = vld [vmem:[%s1045 + $0x8] sm:$0xff]
                %1050 = vst [vmem:[%s1046 + $0x8] sm:$0xff] %v1049
                %v1051 = vld [vmem:[%s1045 + $0x10] sm:$0xff]
                %1052 = vst [vmem:[%s1046 + $0x10] sm:$0xff] %v1051
                %v1053 = vld [vmem:[%s1045 + $0x18] sm:$0xff]
                %1054 = vst [vmem:[%s1046 + $0x18] sm:$0xff] %v1053
                %v1055 = vld [vmem:[%s1045 + $0x20] sm:$0xff]
                %1056 = vst [vmem:[%s1046 + $0x20] sm:$0xff] %v1055
                %v1057 = vld [vmem:[%s1045 + $0x28] sm:$0xff]
                %1058 = vst [vmem:[%s1046 + $0x28] sm:$0xff] %v1057
                %v1059 = vld [vmem:[%s1045 + $0x30] sm:$0xff]
                %1060 = vst [vmem:[%s1046 + $0x30] sm:$0xff] %v1059
                %v1061 = vld [vmem:[%s1045 + $0x38] sm:$0xff]
                %1062 = vst [vmem:[%s1046 + $0x38] sm:$0xff] %v1061
                %v1063 = vld [vmem:[%s1045 + $0x40] sm:$0xff]
                %1064 = vst [vmem:[%s1046 + $0x40] sm:$0xff] %v1063
                %v1065 = vld [vmem:[%s1045 + $0x48] sm:$0xff]
                %1066 = vst [vmem:[%s1046 + $0x48] sm:$0xff] %v1065
                %v1067 = vld [vmem:[%s1045 + $0x50] sm:$0xff]
                %1068 = vst [vmem:[%s1046 + $0x50] sm:$0xff] %v1067
                %v1069 = vld [vmem:[%s1045 + $0x58] sm:$0xff]
                %1070 = vst [vmem:[%s1046 + $0x58] sm:$0xff] %v1069
                %v1071 = vld [vmem:[%s1045 + $0x60] sm:$0xff]
                %1072 = vst [vmem:[%s1046 + $0x60] sm:$0xff] %v1071
                %v1073 = vld [vmem:[%s1045 + $0x68] sm:$0xff]
                %1074 = vst [vmem:[%s1046 + $0x68] sm:$0xff] %v1073
                %v1075 = vld [vmem:[%s1045 + $0x70] sm:$0xff]
                %1076 = vst [vmem:[%s1046 + $0x70] sm:$0xff] %v1075
                %v1077 = vld [vmem:[%s1045 + $0x78] sm:$0xff]
                %1078 = vst [vmem:[%s1046 + $0x78] sm:$0xff] %v1077
                %v1079 = vld [vmem:[%s1045 + $0x80] sm:$0xff]
                %1080 = vst [vmem:[%s1046 + $0x80] sm:$0xff] %v1079
                %v1081 = vld [vmem:[%s1045 + $0x88] sm:$0xff]
                %1082 = vst [vmem:[%s1046 + $0x88] sm:$0xff] %v1081
                %v1083 = vld [vmem:[%s1045 + $0x90] sm:$0xff]
                %1084 = vst [vmem:[%s1046 + $0x90] sm:$0xff] %v1083
                %v1085 = vld [vmem:[%s1045 + $0x98] sm:$0xff]
                %1086 = vst [vmem:[%s1046 + $0x98] sm:$0xff] %v1085
                %v1087 = vld [vmem:[%s1045 + $0xa0] sm:$0xff]
                %1088 = vst [vmem:[%s1046 + $0xa0] sm:$0xff] %v1087
                %v1089 = vld [vmem:[%s1045 + $0xa8] sm:$0xff]
                %1090 = vst [vmem:[%s1046 + $0xa8] sm:$0xff] %v1089
                %v1091 = vld [vmem:[%s1045 + $0xb0] sm:$0xff]
                %1092 = vst [vmem:[%s1046 + $0xb0] sm:$0xff] %v1091
                %v1093 = vld [vmem:[%s1045 + $0xb8] sm:$0xff]
                %1094 = vst [vmem:[%s1046 + $0xb8] sm:$0xff] %v1093
                %v1095 = vld [vmem:[%s1045 + $0xc0] sm:$0xff]
                %1096 = vst [vmem:[%s1046 + $0xc0] sm:$0xff] %v1095
                %v1097 = vld [vmem:[%s1045 + $0xc8] sm:$0xff]
                %1098 = vst [vmem:[%s1046 + $0xc8] sm:$0xff] %v1097
                %v1099 = vld [vmem:[%s1045 + $0xd0] sm:$0xff]
                %1100 = vst [vmem:[%s1046 + $0xd0] sm:$0xff] %v1099
                %v1101 = vld [vmem:[%s1045 + $0xd8] sm:$0xff]
                %1102 = vst [vmem:[%s1046 + $0xd8] sm:$0xff] %v1101
                %v1103 = vld [vmem:[%s1045 + $0xe0] sm:$0xff]
                %1104 = vst [vmem:[%s1046 + $0xe0] sm:$0xff] %v1103
                %v1105 = vld [vmem:[%s1045 + $0xe8] sm:$0xff]
                %1106 = vst [vmem:[%s1046 + $0xe8] sm:$0xff] %v1105
                %v1107 = vld [vmem:[%s1045 + $0xf0] sm:$0xff]
                %1108 = vst [vmem:[%s1046 + $0xf0] sm:$0xff] %v1107
                %v1109 = vld [vmem:[%s1045 + $0xf8] sm:$0xff]
                %1110 = vst [vmem:[%s1046 + $0xf8] sm:$0xff] %v1109
                %v1111 = vld [vmem:[%s1045 + $0x100] sm:$0xff]
                %1112 = vst [vmem:[%s1046 + $0x100] sm:$0xff] %v1111
                %v1113 = vld [vmem:[%s1045 + $0x108] sm:$0xff]
                %1114 = vst [vmem:[%s1046 + $0x108] sm:$0xff] %v1113
                %v1115 = vld [vmem:[%s1045 + $0x110] sm:$0xff]
                %1116 = vst [vmem:[%s1046 + $0x110] sm:$0xff] %v1115
                %v1117 = vld [vmem:[%s1045 + $0x118] sm:$0xff]
                %1118 = vst [vmem:[%s1046 + $0x118] sm:$0xff] %v1117
                %v1119 = vld [vmem:[%s1045 + $0x120] sm:$0xff]
                %1120 = vst [vmem:[%s1046 + $0x120] sm:$0xff] %v1119
                %v1121 = vld [vmem:[%s1045 + $0x128] sm:$0xff]
                %1122 = vst [vmem:[%s1046 + $0x128] sm:$0xff] %v1121
                %v1123 = vld [vmem:[%s1045 + $0x130] sm:$0xff]
                %1124 = vst [vmem:[%s1046 + $0x130] sm:$0xff] %v1123
                %v1125 = vld [vmem:[%s1045 + $0x138] sm:$0xff]
                %1126 = vst [vmem:[%s1046 + $0x138] sm:$0xff] %v1125
                %v1127 = vld [vmem:[%s1045 + $0x140] sm:$0xff]
                %1128 = vst [vmem:[%s1046 + $0x140] sm:$0xff] %v1127
                %v1129 = vld [vmem:[%s1045 + $0x148] sm:$0xff]
                %1130 = vst [vmem:[%s1046 + $0x148] sm:$0xff] %v1129
                %v1131 = vld [vmem:[%s1045 + $0x150] sm:$0xff]
                %1132 = vst [vmem:[%s1046 + $0x150] sm:$0xff] %v1131
                %v1133 = vld [vmem:[%s1045 + $0x158] sm:$0xff]
                %1134 = vst [vmem:[%s1046 + $0x158] sm:$0xff] %v1133
                %v1135 = vld [vmem:[%s1045 + $0x160] sm:$0xff]
                %1136 = vst [vmem:[%s1046 + $0x160] sm:$0xff] %v1135
                %v1137 = vld [vmem:[%s1045 + $0x168] sm:$0xff]
                %1138 = vst [vmem:[%s1046 + $0x168] sm:$0xff] %v1137
                %v1139 = vld [vmem:[%s1045 + $0x170] sm:$0xff]
                %1140 = vst [vmem:[%s1046 + $0x170] sm:$0xff] %v1139
                %v1141 = vld [vmem:[%s1045 + $0x178] sm:$0xff]
                %1142 = vst [vmem:[%s1046 + $0x178] sm:$0xff] %v1141
                %v1143 = vld [vmem:[%s1045 + $0x180] sm:$0xff]
                %1144 = vst [vmem:[%s1046 + $0x180] sm:$0xff] %v1143
                %v1145 = vld [vmem:[%s1045 + $0x188] sm:$0xff]
                %1146 = vst [vmem:[%s1046 + $0x188] sm:$0xff] %v1145
                %v1147 = vld [vmem:[%s1045 + $0x190] sm:$0xff]
                %1148 = vst [vmem:[%s1046 + $0x190] sm:$0xff] %v1147
                %v1149 = vld [vmem:[%s1045 + $0x198] sm:$0xff]
                %1150 = vst [vmem:[%s1046 + $0x198] sm:$0xff] %v1149
                %v1151 = vld [vmem:[%s1045 + $0x1a0] sm:$0xff]
                %1152 = vst [vmem:[%s1046 + $0x1a0] sm:$0xff] %v1151
                %v1153 = vld [vmem:[%s1045 + $0x1a8] sm:$0xff]
                %1154 = vst [vmem:[%s1046 + $0x1a8] sm:$0xff] %v1153
                %v1155 = vld [vmem:[%s1045 + $0x1b0] sm:$0xff]
                %1156 = vst [vmem:[%s1046 + $0x1b0] sm:$0xff] %v1155
                %v1157 = vld [vmem:[%s1045 + $0x1b8] sm:$0xff]
                %1158 = vst [vmem:[%s1046 + $0x1b8] sm:$0xff] %v1157
                %v1159 = vld [vmem:[%s1045 + $0x1c0] sm:$0xff]
                %1160 = vst [vmem:[%s1046 + $0x1c0] sm:$0xff] %v1159
                %v1161 = vld [vmem:[%s1045 + $0x1c8] sm:$0xff]
                %1162 = vst [vmem:[%s1046 + $0x1c8] sm:$0xff] %v1161
                %v1163 = vld [vmem:[%s1045 + $0x1d0] sm:$0xff]
                %1164 = vst [vmem:[%s1046 + $0x1d0] sm:$0xff] %v1163
                %v1165 = vld [vmem:[%s1045 + $0x1d8] sm:$0xff]
                %1166 = vst [vmem:[%s1046 + $0x1d8] sm:$0xff] %v1165
                %v1167 = vld [vmem:[%s1045 + $0x1e0] sm:$0xff]
                %1168 = vst [vmem:[%s1046 + $0x1e0] sm:$0xff] %v1167
                %v1169 = vld [vmem:[%s1045 + $0x1e8] sm:$0xff]
                %1170 = vst [vmem:[%s1046 + $0x1e8] sm:$0xff] %v1169
                %v1171 = vld [vmem:[%s1045 + $0x1f0] sm:$0xff]
                %1172 = vst [vmem:[%s1046 + $0x1f0] sm:$0xff] %v1171
                %v1173 = vld [vmem:[%s1045 + $0x1f8] sm:$0xff]
                %1174 = vst [vmem:[%s1046 + $0x1f8] sm:$0xff] %v1173
                %s1175 = sadd.s32 1, %s1044
                %p1176 = scmp.ge.s32.totalorder %s1175, %s1037
                %s1177 = scalar_select %p1176, 0, %s1175
                %s1178 = smul.u32 %s1177, 512
                %s1179 = smul.u32 %s1177, 512
                %s1180 = scalar_lea.vmem %s1017, %s1178 [#allocation2]
                %s1181 = scalar_lea.vmem %s1028, %s1179
              $region53: #{distg_block_forward.11} parent=47 // loop_footer
                %s1041 = sadd.s32 %s1039, 1
              $region54: #{distg_block_forward.11} parent=47 // loop_footer_branch
                %1038 = sbr.rel target = $region50
              $region55: #{distg_block_forward.11} parent=47 // loop_exit
                _
              %s1182 = sshrl.u32 %s1024, 6
              %s1183 = sand.u32 %s1024, 63
              %s1184 = smul.u32 %s1182, 64
              %s1185 = smul.u32 8, %s1184
              %s1186 = scalar_lea.vmem %s1017, %s1185 [#allocation2]
              %s1187 = smul.u32 8, %s1184
              %s1188 = scalar_lea.vmem %s1028, %s1187
              // While loop
              $region56: #{distg_block_forward.11} parent=47 // loop_pre_header
                _
              $region57: #{distg_block_forward.11} parent=47 // loop_header
                %s1190 = sphi 0, %s1192
                %p1191 = scmp.ge.s32.totalorder %s1190, %s1183
                %s1195 = sphi 0, %s1202
                %s1196 = sphi %s1186, %s1205
                %s1197 = sphi %s1188, %s1206
              $region58: #{distg_block_forward.11} parent=47 // loop_header_branch
                %1194 = sbr.rel (%p1191) target = $region62
              $region59: #{distg_block_forward.11} parent=47 // loop_body
                %v1198 = vld [vmem:[%s1196] sm:$0xff]
                %1199 = vst [vmem:[%s1197] sm:$0xff] %v1198
                %s1200 = sadd.s32 1, %s1195
                %p1201 = scmp.ge.s32.totalorder %s1200, %s1183
                %s1202 = scalar_select %p1201, 0, %s1200
                %s1203 = smul.u32 %s1202, 8
                %s1204 = smul.u32 %s1202, 8
                %s1205 = scalar_lea.vmem %s1186, %s1203 [#allocation2]
                %s1206 = scalar_lea.vmem %s1188, %s1204
              $region60: #{distg_block_forward.11} parent=47 // loop_footer
                %s1192 = sadd.s32 %s1190, 1
              $region61: #{distg_block_forward.11} parent=47 // loop_footer_branch
                %1189 = sbr.rel target = $region57
              $region62: #{distg_block_forward.11} parent=47 // loop_exit
                _
            $region48: #{distg_block_forward.11} parent=39 // pred_fallthru
              _
          $region40: #{distg_block_forward.11} parent=35 // pred_fallthru
            _
          %1381 = vnop
        $region36: #{distg_block_forward.11} parent=31 // pred_fallthru
          _
      $region32: #{distg_block_forward.11} parent=5 // pred_fallthru
        _
      %p1382 = scmp.le.s32.totalorder 2, %s9
      // Predicated region
      $region85: #{distg_block_forward.11} parent=5 // pred_check
        %p1383 = pneg %p1382
      $region86: #{distg_block_forward.11} parent=5 // pred_check_branch
        %1385 = sbr.rel (%p1383) target = $region88
      $region87: #{distg_block_forward.11} parent=5 // pred_region
        %s1386 = ssub.s32 %s9, 2
        // Predicated region
        $region89: #{distg_block_forward.11} parent=87 // pred_check
          %p1387 = pneg %p111
        $region90: #{distg_block_forward.11} parent=87 // pred_check_branch
          %1389 = sbr.rel (%p1387) target = $region92
        $region91: #{distg_block_forward.11} parent=87 // pred_region
          %s1390 = sand.u32 %s96, 1
          %s1391 = sand.u32 %s96, 1
          %s1392 = smul.addr %s1391, 512
          %s1393 = scalar_lea.vmem [#allocation2], %s1392
        $region92: #{distg_block_forward.11} parent=87 // pred_fallthru
          _
      $region88: #{distg_block_forward.11} parent=5 // pred_fallthru
        _
    $region6: #{distg_block_forward.11} parent=1 // loop_footer
      %s13 = sadd.s32 1, %s9
    $region7: #{distg_block_forward.11} parent=1 // loop_footer_branch
      %8 = sbr.rel target = $region3
    $region8: #{distg_block_forward.11} parent=1 // loop_exit
      _

</llo_original>
